<compile_context>
chip_gen: v7x
topology: tpu7x:2x2x1
jax: 0.10.0
libtpu: 0.0.40
codegen_flags: <defaults>
</compile_context>

<pallas_src>
import jax
import jax.numpy as jnp
from jax.experimental import pallas as pl
from jax.experimental.pallas import tpu as pltpu

D_MODEL = 128
N_HEADS = 4
HEAD_DIM = D_MODEL // N_HEADS
D_FF = 2048              # PyTorch nn.Transformer default dim_feedforward
FF_CHUNK = 512           # D_FF accumulation chunk (keeps FFN intermediates tiny)
LN_EPS = 1e-5


# ----------------------------- shared numerics -------------------------------

def _mm(a, w):
    """bf16-operand matmul with f32 accumulation (used by kernel AND reference)."""
    return jnp.dot(a.astype(jnp.bfloat16), w.astype(jnp.bfloat16),
                   preferred_element_type=jnp.float32)


def _layernorm(x, g, b):
    mu = jnp.mean(x, axis=-1, keepdims=True)
    var = jnp.mean((x - mu) ** 2, axis=-1, keepdims=True)
    return (x - mu) * jax.lax.rsqrt(var + LN_EPS) * g + b


# ------------------------------ fused kernel ---------------------------------

def fused_temporal_kernel(
    xwin_ref, cw_ref, cb_ref,
    wqkv1, bqkv1, wo1, bo1, g11, be11,
    w11_hbm, b11, w21_hbm, b21, g21, be21,
    wq2, bq2, wkv2, bkv2, wo2, bo2, g12, be12,
    w12_hbm, b12, w22_hbm, b22, g22, be22,
    o_ref,
    w11_vm, w21_vm, w12_vm, w22_vm, dma_sems,
):
    f32 = jnp.float32
    bf16 = jnp.bfloat16
    B = o_ref.shape[0]
    BT = xwin_ref.shape[0]
    T = BT // B

    # ---- kick off FFN weight DMAs immediately; overlap with conv + attention ----
    cp_w11 = pltpu.make_async_copy(w11_hbm, w11_vm, dma_sems.at[0])
    cp_w21 = pltpu.make_async_copy(w21_hbm, w21_vm, dma_sems.at[1])
    cp_w12 = pltpu.make_async_copy(w12_hbm, w12_vm, dma_sems.at[2])
    cp_w22 = pltpu.make_async_copy(w22_hbm, w22_vm, dma_sems.at[3])
    cp_w11.start(); cp_w21.start(); cp_w12.start(); cp_w22.start()

    # ---- Conv1d(k=3, pad=1) + ReLU: single (BT, 3*Cin) @ (3*Cin, 128) matmul ----
    h0 = jnp.maximum(_mm(xwin_ref[...], cw_ref[...]) + cb_ref[...], 0.0)   # (BT, D) f32

    # ---- Encoder layer 1: self-attention over the full sequence ---------------
    qkv = _mm(h0, wqkv1[...]) + bqkv1[...]                 # (BT, 3D); Q already scaled
    rows = []
    for b in range(B):
        r0 = b * T
        heads = []
        for hh in range(N_HEADS):
            c0 = hh * HEAD_DIM
            q = qkv[r0:r0 + T, c0:c0 + HEAD_DIM].astype(bf16)
            k = qkv[r0:r0 + T, D_MODEL + c0:D_MODEL + c0 + HEAD_DIM].astype(bf16)
            v = qkv[r0:r0 + T, 2 * D_MODEL + c0:2 * D_MODEL + c0 + HEAD_DIM].astype(bf16)
            s = jax.lax.dot_general(q, k, (((1,), (1,)), ((), ())),
                                    preferred_element_type=f32)
            s = s - jnp.max(s, axis=-1, keepdims=True)
            p = jnp.exp(s)
            p = p * pl.reciprocal(jnp.sum(p, axis=-1, keepdims=True), approx=True)
            heads.append(jnp.dot(p.astype(bf16), v, preferred_element_type=f32))
        rows.append(jnp.concatenate(heads, axis=-1))       # (T, D) in-register lane concat
    attn1 = _mm(jnp.concatenate(rows, axis=0), wo1[...]) + bo1[...]
    h1 = _layernorm(h0 + attn1, g11[...], be11[...])       # (BT, D) f32

    # ---- Layer-1 FFN: chunked over D_FF, weights arrive via the manual DMA -----
    cp_w11.wait(); cp_w21.wait()
    h1b = h1.astype(bf16)
    ff = jnp.zeros((BT, D_MODEL), f32)
    for c in range(0, D_FF, FF_CHUNK):
        t = jnp.dot(h1b, w11_vm[:, c:c + FF_CHUNK],
                    preferred_element_type=f32) + b11[:, c:c + FF_CHUNK]
        t = jnp.maximum(t, 0.0).astype(bf16)
        ff = ff + jnp.dot(t, w21_vm[c:c + FF_CHUNK, :], preferred_element_type=f32)
    hL1 = _layernorm(h1 + ff + b21[...], g21[...], be21[...])              # (BT, D)

    # ---- Encoder layer 2: only the last time step of each batch is consumed ----
    h_last = jnp.concatenate(
        [hL1[b * T + T - 1:b * T + T, :] for b in range(B)], axis=0)       # (B, D)
    q2 = _mm(h_last, wq2[...]) + bq2[...]                  # (B, D) queries, pre-scaled
    kv2 = _mm(hL1, wkv2[...]) + bkv2[...]                  # (BT, 2D) keys/values (all rows)
    rows2 = []
    for b in range(B):
        r0 = b * T
        heads = []
        for hh in range(N_HEADS):
            c0 = hh * HEAD_DIM
            qh = q2[b:b + 1, c0:c0 + HEAD_DIM].astype(bf16)               # (1, hd)
            kh = kv2[r0:r0 + T, c0:c0 + HEAD_DIM].astype(bf16)
            vh = kv2[r0:r0 + T, D_MODEL + c0:D_MODEL + c0 + HEAD_DIM].astype(bf16)
            s = jax.lax.dot_general(qh, kh, (((1,), (1,)), ((), ())),
                                    preferred_element_type=f32)
            s = s - jnp.max(s, axis=-1, keepdims=True)
            p = jnp.exp(s)
            p = p * pl.reciprocal(jnp.sum(p, axis=-1, keepdims=True), approx=True)
            heads.append(jnp.dot(p.astype(bf16), vh, preferred_element_type=f32))
        rows2.append(jnp.concatenate(heads, axis=-1))                      # (1, D)
    attn2 = _mm(jnp.concatenate(rows2, axis=0), wo2[...]) + bo2[...]       # (B, D)
    h2 = _layernorm(h_last + attn2, g12[...], be12[...])

    # ---- Layer-2 FFN on the B last-token rows only ------------------------------
    cp_w12.wait(); cp_w22.wait()
    h2b = h2.astype(bf16)
    ff2 = jnp.zeros((B, D_MODEL), f32)
    for c in range(0, D_FF, FF_CHUNK):
        t = jnp.dot(h2b, w12_vm[:, c:c + FF_CHUNK],
                    preferred_element_type=f32) + b12[:, c:c + FF_CHUNK]
        t = jnp.maximum(t, 0.0).astype(bf16)
        ff2 = ff2 + jnp.dot(t, w22_vm[c:c + FF_CHUNK, :], preferred_element_type=f32)
    out = _layernorm(h2 + ff2 + b22[...], g22[...], be22[...])             # (B, D)
    o_ref[...] = out.astype(o_ref.dtype)


# ------------------------------ param prep (once) -----------------------------

def prepare_params(params):
    """One-time parameter preparation (reuse the result across calls): bf16 weight
    casts, (1,N) bias reshapes, layer-2 QKV split into Q / KV, and folding the
    1/sqrt(HEAD_DIM) attention scale into the Q projections."""
    bf = lambda a: jnp.asarray(a, jnp.bfloat16)
    row = lambda a: jnp.asarray(a, jnp.float32).reshape(1, -1)
    scale = 1.0 / float(HEAD_DIM) ** 0.5
    p1, p2 = params["layers"]

    qcol = jnp.concatenate([jnp.full((D_MODEL,), scale, jnp.float32),
                            jnp.ones((2 * D_MODEL,), jnp.float32)])
    k3, cin, _ = params["conv_w"].shape

    return {
        "cw": bf(params["conv_w"].reshape(k3 * cin, D_MODEL)),
        "cb": row(params["conv_b"]),
        # layer 1 (Q columns / bias pre-scaled by 1/sqrt(head_dim))
        "wqkv1": bf(p1["wqkv"] * qcol[None, :]), "bqkv1": row(p1["bqkv"] * qcol),
        "wo1": bf(p1["wo"]), "bo1": row(p1["bo"]),
        "g11": row(p1["g1"]), "be11": row(p1["be1"]),
        "w11": bf(p1["w1"]), "b11": row(p1["b1"]),
        "w21": bf(p1["w2"]), "b21": row(p1["b2"]),
        "g21": row(p1["g2"]), "be21": row(p1["be2"]),
        # layer 2 (Q split from K/V so the kernel queries only the last row)
        "wq2": bf(p2["wqkv"][:, :D_MODEL] * scale), "bq2": row(p2["bqkv"][:D_MODEL] * scale),
        "wkv2": bf(p2["wqkv"][:, D_MODEL:]), "bkv2": row(p2["bqkv"][D_MODEL:]),
        "wo2": bf(p2["wo"]), "bo2": row(p2["bo"]),
        "g12": row(p2["g1"]), "be12": row(p2["be1"]),
        "w12": bf(p2["w1"]), "b12": row(p2["b1"]),
        "w22": bf(p2["w2"]), "b22": row(p2["b2"]),
        "g22": row(p2["g2"]), "be22": row(p2["be2"]),
    }


# ------------------------------ wrapper ----------------------------------------

def temporal_layer_forward(x, pp):
    """x: (B, T, Cin) -> (B, 128)   (== PyTorch `encoder(...)[-1]`)."""
    B, T, Cin = x.shape
    BT = B * T

    # Tiny (BT, 3*Cin) shifted-window operand: fuses the 3 conv taps into one in-kernel
    # matmul and handles the zero padding / batch boundaries for free (768 B at B=2,T=8).
    xp = jnp.pad(x.astype(jnp.float32), ((0, 0), (1, 1), (0, 0)))
    xwin = jnp.concatenate([xp[:, 0:T], xp[:, 1:T + 1], xp[:, 2:T + 2]],
                           axis=-1).reshape(BT, 3 * Cin)

    entries = []

    def add(a, hbm=False):
        if hbm:   # big FFN weights stay in HBM; kernel DMAs them manually (overlapped)
            entries.append((a, pl.BlockSpec(memory_space=pl.ANY)))
        else:
            n = a.ndim
            entries.append((a, pl.BlockSpec(a.shape, lambda i, _n=n: (0,) * _n)))

    add(xwin); add(pp["cw"]); add(pp["cb"])
    add(pp["wqkv1"]); add(pp["bqkv1"]); add(pp["wo1"]); add(pp["bo1"])
    add(pp["g11"]); add(pp["be11"])
    add(pp["w11"], hbm=True); add(pp["b11"]); add(pp["w21"], hbm=True); add(pp["b21"])
    add(pp["g21"]); add(pp["be21"])
    add(pp["wq2"]); add(pp["bq2"]); add(pp["wkv2"]); add(pp["bkv2"])
    add(pp["wo2"]); add(pp["bo2"]); add(pp["g12"]); add(pp["be12"])
    add(pp["w12"], hbm=True); add(pp["b12"]); add(pp["w22"], hbm=True); add(pp["b22"])
    add(pp["g22"]); add(pp["be22"])

    inputs = [a for a, _ in entries]
    in_specs = [s for _, s in entries]

    return pl.pallas_call(
        fused_temporal_kernel,
        out_shape=jax.ShapeDtypeStruct((B, D_MODEL), jnp.float32),
        grid_spec=pltpu.PrefetchScalarGridSpec(
            num_scalar_prefetch=0,
            grid=(1,),
            in_specs=in_specs,
            out_specs=pl.BlockSpec((B, D_MODEL), lambda i: (0, 0)),
            scratch_shapes=[
                pltpu.VMEM((D_MODEL, D_FF), jnp.bfloat16),   # w11 landing buffer
                pltpu.VMEM((D_FF, D_MODEL), jnp.bfloat16),   # w21
                pltpu.VMEM((D_MODEL, D_FF), jnp.bfloat16),   # w12
                pltpu.VMEM((D_FF, D_MODEL), jnp.bfloat16),   # w22
                pltpu.SemaphoreType.DMA((4,)),
            ],
        ),
        compiler_params=pltpu.CompilerParams(
            dimension_semantics=("arbitrary",),
        ),
    )(*inputs)


# ----------------------- pure-JAX reference (for checking) -------------------
# Mirrors the kernel's precision policy: bf16 matmul operands, f32 accumulation,
# f32 LayerNorm / softmax / residuals.

def reference_forward(x, params):
    B, T, _ = x.shape
    xp = jnp.pad(x, ((0, 0), (1, 1), (0, 0)))
    h = sum(_mm(xp[:, k:k + T, :], params["conv_w"][k]) for k in range(3))
    h = jax.nn.relu(h + params["conv_b"])
    for p in params["layers"]:
        qkv = _mm(h, p["wqkv"]) + p["bqkv"]
        q, k_, v = jnp.split(qkv, 3, axis=-1)
        q = q.reshape(B, T, N_HEADS, HEAD_DIM)
        k_ = k_.reshape(B, T, N_HEADS, HEAD_DIM)
        v = v.reshape(B, T, N_HEADS, HEAD_DIM)
        s = jnp.einsum("bthd,bshd->bhts", q, k_) / jnp.sqrt(jnp.float32(HEAD_DIM))
        pa = jax.nn.softmax(s, axis=-1)
        a = jnp.einsum("bhts,bshd->bthd", pa, v).reshape(B, T, D_MODEL)
        a = _mm(a, p["wo"]) + p["bo"]
        h1 = _layernorm(h + a, p["g1"], p["be1"])
        f = _mm(jax.nn.relu(_mm(h1, p["w1"]) + p["b1"]), p["w2"]) + p["b2"]
        h = _layernorm(h1 + f, p["g2"], p["be2"])
    return h[:, -1, :]


# ------------------------------ params ---------------------------------------

def init_params(key, in_channels):
    keys = iter(jax.random.split(key, 16))

    def nrm(shape, scale):
        return jax.random.normal(next(keys), shape, jnp.float32) * scale

    params = {
        "conv_w": nrm((3, in_channels, D_MODEL), 0.1),
        "conv_b": jnp.zeros((D_MODEL,), jnp.float32),
        "layers": [],
    }
    for _ in range(2):   # num_encoder_layers=2
        params["layers"].append({
            "wqkv": nrm((D_MODEL, 3 * D_MODEL), 0.05),
            "bqkv": jnp.zeros((3 * D_MODEL,), jnp.float32),
            "wo":   nrm((D_MODEL, D_MODEL), 0.05),
            "bo":   jnp.zeros((D_MODEL,), jnp.float32),
            "g1":   jnp.ones((D_MODEL,), jnp.float32),
            "be1":  jnp.zeros((D_MODEL,), jnp.float32),
            "w1":   nrm((D_MODEL, D_FF), 0.05),
            "b1":   jnp.zeros((D_FF,), jnp.float32),
            "w2":   nrm((D_FF, D_MODEL), 0.05),
            "b2":   jnp.zeros((D_MODEL,), jnp.float32),
            "g2":   jnp.ones((D_MODEL,), jnp.float32),
            "be2":  jnp.zeros((D_MODEL,), jnp.float32),
        })
    return params


# ------------------------------ main ------------------------------------------

if __name__ == "__main__":
    B, T, C_IN = 2, 8, 4            # (batch, seq_length, in_channels)
    key = jax.random.PRNGKey(0)
    kx, kp = jax.random.split(key)
    x = jax.random.normal(kx, (B, T, C_IN), jnp.float32)
    params = init_params(kp, C_IN)

    prepped = prepare_params(params)               # one-time prep, reused every call
    fwd = jax.jit(temporal_layer_forward)

    out = jax.block_until_ready(fwd(x, prepped))
    assert out.shape == (B, D_MODEL)

    ref = jax.block_until_ready(reference_forward(x, params))
    assert jnp.allclose(out, ref, rtol=2e-2, atol=2e-2), "mismatch vs JAX reference"

    print("KERNEL_OK")
</pallas_src>

<mosaic_0001>
module attributes {stable_mosaic.version = 11 : i64} {
  func.func @fused_temporal_kernel(%arg0: i32, %arg1: memref<16x12xf32, #tpu.memory_space<vmem>>, %arg2: memref<12x128xbf16, #tpu.memory_space<vmem>>, %arg3: memref<1x128xf32, #tpu.memory_space<vmem>>, %arg4: memref<128x384xbf16, #tpu.memory_space<vmem>>, %arg5: memref<1x384xf32, #tpu.memory_space<vmem>>, %arg6: memref<128x128xbf16, #tpu.memory_space<vmem>>, %arg7: memref<1x128xf32, #tpu.memory_space<vmem>>, %arg8: memref<1x128xf32, #tpu.memory_space<vmem>>, %arg9: memref<1x128xf32, #tpu.memory_space<vmem>>, %arg10: memref<128x2048xbf16, #tpu.memory_space<any>>, %arg11: memref<1x2048xf32, #tpu.memory_space<vmem>>, %arg12: memref<2048x128xbf16, #tpu.memory_space<any>>, %arg13: memref<1x128xf32, #tpu.memory_space<vmem>>, %arg14: memref<1x128xf32, #tpu.memory_space<vmem>>, %arg15: memref<1x128xf32, #tpu.memory_space<vmem>>, %arg16: memref<128x128xbf16, #tpu.memory_space<vmem>>, %arg17: memref<1x128xf32, #tpu.memory_space<vmem>>, %arg18: memref<128x256xbf16, #tpu.memory_space<vmem>>, %arg19: memref<1x256xf32, #tpu.memory_space<vmem>>, %arg20: memref<128x128xbf16, #tpu.memory_space<vmem>>, %arg21: memref<1x128xf32, #tpu.memory_space<vmem>>, %arg22: memref<1x128xf32, #tpu.memory_space<vmem>>, %arg23: memref<1x128xf32, #tpu.memory_space<vmem>>, %arg24: memref<128x2048xbf16, #tpu.memory_space<any>>, %arg25: memref<1x2048xf32, #tpu.memory_space<vmem>>, %arg26: memref<2048x128xbf16, #tpu.memory_space<any>>, %arg27: memref<1x128xf32, #tpu.memory_space<vmem>>, %arg28: memref<1x128xf32, #tpu.memory_space<vmem>>, %arg29: memref<1x128xf32, #tpu.memory_space<vmem>>, %arg30: memref<2x128xf32, #tpu.memory_space<vmem>>, %arg31: memref<128x2048xbf16, #tpu.memory_space<vmem>>, %arg32: memref<2048x128xbf16, #tpu.memory_space<vmem>>, %arg33: memref<128x2048xbf16, #tpu.memory_space<vmem>>, %arg34: memref<2048x128xbf16, #tpu.memory_space<vmem>>, %arg35: memref<4x!tpu.dma_semaphore, #tpu.memory_space<semaphore_mem>>) attributes {dimension_semantics = [#tpu.dimension_semantics<arbitrary>], iteration_bounds = array<i64: 1>, scalar_prefetch = 0 : i64, scratch_operands = 5 : i64, tpu.core_type = #tpu.core_type<tc>, window_params = [{pipeline_mode = #tpu.pipeline_mode<synchronous>, transform_indices = @transform_0, window_bounds = array<i64: 16, 12>}, {pipeline_mode = #tpu.pipeline_mode<synchronous>, transform_indices = @transform_1, window_bounds = array<i64: 12, 128>}, {pipeline_mode = #tpu.pipeline_mode<synchronous>, transform_indices = @transform_2, window_bounds = array<i64: 1, 128>}, {pipeline_mode = #tpu.pipeline_mode<synchronous>, transform_indices = @transform_3, window_bounds = array<i64: 128, 384>}, {pipeline_mode = #tpu.pipeline_mode<synchronous>, transform_indices = @transform_4, window_bounds = array<i64: 1, 384>}, {pipeline_mode = #tpu.pipeline_mode<synchronous>, transform_indices = @transform_5, window_bounds = array<i64: 128, 128>}, {pipeline_mode = #tpu.pipeline_mode<synchronous>, transform_indices = @transform_6, window_bounds = array<i64: 1, 128>}, {pipeline_mode = #tpu.pipeline_mode<synchronous>, transform_indices = @transform_7, window_bounds = array<i64: 1, 128>}, {pipeline_mode = #tpu.pipeline_mode<synchronous>, transform_indices = @transform_8, window_bounds = array<i64: 1, 128>}, {}, {pipeline_mode = #tpu.pipeline_mode<synchronous>, transform_indices = @transform_10, window_bounds = array<i64: 1, 2048>}, {}, {pipeline_mode = #tpu.pipeline_mode<synchronous>, transform_indices = @transform_12, window_bounds = array<i64: 1, 128>}, {pipeline_mode = #tpu.pipeline_mode<synchronous>, transform_indices = @transform_13, window_bounds = array<i64: 1, 128>}, {pipeline_mode = #tpu.pipeline_mode<synchronous>, transform_indices = @transform_14, window_bounds = array<i64: 1, 128>}, {pipeline_mode = #tpu.pipeline_mode<synchronous>, transform_indices = @transform_15, window_bounds = array<i64: 128, 128>}, {pipeline_mode = #tpu.pipeline_mode<synchronous>, transform_indices = @transform_16, window_bounds = array<i64: 1, 128>}, {pipeline_mode = #tpu.pipeline_mode<synchronous>, transform_indices = @transform_17, window_bounds = array<i64: 128, 256>}, {pipeline_mode = #tpu.pipeline_mode<synchronous>, transform_indices = @transform_18, window_bounds = array<i64: 1, 256>}, {pipeline_mode = #tpu.pipeline_mode<synchronous>, transform_indices = @transform_19, window_bounds = array<i64: 128, 128>}, {pipeline_mode = #tpu.pipeline_mode<synchronous>, transform_indices = @transform_20, window_bounds = array<i64: 1, 128>}, {pipeline_mode = #tpu.pipeline_mode<synchronous>, transform_indices = @transform_21, window_bounds = array<i64: 1, 128>}, {pipeline_mode = #tpu.pipeline_mode<synchronous>, transform_indices = @transform_22, window_bounds = array<i64: 1, 128>}, {}, {pipeline_mode = #tpu.pipeline_mode<synchronous>, transform_indices = @transform_24, window_bounds = array<i64: 1, 2048>}, {}, {pipeline_mode = #tpu.pipeline_mode<synchronous>, transform_indices = @transform_26, window_bounds = array<i64: 1, 128>}, {pipeline_mode = #tpu.pipeline_mode<synchronous>, transform_indices = @transform_27, window_bounds = array<i64: 1, 128>}, {pipeline_mode = #tpu.pipeline_mode<synchronous>, transform_indices = @transform_28, window_bounds = array<i64: 1, 128>}, {pipeline_mode = #tpu.pipeline_mode<synchronous>, transform_indices = @transform_29, window_bounds = array<i64: 2, 128>}]} {
    %c0_i32 = arith.constant 0 : i32
    %0 = tpu.memref_slice %arg35[%c0_i32] : memref<4x!tpu.dma_semaphore, #tpu.memory_space<semaphore_mem>> -> memref<1x!tpu.dma_semaphore, #tpu.memory_space<semaphore_mem>>
    %1 = tpu.memref_squeeze %0 : memref<1x!tpu.dma_semaphore, #tpu.memory_space<semaphore_mem>> -> memref<!tpu.dma_semaphore, #tpu.memory_space<semaphore_mem>>
    tpu.enqueue_dma source(%arg10 : memref<128x2048xbf16, #tpu.memory_space<any>>) target(%arg31 : memref<128x2048xbf16, #tpu.memory_space<vmem>>) target_semaphore(%1 : memref<!tpu.dma_semaphore, #tpu.memory_space<semaphore_mem>>)
    %c1_i32 = arith.constant 1 : i32
    %2 = tpu.memref_slice %arg35[%c1_i32] : memref<4x!tpu.dma_semaphore, #tpu.memory_space<semaphore_mem>> -> memref<1x!tpu.dma_semaphore, #tpu.memory_space<semaphore_mem>>
    %3 = tpu.memref_squeeze %2 : memref<1x!tpu.dma_semaphore, #tpu.memory_space<semaphore_mem>> -> memref<!tpu.dma_semaphore, #tpu.memory_space<semaphore_mem>>
    tpu.enqueue_dma source(%arg12 : memref<2048x128xbf16, #tpu.memory_space<any>>) target(%arg32 : memref<2048x128xbf16, #tpu.memory_space<vmem>>) target_semaphore(%3 : memref<!tpu.dma_semaphore, #tpu.memory_space<semaphore_mem>>)
    %c2_i32 = arith.constant 2 : i32
    %4 = tpu.memref_slice %arg35[%c2_i32] : memref<4x!tpu.dma_semaphore, #tpu.memory_space<semaphore_mem>> -> memref<1x!tpu.dma_semaphore, #tpu.memory_space<semaphore_mem>>
    %5 = tpu.memref_squeeze %4 : memref<1x!tpu.dma_semaphore, #tpu.memory_space<semaphore_mem>> -> memref<!tpu.dma_semaphore, #tpu.memory_space<semaphore_mem>>
    tpu.enqueue_dma source(%arg24 : memref<128x2048xbf16, #tpu.memory_space<any>>) target(%arg33 : memref<128x2048xbf16, #tpu.memory_space<vmem>>) target_semaphore(%5 : memref<!tpu.dma_semaphore, #tpu.memory_space<semaphore_mem>>)
    %c3_i32 = arith.constant 3 : i32
    %6 = tpu.memref_slice %arg35[%c3_i32] : memref<4x!tpu.dma_semaphore, #tpu.memory_space<semaphore_mem>> -> memref<1x!tpu.dma_semaphore, #tpu.memory_space<semaphore_mem>>
    %7 = tpu.memref_squeeze %6 : memref<1x!tpu.dma_semaphore, #tpu.memory_space<semaphore_mem>> -> memref<!tpu.dma_semaphore, #tpu.memory_space<semaphore_mem>>
    tpu.enqueue_dma source(%arg26 : memref<2048x128xbf16, #tpu.memory_space<any>>) target(%arg34 : memref<2048x128xbf16, #tpu.memory_space<vmem>>) target_semaphore(%7 : memref<!tpu.dma_semaphore, #tpu.memory_space<semaphore_mem>>)
    %c0 = arith.constant 0 : index
    %c0_0 = arith.constant 0 : index
    %8 = vector.load %arg1[%c0, %c0_0] : memref<16x12xf32, #tpu.memory_space<vmem>>, vector<16x12xf32>
    %c0_1 = arith.constant 0 : index
    %c0_2 = arith.constant 0 : index
    %9 = vector.load %arg2[%c0_1, %c0_2] : memref<12x128xbf16, #tpu.memory_space<vmem>>, vector<12x128xbf16>
    %10 = arith.truncf %8 : vector<16x12xf32> to vector<16x12xbf16>
    %cst = arith.constant dense<0.000000e+00> : vector<16x128xf32>
    %11 = tpu.matmul %10, %9, %cst {dimension_numbers = #tpu.dot_dimension_numbers<[1], [0], [0], [1], [0, 0, 1, 1], [], []>} : vector<16x12xbf16>, vector<12x128xbf16>, vector<16x128xf32> -> vector<16x128xf32>
    %c0_3 = arith.constant 0 : index
    %c0_4 = arith.constant 0 : index
    %12 = vector.load %arg3[%c0_3, %c0_4] : memref<1x128xf32, #tpu.memory_space<vmem>>, vector<1x128xf32>
    %13 = vector.broadcast %12 : vector<1x128xf32> to vector<16x128xf32>
    %14 = arith.addf %11, %13 : vector<16x128xf32>
    %cst_5 = arith.constant 0.000000e+00 : f32
    %15 = vector.broadcast %cst_5 : f32 to vector<16x128xf32>
    %16 = arith.maximumf %14, %15 : vector<16x128xf32>
    %c0_6 = arith.constant 0 : index
    %c0_7 = arith.constant 0 : index
    %17 = vector.load %arg4[%c0_6, %c0_7] : memref<128x384xbf16, #tpu.memory_space<vmem>>, vector<128x384xbf16>
    %18 = arith.truncf %16 : vector<16x128xf32> to vector<16x128xbf16>
    %cst_8 = arith.constant dense<0.000000e+00> : vector<16x384xf32>
    %19 = tpu.matmul %18, %17, %cst_8 {dimension_numbers = #tpu.dot_dimension_numbers<[1], [0], [0], [1], [0, 0, 1, 1], [], []>} : vector<16x128xbf16>, vector<128x384xbf16>, vector<16x384xf32> -> vector<16x384xf32>
    %c0_9 = arith.constant 0 : index
    %c0_10 = arith.constant 0 : index
    %20 = vector.load %arg5[%c0_9, %c0_10] : memref<1x384xf32, #tpu.memory_space<vmem>>, vector<1x384xf32>
    %21 = vector.broadcast %20 : vector<1x384xf32> to vector<16x384xf32>
    %22 = arith.addf %19, %21 : vector<16x384xf32>
    %23 = vector.extract_strided_slice %22 {offsets = [0, 0], sizes = [8, 32], strides = [1, 1]} : vector<16x384xf32> to vector<8x32xf32>
    %24 = arith.truncf %23 : vector<8x32xf32> to vector<8x32xbf16>
    %25 = vector.extract_strided_slice %22 {offsets = [0, 128], sizes = [8, 32], strides = [1, 1]} : vector<16x384xf32> to vector<8x32xf32>
    %26 = arith.truncf %25 : vector<8x32xf32> to vector<8x32xbf16>
    %27 = vector.extract_strided_slice %22 {offsets = [0, 256], sizes = [8, 32], strides = [1, 1]} : vector<16x384xf32> to vector<8x32xf32>
    %28 = arith.truncf %27 : vector<8x32xf32> to vector<8x32xbf16>
    %cst_11 = arith.constant dense<0.000000e+00> : vector<8x8xf32>
    %29 = tpu.matmul %24, %26, %cst_11 {dimension_numbers = #tpu.dot_dimension_numbers<[1], [1], [0], [0], [0, 0, 1, 0], [], []>} : vector<8x32xbf16>, vector<8x32xbf16>, vector<8x8xf32> -> vector<8x8xf32>
    %cst_12 = arith.constant dense<0xFF800000> : vector<8xf32>
    %30 = vector.multi_reduction <maximumf>, %29, %cst_12 [1] : vector<8x8xf32> to vector<8xf32>
    %31 = vector.shape_cast %30 : vector<8xf32> to vector<8x1xf32>
    %32 = vector.broadcast %31 : vector<8x1xf32> to vector<8x8xf32>
    %33 = arith.subf %29, %32 : vector<8x8xf32>
    %34 = math.exp %33 : vector<8x8xf32>
    %cst_13 = arith.constant dense<0.000000e+00> : vector<8xf32>
    %35 = vector.multi_reduction <add>, %34, %cst_13 [1] : vector<8x8xf32> to vector<8xf32>
    %36 = vector.shape_cast %35 : vector<8xf32> to vector<8x1xf32>
    %37 = tpu.reciprocal %36 {approx = true} : vector<8x1xf32> -> vector<8x1xf32>
    %38 = vector.broadcast %37 : vector<8x1xf32> to vector<8x8xf32>
    %39 = arith.mulf %34, %38 : vector<8x8xf32>
    %40 = arith.truncf %39 : vector<8x8xf32> to vector<8x8xbf16>
    %cst_14 = arith.constant dense<0.000000e+00> : vector<8x32xf32>
    %41 = tpu.matmul %40, %28, %cst_14 {dimension_numbers = #tpu.dot_dimension_numbers<[1], [0], [0], [1], [0, 0, 1, 1], [], []>} : vector<8x8xbf16>, vector<8x32xbf16>, vector<8x32xf32> -> vector<8x32xf32>
    %42 = vector.extract_strided_slice %22 {offsets = [0, 32], sizes = [8, 32], strides = [1, 1]} : vector<16x384xf32> to vector<8x32xf32>
    %43 = arith.truncf %42 : vector<8x32xf32> to vector<8x32xbf16>
    %44 = vector.extract_strided_slice %22 {offsets = [0, 160], sizes = [8, 32], strides = [1, 1]} : vector<16x384xf32> to vector<8x32xf32>
    %45 = arith.truncf %44 : vector<8x32xf32> to vector<8x32xbf16>
    %46 = vector.extract_strided_slice %22 {offsets = [0, 288], sizes = [8, 32], strides = [1, 1]} : vector<16x384xf32> to vector<8x32xf32>
    %47 = arith.truncf %46 : vector<8x32xf32> to vector<8x32xbf16>
    %cst_15 = arith.constant dense<0.000000e+00> : vector<8x8xf32>
    %48 = tpu.matmul %43, %45, %cst_15 {dimension_numbers = #tpu.dot_dimension_numbers<[1], [1], [0], [0], [0, 0, 1, 0], [], []>} : vector<8x32xbf16>, vector<8x32xbf16>, vector<8x8xf32> -> vector<8x8xf32>
    %cst_16 = arith.constant dense<0xFF800000> : vector<8xf32>
    %49 = vector.multi_reduction <maximumf>, %48, %cst_16 [1] : vector<8x8xf32> to vector<8xf32>
    %50 = vector.shape_cast %49 : vector<8xf32> to vector<8x1xf32>
    %51 = vector.broadcast %50 : vector<8x1xf32> to vector<8x8xf32>
    %52 = arith.subf %48, %51 : vector<8x8xf32>
    %53 = math.exp %52 : vector<8x8xf32>
    %cst_17 = arith.constant dense<0.000000e+00> : vector<8xf32>
    %54 = vector.multi_reduction <add>, %53, %cst_17 [1] : vector<8x8xf32> to vector<8xf32>
    %55 = vector.shape_cast %54 : vector<8xf32> to vector<8x1xf32>
    %56 = tpu.reciprocal %55 {approx = true} : vector<8x1xf32> -> vector<8x1xf32>
    %57 = vector.broadcast %56 : vector<8x1xf32> to vector<8x8xf32>
    %58 = arith.mulf %53, %57 : vector<8x8xf32>
    %59 = arith.truncf %58 : vector<8x8xf32> to vector<8x8xbf16>
    %cst_18 = arith.constant dense<0.000000e+00> : vector<8x32xf32>
    %60 = tpu.matmul %59, %47, %cst_18 {dimension_numbers = #tpu.dot_dimension_numbers<[1], [0], [0], [1], [0, 0, 1, 1], [], []>} : vector<8x8xbf16>, vector<8x32xbf16>, vector<8x32xf32> -> vector<8x32xf32>
    %61 = vector.extract_strided_slice %22 {offsets = [0, 64], sizes = [8, 32], strides = [1, 1]} : vector<16x384xf32> to vector<8x32xf32>
    %62 = arith.truncf %61 : vector<8x32xf32> to vector<8x32xbf16>
    %63 = vector.extract_strided_slice %22 {offsets = [0, 192], sizes = [8, 32], strides = [1, 1]} : vector<16x384xf32> to vector<8x32xf32>
    %64 = arith.truncf %63 : vector<8x32xf32> to vector<8x32xbf16>
    %65 = vector.extract_strided_slice %22 {offsets = [0, 320], sizes = [8, 32], strides = [1, 1]} : vector<16x384xf32> to vector<8x32xf32>
    %66 = arith.truncf %65 : vector<8x32xf32> to vector<8x32xbf16>
    %cst_19 = arith.constant dense<0.000000e+00> : vector<8x8xf32>
    %67 = tpu.matmul %62, %64, %cst_19 {dimension_numbers = #tpu.dot_dimension_numbers<[1], [1], [0], [0], [0, 0, 1, 0], [], []>} : vector<8x32xbf16>, vector<8x32xbf16>, vector<8x8xf32> -> vector<8x8xf32>
    %cst_20 = arith.constant dense<0xFF800000> : vector<8xf32>
    %68 = vector.multi_reduction <maximumf>, %67, %cst_20 [1] : vector<8x8xf32> to vector<8xf32>
    %69 = vector.shape_cast %68 : vector<8xf32> to vector<8x1xf32>
    %70 = vector.broadcast %69 : vector<8x1xf32> to vector<8x8xf32>
    %71 = arith.subf %67, %70 : vector<8x8xf32>
    %72 = math.exp %71 : vector<8x8xf32>
    %cst_21 = arith.constant dense<0.000000e+00> : vector<8xf32>
    %73 = vector.multi_reduction <add>, %72, %cst_21 [1] : vector<8x8xf32> to vector<8xf32>
    %74 = vector.shape_cast %73 : vector<8xf32> to vector<8x1xf32>
    %75 = tpu.reciprocal %74 {approx = true} : vector<8x1xf32> -> vector<8x1xf32>
    %76 = vector.broadcast %75 : vector<8x1xf32> to vector<8x8xf32>
    %77 = arith.mulf %72, %76 : vector<8x8xf32>
    %78 = arith.truncf %77 : vector<8x8xf32> to vector<8x8xbf16>
    %cst_22 = arith.constant dense<0.000000e+00> : vector<8x32xf32>
    %79 = tpu.matmul %78, %66, %cst_22 {dimension_numbers = #tpu.dot_dimension_numbers<[1], [0], [0], [1], [0, 0, 1, 1], [], []>} : vector<8x8xbf16>, vector<8x32xbf16>, vector<8x32xf32> -> vector<8x32xf32>
    %80 = vector.extract_strided_slice %22 {offsets = [0, 96], sizes = [8, 32], strides = [1, 1]} : vector<16x384xf32> to vector<8x32xf32>
    %81 = arith.truncf %80 : vector<8x32xf32> to vector<8x32xbf16>
    %82 = vector.extract_strided_slice %22 {offsets = [0, 224], sizes = [8, 32], strides = [1, 1]} : vector<16x384xf32> to vector<8x32xf32>
    %83 = arith.truncf %82 : vector<8x32xf32> to vector<8x32xbf16>
    %84 = vector.extract_strided_slice %22 {offsets = [0, 352], sizes = [8, 32], strides = [1, 1]} : vector<16x384xf32> to vector<8x32xf32>
    %85 = arith.truncf %84 : vector<8x32xf32> to vector<8x32xbf16>
    %cst_23 = arith.constant dense<0.000000e+00> : vector<8x8xf32>
    %86 = tpu.matmul %81, %83, %cst_23 {dimension_numbers = #tpu.dot_dimension_numbers<[1], [1], [0], [0], [0, 0, 1, 0], [], []>} : vector<8x32xbf16>, vector<8x32xbf16>, vector<8x8xf32> -> vector<8x8xf32>
    %cst_24 = arith.constant dense<0xFF800000> : vector<8xf32>
    %87 = vector.multi_reduction <maximumf>, %86, %cst_24 [1] : vector<8x8xf32> to vector<8xf32>
    %88 = vector.shape_cast %87 : vector<8xf32> to vector<8x1xf32>
    %89 = vector.broadcast %88 : vector<8x1xf32> to vector<8x8xf32>
    %90 = arith.subf %86, %89 : vector<8x8xf32>
    %91 = math.exp %90 : vector<8x8xf32>
    %cst_25 = arith.constant dense<0.000000e+00> : vector<8xf32>
    %92 = vector.multi_reduction <add>, %91, %cst_25 [1] : vector<8x8xf32> to vector<8xf32>
    %93 = vector.shape_cast %92 : vector<8xf32> to vector<8x1xf32>
    %94 = tpu.reciprocal %93 {approx = true} : vector<8x1xf32> -> vector<8x1xf32>
    %95 = vector.broadcast %94 : vector<8x1xf32> to vector<8x8xf32>
    %96 = arith.mulf %91, %95 : vector<8x8xf32>
    %97 = arith.truncf %96 : vector<8x8xf32> to vector<8x8xbf16>
    %cst_26 = arith.constant dense<0.000000e+00> : vector<8x32xf32>
    %98 = tpu.matmul %97, %85, %cst_26 {dimension_numbers = #tpu.dot_dimension_numbers<[1], [0], [0], [1], [0, 0, 1, 1], [], []>} : vector<8x8xbf16>, vector<8x32xbf16>, vector<8x32xf32> -> vector<8x32xf32>
    %99 = tpu.concatenate %41, %60, %79, %98 in 1 : vector<8x32xf32>, vector<8x32xf32>, vector<8x32xf32>, vector<8x32xf32> -> vector<8x128xf32>
    %100 = vector.extract_strided_slice %22 {offsets = [8, 0], sizes = [8, 32], strides = [1, 1]} : vector<16x384xf32> to vector<8x32xf32>
    %101 = arith.truncf %100 : vector<8x32xf32> to vector<8x32xbf16>
    %102 = vector.extract_strided_slice %22 {offsets = [8, 128], sizes = [8, 32], strides = [1, 1]} : vector<16x384xf32> to vector<8x32xf32>
    %103 = arith.truncf %102 : vector<8x32xf32> to vector<8x32xbf16>
    %104 = vector.extract_strided_slice %22 {offsets = [8, 256], sizes = [8, 32], strides = [1, 1]} : vector<16x384xf32> to vector<8x32xf32>
    %105 = arith.truncf %104 : vector<8x32xf32> to vector<8x32xbf16>
    %cst_27 = arith.constant dense<0.000000e+00> : vector<8x8xf32>
    %106 = tpu.matmul %101, %103, %cst_27 {dimension_numbers = #tpu.dot_dimension_numbers<[1], [1], [0], [0], [0, 0, 1, 0], [], []>} : vector<8x32xbf16>, vector<8x32xbf16>, vector<8x8xf32> -> vector<8x8xf32>
    %cst_28 = arith.constant dense<0xFF800000> : vector<8xf32>
    %107 = vector.multi_reduction <maximumf>, %106, %cst_28 [1] : vector<8x8xf32> to vector<8xf32>
    %108 = vector.shape_cast %107 : vector<8xf32> to vector<8x1xf32>
    %109 = vector.broadcast %108 : vector<8x1xf32> to vector<8x8xf32>
    %110 = arith.subf %106, %109 : vector<8x8xf32>
    %111 = math.exp %110 : vector<8x8xf32>
    %cst_29 = arith.constant dense<0.000000e+00> : vector<8xf32>
    %112 = vector.multi_reduction <add>, %111, %cst_29 [1] : vector<8x8xf32> to vector<8xf32>
    %113 = vector.shape_cast %112 : vector<8xf32> to vector<8x1xf32>
    %114 = tpu.reciprocal %113 {approx = true} : vector<8x1xf32> -> vector<8x1xf32>
    %115 = vector.broadcast %114 : vector<8x1xf32> to vector<8x8xf32>
    %116 = arith.mulf %111, %115 : vector<8x8xf32>
    %117 = arith.truncf %116 : vector<8x8xf32> to vector<8x8xbf16>
    %cst_30 = arith.constant dense<0.000000e+00> : vector<8x32xf32>
    %118 = tpu.matmul %117, %105, %cst_30 {dimension_numbers = #tpu.dot_dimension_numbers<[1], [0], [0], [1], [0, 0, 1, 1], [], []>} : vector<8x8xbf16>, vector<8x32xbf16>, vector<8x32xf32> -> vector<8x32xf32>
    %119 = vector.extract_strided_slice %22 {offsets = [8, 32], sizes = [8, 32], strides = [1, 1]} : vector<16x384xf32> to vector<8x32xf32>
    %120 = arith.truncf %119 : vector<8x32xf32> to vector<8x32xbf16>
    %121 = vector.extract_strided_slice %22 {offsets = [8, 160], sizes = [8, 32], strides = [1, 1]} : vector<16x384xf32> to vector<8x32xf32>
    %122 = arith.truncf %121 : vector<8x32xf32> to vector<8x32xbf16>
    %123 = vector.extract_strided_slice %22 {offsets = [8, 288], sizes = [8, 32], strides = [1, 1]} : vector<16x384xf32> to vector<8x32xf32>
    %124 = arith.truncf %123 : vector<8x32xf32> to vector<8x32xbf16>
    %cst_31 = arith.constant dense<0.000000e+00> : vector<8x8xf32>
    %125 = tpu.matmul %120, %122, %cst_31 {dimension_numbers = #tpu.dot_dimension_numbers<[1], [1], [0], [0], [0, 0, 1, 0], [], []>} : vector<8x32xbf16>, vector<8x32xbf16>, vector<8x8xf32> -> vector<8x8xf32>
    %cst_32 = arith.constant dense<0xFF800000> : vector<8xf32>
    %126 = vector.multi_reduction <maximumf>, %125, %cst_32 [1] : vector<8x8xf32> to vector<8xf32>
    %127 = vector.shape_cast %126 : vector<8xf32> to vector<8x1xf32>
    %128 = vector.broadcast %127 : vector<8x1xf32> to vector<8x8xf32>
    %129 = arith.subf %125, %128 : vector<8x8xf32>
    %130 = math.exp %129 : vector<8x8xf32>
    %cst_33 = arith.constant dense<0.000000e+00> : vector<8xf32>
    %131 = vector.multi_reduction <add>, %130, %cst_33 [1] : vector<8x8xf32> to vector<8xf32>
    %132 = vector.shape_cast %131 : vector<8xf32> to vector<8x1xf32>
    %133 = tpu.reciprocal %132 {approx = true} : vector<8x1xf32> -> vector<8x1xf32>
    %134 = vector.broadcast %133 : vector<8x1xf32> to vector<8x8xf32>
    %135 = arith.mulf %130, %134 : vector<8x8xf32>
    %136 = arith.truncf %135 : vector<8x8xf32> to vector<8x8xbf16>
    %cst_34 = arith.constant dense<0.000000e+00> : vector<8x32xf32>
    %137 = tpu.matmul %136, %124, %cst_34 {dimension_numbers = #tpu.dot_dimension_numbers<[1], [0], [0], [1], [0, 0, 1, 1], [], []>} : vector<8x8xbf16>, vector<8x32xbf16>, vector<8x32xf32> -> vector<8x32xf32>
    %138 = vector.extract_strided_slice %22 {offsets = [8, 64], sizes = [8, 32], strides = [1, 1]} : vector<16x384xf32> to vector<8x32xf32>
    %139 = arith.truncf %138 : vector<8x32xf32> to vector<8x32xbf16>
    %140 = vector.extract_strided_slice %22 {offsets = [8, 192], sizes = [8, 32], strides = [1, 1]} : vector<16x384xf32> to vector<8x32xf32>
    %141 = arith.truncf %140 : vector<8x32xf32> to vector<8x32xbf16>
    %142 = vector.extract_strided_slice %22 {offsets = [8, 320], sizes = [8, 32], strides = [1, 1]} : vector<16x384xf32> to vector<8x32xf32>
    %143 = arith.truncf %142 : vector<8x32xf32> to vector<8x32xbf16>
    %cst_35 = arith.constant dense<0.000000e+00> : vector<8x8xf32>
    %144 = tpu.matmul %139, %141, %cst_35 {dimension_numbers = #tpu.dot_dimension_numbers<[1], [1], [0], [0], [0, 0, 1, 0], [], []>} : vector<8x32xbf16>, vector<8x32xbf16>, vector<8x8xf32> -> vector<8x8xf32>
    %cst_36 = arith.constant dense<0xFF800000> : vector<8xf32>
    %145 = vector.multi_reduction <maximumf>, %144, %cst_36 [1] : vector<8x8xf32> to vector<8xf32>
    %146 = vector.shape_cast %145 : vector<8xf32> to vector<8x1xf32>
    %147 = vector.broadcast %146 : vector<8x1xf32> to vector<8x8xf32>
    %148 = arith.subf %144, %147 : vector<8x8xf32>
    %149 = math.exp %148 : vector<8x8xf32>
    %cst_37 = arith.constant dense<0.000000e+00> : vector<8xf32>
    %150 = vector.multi_reduction <add>, %149, %cst_37 [1] : vector<8x8xf32> to vector<8xf32>
    %151 = vector.shape_cast %150 : vector<8xf32> to vector<8x1xf32>
    %152 = tpu.reciprocal %151 {approx = true} : vector<8x1xf32> -> vector<8x1xf32>
    %153 = vector.broadcast %152 : vector<8x1xf32> to vector<8x8xf32>
    %154 = arith.mulf %149, %153 : vector<8x8xf32>
    %155 = arith.truncf %154 : vector<8x8xf32> to vector<8x8xbf16>
    %cst_38 = arith.constant dense<0.000000e+00> : vector<8x32xf32>
    %156 = tpu.matmul %155, %143, %cst_38 {dimension_numbers = #tpu.dot_dimension_numbers<[1], [0], [0], [1], [0, 0, 1, 1], [], []>} : vector<8x8xbf16>, vector<8x32xbf16>, vector<8x32xf32> -> vector<8x32xf32>
    %157 = vector.extract_strided_slice %22 {offsets = [8, 96], sizes = [8, 32], strides = [1, 1]} : vector<16x384xf32> to vector<8x32xf32>
    %158 = arith.truncf %157 : vector<8x32xf32> to vector<8x32xbf16>
    %159 = vector.extract_strided_slice %22 {offsets = [8, 224], sizes = [8, 32], strides = [1, 1]} : vector<16x384xf32> to vector<8x32xf32>
    %160 = arith.truncf %159 : vector<8x32xf32> to vector<8x32xbf16>
    %161 = vector.extract_strided_slice %22 {offsets = [8, 352], sizes = [8, 32], strides = [1, 1]} : vector<16x384xf32> to vector<8x32xf32>
    %162 = arith.truncf %161 : vector<8x32xf32> to vector<8x32xbf16>
    %cst_39 = arith.constant dense<0.000000e+00> : vector<8x8xf32>
    %163 = tpu.matmul %158, %160, %cst_39 {dimension_numbers = #tpu.dot_dimension_numbers<[1], [1], [0], [0], [0, 0, 1, 0], [], []>} : vector<8x32xbf16>, vector<8x32xbf16>, vector<8x8xf32> -> vector<8x8xf32>
    %cst_40 = arith.constant dense<0xFF800000> : vector<8xf32>
    %164 = vector.multi_reduction <maximumf>, %163, %cst_40 [1] : vector<8x8xf32> to vector<8xf32>
    %165 = vector.shape_cast %164 : vector<8xf32> to vector<8x1xf32>
    %166 = vector.broadcast %165 : vector<8x1xf32> to vector<8x8xf32>
    %167 = arith.subf %163, %166 : vector<8x8xf32>
    %168 = math.exp %167 : vector<8x8xf32>
    %cst_41 = arith.constant dense<0.000000e+00> : vector<8xf32>
    %169 = vector.multi_reduction <add>, %168, %cst_41 [1] : vector<8x8xf32> to vector<8xf32>
    %170 = vector.shape_cast %169 : vector<8xf32> to vector<8x1xf32>
    %171 = tpu.reciprocal %170 {approx = true} : vector<8x1xf32> -> vector<8x1xf32>
    %172 = vector.broadcast %171 : vector<8x1xf32> to vector<8x8xf32>
    %173 = arith.mulf %168, %172 : vector<8x8xf32>
    %174 = arith.truncf %173 : vector<8x8xf32> to vector<8x8xbf16>
    %cst_42 = arith.constant dense<0.000000e+00> : vector<8x32xf32>
    %175 = tpu.matmul %174, %162, %cst_42 {dimension_numbers = #tpu.dot_dimension_numbers<[1], [0], [0], [1], [0, 0, 1, 1], [], []>} : vector<8x8xbf16>, vector<8x32xbf16>, vector<8x32xf32> -> vector<8x32xf32>
    %176 = tpu.concatenate %118, %137, %156, %175 in 1 : vector<8x32xf32>, vector<8x32xf32>, vector<8x32xf32>, vector<8x32xf32> -> vector<8x128xf32>
    %177 = tpu.concatenate %99, %176 in 0 : vector<8x128xf32>, vector<8x128xf32> -> vector<16x128xf32>
    %c0_43 = arith.constant 0 : index
    %c0_44 = arith.constant 0 : index
    %178 = vector.load %arg6[%c0_43, %c0_44] : memref<128x128xbf16, #tpu.memory_space<vmem>>, vector<128x128xbf16>
    %179 = arith.truncf %177 : vector<16x128xf32> to vector<16x128xbf16>
    %cst_45 = arith.constant dense<0.000000e+00> : vector<16x128xf32>
    %180 = tpu.matmul %179, %178, %cst_45 {dimension_numbers = #tpu.dot_dimension_numbers<[1], [0], [0], [1], [0, 0, 1, 1], [], []>} : vector<16x128xbf16>, vector<128x128xbf16>, vector<16x128xf32> -> vector<16x128xf32>
    %c0_46 = arith.constant 0 : index
    %c0_47 = arith.constant 0 : index
    %181 = vector.load %arg7[%c0_46, %c0_47] : memref<1x128xf32, #tpu.memory_space<vmem>>, vector<1x128xf32>
    %182 = vector.broadcast %181 : vector<1x128xf32> to vector<16x128xf32>
    %183 = arith.addf %180, %182 : vector<16x128xf32>
    %184 = arith.addf %16, %183 : vector<16x128xf32>
    %c0_48 = arith.constant 0 : index
    %c0_49 = arith.constant 0 : index
    %185 = vector.load %arg8[%c0_48, %c0_49] : memref<1x128xf32, #tpu.memory_space<vmem>>, vector<1x128xf32>
    %c0_50 = arith.constant 0 : index
    %c0_51 = arith.constant 0 : index
    %186 = vector.load %arg9[%c0_50, %c0_51] : memref<1x128xf32, #tpu.memory_space<vmem>>, vector<1x128xf32>
    %cst_52 = arith.constant dense<0.000000e+00> : vector<16xf32>
    %187 = vector.multi_reduction <add>, %184, %cst_52 [1] : vector<16x128xf32> to vector<16xf32>
    %188 = vector.shape_cast %187 : vector<16xf32> to vector<16x1xf32>
    %cst_53 = arith.constant 1.280000e+02 : f32
    %189 = vector.broadcast %cst_53 : f32 to vector<16x1xf32>
    %190 = arith.divf %188, %189 : vector<16x1xf32>
    %191 = vector.broadcast %190 : vector<16x1xf32> to vector<16x128xf32>
    %192 = arith.subf %184, %191 : vector<16x128xf32>
    %193 = arith.mulf %192, %192 : vector<16x128xf32>
    %cst_54 = arith.constant dense<0.000000e+00> : vector<16xf32>
    %194 = vector.multi_reduction <add>, %193, %cst_54 [1] : vector<16x128xf32> to vector<16xf32>
    %195 = vector.shape_cast %194 : vector<16xf32> to vector<16x1xf32>
    %cst_55 = arith.constant 1.280000e+02 : f32
    %196 = vector.broadcast %cst_55 : f32 to vector<16x1xf32>
    %197 = arith.divf %195, %196 : vector<16x1xf32>
    %198 = vector.broadcast %190 : vector<16x1xf32> to vector<16x128xf32>
    %199 = arith.subf %184, %198 : vector<16x128xf32>
    %cst_56 = arith.constant 9.99999974E-6 : f32
    %200 = vector.broadcast %cst_56 : f32 to vector<16x1xf32>
    %201 = arith.addf %197, %200 : vector<16x1xf32>
    %202 = math.rsqrt %201 : vector<16x1xf32>
    %203 = vector.broadcast %202 : vector<16x1xf32> to vector<16x128xf32>
    %204 = arith.mulf %199, %203 : vector<16x128xf32>
    %205 = vector.broadcast %185 : vector<1x128xf32> to vector<16x128xf32>
    %206 = arith.mulf %204, %205 : vector<16x128xf32>
    %207 = vector.broadcast %186 : vector<1x128xf32> to vector<16x128xf32>
    %208 = arith.addf %206, %207 : vector<16x128xf32>
    %c0_i32_57 = arith.constant 0 : i32
    %209 = tpu.memref_slice %arg35[%c0_i32_57] : memref<4x!tpu.dma_semaphore, #tpu.memory_space<semaphore_mem>> -> memref<1x!tpu.dma_semaphore, #tpu.memory_space<semaphore_mem>>
    %210 = tpu.memref_squeeze %209 : memref<1x!tpu.dma_semaphore, #tpu.memory_space<semaphore_mem>> -> memref<!tpu.dma_semaphore, #tpu.memory_space<semaphore_mem>>
    tpu.wait_dma2 semaphore(%210 : memref<!tpu.dma_semaphore, #tpu.memory_space<semaphore_mem>>) src(%arg10 : memref<128x2048xbf16, #tpu.memory_space<any>>) dst(%arg31 : memref<128x2048xbf16, #tpu.memory_space<vmem>>)
    %c1_i32_58 = arith.constant 1 : i32
    %211 = tpu.memref_slice %arg35[%c1_i32_58] : memref<4x!tpu.dma_semaphore, #tpu.memory_space<semaphore_mem>> -> memref<1x!tpu.dma_semaphore, #tpu.memory_space<semaphore_mem>>
    %212 = tpu.memref_squeeze %211 : memref<1x!tpu.dma_semaphore, #tpu.memory_space<semaphore_mem>> -> memref<!tpu.dma_semaphore, #tpu.memory_space<semaphore_mem>>
    tpu.wait_dma2 semaphore(%212 : memref<!tpu.dma_semaphore, #tpu.memory_space<semaphore_mem>>) src(%arg12 : memref<2048x128xbf16, #tpu.memory_space<any>>) dst(%arg32 : memref<2048x128xbf16, #tpu.memory_space<vmem>>)
    %213 = arith.truncf %208 : vector<16x128xf32> to vector<16x128xbf16>
    %cst_59 = arith.constant 0.000000e+00 : f32
    %214 = vector.broadcast %cst_59 : f32 to vector<16x128xf32>
    %c0_60 = arith.constant 0 : index
    %c0_61 = arith.constant 0 : index
    %215 = vector.load %arg31[%c0_60, %c0_61] : memref<128x2048xbf16, #tpu.memory_space<vmem>>, vector<128x512xbf16>
    %cst_62 = arith.constant dense<0.000000e+00> : vector<16x512xf32>
    %216 = tpu.matmul %213, %215, %cst_62 {dimension_numbers = #tpu.dot_dimension_numbers<[1], [0], [0], [1], [0, 0, 1, 1], [], []>} : vector<16x128xbf16>, vector<128x512xbf16>, vector<16x512xf32> -> vector<16x512xf32>
    %c0_63 = arith.constant 0 : index
    %c0_64 = arith.constant 0 : index
    %217 = vector.load %arg11[%c0_63, %c0_64] : memref<1x2048xf32, #tpu.memory_space<vmem>>, vector<1x512xf32>
    %218 = vector.broadcast %217 : vector<1x512xf32> to vector<16x512xf32>
    %219 = arith.addf %216, %218 : vector<16x512xf32>
    %cst_65 = arith.constant 0.000000e+00 : f32
    %220 = vector.broadcast %cst_65 : f32 to vector<16x512xf32>
    %221 = arith.maximumf %219, %220 : vector<16x512xf32>
    %222 = arith.truncf %221 : vector<16x512xf32> to vector<16x512xbf16>
    %c0_66 = arith.constant 0 : index
    %c0_67 = arith.constant 0 : index
    %223 = vector.load %arg32[%c0_66, %c0_67] : memref<2048x128xbf16, #tpu.memory_space<vmem>>, vector<512x128xbf16>
    %cst_68 = arith.constant dense<0.000000e+00> : vector<16x128xf32>
    %224 = tpu.matmul %222, %223, %cst_68 {dimension_numbers = #tpu.dot_dimension_numbers<[1], [0], [0], [1], [0, 0, 1, 1], [], []>} : vector<16x512xbf16>, vector<512x128xbf16>, vector<16x128xf32> -> vector<16x128xf32>
    %225 = arith.addf %214, %224 : vector<16x128xf32>
    %c0_69 = arith.constant 0 : index
    %c512 = arith.constant 512 : index
    %226 = vector.load %arg31[%c0_69, %c512] : memref<128x2048xbf16, #tpu.memory_space<vmem>>, vector<128x512xbf16>
    %cst_70 = arith.constant dense<0.000000e+00> : vector<16x512xf32>
    %227 = tpu.matmul %213, %226, %cst_70 {dimension_numbers = #tpu.dot_dimension_numbers<[1], [0], [0], [1], [0, 0, 1, 1], [], []>} : vector<16x128xbf16>, vector<128x512xbf16>, vector<16x512xf32> -> vector<16x512xf32>
    %c0_71 = arith.constant 0 : index
    %c512_72 = arith.constant 512 : index
    %228 = vector.load %arg11[%c0_71, %c512_72] : memref<1x2048xf32, #tpu.memory_space<vmem>>, vector<1x512xf32>
    %229 = vector.broadcast %228 : vector<1x512xf32> to vector<16x512xf32>
    %230 = arith.addf %227, %229 : vector<16x512xf32>
    %cst_73 = arith.constant 0.000000e+00 : f32
    %231 = vector.broadcast %cst_73 : f32 to vector<16x512xf32>
    %232 = arith.maximumf %230, %231 : vector<16x512xf32>
    %233 = arith.truncf %232 : vector<16x512xf32> to vector<16x512xbf16>
    %c512_74 = arith.constant 512 : index
    %c0_75 = arith.constant 0 : index
    %234 = vector.load %arg32[%c512_74, %c0_75] : memref<2048x128xbf16, #tpu.memory_space<vmem>>, vector<512x128xbf16>
    %cst_76 = arith.constant dense<0.000000e+00> : vector<16x128xf32>
    %235 = tpu.matmul %233, %234, %cst_76 {dimension_numbers = #tpu.dot_dimension_numbers<[1], [0], [0], [1], [0, 0, 1, 1], [], []>} : vector<16x512xbf16>, vector<512x128xbf16>, vector<16x128xf32> -> vector<16x128xf32>
    %236 = arith.addf %225, %235 : vector<16x128xf32>
    %c0_77 = arith.constant 0 : index
    %c1024 = arith.constant 1024 : index
    %237 = vector.load %arg31[%c0_77, %c1024] : memref<128x2048xbf16, #tpu.memory_space<vmem>>, vector<128x512xbf16>
    %cst_78 = arith.constant dense<0.000000e+00> : vector<16x512xf32>
    %238 = tpu.matmul %213, %237, %cst_78 {dimension_numbers = #tpu.dot_dimension_numbers<[1], [0], [0], [1], [0, 0, 1, 1], [], []>} : vector<16x128xbf16>, vector<128x512xbf16>, vector<16x512xf32> -> vector<16x512xf32>
    %c0_79 = arith.constant 0 : index
    %c1024_80 = arith.constant 1024 : index
    %239 = vector.load %arg11[%c0_79, %c1024_80] : memref<1x2048xf32, #tpu.memory_space<vmem>>, vector<1x512xf32>
    %240 = vector.broadcast %239 : vector<1x512xf32> to vector<16x512xf32>
    %241 = arith.addf %238, %240 : vector<16x512xf32>
    %cst_81 = arith.constant 0.000000e+00 : f32
    %242 = vector.broadcast %cst_81 : f32 to vector<16x512xf32>
    %243 = arith.maximumf %241, %242 : vector<16x512xf32>
    %244 = arith.truncf %243 : vector<16x512xf32> to vector<16x512xbf16>
    %c1024_82 = arith.constant 1024 : index
    %c0_83 = arith.constant 0 : index
    %245 = vector.load %arg32[%c1024_82, %c0_83] : memref<2048x128xbf16, #tpu.memory_space<vmem>>, vector<512x128xbf16>
    %cst_84 = arith.constant dense<0.000000e+00> : vector<16x128xf32>
    %246 = tpu.matmul %244, %245, %cst_84 {dimension_numbers = #tpu.dot_dimension_numbers<[1], [0], [0], [1], [0, 0, 1, 1], [], []>} : vector<16x512xbf16>, vector<512x128xbf16>, vector<16x128xf32> -> vector<16x128xf32>
    %247 = arith.addf %236, %246 : vector<16x128xf32>
    %c0_85 = arith.constant 0 : index
    %c1536 = arith.constant 1536 : index
    %248 = vector.load %arg31[%c0_85, %c1536] : memref<128x2048xbf16, #tpu.memory_space<vmem>>, vector<128x512xbf16>
    %cst_86 = arith.constant dense<0.000000e+00> : vector<16x512xf32>
    %249 = tpu.matmul %213, %248, %cst_86 {dimension_numbers = #tpu.dot_dimension_numbers<[1], [0], [0], [1], [0, 0, 1, 1], [], []>} : vector<16x128xbf16>, vector<128x512xbf16>, vector<16x512xf32> -> vector<16x512xf32>
    %c0_87 = arith.constant 0 : index
    %c1536_88 = arith.constant 1536 : index
    %250 = vector.load %arg11[%c0_87, %c1536_88] : memref<1x2048xf32, #tpu.memory_space<vmem>>, vector<1x512xf32>
    %251 = vector.broadcast %250 : vector<1x512xf32> to vector<16x512xf32>
    %252 = arith.addf %249, %251 : vector<16x512xf32>
    %cst_89 = arith.constant 0.000000e+00 : f32
    %253 = vector.broadcast %cst_89 : f32 to vector<16x512xf32>
    %254 = arith.maximumf %252, %253 : vector<16x512xf32>
    %255 = arith.truncf %254 : vector<16x512xf32> to vector<16x512xbf16>
    %c1536_90 = arith.constant 1536 : index
    %c0_91 = arith.constant 0 : index
    %256 = vector.load %arg32[%c1536_90, %c0_91] : memref<2048x128xbf16, #tpu.memory_space<vmem>>, vector<512x128xbf16>
    %cst_92 = arith.constant dense<0.000000e+00> : vector<16x128xf32>
    %257 = tpu.matmul %255, %256, %cst_92 {dimension_numbers = #tpu.dot_dimension_numbers<[1], [0], [0], [1], [0, 0, 1, 1], [], []>} : vector<16x512xbf16>, vector<512x128xbf16>, vector<16x128xf32> -> vector<16x128xf32>
    %258 = arith.addf %247, %257 : vector<16x128xf32>
    %259 = arith.addf %208, %258 : vector<16x128xf32>
    %c0_93 = arith.constant 0 : index
    %c0_94 = arith.constant 0 : index
    %260 = vector.load %arg13[%c0_93, %c0_94] : memref<1x128xf32, #tpu.memory_space<vmem>>, vector<1x128xf32>
    %261 = vector.broadcast %260 : vector<1x128xf32> to vector<16x128xf32>
    %262 = arith.addf %259, %261 : vector<16x128xf32>
    %c0_95 = arith.constant 0 : index
    %c0_96 = arith.constant 0 : index
    %263 = vector.load %arg14[%c0_95, %c0_96] : memref<1x128xf32, #tpu.memory_space<vmem>>, vector<1x128xf32>
    %c0_97 = arith.constant 0 : index
    %c0_98 = arith.constant 0 : index
    %264 = vector.load %arg15[%c0_97, %c0_98] : memref<1x128xf32, #tpu.memory_space<vmem>>, vector<1x128xf32>
    %cst_99 = arith.constant dense<0.000000e+00> : vector<16xf32>
    %265 = vector.multi_reduction <add>, %262, %cst_99 [1] : vector<16x128xf32> to vector<16xf32>
    %266 = vector.shape_cast %265 : vector<16xf32> to vector<16x1xf32>
    %cst_100 = arith.constant 1.280000e+02 : f32
    %267 = vector.broadcast %cst_100 : f32 to vector<16x1xf32>
    %268 = arith.divf %266, %267 : vector<16x1xf32>
    %269 = vector.broadcast %268 : vector<16x1xf32> to vector<16x128xf32>
    %270 = arith.subf %262, %269 : vector<16x128xf32>
    %271 = arith.mulf %270, %270 : vector<16x128xf32>
    %cst_101 = arith.constant dense<0.000000e+00> : vector<16xf32>
    %272 = vector.multi_reduction <add>, %271, %cst_101 [1] : vector<16x128xf32> to vector<16xf32>
    %273 = vector.shape_cast %272 : vector<16xf32> to vector<16x1xf32>
    %cst_102 = arith.constant 1.280000e+02 : f32
    %274 = vector.broadcast %cst_102 : f32 to vector<16x1xf32>
    %275 = arith.divf %273, %274 : vector<16x1xf32>
    %276 = vector.broadcast %268 : vector<16x1xf32> to vector<16x128xf32>
    %277 = arith.subf %262, %276 : vector<16x128xf32>
    %cst_103 = arith.constant 9.99999974E-6 : f32
    %278 = vector.broadcast %cst_103 : f32 to vector<16x1xf32>
    %279 = arith.addf %275, %278 : vector<16x1xf32>
    %280 = math.rsqrt %279 : vector<16x1xf32>
    %281 = vector.broadcast %280 : vector<16x1xf32> to vector<16x128xf32>
    %282 = arith.mulf %277, %281 : vector<16x128xf32>
    %283 = vector.broadcast %263 : vector<1x128xf32> to vector<16x128xf32>
    %284 = arith.mulf %282, %283 : vector<16x128xf32>
    %285 = vector.broadcast %264 : vector<1x128xf32> to vector<16x128xf32>
    %286 = arith.addf %284, %285 : vector<16x128xf32>
    %287 = vector.extract_strided_slice %286 {offsets = [7, 0], sizes = [1, 128], strides = [1, 1]} : vector<16x128xf32> to vector<1x128xf32>
    %288 = vector.extract_strided_slice %286 {offsets = [15, 0], sizes = [1, 128], strides = [1, 1]} : vector<16x128xf32> to vector<1x128xf32>
    %289 = tpu.concatenate %287, %288 in 0 : vector<1x128xf32>, vector<1x128xf32> -> vector<2x128xf32>
    %c0_104 = arith.constant 0 : index
    %c0_105 = arith.constant 0 : index
    %290 = vector.load %arg16[%c0_104, %c0_105] : memref<128x128xbf16, #tpu.memory_space<vmem>>, vector<128x128xbf16>
    %291 = arith.truncf %289 : vector<2x128xf32> to vector<2x128xbf16>
    %cst_106 = arith.constant dense<0.000000e+00> : vector<2x128xf32>
    %292 = tpu.matmul %291, %290, %cst_106 {dimension_numbers = #tpu.dot_dimension_numbers<[1], [0], [0], [1], [0, 0, 1, 1], [], []>} : vector<2x128xbf16>, vector<128x128xbf16>, vector<2x128xf32> -> vector<2x128xf32>
    %c0_107 = arith.constant 0 : index
    %c0_108 = arith.constant 0 : index
    %293 = vector.load %arg17[%c0_107, %c0_108] : memref<1x128xf32, #tpu.memory_space<vmem>>, vector<1x128xf32>
    %294 = vector.broadcast %293 : vector<1x128xf32> to vector<2x128xf32>
    %295 = arith.addf %292, %294 : vector<2x128xf32>
    %c0_109 = arith.constant 0 : index
    %c0_110 = arith.constant 0 : index
    %296 = vector.load %arg18[%c0_109, %c0_110] : memref<128x256xbf16, #tpu.memory_space<vmem>>, vector<128x256xbf16>
    %297 = arith.truncf %286 : vector<16x128xf32> to vector<16x128xbf16>
    %cst_111 = arith.constant dense<0.000000e+00> : vector<16x256xf32>
    %298 = tpu.matmul %297, %296, %cst_111 {dimension_numbers = #tpu.dot_dimension_numbers<[1], [0], [0], [1], [0, 0, 1, 1], [], []>} : vector<16x128xbf16>, vector<128x256xbf16>, vector<16x256xf32> -> vector<16x256xf32>
    %c0_112 = arith.constant 0 : index
    %c0_113 = arith.constant 0 : index
    %299 = vector.load %arg19[%c0_112, %c0_113] : memref<1x256xf32, #tpu.memory_space<vmem>>, vector<1x256xf32>
    %300 = vector.broadcast %299 : vector<1x256xf32> to vector<16x256xf32>
    %301 = arith.addf %298, %300 : vector<16x256xf32>
    %302 = vector.extract_strided_slice %295 {offsets = [0, 0], sizes = [1, 32], strides = [1, 1]} : vector<2x128xf32> to vector<1x32xf32>
    %303 = arith.truncf %302 : vector<1x32xf32> to vector<1x32xbf16>
    %304 = vector.extract_strided_slice %301 {offsets = [0, 0], sizes = [8, 32], strides = [1, 1]} : vector<16x256xf32> to vector<8x32xf32>
    %305 = arith.truncf %304 : vector<8x32xf32> to vector<8x32xbf16>
    %306 = vector.extract_strided_slice %301 {offsets = [0, 128], sizes = [8, 32], strides = [1, 1]} : vector<16x256xf32> to vector<8x32xf32>
    %307 = arith.truncf %306 : vector<8x32xf32> to vector<8x32xbf16>
    %cst_114 = arith.constant dense<0.000000e+00> : vector<1x8xf32>
    %308 = tpu.matmul %303, %305, %cst_114 {dimension_numbers = #tpu.dot_dimension_numbers<[1], [1], [0], [0], [0, 0, 1, 0], [], []>} : vector<1x32xbf16>, vector<8x32xbf16>, vector<1x8xf32> -> vector<1x8xf32>
    %cst_115 = arith.constant dense<0xFF800000> : vector<1xf32>
    %309 = vector.multi_reduction <maximumf>, %308, %cst_115 [1] : vector<1x8xf32> to vector<1xf32>
    %310 = vector.shape_cast %309 : vector<1xf32> to vector<1x1xf32>
    %311 = vector.broadcast %310 : vector<1x1xf32> to vector<1x8xf32>
    %312 = arith.subf %308, %311 : vector<1x8xf32>
    %313 = math.exp %312 : vector<1x8xf32>
    %cst_116 = arith.constant dense<0.000000e+00> : vector<1xf32>
    %314 = vector.multi_reduction <add>, %313, %cst_116 [1] : vector<1x8xf32> to vector<1xf32>
    %315 = vector.shape_cast %314 : vector<1xf32> to vector<1x1xf32>
    %316 = tpu.reciprocal %315 {approx = true} : vector<1x1xf32> -> vector<1x1xf32>
    %317 = vector.broadcast %316 : vector<1x1xf32> to vector<1x8xf32>
    %318 = arith.mulf %313, %317 : vector<1x8xf32>
    %319 = arith.truncf %318 : vector<1x8xf32> to vector<1x8xbf16>
    %cst_117 = arith.constant dense<0.000000e+00> : vector<1x32xf32>
    %320 = tpu.matmul %319, %307, %cst_117 {dimension_numbers = #tpu.dot_dimension_numbers<[1], [0], [0], [1], [0, 0, 1, 1], [], []>} : vector<1x8xbf16>, vector<8x32xbf16>, vector<1x32xf32> -> vector<1x32xf32>
    %321 = vector.extract_strided_slice %295 {offsets = [0, 32], sizes = [1, 32], strides = [1, 1]} : vector<2x128xf32> to vector<1x32xf32>
    %322 = arith.truncf %321 : vector<1x32xf32> to vector<1x32xbf16>
    %323 = vector.extract_strided_slice %301 {offsets = [0, 32], sizes = [8, 32], strides = [1, 1]} : vector<16x256xf32> to vector<8x32xf32>
    %324 = arith.truncf %323 : vector<8x32xf32> to vector<8x32xbf16>
    %325 = vector.extract_strided_slice %301 {offsets = [0, 160], sizes = [8, 32], strides = [1, 1]} : vector<16x256xf32> to vector<8x32xf32>
    %326 = arith.truncf %325 : vector<8x32xf32> to vector<8x32xbf16>
    %cst_118 = arith.constant dense<0.000000e+00> : vector<1x8xf32>
    %327 = tpu.matmul %322, %324, %cst_118 {dimension_numbers = #tpu.dot_dimension_numbers<[1], [1], [0], [0], [0, 0, 1, 0], [], []>} : vector<1x32xbf16>, vector<8x32xbf16>, vector<1x8xf32> -> vector<1x8xf32>
    %cst_119 = arith.constant dense<0xFF800000> : vector<1xf32>
    %328 = vector.multi_reduction <maximumf>, %327, %cst_119 [1] : vector<1x8xf32> to vector<1xf32>
    %329 = vector.shape_cast %328 : vector<1xf32> to vector<1x1xf32>
    %330 = vector.broadcast %329 : vector<1x1xf32> to vector<1x8xf32>
    %331 = arith.subf %327, %330 : vector<1x8xf32>
    %332 = math.exp %331 : vector<1x8xf32>
    %cst_120 = arith.constant dense<0.000000e+00> : vector<1xf32>
    %333 = vector.multi_reduction <add>, %332, %cst_120 [1] : vector<1x8xf32> to vector<1xf32>
    %334 = vector.shape_cast %333 : vector<1xf32> to vector<1x1xf32>
    %335 = tpu.reciprocal %334 {approx = true} : vector<1x1xf32> -> vector<1x1xf32>
    %336 = vector.broadcast %335 : vector<1x1xf32> to vector<1x8xf32>
    %337 = arith.mulf %332, %336 : vector<1x8xf32>
    %338 = arith.truncf %337 : vector<1x8xf32> to vector<1x8xbf16>
    %cst_121 = arith.constant dense<0.000000e+00> : vector<1x32xf32>
    %339 = tpu.matmul %338, %326, %cst_121 {dimension_numbers = #tpu.dot_dimension_numbers<[1], [0], [0], [1], [0, 0, 1, 1], [], []>} : vector<1x8xbf16>, vector<8x32xbf16>, vector<1x32xf32> -> vector<1x32xf32>
    %340 = vector.extract_strided_slice %295 {offsets = [0, 64], sizes = [1, 32], strides = [1, 1]} : vector<2x128xf32> to vector<1x32xf32>
    %341 = arith.truncf %340 : vector<1x32xf32> to vector<1x32xbf16>
    %342 = vector.extract_strided_slice %301 {offsets = [0, 64], sizes = [8, 32], strides = [1, 1]} : vector<16x256xf32> to vector<8x32xf32>
    %343 = arith.truncf %342 : vector<8x32xf32> to vector<8x32xbf16>
    %344 = vector.extract_strided_slice %301 {offsets = [0, 192], sizes = [8, 32], strides = [1, 1]} : vector<16x256xf32> to vector<8x32xf32>
    %345 = arith.truncf %344 : vector<8x32xf32> to vector<8x32xbf16>
    %cst_122 = arith.constant dense<0.000000e+00> : vector<1x8xf32>
    %346 = tpu.matmul %341, %343, %cst_122 {dimension_numbers = #tpu.dot_dimension_numbers<[1], [1], [0], [0], [0, 0, 1, 0], [], []>} : vector<1x32xbf16>, vector<8x32xbf16>, vector<1x8xf32> -> vector<1x8xf32>
    %cst_123 = arith.constant dense<0xFF800000> : vector<1xf32>
    %347 = vector.multi_reduction <maximumf>, %346, %cst_123 [1] : vector<1x8xf32> to vector<1xf32>
    %348 = vector.shape_cast %347 : vector<1xf32> to vector<1x1xf32>
    %349 = vector.broadcast %348 : vector<1x1xf32> to vector<1x8xf32>
    %350 = arith.subf %346, %349 : vector<1x8xf32>
    %351 = math.exp %350 : vector<1x8xf32>
    %cst_124 = arith.constant dense<0.000000e+00> : vector<1xf32>
    %352 = vector.multi_reduction <add>, %351, %cst_124 [1] : vector<1x8xf32> to vector<1xf32>
    %353 = vector.shape_cast %352 : vector<1xf32> to vector<1x1xf32>
    %354 = tpu.reciprocal %353 {approx = true} : vector<1x1xf32> -> vector<1x1xf32>
    %355 = vector.broadcast %354 : vector<1x1xf32> to vector<1x8xf32>
    %356 = arith.mulf %351, %355 : vector<1x8xf32>
    %357 = arith.truncf %356 : vector<1x8xf32> to vector<1x8xbf16>
    %cst_125 = arith.constant dense<0.000000e+00> : vector<1x32xf32>
    %358 = tpu.matmul %357, %345, %cst_125 {dimension_numbers = #tpu.dot_dimension_numbers<[1], [0], [0], [1], [0, 0, 1, 1], [], []>} : vector<1x8xbf16>, vector<8x32xbf16>, vector<1x32xf32> -> vector<1x32xf32>
    %359 = vector.extract_strided_slice %295 {offsets = [0, 96], sizes = [1, 32], strides = [1, 1]} : vector<2x128xf32> to vector<1x32xf32>
    %360 = arith.truncf %359 : vector<1x32xf32> to vector<1x32xbf16>
    %361 = vector.extract_strided_slice %301 {offsets = [0, 96], sizes = [8, 32], strides = [1, 1]} : vector<16x256xf32> to vector<8x32xf32>
    %362 = arith.truncf %361 : vector<8x32xf32> to vector<8x32xbf16>
    %363 = vector.extract_strided_slice %301 {offsets = [0, 224], sizes = [8, 32], strides = [1, 1]} : vector<16x256xf32> to vector<8x32xf32>
    %364 = arith.truncf %363 : vector<8x32xf32> to vector<8x32xbf16>
    %cst_126 = arith.constant dense<0.000000e+00> : vector<1x8xf32>
    %365 = tpu.matmul %360, %362, %cst_126 {dimension_numbers = #tpu.dot_dimension_numbers<[1], [1], [0], [0], [0, 0, 1, 0], [], []>} : vector<1x32xbf16>, vector<8x32xbf16>, vector<1x8xf32> -> vector<1x8xf32>
    %cst_127 = arith.constant dense<0xFF800000> : vector<1xf32>
    %366 = vector.multi_reduction <maximumf>, %365, %cst_127 [1] : vector<1x8xf32> to vector<1xf32>
    %367 = vector.shape_cast %366 : vector<1xf32> to vector<1x1xf32>
    %368 = vector.broadcast %367 : vector<1x1xf32> to vector<1x8xf32>
    %369 = arith.subf %365, %368 : vector<1x8xf32>
    %370 = math.exp %369 : vector<1x8xf32>
    %cst_128 = arith.constant dense<0.000000e+00> : vector<1xf32>
    %371 = vector.multi_reduction <add>, %370, %cst_128 [1] : vector<1x8xf32> to vector<1xf32>
    %372 = vector.shape_cast %371 : vector<1xf32> to vector<1x1xf32>
    %373 = tpu.reciprocal %372 {approx = true} : vector<1x1xf32> -> vector<1x1xf32>
    %374 = vector.broadcast %373 : vector<1x1xf32> to vector<1x8xf32>
    %375 = arith.mulf %370, %374 : vector<1x8xf32>
    %376 = arith.truncf %375 : vector<1x8xf32> to vector<1x8xbf16>
    %cst_129 = arith.constant dense<0.000000e+00> : vector<1x32xf32>
    %377 = tpu.matmul %376, %364, %cst_129 {dimension_numbers = #tpu.dot_dimension_numbers<[1], [0], [0], [1], [0, 0, 1, 1], [], []>} : vector<1x8xbf16>, vector<8x32xbf16>, vector<1x32xf32> -> vector<1x32xf32>
    %378 = tpu.concatenate %320, %339, %358, %377 in 1 : vector<1x32xf32>, vector<1x32xf32>, vector<1x32xf32>, vector<1x32xf32> -> vector<1x128xf32>
    %379 = vector.extract_strided_slice %295 {offsets = [1, 0], sizes = [1, 32], strides = [1, 1]} : vector<2x128xf32> to vector<1x32xf32>
    %380 = arith.truncf %379 : vector<1x32xf32> to vector<1x32xbf16>
    %381 = vector.extract_strided_slice %301 {offsets = [8, 0], sizes = [8, 32], strides = [1, 1]} : vector<16x256xf32> to vector<8x32xf32>
    %382 = arith.truncf %381 : vector<8x32xf32> to vector<8x32xbf16>
    %383 = vector.extract_strided_slice %301 {offsets = [8, 128], sizes = [8, 32], strides = [1, 1]} : vector<16x256xf32> to vector<8x32xf32>
    %384 = arith.truncf %383 : vector<8x32xf32> to vector<8x32xbf16>
    %cst_130 = arith.constant dense<0.000000e+00> : vector<1x8xf32>
    %385 = tpu.matmul %380, %382, %cst_130 {dimension_numbers = #tpu.dot_dimension_numbers<[1], [1], [0], [0], [0, 0, 1, 0], [], []>} : vector<1x32xbf16>, vector<8x32xbf16>, vector<1x8xf32> -> vector<1x8xf32>
    %cst_131 = arith.constant dense<0xFF800000> : vector<1xf32>
    %386 = vector.multi_reduction <maximumf>, %385, %cst_131 [1] : vector<1x8xf32> to vector<1xf32>
    %387 = vector.shape_cast %386 : vector<1xf32> to vector<1x1xf32>
    %388 = vector.broadcast %387 : vector<1x1xf32> to vector<1x8xf32>
    %389 = arith.subf %385, %388 : vector<1x8xf32>
    %390 = math.exp %389 : vector<1x8xf32>
    %cst_132 = arith.constant dense<0.000000e+00> : vector<1xf32>
    %391 = vector.multi_reduction <add>, %390, %cst_132 [1] : vector<1x8xf32> to vector<1xf32>
    %392 = vector.shape_cast %391 : vector<1xf32> to vector<1x1xf32>
    %393 = tpu.reciprocal %392 {approx = true} : vector<1x1xf32> -> vector<1x1xf32>
    %394 = vector.broadcast %393 : vector<1x1xf32> to vector<1x8xf32>
    %395 = arith.mulf %390, %394 : vector<1x8xf32>
    %396 = arith.truncf %395 : vector<1x8xf32> to vector<1x8xbf16>
    %cst_133 = arith.constant dense<0.000000e+00> : vector<1x32xf32>
    %397 = tpu.matmul %396, %384, %cst_133 {dimension_numbers = #tpu.dot_dimension_numbers<[1], [0], [0], [1], [0, 0, 1, 1], [], []>} : vector<1x8xbf16>, vector<8x32xbf16>, vector<1x32xf32> -> vector<1x32xf32>
    %398 = vector.extract_strided_slice %295 {offsets = [1, 32], sizes = [1, 32], strides = [1, 1]} : vector<2x128xf32> to vector<1x32xf32>
    %399 = arith.truncf %398 : vector<1x32xf32> to vector<1x32xbf16>
    %400 = vector.extract_strided_slice %301 {offsets = [8, 32], sizes = [8, 32], strides = [1, 1]} : vector<16x256xf32> to vector<8x32xf32>
    %401 = arith.truncf %400 : vector<8x32xf32> to vector<8x32xbf16>
    %402 = vector.extract_strided_slice %301 {offsets = [8, 160], sizes = [8, 32], strides = [1, 1]} : vector<16x256xf32> to vector<8x32xf32>
    %403 = arith.truncf %402 : vector<8x32xf32> to vector<8x32xbf16>
    %cst_134 = arith.constant dense<0.000000e+00> : vector<1x8xf32>
    %404 = tpu.matmul %399, %401, %cst_134 {dimension_numbers = #tpu.dot_dimension_numbers<[1], [1], [0], [0], [0, 0, 1, 0], [], []>} : vector<1x32xbf16>, vector<8x32xbf16>, vector<1x8xf32> -> vector<1x8xf32>
    %cst_135 = arith.constant dense<0xFF800000> : vector<1xf32>
    %405 = vector.multi_reduction <maximumf>, %404, %cst_135 [1] : vector<1x8xf32> to vector<1xf32>
    %406 = vector.shape_cast %405 : vector<1xf32> to vector<1x1xf32>
    %407 = vector.broadcast %406 : vector<1x1xf32> to vector<1x8xf32>
    %408 = arith.subf %404, %407 : vector<1x8xf32>
    %409 = math.exp %408 : vector<1x8xf32>
    %cst_136 = arith.constant dense<0.000000e+00> : vector<1xf32>
    %410 = vector.multi_reduction <add>, %409, %cst_136 [1] : vector<1x8xf32> to vector<1xf32>
    %411 = vector.shape_cast %410 : vector<1xf32> to vector<1x1xf32>
    %412 = tpu.reciprocal %411 {approx = true} : vector<1x1xf32> -> vector<1x1xf32>
    %413 = vector.broadcast %412 : vector<1x1xf32> to vector<1x8xf32>
    %414 = arith.mulf %409, %413 : vector<1x8xf32>
    %415 = arith.truncf %414 : vector<1x8xf32> to vector<1x8xbf16>
    %cst_137 = arith.constant dense<0.000000e+00> : vector<1x32xf32>
    %416 = tpu.matmul %415, %403, %cst_137 {dimension_numbers = #tpu.dot_dimension_numbers<[1], [0], [0], [1], [0, 0, 1, 1], [], []>} : vector<1x8xbf16>, vector<8x32xbf16>, vector<1x32xf32> -> vector<1x32xf32>
    %417 = vector.extract_strided_slice %295 {offsets = [1, 64], sizes = [1, 32], strides = [1, 1]} : vector<2x128xf32> to vector<1x32xf32>
    %418 = arith.truncf %417 : vector<1x32xf32> to vector<1x32xbf16>
    %419 = vector.extract_strided_slice %301 {offsets = [8, 64], sizes = [8, 32], strides = [1, 1]} : vector<16x256xf32> to vector<8x32xf32>
    %420 = arith.truncf %419 : vector<8x32xf32> to vector<8x32xbf16>
    %421 = vector.extract_strided_slice %301 {offsets = [8, 192], sizes = [8, 32], strides = [1, 1]} : vector<16x256xf32> to vector<8x32xf32>
    %422 = arith.truncf %421 : vector<8x32xf32> to vector<8x32xbf16>
    %cst_138 = arith.constant dense<0.000000e+00> : vector<1x8xf32>
    %423 = tpu.matmul %418, %420, %cst_138 {dimension_numbers = #tpu.dot_dimension_numbers<[1], [1], [0], [0], [0, 0, 1, 0], [], []>} : vector<1x32xbf16>, vector<8x32xbf16>, vector<1x8xf32> -> vector<1x8xf32>
    %cst_139 = arith.constant dense<0xFF800000> : vector<1xf32>
    %424 = vector.multi_reduction <maximumf>, %423, %cst_139 [1] : vector<1x8xf32> to vector<1xf32>
    %425 = vector.shape_cast %424 : vector<1xf32> to vector<1x1xf32>
    %426 = vector.broadcast %425 : vector<1x1xf32> to vector<1x8xf32>
    %427 = arith.subf %423, %426 : vector<1x8xf32>
    %428 = math.exp %427 : vector<1x8xf32>
    %cst_140 = arith.constant dense<0.000000e+00> : vector<1xf32>
    %429 = vector.multi_reduction <add>, %428, %cst_140 [1] : vector<1x8xf32> to vector<1xf32>
    %430 = vector.shape_cast %429 : vector<1xf32> to vector<1x1xf32>
    %431 = tpu.reciprocal %430 {approx = true} : vector<1x1xf32> -> vector<1x1xf32>
    %432 = vector.broadcast %431 : vector<1x1xf32> to vector<1x8xf32>
    %433 = arith.mulf %428, %432 : vector<1x8xf32>
    %434 = arith.truncf %433 : vector<1x8xf32> to vector<1x8xbf16>
    %cst_141 = arith.constant dense<0.000000e+00> : vector<1x32xf32>
    %435 = tpu.matmul %434, %422, %cst_141 {dimension_numbers = #tpu.dot_dimension_numbers<[1], [0], [0], [1], [0, 0, 1, 1], [], []>} : vector<1x8xbf16>, vector<8x32xbf16>, vector<1x32xf32> -> vector<1x32xf32>
    %436 = vector.extract_strided_slice %295 {offsets = [1, 96], sizes = [1, 32], strides = [1, 1]} : vector<2x128xf32> to vector<1x32xf32>
    %437 = arith.truncf %436 : vector<1x32xf32> to vector<1x32xbf16>
    %438 = vector.extract_strided_slice %301 {offsets = [8, 96], sizes = [8, 32], strides = [1, 1]} : vector<16x256xf32> to vector<8x32xf32>
    %439 = arith.truncf %438 : vector<8x32xf32> to vector<8x32xbf16>
    %440 = vector.extract_strided_slice %301 {offsets = [8, 224], sizes = [8, 32], strides = [1, 1]} : vector<16x256xf32> to vector<8x32xf32>
    %441 = arith.truncf %440 : vector<8x32xf32> to vector<8x32xbf16>
    %cst_142 = arith.constant dense<0.000000e+00> : vector<1x8xf32>
    %442 = tpu.matmul %437, %439, %cst_142 {dimension_numbers = #tpu.dot_dimension_numbers<[1], [1], [0], [0], [0, 0, 1, 0], [], []>} : vector<1x32xbf16>, vector<8x32xbf16>, vector<1x8xf32> -> vector<1x8xf32>
    %cst_143 = arith.constant dense<0xFF800000> : vector<1xf32>
    %443 = vector.multi_reduction <maximumf>, %442, %cst_143 [1] : vector<1x8xf32> to vector<1xf32>
    %444 = vector.shape_cast %443 : vector<1xf32> to vector<1x1xf32>
    %445 = vector.broadcast %444 : vector<1x1xf32> to vector<1x8xf32>
    %446 = arith.subf %442, %445 : vector<1x8xf32>
    %447 = math.exp %446 : vector<1x8xf32>
    %cst_144 = arith.constant dense<0.000000e+00> : vector<1xf32>
    %448 = vector.multi_reduction <add>, %447, %cst_144 [1] : vector<1x8xf32> to vector<1xf32>
    %449 = vector.shape_cast %448 : vector<1xf32> to vector<1x1xf32>
    %450 = tpu.reciprocal %449 {approx = true} : vector<1x1xf32> -> vector<1x1xf32>
    %451 = vector.broadcast %450 : vector<1x1xf32> to vector<1x8xf32>
    %452 = arith.mulf %447, %451 : vector<1x8xf32>
    %453 = arith.truncf %452 : vector<1x8xf32> to vector<1x8xbf16>
    %cst_145 = arith.constant dense<0.000000e+00> : vector<1x32xf32>
    %454 = tpu.matmul %453, %441, %cst_145 {dimension_numbers = #tpu.dot_dimension_numbers<[1], [0], [0], [1], [0, 0, 1, 1], [], []>} : vector<1x8xbf16>, vector<8x32xbf16>, vector<1x32xf32> -> vector<1x32xf32>
    %455 = tpu.concatenate %397, %416, %435, %454 in 1 : vector<1x32xf32>, vector<1x32xf32>, vector<1x32xf32>, vector<1x32xf32> -> vector<1x128xf32>
    %456 = tpu.concatenate %378, %455 in 0 : vector<1x128xf32>, vector<1x128xf32> -> vector<2x128xf32>
    %c0_146 = arith.constant 0 : index
    %c0_147 = arith.constant 0 : index
    %457 = vector.load %arg20[%c0_146, %c0_147] : memref<128x128xbf16, #tpu.memory_space<vmem>>, vector<128x128xbf16>
    %458 = arith.truncf %456 : vector<2x128xf32> to vector<2x128xbf16>
    %cst_148 = arith.constant dense<0.000000e+00> : vector<2x128xf32>
    %459 = tpu.matmul %458, %457, %cst_148 {dimension_numbers = #tpu.dot_dimension_numbers<[1], [0], [0], [1], [0, 0, 1, 1], [], []>} : vector<2x128xbf16>, vector<128x128xbf16>, vector<2x128xf32> -> vector<2x128xf32>
    %c0_149 = arith.constant 0 : index
    %c0_150 = arith.constant 0 : index
    %460 = vector.load %arg21[%c0_149, %c0_150] : memref<1x128xf32, #tpu.memory_space<vmem>>, vector<1x128xf32>
    %461 = vector.broadcast %460 : vector<1x128xf32> to vector<2x128xf32>
    %462 = arith.addf %459, %461 : vector<2x128xf32>
    %463 = arith.addf %289, %462 : vector<2x128xf32>
    %c0_151 = arith.constant 0 : index
    %c0_152 = arith.constant 0 : index
    %464 = vector.load %arg22[%c0_151, %c0_152] : memref<1x128xf32, #tpu.memory_space<vmem>>, vector<1x128xf32>
    %c0_153 = arith.constant 0 : index
    %c0_154 = arith.constant 0 : index
    %465 = vector.load %arg23[%c0_153, %c0_154] : memref<1x128xf32, #tpu.memory_space<vmem>>, vector<1x128xf32>
    %cst_155 = arith.constant dense<0.000000e+00> : vector<2xf32>
    %466 = vector.multi_reduction <add>, %463, %cst_155 [1] : vector<2x128xf32> to vector<2xf32>
    %467 = vector.shape_cast %466 : vector<2xf32> to vector<2x1xf32>
    %cst_156 = arith.constant 1.280000e+02 : f32
    %468 = vector.broadcast %cst_156 : f32 to vector<2x1xf32>
    %469 = arith.divf %467, %468 : vector<2x1xf32>
    %470 = vector.broadcast %469 : vector<2x1xf32> to vector<2x128xf32>
    %471 = arith.subf %463, %470 : vector<2x128xf32>
    %472 = arith.mulf %471, %471 : vector<2x128xf32>
    %cst_157 = arith.constant dense<0.000000e+00> : vector<2xf32>
    %473 = vector.multi_reduction <add>, %472, %cst_157 [1] : vector<2x128xf32> to vector<2xf32>
    %474 = vector.shape_cast %473 : vector<2xf32> to vector<2x1xf32>
    %cst_158 = arith.constant 1.280000e+02 : f32
    %475 = vector.broadcast %cst_158 : f32 to vector<2x1xf32>
    %476 = arith.divf %474, %475 : vector<2x1xf32>
    %477 = vector.broadcast %469 : vector<2x1xf32> to vector<2x128xf32>
    %478 = arith.subf %463, %477 : vector<2x128xf32>
    %cst_159 = arith.constant 9.99999974E-6 : f32
    %479 = vector.broadcast %cst_159 : f32 to vector<2x1xf32>
    %480 = arith.addf %476, %479 : vector<2x1xf32>
    %481 = math.rsqrt %480 : vector<2x1xf32>
    %482 = vector.broadcast %481 : vector<2x1xf32> to vector<2x128xf32>
    %483 = arith.mulf %478, %482 : vector<2x128xf32>
    %484 = vector.broadcast %464 : vector<1x128xf32> to vector<2x128xf32>
    %485 = arith.mulf %483, %484 : vector<2x128xf32>
    %486 = vector.broadcast %465 : vector<1x128xf32> to vector<2x128xf32>
    %487 = arith.addf %485, %486 : vector<2x128xf32>
    %c2_i32_160 = arith.constant 2 : i32
    %488 = tpu.memref_slice %arg35[%c2_i32_160] : memref<4x!tpu.dma_semaphore, #tpu.memory_space<semaphore_mem>> -> memref<1x!tpu.dma_semaphore, #tpu.memory_space<semaphore_mem>>
    %489 = tpu.memref_squeeze %488 : memref<1x!tpu.dma_semaphore, #tpu.memory_space<semaphore_mem>> -> memref<!tpu.dma_semaphore, #tpu.memory_space<semaphore_mem>>
    tpu.wait_dma2 semaphore(%489 : memref<!tpu.dma_semaphore, #tpu.memory_space<semaphore_mem>>) src(%arg24 : memref<128x2048xbf16, #tpu.memory_space<any>>) dst(%arg33 : memref<128x2048xbf16, #tpu.memory_space<vmem>>)
    %c3_i32_161 = arith.constant 3 : i32
    %490 = tpu.memref_slice %arg35[%c3_i32_161] : memref<4x!tpu.dma_semaphore, #tpu.memory_space<semaphore_mem>> -> memref<1x!tpu.dma_semaphore, #tpu.memory_space<semaphore_mem>>
    %491 = tpu.memref_squeeze %490 : memref<1x!tpu.dma_semaphore, #tpu.memory_space<semaphore_mem>> -> memref<!tpu.dma_semaphore, #tpu.memory_space<semaphore_mem>>
    tpu.wait_dma2 semaphore(%491 : memref<!tpu.dma_semaphore, #tpu.memory_space<semaphore_mem>>) src(%arg26 : memref<2048x128xbf16, #tpu.memory_space<any>>) dst(%arg34 : memref<2048x128xbf16, #tpu.memory_space<vmem>>)
    %492 = arith.truncf %487 : vector<2x128xf32> to vector<2x128xbf16>
    %cst_162 = arith.constant 0.000000e+00 : f32
    %493 = vector.broadcast %cst_162 : f32 to vector<2x128xf32>
    %c0_163 = arith.constant 0 : index
    %c0_164 = arith.constant 0 : index
    %494 = vector.load %arg33[%c0_163, %c0_164] : memref<128x2048xbf16, #tpu.memory_space<vmem>>, vector<128x512xbf16>
    %cst_165 = arith.constant dense<0.000000e+00> : vector<2x512xf32>
    %495 = tpu.matmul %492, %494, %cst_165 {dimension_numbers = #tpu.dot_dimension_numbers<[1], [0], [0], [1], [0, 0, 1, 1], [], []>} : vector<2x128xbf16>, vector<128x512xbf16>, vector<2x512xf32> -> vector<2x512xf32>
    %c0_166 = arith.constant 0 : index
    %c0_167 = arith.constant 0 : index
    %496 = vector.load %arg25[%c0_166, %c0_167] : memref<1x2048xf32, #tpu.memory_space<vmem>>, vector<1x512xf32>
    %497 = vector.broadcast %496 : vector<1x512xf32> to vector<2x512xf32>
    %498 = arith.addf %495, %497 : vector<2x512xf32>
    %cst_168 = arith.constant 0.000000e+00 : f32
    %499 = vector.broadcast %cst_168 : f32 to vector<2x512xf32>
    %500 = arith.maximumf %498, %499 : vector<2x512xf32>
    %501 = arith.truncf %500 : vector<2x512xf32> to vector<2x512xbf16>
    %c0_169 = arith.constant 0 : index
    %c0_170 = arith.constant 0 : index
    %502 = vector.load %arg34[%c0_169, %c0_170] : memref<2048x128xbf16, #tpu.memory_space<vmem>>, vector<512x128xbf16>
    %cst_171 = arith.constant dense<0.000000e+00> : vector<2x128xf32>
    %503 = tpu.matmul %501, %502, %cst_171 {dimension_numbers = #tpu.dot_dimension_numbers<[1], [0], [0], [1], [0, 0, 1, 1], [], []>} : vector<2x512xbf16>, vector<512x128xbf16>, vector<2x128xf32> -> vector<2x128xf32>
    %504 = arith.addf %493, %503 : vector<2x128xf32>
    %c0_172 = arith.constant 0 : index
    %c512_173 = arith.constant 512 : index
    %505 = vector.load %arg33[%c0_172, %c512_173] : memref<128x2048xbf16, #tpu.memory_space<vmem>>, vector<128x512xbf16>
    %cst_174 = arith.constant dense<0.000000e+00> : vector<2x512xf32>
    %506 = tpu.matmul %492, %505, %cst_174 {dimension_numbers = #tpu.dot_dimension_numbers<[1], [0], [0], [1], [0, 0, 1, 1], [], []>} : vector<2x128xbf16>, vector<128x512xbf16>, vector<2x512xf32> -> vector<2x512xf32>
    %c0_175 = arith.constant 0 : index
    %c512_176 = arith.constant 512 : index
    %507 = vector.load %arg25[%c0_175, %c512_176] : memref<1x2048xf32, #tpu.memory_space<vmem>>, vector<1x512xf32>
    %508 = vector.broadcast %507 : vector<1x512xf32> to vector<2x512xf32>
    %509 = arith.addf %506, %508 : vector<2x512xf32>
    %cst_177 = arith.constant 0.000000e+00 : f32
    %510 = vector.broadcast %cst_177 : f32 to vector<2x512xf32>
    %511 = arith.maximumf %509, %510 : vector<2x512xf32>
    %512 = arith.truncf %511 : vector<2x512xf32> to vector<2x512xbf16>
    %c512_178 = arith.constant 512 : index
    %c0_179 = arith.constant 0 : index
    %513 = vector.load %arg34[%c512_178, %c0_179] : memref<2048x128xbf16, #tpu.memory_space<vmem>>, vector<512x128xbf16>
    %cst_180 = arith.constant dense<0.000000e+00> : vector<2x128xf32>
    %514 = tpu.matmul %512, %513, %cst_180 {dimension_numbers = #tpu.dot_dimension_numbers<[1], [0], [0], [1], [0, 0, 1, 1], [], []>} : vector<2x512xbf16>, vector<512x128xbf16>, vector<2x128xf32> -> vector<2x128xf32>
    %515 = arith.addf %504, %514 : vector<2x128xf32>
    %c0_181 = arith.constant 0 : index
    %c1024_182 = arith.constant 1024 : index
    %516 = vector.load %arg33[%c0_181, %c1024_182] : memref<128x2048xbf16, #tpu.memory_space<vmem>>, vector<128x512xbf16>
    %cst_183 = arith.constant dense<0.000000e+00> : vector<2x512xf32>
    %517 = tpu.matmul %492, %516, %cst_183 {dimension_numbers = #tpu.dot_dimension_numbers<[1], [0], [0], [1], [0, 0, 1, 1], [], []>} : vector<2x128xbf16>, vector<128x512xbf16>, vector<2x512xf32> -> vector<2x512xf32>
    %c0_184 = arith.constant 0 : index
    %c1024_185 = arith.constant 1024 : index
    %518 = vector.load %arg25[%c0_184, %c1024_185] : memref<1x2048xf32, #tpu.memory_space<vmem>>, vector<1x512xf32>
    %519 = vector.broadcast %518 : vector<1x512xf32> to vector<2x512xf32>
    %520 = arith.addf %517, %519 : vector<2x512xf32>
    %cst_186 = arith.constant 0.000000e+00 : f32
    %521 = vector.broadcast %cst_186 : f32 to vector<2x512xf32>
    %522 = arith.maximumf %520, %521 : vector<2x512xf32>
    %523 = arith.truncf %522 : vector<2x512xf32> to vector<2x512xbf16>
    %c1024_187 = arith.constant 1024 : index
    %c0_188 = arith.constant 0 : index
    %524 = vector.load %arg34[%c1024_187, %c0_188] : memref<2048x128xbf16, #tpu.memory_space<vmem>>, vector<512x128xbf16>
    %cst_189 = arith.constant dense<0.000000e+00> : vector<2x128xf32>
    %525 = tpu.matmul %523, %524, %cst_189 {dimension_numbers = #tpu.dot_dimension_numbers<[1], [0], [0], [1], [0, 0, 1, 1], [], []>} : vector<2x512xbf16>, vector<512x128xbf16>, vector<2x128xf32> -> vector<2x128xf32>
    %526 = arith.addf %515, %525 : vector<2x128xf32>
    %c0_190 = arith.constant 0 : index
    %c1536_191 = arith.constant 1536 : index
    %527 = vector.load %arg33[%c0_190, %c1536_191] : memref<128x2048xbf16, #tpu.memory_space<vmem>>, vector<128x512xbf16>
    %cst_192 = arith.constant dense<0.000000e+00> : vector<2x512xf32>
    %528 = tpu.matmul %492, %527, %cst_192 {dimension_numbers = #tpu.dot_dimension_numbers<[1], [0], [0], [1], [0, 0, 1, 1], [], []>} : vector<2x128xbf16>, vector<128x512xbf16>, vector<2x512xf32> -> vector<2x512xf32>
    %c0_193 = arith.constant 0 : index
    %c1536_194 = arith.constant 1536 : index
    %529 = vector.load %arg25[%c0_193, %c1536_194] : memref<1x2048xf32, #tpu.memory_space<vmem>>, vector<1x512xf32>
    %530 = vector.broadcast %529 : vector<1x512xf32> to vector<2x512xf32>
    %531 = arith.addf %528, %530 : vector<2x512xf32>
    %cst_195 = arith.constant 0.000000e+00 : f32
    %532 = vector.broadcast %cst_195 : f32 to vector<2x512xf32>
    %533 = arith.maximumf %531, %532 : vector<2x512xf32>
    %534 = arith.truncf %533 : vector<2x512xf32> to vector<2x512xbf16>
    %c1536_196 = arith.constant 1536 : index
    %c0_197 = arith.constant 0 : index
    %535 = vector.load %arg34[%c1536_196, %c0_197] : memref<2048x128xbf16, #tpu.memory_space<vmem>>, vector<512x128xbf16>
    %cst_198 = arith.constant dense<0.000000e+00> : vector<2x128xf32>
    %536 = tpu.matmul %534, %535, %cst_198 {dimension_numbers = #tpu.dot_dimension_numbers<[1], [0], [0], [1], [0, 0, 1, 1], [], []>} : vector<2x512xbf16>, vector<512x128xbf16>, vector<2x128xf32> -> vector<2x128xf32>
    %537 = arith.addf %526, %536 : vector<2x128xf32>
    %538 = arith.addf %487, %537 : vector<2x128xf32>
    %c0_199 = arith.constant 0 : index
    %c0_200 = arith.constant 0 : index
    %539 = vector.load %arg27[%c0_199, %c0_200] : memref<1x128xf32, #tpu.memory_space<vmem>>, vector<1x128xf32>
    %540 = vector.broadcast %539 : vector<1x128xf32> to vector<2x128xf32>
    %541 = arith.addf %538, %540 : vector<2x128xf32>
    %c0_201 = arith.constant 0 : index
    %c0_202 = arith.constant 0 : index
    %542 = vector.load %arg28[%c0_201, %c0_202] : memref<1x128xf32, #tpu.memory_space<vmem>>, vector<1x128xf32>
    %c0_203 = arith.constant 0 : index
    %c0_204 = arith.constant 0 : index
    %543 = vector.load %arg29[%c0_203, %c0_204] : memref<1x128xf32, #tpu.memory_space<vmem>>, vector<1x128xf32>
    %cst_205 = arith.constant dense<0.000000e+00> : vector<2xf32>
    %544 = vector.multi_reduction <add>, %541, %cst_205 [1] : vector<2x128xf32> to vector<2xf32>
    %545 = vector.shape_cast %544 : vector<2xf32> to vector<2x1xf32>
    %cst_206 = arith.constant 1.280000e+02 : f32
    %546 = vector.broadcast %cst_206 : f32 to vector<2x1xf32>
    %547 = arith.divf %545, %546 : vector<2x1xf32>
    %548 = vector.broadcast %547 : vector<2x1xf32> to vector<2x128xf32>
    %549 = arith.subf %541, %548 : vector<2x128xf32>
    %550 = arith.mulf %549, %549 : vector<2x128xf32>
    %cst_207 = arith.constant dense<0.000000e+00> : vector<2xf32>
    %551 = vector.multi_reduction <add>, %550, %cst_207 [1] : vector<2x128xf32> to vector<2xf32>
    %552 = vector.shape_cast %551 : vector<2xf32> to vector<2x1xf32>
    %cst_208 = arith.constant 1.280000e+02 : f32
    %553 = vector.broadcast %cst_208 : f32 to vector<2x1xf32>
    %554 = arith.divf %552, %553 : vector<2x1xf32>
    %555 = vector.broadcast %547 : vector<2x1xf32> to vector<2x128xf32>
    %556 = arith.subf %541, %555 : vector<2x128xf32>
    %cst_209 = arith.constant 9.99999974E-6 : f32
    %557 = vector.broadcast %cst_209 : f32 to vector<2x1xf32>
    %558 = arith.addf %554, %557 : vector<2x1xf32>
    %559 = math.rsqrt %558 : vector<2x1xf32>
    %560 = vector.broadcast %559 : vector<2x1xf32> to vector<2x128xf32>
    %561 = arith.mulf %556, %560 : vector<2x128xf32>
    %562 = vector.broadcast %542 : vector<1x128xf32> to vector<2x128xf32>
    %563 = arith.mulf %561, %562 : vector<2x128xf32>
    %564 = vector.broadcast %543 : vector<1x128xf32> to vector<2x128xf32>
    %565 = arith.addf %563, %564 : vector<2x128xf32>
    %c0_210 = arith.constant 0 : index
    %c0_211 = arith.constant 0 : index
    %566 = vector.load %arg30[%c0_210, %c0_211] : memref<2x128xf32, #tpu.memory_space<vmem>>, vector<2x128xf32>
    tpu.vector_store %arg30[%c0_210, %c0_211], %565 {strides = array<i32>} : memref<2x128xf32, #tpu.memory_space<vmem>>, vector<2x128xf32>,
    return
  }
  func.func @transform_0(%arg0: i32) -> (i32, i32) {
    %c0_i32 = arith.constant 0 : i32
    %c0_i32_0 = arith.constant 0 : i32
    %c0_i32_1 = arith.constant 0 : i32
    return %c0_i32, %c0_i32_0 : i32, i32
  }
  func.func @transform_1(%arg0: i32) -> (i32, i32) {
    %c0_i32 = arith.constant 0 : i32
    %c0_i32_0 = arith.constant 0 : i32
    %c0_i32_1 = arith.constant 0 : i32
    return %c0_i32, %c0_i32_0 : i32, i32
  }
  func.func @transform_2(%arg0: i32) -> (i32, i32) {
    %c0_i32 = arith.constant 0 : i32
    %c0_i32_0 = arith.constant 0 : i32
    %c0_i32_1 = arith.constant 0 : i32
    return %c0_i32, %c0_i32_0 : i32, i32
  }
  func.func @transform_3(%arg0: i32) -> (i32, i32) {
    %c0_i32 = arith.constant 0 : i32
    %c0_i32_0 = arith.constant 0 : i32
    %c0_i32_1 = arith.constant 0 : i32
    return %c0_i32, %c0_i32_0 : i32, i32
  }
  func.func @transform_4(%arg0: i32) -> (i32, i32) {
    %c0_i32 = arith.constant 0 : i32
    %c0_i32_0 = arith.constant 0 : i32
    %c0_i32_1 = arith.constant 0 : i32
    return %c0_i32, %c0_i32_0 : i32, i32
  }
  func.func @transform_5(%arg0: i32) -> (i32, i32) {
    %c0_i32 = arith.constant 0 : i32
    %c0_i32_0 = arith.constant 0 : i32
    %c0_i32_1 = arith.constant 0 : i32
    return %c0_i32, %c0_i32_0 : i32, i32
  }
  func.func @transform_6(%arg0: i32) -> (i32, i32) {
    %c0_i32 = arith.constant 0 : i32
    %c0_i32_0 = arith.constant 0 : i32
    %c0_i32_1 = arith.constant 0 : i32
    return %c0_i32, %c0_i32_0 : i32, i32
  }
  func.func @transform_7(%arg0: i32) -> (i32, i32) {
    %c0_i32 = arith.constant 0 : i32
    %c0_i32_0 = arith.constant 0 : i32
    %c0_i32_1 = arith.constant 0 : i32
    return %c0_i32, %c0_i32_0 : i32, i32
  }
  func.func @transform_8(%arg0: i32) -> (i32, i32) {
    %c0_i32 = arith.constant 0 : i32
    %c0_i32_0 = arith.constant 0 : i32
    %c0_i32_1 = arith.constant 0 : i32
    return %c0_i32, %c0_i32_0 : i32, i32
  }
  func.func @transform_10(%arg0: i32) -> (i32, i32) {
    %c0_i32 = arith.constant 0 : i32
    %c0_i32_0 = arith.constant 0 : i32
    %c0_i32_1 = arith.constant 0 : i32
    return %c0_i32, %c0_i32_0 : i32, i32
  }
  func.func @transform_12(%arg0: i32) -> (i32, i32) {
    %c0_i32 = arith.constant 0 : i32
    %c0_i32_0 = arith.constant 0 : i32
    %c0_i32_1 = arith.constant 0 : i32
    return %c0_i32, %c0_i32_0 : i32, i32
  }
  func.func @transform_13(%arg0: i32) -> (i32, i32) {
    %c0_i32 = arith.constant 0 : i32
    %c0_i32_0 = arith.constant 0 : i32
    %c0_i32_1 = arith.constant 0 : i32
    return %c0_i32, %c0_i32_0 : i32, i32
  }
  func.func @transform_14(%arg0: i32) -> (i32, i32) {
    %c0_i32 = arith.constant 0 : i32
    %c0_i32_0 = arith.constant 0 : i32
    %c0_i32_1 = arith.constant 0 : i32
    return %c0_i32, %c0_i32_0 : i32, i32
  }
  func.func @transform_15(%arg0: i32) -> (i32, i32) {
    %c0_i32 = arith.constant 0 : i32
    %c0_i32_0 = arith.constant 0 : i32
    %c0_i32_1 = arith.constant 0 : i32
    return %c0_i32, %c0_i32_0 : i32, i32
  }
  func.func @transform_16(%arg0: i32) -> (i32, i32) {
    %c0_i32 = arith.constant 0 : i32
    %c0_i32_0 = arith.constant 0 : i32
    %c0_i32_1 = arith.constant 0 : i32
    return %c0_i32, %c0_i32_0 : i32, i32
  }
  func.func @transform_17(%arg0: i32) -> (i32, i32) {
    %c0_i32 = arith.constant 0 : i32
    %c0_i32_0 = arith.constant 0 : i32
    %c0_i32_1 = arith.constant 0 : i32
    return %c0_i32, %c0_i32_0 : i32, i32
  }
  func.func @transform_18(%arg0: i32) -> (i32, i32) {
    %c0_i32 = arith.constant 0 : i32
    %c0_i32_0 = arith.constant 0 : i32
    %c0_i32_1 = arith.constant 0 : i32
    return %c0_i32, %c0_i32_0 : i32, i32
  }
  func.func @transform_19(%arg0: i32) -> (i32, i32) {
    %c0_i32 = arith.constant 0 : i32
    %c0_i32_0 = arith.constant 0 : i32
    %c0_i32_1 = arith.constant 0 : i32
    return %c0_i32, %c0_i32_0 : i32, i32
  }
  func.func @transform_20(%arg0: i32) -> (i32, i32) {
    %c0_i32 = arith.constant 0 : i32
    %c0_i32_0 = arith.constant 0 : i32
    %c0_i32_1 = arith.constant 0 : i32
    return %c0_i32, %c0_i32_0 : i32, i32
  }
  func.func @transform_21(%arg0: i32) -> (i32, i32) {
    %c0_i32 = arith.constant 0 : i32
    %c0_i32_0 = arith.constant 0 : i32
    %c0_i32_1 = arith.constant 0 : i32
    return %c0_i32, %c0_i32_0 : i32, i32
  }
  func.func @transform_22(%arg0: i32) -> (i32, i32) {
    %c0_i32 = arith.constant 0 : i32
    %c0_i32_0 = arith.constant 0 : i32
    %c0_i32_1 = arith.constant 0 : i32
    return %c0_i32, %c0_i32_0 : i32, i32
  }
  func.func @transform_24(%arg0: i32) -> (i32, i32) {
    %c0_i32 = arith.constant 0 : i32
    %c0_i32_0 = arith.constant 0 : i32
    %c0_i32_1 = arith.constant 0 : i32
    return %c0_i32, %c0_i32_0 : i32, i32
  }
  func.func @transform_26(%arg0: i32) -> (i32, i32) {
    %c0_i32 = arith.constant 0 : i32
    %c0_i32_0 = arith.constant 0 : i32
    %c0_i32_1 = arith.constant 0 : i32
    return %c0_i32, %c0_i32_0 : i32, i32
  }
  func.func @transform_27(%arg0: i32) -> (i32, i32) {
    %c0_i32 = arith.constant 0 : i32
    %c0_i32_0 = arith.constant 0 : i32
    %c0_i32_1 = arith.constant 0 : i32
    return %c0_i32, %c0_i32_0 : i32, i32
  }
  func.func @transform_28(%arg0: i32) -> (i32, i32) {
    %c0_i32 = arith.constant 0 : i32
    %c0_i32_0 = arith.constant 0 : i32
    %c0_i32_1 = arith.constant 0 : i32
    return %c0_i32, %c0_i32_0 : i32, i32
  }
  func.func @transform_29(%arg0: i32) -> (i32, i32) {
    %c0_i32 = arith.constant 0 : i32
    %c0_i32_0 = arith.constant 0 : i32
    %c0_i32_1 = arith.constant 0 : i32
    return %c0_i32, %c0_i32_0 : i32, i32
  }
}

</mosaic_0001>

<llo_original>
// kernel: temporal_layer_forward.1
$region0: #{temporal_layer_forward.1}
  #allocation0 [shape = 'u32[]', space=smem, size = 0x4, offset = 0x4, fixed_abs, tag = 'smem constant byte address 0x4 - core index']
  #allocation1 [shape = 'u32[144,128]{1,0:T(1,128)}', space=vmem, size = 0x12000, scoped, tag = 'internal scratch']
  #allocation2 [shape = 'bf16[128,2048]{1,0:T(16,128)(2,1)}', space=vmem, size = 0x80000, scoped, tag = 'scratch operand']
  #allocation3 [shape = 'bf16[2048,128]{1,0:T(16,128)(2,1)}', space=vmem, size = 0x80000, scoped, tag = 'scratch operand']
  #allocation4 [shape = 'bf16[128,2048]{1,0:T(16,128)(2,1)}', space=vmem, size = 0x80000, scoped, tag = 'scratch operand']
  #allocation5 [shape = 'bf16[2048,128]{1,0:T(16,128)(2,1)}', space=vmem, size = 0x80000, scoped, tag = 'scratch operand']
  #allocation6 [shape = 's32[4]{0}', space=sflag, size = 0x10, scoped, tag = 'scratch operand']
  #allocation37 [shape = 's32[]', space=sflag, size = 0x4, offset = 0, fixed_abs, tag = 'sflag constant byte address 0x0 - dummy sync flag']
  #allocation39 [shape = 's32[]', space=sflag, size = 0x4, offset = 0, fixed_abs, tag = 'sflag constant byte address 0x0 - dummy sync flag']
  #allocation40 [shape = 's32[]', space=sflag, size = 0x4, offset = 0, fixed_abs, tag = 'sflag constant byte address 0x0 - dummy sync flag']
  #allocation41 [shape = 'u32[]', space=smem, size = 0x4, offset = 0x44, fixed_abs, tag = 'smem constant byte address 0x44 - assertion arg 0']
  #allocation42 [shape = 'u32[]', space=smem, size = 0x4, offset = 0x48, fixed_abs, tag = 'smem constant byte address 0x48 - assertion arg 1']
  #allocation43 [shape = 's32[]', space=sflag, size = 0x4, offset = 0, fixed_abs, tag = 'sflag constant byte address 0x0 - dummy sync flag']
  #allocation45 [shape = 's32[]', space=sflag, size = 0x4, offset = 0, fixed_abs, tag = 'sflag constant byte address 0x0 - dummy sync flag']
  #allocation46 [shape = 's32[]', space=sflag, size = 0x4, offset = 0, fixed_abs, tag = 'sflag constant byte address 0x0 - dummy sync flag']
  %s0 = inlined_call_operand.smem [shape: u32[30], index: -1, kind: input, shape index: {}]
  %s1 = sld [smem:[%s0]]
  %s2 = scalar_lea.smem %s0, 1
  %s3 = sld [smem:[%s2]]
  %s4 = scalar_lea.smem %s0, 2
  %s5 = sld [smem:[%s4]]
  %s6 = scalar_lea.smem %s0, 3
  %s7 = sld [smem:[%s6]]
  %s8 = scalar_lea.smem %s0, 4
  %s9 = sld [smem:[%s8]]
  %s10 = scalar_lea.smem %s0, 5
  %s11 = sld [smem:[%s10]]
  %s12 = scalar_lea.smem %s0, 6
  %s13 = sld [smem:[%s12]]
  %s14 = scalar_lea.smem %s0, 7
  %s15 = sld [smem:[%s14]]
  %s16 = scalar_lea.smem %s0, 8
  %s17 = sld [smem:[%s16]]
  %s18 = scalar_lea.smem %s0, 9
  %s19 = sld [smem:[%s18]]
  %s20 = scalar_lea.smem %s0, 10
  %s21 = sld [smem:[%s20]]
  %s22 = scalar_lea.smem %s0, 11
  %s23 = sld [smem:[%s22]]
  %s24 = scalar_lea.smem %s0, 12
  %s25 = sld [smem:[%s24]]
  %s26 = scalar_lea.smem %s0, 13
  %s27 = sld [smem:[%s26]]
  %s28 = scalar_lea.smem %s0, 14
  %s29 = sld [smem:[%s28]]
  %s30 = scalar_lea.smem %s0, 15
  %s31 = sld [smem:[%s30]]
  %s32 = scalar_lea.smem %s0, 16
  %s33 = sld [smem:[%s32]]
  %s34 = scalar_lea.smem %s0, 17
  %s35 = sld [smem:[%s34]]
  %s36 = scalar_lea.smem %s0, 18
  %s37 = sld [smem:[%s36]]
  %s38 = scalar_lea.smem %s0, 19
  %s39 = sld [smem:[%s38]]
  %s40 = scalar_lea.smem %s0, 20
  %s41 = sld [smem:[%s40]]
  %s42 = scalar_lea.smem %s0, 21
  %s43 = sld [smem:[%s42]]
  %s44 = scalar_lea.smem %s0, 22
  %s45 = sld [smem:[%s44]]
  %s46 = scalar_lea.smem %s0, 23
  %s47 = sld [smem:[%s46]]
  %s48 = scalar_lea.smem %s0, 24
  %s49 = sld [smem:[%s48]]
  %s50 = scalar_lea.smem %s0, 25
  %s51 = sld [smem:[%s50]]
  %s52 = scalar_lea.smem %s0, 26
  %s53 = sld [smem:[%s52]]
  %s54 = scalar_lea.smem %s0, 27
  %s55 = sld [smem:[%s54]]
  %s56 = scalar_lea.smem %s0, 28
  %s57 = sld [smem:[%s56]]
  %s58 = scalar_lea.smem %s0, 29
  %s59 = sld [smem:[%s58]]
  %s60 = sld [smem:[#allocation0]]
  $region190: #{temporal_layer_forward.1} parent=0
    _
  %s62 = ssub.s32 1, %s60
  %s63 = scalar_select 0, %s62, %s60
  $region1: #{temporal_layer_forward.1} parent=0
    #allocation7 [shape = 'u8[512]{0}', space=vmem, size = 0x400, scoped, tag = 'input window, operand 2, single buffered']
    #allocation8 [shape = 's32[1]{0}', space=sflag, size = 0x4, scoped, tag = 'scoped memory for temporal_layer_forward.1']
    #allocation9 [shape = 's32[1]{0}', space=sflag, size = 0x4, scoped, tag = 'scoped memory for temporal_layer_forward.1']
    #allocation10 [shape = 'u8[32768]{0}', space=vmem, size = 0x8000, scoped, tag = 'input window, operand 5, single buffered']
    #allocation11 [shape = 's32[1]{0}', space=sflag, size = 0x4, scoped, tag = 'scoped memory for temporal_layer_forward.1']
    #allocation12 [shape = 'u8[512]{0}', space=vmem, size = 0x400, scoped, tag = 'input window, operand 6, single buffered']
    #allocation13 [shape = 'u8[512]{0}', space=vmem, size = 0x400, scoped, tag = 'input window, operand 7, single buffered']
    #allocation14 [shape = 's32[1]{0}', space=sflag, size = 0x4, scoped, tag = 'scoped memory for temporal_layer_forward.1']
    #allocation15 [shape = 'u8[512]{0}', space=vmem, size = 0x400, scoped, tag = 'input window, operand 8, single buffered']
    #allocation16 [shape = 'u8[512]{0}', space=vmem, size = 0x400, scoped, tag = 'input window, operand 12, single buffered']
    #allocation17 [shape = 's32[1]{0}', space=sflag, size = 0x4, scoped, tag = 'scoped memory for temporal_layer_forward.1']
    #allocation18 [shape = 'u8[512]{0}', space=vmem, size = 0x400, scoped, tag = 'input window, operand 13, single buffered']
    #allocation19 [shape = 'u8[512]{0}', space=vmem, size = 0x400, scoped, tag = 'input window, operand 14, single buffered']
    #allocation20 [shape = 's32[1]{0}', space=sflag, size = 0x4, scoped, tag = 'scoped memory for temporal_layer_forward.1']
    #allocation21 [shape = 'u8[32768]{0}', space=vmem, size = 0x8000, scoped, tag = 'input window, operand 15, single buffered']
    #allocation22 [shape = 'u8[512]{0}', space=vmem, size = 0x400, scoped, tag = 'input window, operand 16, single buffered']
    #allocation23 [shape = 's32[1]{0}', space=sflag, size = 0x4, scoped, tag = 'scoped memory for temporal_layer_forward.1']
    #allocation24 [shape = 'u8[65536]{0}', space=vmem, size = 0x10000, scoped, tag = 'input window, operand 17, single buffered']
    #allocation25 [shape = 'u8[32768]{0}', space=vmem, size = 0x8000, scoped, tag = 'input window, operand 19, single buffered']
    #allocation26 [shape = 's32[1]{0}', space=sflag, size = 0x4, scoped, tag = 'scoped memory for temporal_layer_forward.1']
    #allocation27 [shape = 'u8[512]{0}', space=vmem, size = 0x400, scoped, tag = 'input window, operand 20, single buffered']
    #allocation28 [shape = 'u8[512]{0}', space=vmem, size = 0x400, scoped, tag = 'input window, operand 21, single buffered']
    #allocation29 [shape = 's32[1]{0}', space=sflag, size = 0x4, scoped, tag = 'scoped memory for temporal_layer_forward.1']
    #allocation30 [shape = 'u8[512]{0}', space=vmem, size = 0x400, scoped, tag = 'input window, operand 22, single buffered']
    #allocation31 [shape = 'u8[512]{0}', space=vmem, size = 0x400, scoped, tag = 'input window, operand 26, single buffered']
    #allocation32 [shape = 's32[1]{0}', space=sflag, size = 0x4, scoped, tag = 'scoped memory for temporal_layer_forward.1']
    #allocation33 [shape = 'u8[512]{0}', space=vmem, size = 0x400, scoped, tag = 'input window, operand 27, single buffered']
    #allocation34 [shape = 'u8[512]{0}', space=vmem, size = 0x400, scoped, tag = 'input window, operand 28, single buffered']
    #allocation35 [shape = 's32[1]{0}', space=sflag, size = 0x4, scoped, tag = 'scoped memory for temporal_layer_forward.1']
    #allocation36 [shape = 'u8[1024]{0}', space=vmem, size = 0x400, scoped, tag = 'output window, operand 0, single buffered']
    #allocation38 [shape = 'u32[9]{0}', space=smem, size = 0x24, scoped, tag = 'DMA stride descriptor']
    #allocation44 [shape = 'u32[9]{0}', space=smem, size = 0x24, scoped, tag = 'DMA stride descriptor']
    %64 = vsyncpa [#allocation8], 0
    %65 = vsyncpa [#allocation11], 0
    %66 = vsyncpa [#allocation14], 0
    %67 = vsyncpa [#allocation17], 0
    %68 = vsyncpa [#allocation20], 0
    %69 = vsyncpa [#allocation23], 0
    %70 = vsyncpa [#allocation26], 0
    %71 = vsyncpa [#allocation29], 0
    %72 = vsyncpa [#allocation32], 0
    %73 = vsyncpa [#allocation35], 0
    %74 = vsyncpa [#allocation9], 0
    // Predicated region
    $region2: #{temporal_layer_forward.1} parent=1 // pred_check
      _
    $region3: #{temporal_layer_forward.1} parent=1 // pred_check_branch
      %76 = sbr.rel (0) target = $region5
    $region4: #{temporal_layer_forward.1} parent=1 // pred_region
      _
    $region5: #{temporal_layer_forward.1} parent=1 // pred_fallthru
      _
    // Predicated region
    $region6: #{temporal_layer_forward.1} parent=1 // pred_check
      _
    $region7: #{temporal_layer_forward.1} parent=1 // pred_check_branch
      %78 = sbr.rel (0) target = $region9
    $region8: #{temporal_layer_forward.1} parent=1 // pred_region
      _
    $region9: #{temporal_layer_forward.1} parent=1 // pred_fallthru
      _
    // Predicated region
    $region10: #{temporal_layer_forward.1} parent=1 // pred_check
      _
    $region11: #{temporal_layer_forward.1} parent=1 // pred_check_branch
      %80 = sbr.rel (0) target = $region13
    $region12: #{temporal_layer_forward.1} parent=1 // pred_region
      %s82 = ssub.s32 16, 16
      %83 = vsyncadd [#allocation8], %s82
      %s85 = sshll.u32 [#allocation7], 4
      %s86 = int_to_ptr.vmem [resolvable:$true] %s85
      %88 = dma.hbm_to_vmem [thread:$0]  %s5, 16, %s86, [#allocation8]
    $region13: #{temporal_layer_forward.1} parent=1 // pred_fallthru
      _
    // Predicated region
    $region14: #{temporal_layer_forward.1} parent=1 // pred_check
      _
    $region15: #{temporal_layer_forward.1} parent=1 // pred_check_branch
      %90 = sbr.rel (0) target = $region17
    $region16: #{temporal_layer_forward.1} parent=1 // pred_region
      _
    $region17: #{temporal_layer_forward.1} parent=1 // pred_fallthru
      _
    // Predicated region
    $region18: #{temporal_layer_forward.1} parent=1 // pred_check
      _
    $region19: #{temporal_layer_forward.1} parent=1 // pred_check_branch
      %92 = sbr.rel (0) target = $region21
    $region20: #{temporal_layer_forward.1} parent=1 // pred_region
      _
    $region21: #{temporal_layer_forward.1} parent=1 // pred_fallthru
      _
    // Predicated region
    $region22: #{temporal_layer_forward.1} parent=1 // pred_check
      _
    $region23: #{temporal_layer_forward.1} parent=1 // pred_check_branch
      %94 = sbr.rel (0) target = $region25
    $region24: #{temporal_layer_forward.1} parent=1 // pred_region
      %s96 = ssub.s32 1024, 1024
      %97 = vsyncadd [#allocation11], %s96
      %s98 = sshll.u32 [#allocation10], 4
      %s99 = int_to_ptr.vmem [resolvable:$true] %s98
      %104 = dma.hbm_to_vmem [thread:$0]  %s11, 1024, %s99, [#allocation11], 64, 64, 4
    $region25: #{temporal_layer_forward.1} parent=1 // pred_fallthru
      _
    // Predicated region
    $region26: #{temporal_layer_forward.1} parent=1 // pred_check
      _
    $region27: #{temporal_layer_forward.1} parent=1 // pred_check_branch
      %106 = sbr.rel (0) target = $region29
    $region28: #{temporal_layer_forward.1} parent=1 // pred_region
      %s108 = ssub.s32 16, 16
      %109 = vsyncadd [#allocation11], %s108
      %s111 = sshll.u32 [#allocation12], 4
      %s112 = int_to_ptr.vmem [resolvable:$true] %s111
      %114 = dma.hbm_to_vmem [thread:$0]  %s13, 16, %s112, [#allocation11]
    $region29: #{temporal_layer_forward.1} parent=1 // pred_fallthru
      _
    // Predicated region
    $region30: #{temporal_layer_forward.1} parent=1 // pred_check
      _
    $region31: #{temporal_layer_forward.1} parent=1 // pred_check_branch
      %116 = sbr.rel (0) target = $region33
    $region32: #{temporal_layer_forward.1} parent=1 // pred_region
      %s118 = ssub.s32 16, 16
      %119 = vsyncadd [#allocation14], %s118
      %s121 = sshll.u32 [#allocation13], 4
      %s122 = int_to_ptr.vmem [resolvable:$true] %s121
      %124 = dma.hbm_to_vmem [thread:$0]  %s15, 16, %s122, [#allocation14]
    $region33: #{temporal_layer_forward.1} parent=1 // pred_fallthru
      _
    // Predicated region
    $region34: #{temporal_layer_forward.1} parent=1 // pred_check
      _
    $region35: #{temporal_layer_forward.1} parent=1 // pred_check_branch
      %126 = sbr.rel (0) target = $region37
    $region36: #{temporal_layer_forward.1} parent=1 // pred_region
      %s128 = ssub.s32 16, 16
      %129 = vsyncadd [#allocation14], %s128
      %s131 = sshll.u32 [#allocation15], 4
      %s132 = int_to_ptr.vmem [resolvable:$true] %s131
      %134 = dma.hbm_to_vmem [thread:$0]  %s17, 16, %s132, [#allocation14]
    $region37: #{temporal_layer_forward.1} parent=1 // pred_fallthru
      _
    // Predicated region
    $region38: #{temporal_layer_forward.1} parent=1 // pred_check
      _
    $region39: #{temporal_layer_forward.1} parent=1 // pred_check_branch
      %136 = sbr.rel (0) target = $region41
    $region40: #{temporal_layer_forward.1} parent=1 // pred_region
      _
    $region41: #{temporal_layer_forward.1} parent=1 // pred_fallthru
      _
    // Predicated region
    $region42: #{temporal_layer_forward.1} parent=1 // pred_check
      _
    $region43: #{temporal_layer_forward.1} parent=1 // pred_check_branch
      %138 = sbr.rel (0) target = $region45
    $region44: #{temporal_layer_forward.1} parent=1 // pred_region
      %s140 = ssub.s32 16, 16
      %141 = vsyncadd [#allocation17], %s140
      %s143 = sshll.u32 [#allocation16], 4
      %s144 = int_to_ptr.vmem [resolvable:$true] %s143
      %146 = dma.hbm_to_vmem [thread:$0]  %s25, 16, %s144, [#allocation17]
    $region45: #{temporal_layer_forward.1} parent=1 // pred_fallthru
      _
    // Predicated region
    $region46: #{temporal_layer_forward.1} parent=1 // pred_check
      _
    $region47: #{temporal_layer_forward.1} parent=1 // pred_check_branch
      %148 = sbr.rel (0) target = $region49
    $region48: #{temporal_layer_forward.1} parent=1 // pred_region
      %s150 = ssub.s32 16, 16
      %151 = vsyncadd [#allocation17], %s150
      %s153 = sshll.u32 [#allocation18], 4
      %s154 = int_to_ptr.vmem [resolvable:$true] %s153
      %156 = dma.hbm_to_vmem [thread:$0]  %s27, 16, %s154, [#allocation17]
    $region49: #{temporal_layer_forward.1} parent=1 // pred_fallthru
      _
    // Predicated region
    $region50: #{temporal_layer_forward.1} parent=1 // pred_check
      _
    $region51: #{temporal_layer_forward.1} parent=1 // pred_check_branch
      %158 = sbr.rel (0) target = $region53
    $region52: #{temporal_layer_forward.1} parent=1 // pred_region
      %s160 = ssub.s32 16, 16
      %161 = vsyncadd [#allocation20], %s160
      %s163 = sshll.u32 [#allocation19], 4
      %s164 = int_to_ptr.vmem [resolvable:$true] %s163
      %166 = dma.hbm_to_vmem [thread:$0]  %s29, 16, %s164, [#allocation20]
    $region53: #{temporal_layer_forward.1} parent=1 // pred_fallthru
      _
    // Predicated region
    $region54: #{temporal_layer_forward.1} parent=1 // pred_check
      _
    $region55: #{temporal_layer_forward.1} parent=1 // pred_check_branch
      %168 = sbr.rel (0) target = $region57
    $region56: #{temporal_layer_forward.1} parent=1 // pred_region
      %s170 = ssub.s32 1024, 1024
      %171 = vsyncadd [#allocation20], %s170
      %s172 = sshll.u32 [#allocation21], 4
      %s173 = int_to_ptr.vmem [resolvable:$true] %s172
      %178 = dma.hbm_to_vmem [thread:$0]  %s31, 1024, %s173, [#allocation20], 64, 64, 4
    $region57: #{temporal_layer_forward.1} parent=1 // pred_fallthru
      _
    // Predicated region
    $region58: #{temporal_layer_forward.1} parent=1 // pred_check
      _
    $region59: #{temporal_layer_forward.1} parent=1 // pred_check_branch
      %180 = sbr.rel (0) target = $region61
    $region60: #{temporal_layer_forward.1} parent=1 // pred_region
      %s182 = ssub.s32 16, 16
      %183 = vsyncadd [#allocation23], %s182
      %s185 = sshll.u32 [#allocation22], 4
      %s186 = int_to_ptr.vmem [resolvable:$true] %s185
      %188 = dma.hbm_to_vmem [thread:$0]  %s33, 16, %s186, [#allocation23]
    $region61: #{temporal_layer_forward.1} parent=1 // pred_fallthru
      _
    // Predicated region
    $region62: #{temporal_layer_forward.1} parent=1 // pred_check
      _
    $region63: #{temporal_layer_forward.1} parent=1 // pred_check_branch
      %190 = sbr.rel (0) target = $region65
    $region64: #{temporal_layer_forward.1} parent=1 // pred_region
      %s192 = ssub.s32 2048, 2048
      %193 = vsyncadd [#allocation23], %s192
      %s194 = sshll.u32 [#allocation24], 4
      %s195 = int_to_ptr.vmem [resolvable:$true] %s194
      %200 = dma.hbm_to_vmem [thread:$0]  %s35, 2048, %s195, [#allocation23], 128, 128, 8
    $region65: #{temporal_layer_forward.1} parent=1 // pred_fallthru
      _
    // Predicated region
    $region66: #{temporal_layer_forward.1} parent=1 // pred_check
      _
    $region67: #{temporal_layer_forward.1} parent=1 // pred_check_branch
      %202 = sbr.rel (0) target = $region69
    $region68: #{temporal_layer_forward.1} parent=1 // pred_region
      _
    $region69: #{temporal_layer_forward.1} parent=1 // pred_fallthru
      _
    // Predicated region
    $region70: #{temporal_layer_forward.1} parent=1 // pred_check
      _
    $region71: #{temporal_layer_forward.1} parent=1 // pred_check_branch
      %204 = sbr.rel (0) target = $region73
    $region72: #{temporal_layer_forward.1} parent=1 // pred_region
      %s206 = ssub.s32 1024, 1024
      %207 = vsyncadd [#allocation26], %s206
      %s208 = sshll.u32 [#allocation25], 4
      %s209 = int_to_ptr.vmem [resolvable:$true] %s208
      %214 = dma.hbm_to_vmem [thread:$0]  %s39, 1024, %s209, [#allocation26], 64, 64, 4
    $region73: #{temporal_layer_forward.1} parent=1 // pred_fallthru
      _
    // Predicated region
    $region74: #{temporal_layer_forward.1} parent=1 // pred_check
      _
    $region75: #{temporal_layer_forward.1} parent=1 // pred_check_branch
      %216 = sbr.rel (0) target = $region77
    $region76: #{temporal_layer_forward.1} parent=1 // pred_region
      %s218 = ssub.s32 16, 16
      %219 = vsyncadd [#allocation26], %s218
      %s221 = sshll.u32 [#allocation27], 4
      %s222 = int_to_ptr.vmem [resolvable:$true] %s221
      %224 = dma.hbm_to_vmem [thread:$0]  %s41, 16, %s222, [#allocation26]
    $region77: #{temporal_layer_forward.1} parent=1 // pred_fallthru
      _
    // Predicated region
    $region78: #{temporal_layer_forward.1} parent=1 // pred_check
      _
    $region79: #{temporal_layer_forward.1} parent=1 // pred_check_branch
      %226 = sbr.rel (0) target = $region81
    $region80: #{temporal_layer_forward.1} parent=1 // pred_region
      %s228 = ssub.s32 16, 16
      %229 = vsyncadd [#allocation29], %s228
      %s231 = sshll.u32 [#allocation28], 4
      %s232 = int_to_ptr.vmem [resolvable:$true] %s231
      %234 = dma.hbm_to_vmem [thread:$0]  %s43, 16, %s232, [#allocation29]
    $region81: #{temporal_layer_forward.1} parent=1 // pred_fallthru
      _
    // Predicated region
    $region82: #{temporal_layer_forward.1} parent=1 // pred_check
      _
    $region83: #{temporal_layer_forward.1} parent=1 // pred_check_branch
      %236 = sbr.rel (0) target = $region85
    $region84: #{temporal_layer_forward.1} parent=1 // pred_region
      %s238 = ssub.s32 16, 16
      %239 = vsyncadd [#allocation29], %s238
      %s241 = sshll.u32 [#allocation30], 4
      %s242 = int_to_ptr.vmem [resolvable:$true] %s241
      %244 = dma.hbm_to_vmem [thread:$0]  %s45, 16, %s242, [#allocation29]
    $region85: #{temporal_layer_forward.1} parent=1 // pred_fallthru
      _
    // Predicated region
    $region86: #{temporal_layer_forward.1} parent=1 // pred_check
      _
    $region87: #{temporal_layer_forward.1} parent=1 // pred_check_branch
      %246 = sbr.rel (0) target = $region89
    $region88: #{temporal_layer_forward.1} parent=1 // pred_region
      _
    $region89: #{temporal_layer_forward.1} parent=1 // pred_fallthru
      _
    // Predicated region
    $region90: #{temporal_layer_forward.1} parent=1 // pred_check
      _
    $region91: #{temporal_layer_forward.1} parent=1 // pred_check_branch
      %248 = sbr.rel (0) target = $region93
    $region92: #{temporal_layer_forward.1} parent=1 // pred_region
      %s250 = ssub.s32 16, 16
      %251 = vsyncadd [#allocation32], %s250
      %s253 = sshll.u32 [#allocation31], 4
      %s254 = int_to_ptr.vmem [resolvable:$true] %s253
      %256 = dma.hbm_to_vmem [thread:$0]  %s53, 16, %s254, [#allocation32]
    $region93: #{temporal_layer_forward.1} parent=1 // pred_fallthru
      _
    // Predicated region
    $region94: #{temporal_layer_forward.1} parent=1 // pred_check
      _
    $region95: #{temporal_layer_forward.1} parent=1 // pred_check_branch
      %258 = sbr.rel (0) target = $region97
    $region96: #{temporal_layer_forward.1} parent=1 // pred_region
      %s260 = ssub.s32 16, 16
      %261 = vsyncadd [#allocation32], %s260
      %s263 = sshll.u32 [#allocation33], 4
      %s264 = int_to_ptr.vmem [resolvable:$true] %s263
      %266 = dma.hbm_to_vmem [thread:$0]  %s55, 16, %s264, [#allocation32]
    $region97: #{temporal_layer_forward.1} parent=1 // pred_fallthru
      _
    // Predicated region
    $region98: #{temporal_layer_forward.1} parent=1 // pred_check
      _
    $region99: #{temporal_layer_forward.1} parent=1 // pred_check_branch
      %268 = sbr.rel (0) target = $region101
    $region100: #{temporal_layer_forward.1} parent=1 // pred_region
      %s270 = ssub.s32 16, 16
      %271 = vsyncadd [#allocation35], %s270
      %s273 = sshll.u32 [#allocation34], 4
      %s274 = int_to_ptr.vmem [resolvable:$true] %s273
      %276 = dma.hbm_to_vmem [thread:$0]  %s57, 16, %s274, [#allocation35]
    $region101: #{temporal_layer_forward.1} parent=1 // pred_fallthru
      _
    // Predicated region
    $region102: #{temporal_layer_forward.1} parent=1 // pred_check
      _
    $region103: #{temporal_layer_forward.1} parent=1 // pred_check_branch
      %278 = sbr.rel (0) target = $region105
    $region104: #{temporal_layer_forward.1} parent=1 // pred_region
      %279 = dma.done [#allocation8], 16
    $region105: #{temporal_layer_forward.1} parent=1 // pred_fallthru
      _
    // Predicated region
    $region106: #{temporal_layer_forward.1} parent=1 // pred_check
      _
    $region107: #{temporal_layer_forward.1} parent=1 // pred_check_branch
      %281 = sbr.rel (0) target = $region109
    $region108: #{temporal_layer_forward.1} parent=1 // pred_region
      %282 = dma.done [#allocation11], 1024
    $region109: #{temporal_layer_forward.1} parent=1 // pred_fallthru
      _
    // Predicated region
    $region110: #{temporal_layer_forward.1} parent=1 // pred_check
      _
    $region111: #{temporal_layer_forward.1} parent=1 // pred_check_branch
      %284 = sbr.rel (0) target = $region113
    $region112: #{temporal_layer_forward.1} parent=1 // pred_region
      %285 = dma.done [#allocation11], 16
    $region113: #{temporal_layer_forward.1} parent=1 // pred_fallthru
      _
    // Predicated region
    $region114: #{temporal_layer_forward.1} parent=1 // pred_check
      _
    $region115: #{temporal_layer_forward.1} parent=1 // pred_check_branch
      %287 = sbr.rel (0) target = $region117
    $region116: #{temporal_layer_forward.1} parent=1 // pred_region
      %288 = dma.done [#allocation14], 16
    $region117: #{temporal_layer_forward.1} parent=1 // pred_fallthru
      _
    // Predicated region
    $region118: #{temporal_layer_forward.1} parent=1 // pred_check
      _
    $region119: #{temporal_layer_forward.1} parent=1 // pred_check_branch
      %290 = sbr.rel (0) target = $region121
    $region120: #{temporal_layer_forward.1} parent=1 // pred_region
      %291 = dma.done [#allocation14], 16
    $region121: #{temporal_layer_forward.1} parent=1 // pred_fallthru
      _
    // Predicated region
    $region122: #{temporal_layer_forward.1} parent=1 // pred_check
      _
    $region123: #{temporal_layer_forward.1} parent=1 // pred_check_branch
      %293 = sbr.rel (0) target = $region125
    $region124: #{temporal_layer_forward.1} parent=1 // pred_region
      %294 = dma.done [#allocation17], 16
    $region125: #{temporal_layer_forward.1} parent=1 // pred_fallthru
      _
    // Predicated region
    $region126: #{temporal_layer_forward.1} parent=1 // pred_check
      _
    $region127: #{temporal_layer_forward.1} parent=1 // pred_check_branch
      %296 = sbr.rel (0) target = $region129
    $region128: #{temporal_layer_forward.1} parent=1 // pred_region
      %297 = dma.done [#allocation17], 16
    $region129: #{temporal_layer_forward.1} parent=1 // pred_fallthru
      _
    // Predicated region
    $region130: #{temporal_layer_forward.1} parent=1 // pred_check
      _
    $region131: #{temporal_layer_forward.1} parent=1 // pred_check_branch
      %299 = sbr.rel (0) target = $region133
    $region132: #{temporal_layer_forward.1} parent=1 // pred_region
      %300 = dma.done [#allocation20], 16
    $region133: #{temporal_layer_forward.1} parent=1 // pred_fallthru
      _
    // Predicated region
    $region134: #{temporal_layer_forward.1} parent=1 // pred_check
      _
    $region135: #{temporal_layer_forward.1} parent=1 // pred_check_branch
      %302 = sbr.rel (0) target = $region137
    $region136: #{temporal_layer_forward.1} parent=1 // pred_region
      %303 = dma.done [#allocation20], 1024
    $region137: #{temporal_layer_forward.1} parent=1 // pred_fallthru
      _
    // Predicated region
    $region138: #{temporal_layer_forward.1} parent=1 // pred_check
      _
    $region139: #{temporal_layer_forward.1} parent=1 // pred_check_branch
      %305 = sbr.rel (0) target = $region141
    $region140: #{temporal_layer_forward.1} parent=1 // pred_region
      %306 = dma.done [#allocation23], 16
    $region141: #{temporal_layer_forward.1} parent=1 // pred_fallthru
      _
    // Predicated region
    $region142: #{temporal_layer_forward.1} parent=1 // pred_check
      _
    $region143: #{temporal_layer_forward.1} parent=1 // pred_check_branch
      %308 = sbr.rel (0) target = $region145
    $region144: #{temporal_layer_forward.1} parent=1 // pred_region
      %309 = dma.done [#allocation23], 2048
    $region145: #{temporal_layer_forward.1} parent=1 // pred_fallthru
      _
    // Predicated region
    $region146: #{temporal_layer_forward.1} parent=1 // pred_check
      _
    $region147: #{temporal_layer_forward.1} parent=1 // pred_check_branch
      %311 = sbr.rel (0) target = $region149
    $region148: #{temporal_layer_forward.1} parent=1 // pred_region
      %312 = dma.done [#allocation26], 1024
    $region149: #{temporal_layer_forward.1} parent=1 // pred_fallthru
      _
    // Predicated region
    $region150: #{temporal_layer_forward.1} parent=1 // pred_check
      _
    $region151: #{temporal_layer_forward.1} parent=1 // pred_check_branch
      %314 = sbr.rel (0) target = $region153
    $region152: #{temporal_layer_forward.1} parent=1 // pred_region
      %315 = dma.done [#allocation26], 16
    $region153: #{temporal_layer_forward.1} parent=1 // pred_fallthru
      _
    // Predicated region
    $region154: #{temporal_layer_forward.1} parent=1 // pred_check
      _
    $region155: #{temporal_layer_forward.1} parent=1 // pred_check_branch
      %317 = sbr.rel (0) target = $region157
    $region156: #{temporal_layer_forward.1} parent=1 // pred_region
      %318 = dma.done [#allocation29], 16
    $region157: #{temporal_layer_forward.1} parent=1 // pred_fallthru
      _
    // Predicated region
    $region158: #{temporal_layer_forward.1} parent=1 // pred_check
      _
    $region159: #{temporal_layer_forward.1} parent=1 // pred_check_branch
      %320 = sbr.rel (0) target = $region161
    $region160: #{temporal_layer_forward.1} parent=1 // pred_region
      %321 = dma.done [#allocation29], 16
    $region161: #{temporal_layer_forward.1} parent=1 // pred_fallthru
      _
    // Predicated region
    $region162: #{temporal_layer_forward.1} parent=1 // pred_check
      _
    $region163: #{temporal_layer_forward.1} parent=1 // pred_check_branch
      %323 = sbr.rel (0) target = $region165
    $region164: #{temporal_layer_forward.1} parent=1 // pred_region
      %324 = dma.done [#allocation32], 16
    $region165: #{temporal_layer_forward.1} parent=1 // pred_fallthru
      _
    // Predicated region
    $region166: #{temporal_layer_forward.1} parent=1 // pred_check
      _
    $region167: #{temporal_layer_forward.1} parent=1 // pred_check_branch
      %326 = sbr.rel (0) target = $region169
    $region168: #{temporal_layer_forward.1} parent=1 // pred_region
      %327 = dma.done [#allocation32], 16
    $region169: #{temporal_layer_forward.1} parent=1 // pred_fallthru
      _
    // Predicated region
    $region170: #{temporal_layer_forward.1} parent=1 // pred_check
      _
    $region171: #{temporal_layer_forward.1} parent=1 // pred_check_branch
      %329 = sbr.rel (0) target = $region173
    $region172: #{temporal_layer_forward.1} parent=1 // pred_region
      %330 = dma.done [#allocation35], 16
    $region173: #{temporal_layer_forward.1} parent=1 // pred_fallthru
      _
    %s333 = sshll.u32 1, 14
    %s334 = sxor.u32 4294967295, %s333
    %s336 = sld [smem:[#allocation0]]
    %s337 = sadd.s32 2, %s336
    %s339 = sshll.u32 7, 26
    %s340 = sxor.u32 4294967295, %s339
    %s341 = sand.u32 0, %s340
    %s342 = sshll.u32 %s337, 26
    %s343 = sor.u32 %s341, %s342
    %s344 = sshll.u32 [#allocation2], 4
    %s345 = int_to_ptr.vmem [resolvable:$true] %s344
    %348 = sst [smem:[#allocation38]] 2048
    %s349 = scalar_lea.smem [#allocation38], 1
    %350 = sst [smem:[%s349]] 2048
    %s351 = scalar_lea.smem [#allocation38], 2
    %352 = sst [smem:[%s351]] 16
    %s353 = scalar_lea.smem [#allocation38], 3
    %354 = sst [smem:[%s353]] 64
    %s355 = scalar_lea.smem [#allocation38], 4
    %356 = sst [smem:[%s355]] 128
    %s357 = scalar_lea.smem [#allocation38], 5
    %358 = sst [smem:[%s357]] 2
    %s359 = scalar_lea.smem [#allocation38], 6
    %360 = sst [smem:[%s359]] 1024
    %s361 = scalar_lea.smem [#allocation38], 7
    %362 = sst [smem:[%s361]] 64
    %s363 = scalar_lea.smem [#allocation38], 8
    %364 = sst [smem:[%s363]] 4
    %366 = dma.general %s19, 16384, %s345, [#allocation6], [#allocation37], [#allocation38], %s343, 0
    %s367 = scalar_lea.sflag [#allocation6], 1
    // Predicated region
    $region174: #{temporal_layer_forward.1} parent=1 // pred_check
      _
    $region175: #{temporal_layer_forward.1} parent=1 // pred_check_branch
      %369 = sbr.rel target = $region177
    $region176: #{temporal_layer_forward.1} parent=1 // pred_region
      %370 = sst [smem:[#allocation41]] [#allocation40]
      %371 = sst [smem:[#allocation42]] [#allocation39]
    $region177: #{temporal_layer_forward.1} parent=1 // pred_fallthru
      _
    %373 = shalt.err (0)
    %s375 = sshll.u32 [#allocation3], 4
    %s376 = int_to_ptr.vmem [resolvable:$true] %s375
    %378 = dma.hbm_to_vmem [thread:$0]  %s23, 16384, %s376, %s367
    %s379 = scalar_lea.sflag [#allocation6], 2
    %s381 = sshll.u32 1, 14
    %s382 = sxor.u32 4294967295, %s381
    %s384 = sadd.s32 2, %s336
    %s386 = sshll.u32 7, 26
    %s387 = sxor.u32 4294967295, %s386
    %s388 = sand.u32 0, %s387
    %s389 = sshll.u32 %s384, 26
    %s390 = sor.u32 %s388, %s389
    %s391 = sshll.u32 [#allocation4], 4
    %s392 = int_to_ptr.vmem [resolvable:$true] %s391
    %395 = sst [smem:[#allocation44]] 2048
    %s396 = scalar_lea.smem [#allocation44], 1
    %397 = sst [smem:[%s396]] 2048
    %s398 = scalar_lea.smem [#allocation44], 2
    %399 = sst [smem:[%s398]] 16
    %s400 = scalar_lea.smem [#allocation44], 3
    %401 = sst [smem:[%s400]] 64
    %s402 = scalar_lea.smem [#allocation44], 4
    %403 = sst [smem:[%s402]] 128
    %s404 = scalar_lea.smem [#allocation44], 5
    %405 = sst [smem:[%s404]] 2
    %s406 = scalar_lea.smem [#allocation44], 6
    %407 = sst [smem:[%s406]] 1024
    %s408 = scalar_lea.smem [#allocation44], 7
    %409 = sst [smem:[%s408]] 64
    %s410 = scalar_lea.smem [#allocation44], 8
    %411 = sst [smem:[%s410]] 4
    %413 = dma.general %s47, 16384, %s392, %s379, [#allocation43], [#allocation44], %s390, 0
    %s414 = scalar_lea.sflag [#allocation6], 3
    // Predicated region
    $region178: #{temporal_layer_forward.1} parent=1 // pred_check
      _
    $region179: #{temporal_layer_forward.1} parent=1 // pred_check_branch
      %416 = sbr.rel target = $region181
    $region180: #{temporal_layer_forward.1} parent=1 // pred_region
      %417 = sst [smem:[#allocation41]] [#allocation46]
      %418 = sst [smem:[#allocation42]] [#allocation45]
    $region181: #{temporal_layer_forward.1} parent=1 // pred_fallthru
      _
    %420 = shalt.err (0)
    %s422 = sshll.u32 [#allocation5], 4
    %s423 = int_to_ptr.vmem [resolvable:$true] %s422
    %425 = dma.hbm_to_vmem [thread:$0]  %s51, 16384, %s423, %s414
    %v426 = vld [vmem:[%s1] sm:$0xff]
    %v427 = vld [vmem:[%s1 + $0x8] sm:$0xff]
    %v428 = vld [vmem:[%s3] sm:$0xf]
    %v429 = vld [vmem:[%s3 + $0x4] sm:$0x3]
    %v430 = vpack.c.bf16 %v427, %v426
    %v431 = vld [vmem:[#allocation7] sm:$0x1]
    %v433 = vlaneseq
    %v434 = vshrl.u32 %v433, 7
    %v435 = vsub.s32 0, %v434
    %v436 = vrot.slane %v431, %v435
    %v440 = vunpack.c.l.b16 %v428
    %v441 = vunpack.c.l.b16 %v429
    %v442 = vpack.c.b16 %v441, %v440
    %vm443 = vcmask 97280
    %v445 = vsel %vm443, %v430, 0
    %vm447 = vcmask 1045504
    %v449 = vsel %vm447, %v442, 0
    %451 = vmatprep.subr.bf16.mxu0 0
    %452 = vmatpush1.bf16.msra.mxu0 %v449
    %453 = vmatprep.subr.bf16.mxu0 0
    %454 = vmatpush1.bf16.msra.mxu0 0
    %455 = vmatprep.subr.bf16.mxu0 0
    %456 = vmatpush1.bf16.msra.mxu0 0
    %457 = vmatprep.subr.bf16.mxu0 0
    %458 = vmatpush1.bf16.msra.mxu0 0
    %459 = vmatprep.subr.bf16.mxu0 0
    %460 = vmatpush1.bf16.msra.mxu0 0
    %461 = vmatprep.subr.bf16.mxu0 0
    %462 = vmatpush1.bf16.msra.mxu0 0
    %463 = vmatprep.subr.bf16.mxu0 0
    %464 = vmatpush1.bf16.msra.mxu0 0
    %465 = vmatprep.subr.bf16.mxu0 0
    %466 = vmatpush1.bf16.msra.mxu0 0
    %467 = vmatprep.subr.bf16.mxu0 0
    %468 = vmatpush1.bf16.msra.mxu0 0
    %469 = vmatprep.subr.bf16.mxu0 0
    %470 = vmatpush1.bf16.msra.mxu0 0
    %471 = vmatprep.subr.bf16.mxu0 0
    %472 = vmatpush1.bf16.msra.mxu0 0
    %473 = vmatprep.subr.bf16.mxu0 0
    %474 = vmatpush1.bf16.msra.mxu0 0
    %475 = vmatprep.subr.bf16.mxu0 0
    %476 = vmatpush1.bf16.msra.mxu0 0
    %477 = vmatprep.subr.bf16.mxu0 0
    %478 = vmatpush1.bf16.msra.mxu0 0
    %479 = vmatprep.subr.bf16.mxu0 0
    %480 = vmatpush1.bf16.msra.mxu0 0
    %481 = vmatprep.subr.bf16.mxu0 0
    %482 = vmatpush1.bf16.msra.mxu0 0
    %483 = vmatprep.mubr.bf16.mxu0 0
    %484 = vmatmul.mubr.bf16.gmra.mrb[0].mxu0 %v445
    %v485 = vpop.f32.mrb[0].mxu0
    %v486 = vadd.f32 %v436, %v485
    %v487 = vpop.f32.mrb[0].mxu0
    %v488 = vpop.f32.mrb[0].mxu0
    %v489 = vadd.f32 %v436, %v488
    %v490 = vpop.f32.mrb[0].mxu0
    %491 = vdwg.mxu0
    %v492 = vmax.f32 %v486, 0.0
    %v493 = vmax.f32 %v489, 0.0
    %v494 = vld [vmem:[%s7] sm:$0xff]
    %v495 = vld [vmem:[%s7 + $0x8] sm:$0xf]
    %v496 = vld [vmem:[%s7 + $0xc] sm:$0xff]
    %v497 = vld [vmem:[%s7 + $0x14] sm:$0xf]
    %v498 = vld [vmem:[%s7 + $0x18] sm:$0xff]
    %v499 = vld [vmem:[%s7 + $0x20] sm:$0xf]
    %v500 = vld [vmem:[%s7 + $0x24] sm:$0xff]
    %v501 = vld [vmem:[%s7 + $0x2c] sm:$0xf]
    %v502 = vld [vmem:[%s7 + $0x30] sm:$0xff]
    %v503 = vld [vmem:[%s7 + $0x38] sm:$0xf]
    %v504 = vld [vmem:[%s7 + $0x3c] sm:$0xff]
    %v505 = vld [vmem:[%s7 + $0x44] sm:$0xf]
    %v506 = vld [vmem:[%s7 + $0x48] sm:$0xff]
    %v507 = vld [vmem:[%s7 + $0x50] sm:$0xf]
    %v508 = vld [vmem:[%s7 + $0x54] sm:$0xff]
    %v509 = vld [vmem:[%s7 + $0x5c] sm:$0xf]
    %v510 = vld [vmem:[%s7 + $0x60] sm:$0xff]
    %v511 = vld [vmem:[%s7 + $0x68] sm:$0xf]
    %v512 = vld [vmem:[%s7 + $0x6c] sm:$0xff]
    %v513 = vld [vmem:[%s7 + $0x74] sm:$0xf]
    %v514 = vld [vmem:[%s7 + $0x78] sm:$0xff]
    %v515 = vld [vmem:[%s7 + $0x80] sm:$0xf]
    %v516 = vld [vmem:[%s7 + $0x84] sm:$0xff]
    %v517 = vld [vmem:[%s7 + $0x8c] sm:$0xf]
    %v518 = vld [vmem:[%s7 + $0x90] sm:$0xff]
    %v519 = vld [vmem:[%s7 + $0x98] sm:$0xf]
    %v520 = vld [vmem:[%s7 + $0x9c] sm:$0xff]
    %v521 = vld [vmem:[%s7 + $0xa4] sm:$0xf]
    %v522 = vld [vmem:[%s7 + $0xa8] sm:$0xff]
    %v523 = vld [vmem:[%s7 + $0xb0] sm:$0xf]
    %v524 = vld [vmem:[%s7 + $0xb4] sm:$0xff]
    %v525 = vld [vmem:[%s7 + $0xbc] sm:$0xf]
    %v526 = vpack.c.bf16 %v493, %v492
    %v527 = vld [vmem:[%s9] sm:$0x7]
    %v529 = vlaneseq
    %v530 = vshrl.u32 %v529, 7
    %v531 = vsub.s32 0, %v530
    %v532 = vrot.slane %v527, %v531
    %v533 = vlaneseq
    %v534 = vshrl.u32 %v533, 7
    %v535 = vsub.s32 1, %v534
    %v536 = vrot.slane %v527, %v535
    %v537 = vlaneseq
    %v538 = vshrl.u32 %v537, 7
    %v539 = vsub.s32 2, %v538
    %v540 = vrot.slane %v527, %v539
    %v576 = vunpack.c.l.b16 %v494
    %v577 = vunpack.c.h.b16 %v494
    %v578 = vunpack.c.l.b16 %v495
    %v579 = vunpack.c.l.b16 %v496
    %v580 = vunpack.c.h.b16 %v496
    %v581 = vunpack.c.l.b16 %v497
    %v582 = vunpack.c.l.b16 %v498
    %v583 = vunpack.c.h.b16 %v498
    %v584 = vunpack.c.l.b16 %v499
    %v585 = vunpack.c.l.b16 %v500
    %v586 = vunpack.c.h.b16 %v500
    %v587 = vunpack.c.l.b16 %v501
    %v588 = vunpack.c.l.b16 %v502
    %v589 = vunpack.c.h.b16 %v502
    %v590 = vunpack.c.l.b16 %v503
    %v591 = vunpack.c.l.b16 %v504
    %v592 = vunpack.c.h.b16 %v504
    %v593 = vunpack.c.l.b16 %v505
    %v594 = vunpack.c.l.b16 %v506
    %v595 = vunpack.c.h.b16 %v506
    %v596 = vunpack.c.l.b16 %v507
    %v597 = vunpack.c.l.b16 %v508
    %v598 = vunpack.c.h.b16 %v508
    %v599 = vunpack.c.l.b16 %v509
    %v600 = vunpack.c.l.b16 %v510
    %v601 = vunpack.c.h.b16 %v510
    %v602 = vunpack.c.l.b16 %v511
    %v603 = vunpack.c.l.b16 %v512
    %v604 = vunpack.c.h.b16 %v512
    %v605 = vunpack.c.l.b16 %v513
    %v606 = vunpack.c.l.b16 %v514
    %v607 = vunpack.c.h.b16 %v514
    %v608 = vunpack.c.l.b16 %v515
    %v609 = vunpack.c.l.b16 %v516
    %v610 = vunpack.c.h.b16 %v516
    %v611 = vunpack.c.l.b16 %v517
    %v612 = vunpack.c.l.b16 %v518
    %v613 = vunpack.c.h.b16 %v518
    %v614 = vunpack.c.l.b16 %v519
    %v615 = vunpack.c.l.b16 %v520
    %v616 = vunpack.c.h.b16 %v520
    %v617 = vunpack.c.l.b16 %v521
    %v618 = vunpack.c.l.b16 %v522
    %v619 = vunpack.c.h.b16 %v522
    %v620 = vunpack.c.l.b16 %v523
    %v621 = vunpack.c.l.b16 %v524
    %v622 = vunpack.c.h.b16 %v524
    %v623 = vunpack.c.l.b16 %v525
    %v624 = vpack.c.b16 %v579, %v576
    %v625 = vpack.c.b16 %v580, %v577
    %v626 = vpack.c.b16 %v581, %v578
    %v627 = vpack.c.b16 %v585, %v582
    %v628 = vpack.c.b16 %v586, %v583
    %v629 = vpack.c.b16 %v587, %v584
    %v630 = vpack.c.b16 %v591, %v588
    %v631 = vpack.c.b16 %v592, %v589
    %v632 = vpack.c.b16 %v593, %v590
    %v633 = vpack.c.b16 %v597, %v594
    %v634 = vpack.c.b16 %v598, %v595
    %v635 = vpack.c.b16 %v599, %v596
    %v636 = vpack.c.b16 %v603, %v600
    %v637 = vpack.c.b16 %v604, %v601
    %v638 = vpack.c.b16 %v605, %v602
    %v639 = vpack.c.b16 %v609, %v606
    %v640 = vpack.c.b16 %v610, %v607
    %v641 = vpack.c.b16 %v611, %v608
    %v642 = vpack.c.b16 %v615, %v612
    %v643 = vpack.c.b16 %v616, %v613
    %v644 = vpack.c.b16 %v617, %v614
    %v645 = vpack.c.b16 %v621, %v618
    %v646 = vpack.c.b16 %v622, %v619
    %v647 = vpack.c.b16 %v623, %v620
    %672 = vmatprep.subr.bf16.mxu0 %v625
    %673 = vmatpush1.bf16.msra.mxu0 %v624
    %674 = vmatprep.subr.bf16.mxu0 %v628
    %675 = vmatpush1.bf16.msra.mxu0 %v627
    %676 = vmatprep.subr.bf16.mxu0 %v631
    %677 = vmatpush1.bf16.msra.mxu0 %v630
    %678 = vmatprep.subr.bf16.mxu0 %v634
    %679 = vmatpush1.bf16.msra.mxu0 %v633
    %680 = vmatprep.subr.bf16.mxu0 %v637
    %681 = vmatpush1.bf16.msra.mxu0 %v636
    %682 = vmatprep.subr.bf16.mxu0 %v640
    %683 = vmatpush1.bf16.msra.mxu0 %v639
    %684 = vmatprep.subr.bf16.mxu0 %v643
    %685 = vmatpush1.bf16.msra.mxu0 %v642
    %686 = vmatprep.subr.bf16.mxu0 %v646
    %687 = vmatpush1.bf16.msra.mxu0 %v645
    %688 = vmatprep.subr.bf16.mxu0 0
    %689 = vmatpush1.bf16.msra.mxu0 0
    %690 = vmatprep.subr.bf16.mxu0 0
    %691 = vmatpush1.bf16.msra.mxu0 0
    %692 = vmatprep.subr.bf16.mxu0 0
    %693 = vmatpush1.bf16.msra.mxu0 0
    %694 = vmatprep.subr.bf16.mxu0 0
    %695 = vmatpush1.bf16.msra.mxu0 0
    %696 = vmatprep.subr.bf16.mxu0 0
    %697 = vmatpush1.bf16.msra.mxu0 0
    %698 = vmatprep.subr.bf16.mxu0 0
    %699 = vmatpush1.bf16.msra.mxu0 0
    %700 = vmatprep.subr.bf16.mxu0 0
    %701 = vmatpush1.bf16.msra.mxu0 0
    %702 = vmatprep.subr.bf16.mxu0 0
    %703 = vmatpush1.bf16.msra.mxu0 0
    %704 = vmatprep.mubr.bf16.mxu0 0
    %705 = vmatmul.mubr.bf16.gmra.mrb[0].mxu0 %v526
    %v706 = vpop.f32.mrb[0].mxu0
    %v707 = vadd.f32 %v532, %v706
    %v708 = vpop.f32.mrb[0].mxu0
    %v709 = vadd.f32 %v536, %v708
    %v710 = vpop.f32.mrb[0].mxu0
    %v711 = vadd.f32 %v532, %v710
    %v712 = vpop.f32.mrb[0].mxu0
    %v713 = vadd.f32 %v536, %v712
    %714 = vdwg.mxu0
    %715 = vmatprep.subr.bf16.mxu0 0
    %716 = vmatpush1.bf16.msra.mxu0 %v626
    %717 = vmatprep.subr.bf16.mxu0 0
    %718 = vmatpush1.bf16.msra.mxu0 %v629
    %719 = vmatprep.subr.bf16.mxu0 0
    %720 = vmatpush1.bf16.msra.mxu0 %v632
    %721 = vmatprep.subr.bf16.mxu0 0
    %722 = vmatpush1.bf16.msra.mxu0 %v635
    %723 = vmatprep.subr.bf16.mxu0 0
    %724 = vmatpush1.bf16.msra.mxu0 %v638
    %725 = vmatprep.subr.bf16.mxu0 0
    %726 = vmatpush1.bf16.msra.mxu0 %v641
    %727 = vmatprep.subr.bf16.mxu0 0
    %728 = vmatpush1.bf16.msra.mxu0 %v644
    %729 = vmatprep.subr.bf16.mxu0 0
    %730 = vmatpush1.bf16.msra.mxu0 %v647
    %731 = vmatprep.subr.bf16.mxu0 0
    %732 = vmatpush1.bf16.msra.mxu0 0
    %733 = vmatprep.subr.bf16.mxu0 0
    %734 = vmatpush1.bf16.msra.mxu0 0
    %735 = vmatprep.subr.bf16.mxu0 0
    %736 = vmatpush1.bf16.msra.mxu0 0
    %737 = vmatprep.subr.bf16.mxu0 0
    %738 = vmatpush1.bf16.msra.mxu0 0
    %739 = vmatprep.subr.bf16.mxu0 0
    %740 = vmatpush1.bf16.msra.mxu0 0
    %741 = vmatprep.subr.bf16.mxu0 0
    %742 = vmatpush1.bf16.msra.mxu0 0
    %743 = vmatprep.subr.bf16.mxu0 0
    %744 = vmatpush1.bf16.msra.mxu0 0
    %745 = vmatprep.subr.bf16.mxu0 0
    %746 = vmatpush1.bf16.msra.mxu0 0
    %747 = vmatprep.mubr.bf16.mxu0 0
    %748 = vmatmul.mubr.bf16.gmra.mrb[0].mxu0 %v526
    %v749 = vpop.f32.mrb[0].mxu0
    %v750 = vadd.f32 %v540, %v749
    %v751 = vpop.f32.mrb[0].mxu0
    %v752 = vpop.f32.mrb[0].mxu0
    %v753 = vadd.f32 %v540, %v752
    %v754 = vpop.f32.mrb[0].mxu0
    %755 = vdwg.mxu0
    %v756 = vpack.c.bf16 %v707, %v707
    %v757 = vpack.c.bf16 %v709, %v709
    %v758 = vpack.c.bf16 %v750, %v750
    %vm759 = vcmask 261120
    %v761 = vsel %vm759, %v756, 0
    %v764 = vsel %vm759, %v757, 0
    %766 = vmatprep.subr.bf16.mxu0 0
    %767 = vmatpush1.bf16.xpose.msra.mxu0 %v764
    %768 = vmatprep.subr.bf16.mxu0 0
    %769 = vmatpush1.bf16.xpose.msra.mxu0 0
    %770 = vmatprep.subr.bf16.mxu0 0
    %771 = vmatpush1.bf16.xpose.msra.mxu0 0
    %772 = vmatprep.subr.bf16.mxu0 0
    %773 = vmatpush1.bf16.xpose.msra.mxu0 0
    %774 = vmatprep.subr.bf16.mxu0 0
    %775 = vmatpush1.bf16.xpose.msra.mxu0 0
    %776 = vmatprep.subr.bf16.mxu0 0
    %777 = vmatpush1.bf16.xpose.msra.mxu0 0
    %778 = vmatprep.subr.bf16.mxu0 0
    %779 = vmatpush1.bf16.xpose.msra.mxu0 0
    %780 = vmatprep.subr.bf16.mxu0 0
    %781 = vmatpush1.bf16.xpose.msra.mxu0 0
    %782 = vmatprep.subr.bf16.mxu0 0
    %783 = vmatpush1.bf16.xpose.msra.mxu0 0
    %784 = vmatprep.subr.bf16.mxu0 0
    %785 = vmatpush1.bf16.xpose.msra.mxu0 0
    %786 = vmatprep.subr.bf16.mxu0 0
    %787 = vmatpush1.bf16.xpose.msra.mxu0 0
    %788 = vmatprep.subr.bf16.mxu0 0
    %789 = vmatpush1.bf16.xpose.msra.mxu0 0
    %790 = vmatprep.subr.bf16.mxu0 0
    %791 = vmatpush1.bf16.xpose.msra.mxu0 0
    %792 = vmatprep.subr.bf16.mxu0 0
    %793 = vmatpush1.bf16.xpose.msra.mxu0 0
    %794 = vmatprep.subr.bf16.mxu0 0
    %795 = vmatpush1.bf16.xpose.msra.mxu0 0
    %796 = vmatprep.subr.bf16.mxu0 0
    %797 = vmatpush1.bf16.xpose.msra.mxu0 0
    %798 = vmatprep.mubr.bf16.mxu0 0
    %799 = vmatmul.mubr.bf16.gmra.mrb[0].mxu0 %v761
    %v800 = vpop.f32.mrb[0].mxu0
    %v801 = vadd.f32 0.0, %v800
    %v802 = vpop.f32.mrb[0].mxu0
    %v803 = vpop.f32.mrb[0].mxu0
    %v804 = vpop.f32.mrb[0].mxu0
    %805 = vdwg.mxu0
    %vm806 = vcmask 64512
    %v807 = vsel %vm806, %v801, -inf
    %808 = vmax.xlane.f32.xlu0 %v807
    %v809 = vpop.xlane.xlu0 %808
    %v810 = vsub.f32 %v801, %v809
    %v811 = vmul.f32 %v810, 1.442695
    %v812 = vpow.pop %v811
    %v813 = vsel %vm806, %v812, 0.0
    %814 = vadd.xlane.f32.xlu0 %v813
    %v815 = vpop.xlane.xlu0 %814
    %v816 = vrcp.pop %v815
    %v817 = vmul.f32 %v812, %v816
    %v818 = vpack.c.bf16 %v817, %v817
    %v820 = vsel %vm806, %v818, 0
    %vm822 = vcmask 1043456
    %v824 = vsel %vm822, %v758, 0
    %826 = vmatprep.subr.bf16.mxu0 0
    %827 = vmatpush1.bf16.msra.mxu0 %v824
    %828 = vmatprep.subr.bf16.mxu0 0
    %829 = vmatpush1.bf16.msra.mxu0 0
    %830 = vmatprep.subr.bf16.mxu0 0
    %831 = vmatpush1.bf16.msra.mxu0 0
    %832 = vmatprep.subr.bf16.mxu0 0
    %833 = vmatpush1.bf16.msra.mxu0 0
    %834 = vmatprep.subr.bf16.mxu0 0
    %835 = vmatpush1.bf16.msra.mxu0 0
    %836 = vmatprep.subr.bf16.mxu0 0
    %837 = vmatpush1.bf16.msra.mxu0 0
    %838 = vmatprep.subr.bf16.mxu0 0
    %839 = vmatpush1.bf16.msra.mxu0 0
    %840 = vmatprep.subr.bf16.mxu0 0
    %841 = vmatpush1.bf16.msra.mxu0 0
    %842 = vmatprep.subr.bf16.mxu0 0
    %843 = vmatpush1.bf16.msra.mxu0 0
    %844 = vmatprep.subr.bf16.mxu0 0
    %845 = vmatpush1.bf16.msra.mxu0 0
    %846 = vmatprep.subr.bf16.mxu0 0
    %847 = vmatpush1.bf16.msra.mxu0 0
    %848 = vmatprep.subr.bf16.mxu0 0
    %849 = vmatpush1.bf16.msra.mxu0 0
    %850 = vmatprep.subr.bf16.mxu0 0
    %851 = vmatpush1.bf16.msra.mxu0 0
    %852 = vmatprep.subr.bf16.mxu0 0
    %853 = vmatpush1.bf16.msra.mxu0 0
    %854 = vmatprep.subr.bf16.mxu0 0
    %855 = vmatpush1.bf16.msra.mxu0 0
    %856 = vmatprep.subr.bf16.mxu0 0
    %857 = vmatpush1.bf16.msra.mxu0 0
    %858 = vmatprep.mubr.bf16.mxu0 0
    %859 = vmatmul.mubr.bf16.gmra.mrb[0].mxu0 %v820
    %v860 = vpop.f32.mrb[0].mxu0
    %v861 = vadd.f32 0.0, %v860
    %v862 = vpop.f32.mrb[0].mxu0
    %v863 = vpop.f32.mrb[0].mxu0
    %v864 = vpop.f32.mrb[0].mxu0
    %865 = vdwg.mxu0
    %867 = vrot.lane.b32.xlu0 %v756, 96
    %v868 = vpop.permute.xlu0 %867
    %870 = vrot.lane.b32.xlu0 %v757, 96
    %v871 = vpop.permute.xlu0 %870
    %v873 = vsel %vm759, %v868, 0
    %v876 = vsel %vm759, %v871, 0
    %878 = vmatprep.subr.bf16.mxu0 0
    %879 = vmatpush1.bf16.xpose.msra.mxu0 %v876
    %880 = vmatprep.subr.bf16.mxu0 0
    %881 = vmatpush1.bf16.xpose.msra.mxu0 0
    %882 = vmatprep.subr.bf16.mxu0 0
    %883 = vmatpush1.bf16.xpose.msra.mxu0 0
    %884 = vmatprep.subr.bf16.mxu0 0
    %885 = vmatpush1.bf16.xpose.msra.mxu0 0
    %886 = vmatprep.subr.bf16.mxu0 0
    %887 = vmatpush1.bf16.xpose.msra.mxu0 0
    %888 = vmatprep.subr.bf16.mxu0 0
    %889 = vmatpush1.bf16.xpose.msra.mxu0 0
    %890 = vmatprep.subr.bf16.mxu0 0
    %891 = vmatpush1.bf16.xpose.msra.mxu0 0
    %892 = vmatprep.subr.bf16.mxu0 0
    %893 = vmatpush1.bf16.xpose.msra.mxu0 0
    %894 = vmatprep.subr.bf16.mxu0 0
    %895 = vmatpush1.bf16.xpose.msra.mxu0 0
    %896 = vmatprep.subr.bf16.mxu0 0
    %897 = vmatpush1.bf16.xpose.msra.mxu0 0
    %898 = vmatprep.subr.bf16.mxu0 0
    %899 = vmatpush1.bf16.xpose.msra.mxu0 0
    %900 = vmatprep.subr.bf16.mxu0 0
    %901 = vmatpush1.bf16.xpose.msra.mxu0 0
    %902 = vmatprep.subr.bf16.mxu0 0
    %903 = vmatpush1.bf16.xpose.msra.mxu0 0
    %904 = vmatprep.subr.bf16.mxu0 0
    %905 = vmatpush1.bf16.xpose.msra.mxu0 0
    %906 = vmatprep.subr.bf16.mxu0 0
    %907 = vmatpush1.bf16.xpose.msra.mxu0 0
    %908 = vmatprep.subr.bf16.mxu0 0
    %909 = vmatpush1.bf16.xpose.msra.mxu0 0
    %910 = vmatprep.mubr.bf16.mxu0 0
    %911 = vmatmul.mubr.bf16.gmra.mrb[0].mxu0 %v873
    %v912 = vpop.f32.mrb[0].mxu0
    %v913 = vadd.f32 0.0, %v912
    %v914 = vpop.f32.mrb[0].mxu0
    %v915 = vpop.f32.mrb[0].mxu0
    %v916 = vpop.f32.mrb[0].mxu0
    %917 = vdwg.mxu0
    %v918 = vsel %vm806, %v913, -inf
    %919 = vmax.xlane.f32.xlu0 %v918
    %v920 = vpop.xlane.xlu0 %919
    %v921 = vsub.f32 %v913, %v920
    %v922 = vmul.f32 %v921, 1.442695
    %v923 = vpow.pop %v922
    %v924 = vsel %vm806, %v923, 0.0
    %925 = vadd.xlane.f32.xlu0 %v924
    %v926 = vpop.xlane.xlu0 %925
    %v927 = vrcp.pop %v926
    %v928 = vmul.f32 %v923, %v927
    %v929 = vpack.c.bf16 %v928, %v928
    %931 = vrot.lane.b32.xlu0 %v758, 96
    %v932 = vpop.permute.xlu0 %931
    %v934 = vsel %vm806, %v929, 0
    %v937 = vsel %vm822, %v932, 0
    %939 = vmatprep.subr.bf16.mxu0 0
    %940 = vmatpush1.bf16.msra.mxu0 %v937
    %941 = vmatprep.subr.bf16.mxu0 0
    %942 = vmatpush1.bf16.msra.mxu0 0
    %943 = vmatprep.subr.bf16.mxu0 0
    %944 = vmatpush1.bf16.msra.mxu0 0
    %945 = vmatprep.subr.bf16.mxu0 0
    %946 = vmatpush1.bf16.msra.mxu0 0
    %947 = vmatprep.subr.bf16.mxu0 0
    %948 = vmatpush1.bf16.msra.mxu0 0
    %949 = vmatprep.subr.bf16.mxu0 0
    %950 = vmatpush1.bf16.msra.mxu0 0
    %951 = vmatprep.subr.bf16.mxu0 0
    %952 = vmatpush1.bf16.msra.mxu0 0
    %953 = vmatprep.subr.bf16.mxu0 0
    %954 = vmatpush1.bf16.msra.mxu0 0
    %955 = vmatprep.subr.bf16.mxu0 0
    %956 = vmatpush1.bf16.msra.mxu0 0
    %957 = vmatprep.subr.bf16.mxu0 0
    %958 = vmatpush1.bf16.msra.mxu0 0
    %959 = vmatprep.subr.bf16.mxu0 0
    %960 = vmatpush1.bf16.msra.mxu0 0
    %961 = vmatprep.subr.bf16.mxu0 0
    %962 = vmatpush1.bf16.msra.mxu0 0
    %963 = vmatprep.subr.bf16.mxu0 0
    %964 = vmatpush1.bf16.msra.mxu0 0
    %965 = vmatprep.subr.bf16.mxu0 0
    %966 = vmatpush1.bf16.msra.mxu0 0
    %967 = vmatprep.subr.bf16.mxu0 0
    %968 = vmatpush1.bf16.msra.mxu0 0
    %969 = vmatprep.subr.bf16.mxu0 0
    %970 = vmatpush1.bf16.msra.mxu0 0
    %971 = vmatprep.mubr.bf16.mxu0 0
    %972 = vmatmul.mubr.bf16.gmra.mrb[0].mxu0 %v934
    %v973 = vpop.f32.mrb[0].mxu0
    %v974 = vadd.f32 0.0, %v973
    %v975 = vpop.f32.mrb[0].mxu0
    %v976 = vpop.f32.mrb[0].mxu0
    %v977 = vpop.f32.mrb[0].mxu0
    %978 = vdwg.mxu0
    %979 = vrot.lane.b32.xlu0 %v756, 64
    %v980 = vpop.permute.xlu0 %979
    %981 = vrot.lane.b32.xlu0 %v757, 64
    %v982 = vpop.permute.xlu0 %981
    %v984 = vsel %vm759, %v980, 0
    %v987 = vsel %vm759, %v982, 0
    %989 = vmatprep.subr.bf16.mxu0 0
    %990 = vmatpush1.bf16.xpose.msra.mxu0 %v987
    %991 = vmatprep.subr.bf16.mxu0 0
    %992 = vmatpush1.bf16.xpose.msra.mxu0 0
    %993 = vmatprep.subr.bf16.mxu0 0
    %994 = vmatpush1.bf16.xpose.msra.mxu0 0
    %995 = vmatprep.subr.bf16.mxu0 0
    %996 = vmatpush1.bf16.xpose.msra.mxu0 0
    %997 = vmatprep.subr.bf16.mxu0 0
    %998 = vmatpush1.bf16.xpose.msra.mxu0 0
    %999 = vmatprep.subr.bf16.mxu0 0
    %1000 = vmatpush1.bf16.xpose.msra.mxu0 0
    %1001 = vmatprep.subr.bf16.mxu0 0
    %1002 = vmatpush1.bf16.xpose.msra.mxu0 0
    %1003 = vmatprep.subr.bf16.mxu0 0
    %1004 = vmatpush1.bf16.xpose.msra.mxu0 0
    %1005 = vmatprep.subr.bf16.mxu0 0
    %1006 = vmatpush1.bf16.xpose.msra.mxu0 0
    %1007 = vmatprep.subr.bf16.mxu0 0
    %1008 = vmatpush1.bf16.xpose.msra.mxu0 0
    %1009 = vmatprep.subr.bf16.mxu0 0
    %1010 = vmatpush1.bf16.xpose.msra.mxu0 0
    %1011 = vmatprep.subr.bf16.mxu0 0
    %1012 = vmatpush1.bf16.xpose.msra.mxu0 0
    %1013 = vmatprep.subr.bf16.mxu0 0
    %1014 = vmatpush1.bf16.xpose.msra.mxu0 0
    %1015 = vmatprep.subr.bf16.mxu0 0
    %1016 = vmatpush1.bf16.xpose.msra.mxu0 0
    %1017 = vmatprep.subr.bf16.mxu0 0
    %1018 = vmatpush1.bf16.xpose.msra.mxu0 0
    %1019 = vmatprep.subr.bf16.mxu0 0
    %1020 = vmatpush1.bf16.xpose.msra.mxu0 0
    %1021 = vmatprep.mubr.bf16.mxu0 0
    %1022 = vmatmul.mubr.bf16.gmra.mrb[0].mxu0 %v984
    %v1023 = vpop.f32.mrb[0].mxu0
    %v1024 = vadd.f32 0.0, %v1023
    %v1025 = vpop.f32.mrb[0].mxu0
    %v1026 = vpop.f32.mrb[0].mxu0
    %v1027 = vpop.f32.mrb[0].mxu0
    %1028 = vdwg.mxu0
    %v1029 = vsel %vm806, %v1024, -inf
    %1030 = vmax.xlane.f32.xlu0 %v1029
    %v1031 = vpop.xlane.xlu0 %1030
    %v1032 = vsub.f32 %v1024, %v1031
    %v1033 = vmul.f32 %v1032, 1.442695
    %v1034 = vpow.pop %v1033
    %v1035 = vsel %vm806, %v1034, 0.0
    %1036 = vadd.xlane.f32.xlu0 %v1035
    %v1037 = vpop.xlane.xlu0 %1036
    %v1038 = vrcp.pop %v1037
    %v1039 = vmul.f32 %v1034, %v1038
    %v1040 = vpack.c.bf16 %v1039, %v1039
    %1041 = vrot.lane.b32.xlu0 %v758, 64
    %v1042 = vpop.permute.xlu0 %1041
    %v1044 = vsel %vm806, %v1040, 0
    %v1047 = vsel %vm822, %v1042, 0
    %1049 = vmatprep.subr.bf16.mxu0 0
    %1050 = vmatpush1.bf16.msra.mxu0 %v1047
    %1051 = vmatprep.subr.bf16.mxu0 0
    %1052 = vmatpush1.bf16.msra.mxu0 0
    %1053 = vmatprep.subr.bf16.mxu0 0
    %1054 = vmatpush1.bf16.msra.mxu0 0
    %1055 = vmatprep.subr.bf16.mxu0 0
    %1056 = vmatpush1.bf16.msra.mxu0 0
    %1057 = vmatprep.subr.bf16.mxu0 0
    %1058 = vmatpush1.bf16.msra.mxu0 0
    %1059 = vmatprep.subr.bf16.mxu0 0
    %1060 = vmatpush1.bf16.msra.mxu0 0
    %1061 = vmatprep.subr.bf16.mxu0 0
    %1062 = vmatpush1.bf16.msra.mxu0 0
    %1063 = vmatprep.subr.bf16.mxu0 0
    %1064 = vmatpush1.bf16.msra.mxu0 0
    %1065 = vmatprep.subr.bf16.mxu0 0
    %1066 = vmatpush1.bf16.msra.mxu0 0
    %1067 = vmatprep.subr.bf16.mxu0 0
    %1068 = vmatpush1.bf16.msra.mxu0 0
    %1069 = vmatprep.subr.bf16.mxu0 0
    %1070 = vmatpush1.bf16.msra.mxu0 0
    %1071 = vmatprep.subr.bf16.mxu0 0
    %1072 = vmatpush1.bf16.msra.mxu0 0
    %1073 = vmatprep.subr.bf16.mxu0 0
    %1074 = vmatpush1.bf16.msra.mxu0 0
    %1075 = vmatprep.subr.bf16.mxu0 0
    %1076 = vmatpush1.bf16.msra.mxu0 0
    %1077 = vmatprep.subr.bf16.mxu0 0
    %1078 = vmatpush1.bf16.msra.mxu0 0
    %1079 = vmatprep.subr.bf16.mxu0 0
    %1080 = vmatpush1.bf16.msra.mxu0 0
    %1081 = vmatprep.mubr.bf16.mxu0 0
    %1082 = vmatmul.mubr.bf16.gmra.mrb[0].mxu0 %v1044
    %v1083 = vpop.f32.mrb[0].mxu0
    %v1084 = vadd.f32 0.0, %v1083
    %v1085 = vpop.f32.mrb[0].mxu0
    %v1086 = vpop.f32.mrb[0].mxu0
    %v1087 = vpop.f32.mrb[0].mxu0
    %1088 = vdwg.mxu0
    %1089 = vrot.lane.b32.xlu0 %v756, 32
    %v1090 = vpop.permute.xlu0 %1089
    %1091 = vrot.lane.b32.xlu0 %v757, 32
    %v1092 = vpop.permute.xlu0 %1091
    %v1094 = vsel %vm759, %v1090, 0
    %v1097 = vsel %vm759, %v1092, 0
    %1099 = vmatprep.subr.bf16.mxu0 0
    %1100 = vmatpush1.bf16.xpose.msra.mxu0 %v1097
    %1101 = vmatprep.subr.bf16.mxu0 0
    %1102 = vmatpush1.bf16.xpose.msra.mxu0 0
    %1103 = vmatprep.subr.bf16.mxu0 0
    %1104 = vmatpush1.bf16.xpose.msra.mxu0 0
    %1105 = vmatprep.subr.bf16.mxu0 0
    %1106 = vmatpush1.bf16.xpose.msra.mxu0 0
    %1107 = vmatprep.subr.bf16.mxu0 0
    %1108 = vmatpush1.bf16.xpose.msra.mxu0 0
    %1109 = vmatprep.subr.bf16.mxu0 0
    %1110 = vmatpush1.bf16.xpose.msra.mxu0 0
    %1111 = vmatprep.subr.bf16.mxu0 0
    %1112 = vmatpush1.bf16.xpose.msra.mxu0 0
    %1113 = vmatprep.subr.bf16.mxu0 0
    %1114 = vmatpush1.bf16.xpose.msra.mxu0 0
    %1115 = vmatprep.subr.bf16.mxu0 0
    %1116 = vmatpush1.bf16.xpose.msra.mxu0 0
    %1117 = vmatprep.subr.bf16.mxu0 0
    %1118 = vmatpush1.bf16.xpose.msra.mxu0 0
    %1119 = vmatprep.subr.bf16.mxu0 0
    %1120 = vmatpush1.bf16.xpose.msra.mxu0 0
    %1121 = vmatprep.subr.bf16.mxu0 0
    %1122 = vmatpush1.bf16.xpose.msra.mxu0 0
    %1123 = vmatprep.subr.bf16.mxu0 0
    %1124 = vmatpush1.bf16.xpose.msra.mxu0 0
    %1125 = vmatprep.subr.bf16.mxu0 0
    %1126 = vmatpush1.bf16.xpose.msra.mxu0 0
    %1127 = vmatprep.subr.bf16.mxu0 0
    %1128 = vmatpush1.bf16.xpose.msra.mxu0 0
    %1129 = vmatprep.subr.bf16.mxu0 0
    %1130 = vmatpush1.bf16.xpose.msra.mxu0 0
    %1131 = vmatprep.mubr.bf16.mxu0 0
    %1132 = vmatmul.mubr.bf16.gmra.mrb[0].mxu0 %v1094
    %v1133 = vpop.f32.mrb[0].mxu0
    %v1134 = vadd.f32 0.0, %v1133
    %v1135 = vpop.f32.mrb[0].mxu0
    %v1136 = vpop.f32.mrb[0].mxu0
    %v1137 = vpop.f32.mrb[0].mxu0
    %1138 = vdwg.mxu0
    %v1139 = vsel %vm806, %v1134, -inf
    %1140 = vmax.xlane.f32.xlu0 %v1139
    %v1141 = vpop.xlane.xlu0 %1140
    %v1142 = vsub.f32 %v1134, %v1141
    %v1143 = vmul.f32 %v1142, 1.442695
    %v1144 = vpow.pop %v1143
    %v1145 = vsel %vm806, %v1144, 0.0
    %1146 = vadd.xlane.f32.xlu0 %v1145
    %v1147 = vpop.xlane.xlu0 %1146
    %v1148 = vrcp.pop %v1147
    %v1149 = vmul.f32 %v1144, %v1148
    %v1150 = vpack.c.bf16 %v1149, %v1149
    %1151 = vrot.lane.b32.xlu0 %v758, 32
    %v1152 = vpop.permute.xlu0 %1151
    %v1154 = vsel %vm806, %v1150, 0
    %v1157 = vsel %vm822, %v1152, 0
    %1159 = vmatprep.subr.bf16.mxu0 0
    %1160 = vmatpush1.bf16.msra.mxu0 %v1157
    %1161 = vmatprep.subr.bf16.mxu0 0
    %1162 = vmatpush1.bf16.msra.mxu0 0
    %1163 = vmatprep.subr.bf16.mxu0 0
    %1164 = vmatpush1.bf16.msra.mxu0 0
    %1165 = vmatprep.subr.bf16.mxu0 0
    %1166 = vmatpush1.bf16.msra.mxu0 0
    %1167 = vmatprep.subr.bf16.mxu0 0
    %1168 = vmatpush1.bf16.msra.mxu0 0
    %1169 = vmatprep.subr.bf16.mxu0 0
    %1170 = vmatpush1.bf16.msra.mxu0 0
    %1171 = vmatprep.subr.bf16.mxu0 0
    %1172 = vmatpush1.bf16.msra.mxu0 0
    %1173 = vmatprep.subr.bf16.mxu0 0
    %1174 = vmatpush1.bf16.msra.mxu0 0
    %1175 = vmatprep.subr.bf16.mxu0 0
    %1176 = vmatpush1.bf16.msra.mxu0 0
    %1177 = vmatprep.subr.bf16.mxu0 0
    %1178 = vmatpush1.bf16.msra.mxu0 0
    %1179 = vmatprep.subr.bf16.mxu0 0
    %1180 = vmatpush1.bf16.msra.mxu0 0
    %1181 = vmatprep.subr.bf16.mxu0 0
    %1182 = vmatpush1.bf16.msra.mxu0 0
    %1183 = vmatprep.subr.bf16.mxu0 0
    %1184 = vmatpush1.bf16.msra.mxu0 0
    %1185 = vmatprep.subr.bf16.mxu0 0
    %1186 = vmatpush1.bf16.msra.mxu0 0
    %1187 = vmatprep.subr.bf16.mxu0 0
    %1188 = vmatpush1.bf16.msra.mxu0 0
    %1189 = vmatprep.subr.bf16.mxu0 0
    %1190 = vmatpush1.bf16.msra.mxu0 0
    %1191 = vmatprep.mubr.bf16.mxu0 0
    %1192 = vmatmul.mubr.bf16.gmra.mrb[0].mxu0 %v1154
    %v1193 = vpop.f32.mrb[0].mxu0
    %v1194 = vadd.f32 0.0, %v1193
    %v1195 = vpop.f32.mrb[0].mxu0
    %v1196 = vpop.f32.mrb[0].mxu0
    %v1197 = vpop.f32.mrb[0].mxu0
    %1198 = vdwg.mxu0
    %1200 = vrot.lane.b32.xlu0 %v974, 32
    %v1201 = vpop.permute.xlu0 %1200
    %1204 = vrot.lane.b32.xlu0 %v1084, 64
    %v1205 = vpop.permute.xlu0 %1204
    %1208 = vrot.lane.b32.xlu0 %v1194, 96
    %v1209 = vpop.permute.xlu0 %1208
    %v1211 = vsel %vm759, %v861, %v1201
    %vm1212 = vcmask 523264
    %v1213 = vsel %vm1212, %v1211, %v1205
    %vm1214 = vcmask 785408
    %v1215 = vsel %vm1214, %v1213, %v1209
    %v1216 = vpack.c.bf16 %v711, %v711
    %v1217 = vpack.c.bf16 %v713, %v713
    %v1218 = vpack.c.bf16 %v753, %v753
    %v1220 = vsel %vm759, %v1216, 0
    %v1223 = vsel %vm759, %v1217, 0
    %1225 = vmatprep.subr.bf16.mxu0 0
    %1226 = vmatpush1.bf16.xpose.msra.mxu0 %v1223
    %1227 = vmatprep.subr.bf16.mxu0 0
    %1228 = vmatpush1.bf16.xpose.msra.mxu0 0
    %1229 = vmatprep.subr.bf16.mxu0 0
    %1230 = vmatpush1.bf16.xpose.msra.mxu0 0
    %1231 = vmatprep.subr.bf16.mxu0 0
    %1232 = vmatpush1.bf16.xpose.msra.mxu0 0
    %1233 = vmatprep.subr.bf16.mxu0 0
    %1234 = vmatpush1.bf16.xpose.msra.mxu0 0
    %1235 = vmatprep.subr.bf16.mxu0 0
    %1236 = vmatpush1.bf16.xpose.msra.mxu0 0
    %1237 = vmatprep.subr.bf16.mxu0 0
    %1238 = vmatpush1.bf16.xpose.msra.mxu0 0
    %1239 = vmatprep.subr.bf16.mxu0 0
    %1240 = vmatpush1.bf16.xpose.msra.mxu0 0
    %1241 = vmatprep.subr.bf16.mxu0 0
    %1242 = vmatpush1.bf16.xpose.msra.mxu0 0
    %1243 = vmatprep.subr.bf16.mxu0 0
    %1244 = vmatpush1.bf16.xpose.msra.mxu0 0
    %1245 = vmatprep.subr.bf16.mxu0 0
    %1246 = vmatpush1.bf16.xpose.msra.mxu0 0
    %1247 = vmatprep.subr.bf16.mxu0 0
    %1248 = vmatpush1.bf16.xpose.msra.mxu0 0
    %1249 = vmatprep.subr.bf16.mxu0 0
    %1250 = vmatpush1.bf16.xpose.msra.mxu0 0
    %1251 = vmatprep.subr.bf16.mxu0 0
    %1252 = vmatpush1.bf16.xpose.msra.mxu0 0
    %1253 = vmatprep.subr.bf16.mxu0 0
    %1254 = vmatpush1.bf16.xpose.msra.mxu0 0
    %1255 = vmatprep.subr.bf16.mxu0 0
    %1256 = vmatpush1.bf16.xpose.msra.mxu0 0
    %1257 = vmatprep.mubr.bf16.mxu0 0
    %1258 = vmatmul.mubr.bf16.gmra.mrb[0].mxu0 %v1220
    %v1259 = vpop.f32.mrb[0].mxu0
    %v1260 = vadd.f32 0.0, %v1259
    %v1261 = vpop.f32.mrb[0].mxu0
    %v1262 = vpop.f32.mrb[0].mxu0
    %v1263 = vpop.f32.mrb[0].mxu0
    %1264 = vdwg.mxu0
    %v1265 = vsel %vm806, %v1260, -inf
    %1266 = vmax.xlane.f32.xlu0 %v1265
    %v1267 = vpop.xlane.xlu0 %1266
    %v1268 = vsub.f32 %v1260, %v1267
    %v1269 = vmul.f32 %v1268, 1.442695
    %v1270 = vpow.pop %v1269
    %v1271 = vsel %vm806, %v1270, 0.0
    %1272 = vadd.xlane.f32.xlu0 %v1271
    %v1273 = vpop.xlane.xlu0 %1272
    %v1274 = vrcp.pop %v1273
    %v1275 = vmul.f32 %v1270, %v1274
    %v1276 = vpack.c.bf16 %v1275, %v1275
    %v1278 = vsel %vm806, %v1276, 0
    %v1281 = vsel %vm822, %v1218, 0
    %1283 = vmatprep.subr.bf16.mxu0 0
    %1284 = vmatpush1.bf16.msra.mxu0 %v1281
    %1285 = vmatprep.subr.bf16.mxu0 0
    %1286 = vmatpush1.bf16.msra.mxu0 0
    %1287 = vmatprep.subr.bf16.mxu0 0
    %1288 = vmatpush1.bf16.msra.mxu0 0
    %1289 = vmatprep.subr.bf16.mxu0 0
    %1290 = vmatpush1.bf16.msra.mxu0 0
    %1291 = vmatprep.subr.bf16.mxu0 0
    %1292 = vmatpush1.bf16.msra.mxu0 0
    %1293 = vmatprep.subr.bf16.mxu0 0
    %1294 = vmatpush1.bf16.msra.mxu0 0
    %1295 = vmatprep.subr.bf16.mxu0 0
    %1296 = vmatpush1.bf16.msra.mxu0 0
    %1297 = vmatprep.subr.bf16.mxu0 0
    %1298 = vmatpush1.bf16.msra.mxu0 0
    %1299 = vmatprep.subr.bf16.mxu0 0
    %1300 = vmatpush1.bf16.msra.mxu0 0
    %1301 = vmatprep.subr.bf16.mxu0 0
    %1302 = vmatpush1.bf16.msra.mxu0 0
    %1303 = vmatprep.subr.bf16.mxu0 0
    %1304 = vmatpush1.bf16.msra.mxu0 0
    %1305 = vmatprep.subr.bf16.mxu0 0
    %1306 = vmatpush1.bf16.msra.mxu0 0
    %1307 = vmatprep.subr.bf16.mxu0 0
    %1308 = vmatpush1.bf16.msra.mxu0 0
    %1309 = vmatprep.subr.bf16.mxu0 0
    %1310 = vmatpush1.bf16.msra.mxu0 0
    %1311 = vmatprep.subr.bf16.mxu0 0
    %1312 = vmatpush1.bf16.msra.mxu0 0
    %1313 = vmatprep.subr.bf16.mxu0 0
    %1314 = vmatpush1.bf16.msra.mxu0 0
    %1315 = vmatprep.mubr.bf16.mxu0 0
    %1316 = vmatmul.mubr.bf16.gmra.mrb[0].mxu0 %v1278
    %v1317 = vpop.f32.mrb[0].mxu0
    %v1318 = vadd.f32 0.0, %v1317
    %v1319 = vpop.f32.mrb[0].mxu0
    %v1320 = vpop.f32.mrb[0].mxu0
    %v1321 = vpop.f32.mrb[0].mxu0
    %1322 = vdwg.mxu0
    %1324 = vrot.lane.b32.xlu0 %v1216, 96
    %v1325 = vpop.permute.xlu0 %1324
    %1327 = vrot.lane.b32.xlu0 %v1217, 96
    %v1328 = vpop.permute.xlu0 %1327
    %v1330 = vsel %vm759, %v1325, 0
    %v1333 = vsel %vm759, %v1328, 0
    %1335 = vmatprep.subr.bf16.mxu0 0
    %1336 = vmatpush1.bf16.xpose.msra.mxu0 %v1333
    %1337 = vmatprep.subr.bf16.mxu0 0
    %1338 = vmatpush1.bf16.xpose.msra.mxu0 0
    %1339 = vmatprep.subr.bf16.mxu0 0
    %1340 = vmatpush1.bf16.xpose.msra.mxu0 0
    %1341 = vmatprep.subr.bf16.mxu0 0
    %1342 = vmatpush1.bf16.xpose.msra.mxu0 0
    %1343 = vmatprep.subr.bf16.mxu0 0
    %1344 = vmatpush1.bf16.xpose.msra.mxu0 0
    %1345 = vmatprep.subr.bf16.mxu0 0
    %1346 = vmatpush1.bf16.xpose.msra.mxu0 0
    %1347 = vmatprep.subr.bf16.mxu0 0
    %1348 = vmatpush1.bf16.xpose.msra.mxu0 0
    %1349 = vmatprep.subr.bf16.mxu0 0
    %1350 = vmatpush1.bf16.xpose.msra.mxu0 0
    %1351 = vmatprep.subr.bf16.mxu0 0
    %1352 = vmatpush1.bf16.xpose.msra.mxu0 0
    %1353 = vmatprep.subr.bf16.mxu0 0
    %1354 = vmatpush1.bf16.xpose.msra.mxu0 0
    %1355 = vmatprep.subr.bf16.mxu0 0
    %1356 = vmatpush1.bf16.xpose.msra.mxu0 0
    %1357 = vmatprep.subr.bf16.mxu0 0
    %1358 = vmatpush1.bf16.xpose.msra.mxu0 0
    %1359 = vmatprep.subr.bf16.mxu0 0
    %1360 = vmatpush1.bf16.xpose.msra.mxu0 0
    %1361 = vmatprep.subr.bf16.mxu0 0
    %1362 = vmatpush1.bf16.xpose.msra.mxu0 0
    %1363 = vmatprep.subr.bf16.mxu0 0
    %1364 = vmatpush1.bf16.xpose.msra.mxu0 0
    %1365 = vmatprep.subr.bf16.mxu0 0
    %1366 = vmatpush1.bf16.xpose.msra.mxu0 0
    %1367 = vmatprep.mubr.bf16.mxu0 0
    %1368 = vmatmul.mubr.bf16.gmra.mrb[0].mxu0 %v1330
    %v1369 = vpop.f32.mrb[0].mxu0
    %v1370 = vadd.f32 0.0, %v1369
    %v1371 = vpop.f32.mrb[0].mxu0
    %v1372 = vpop.f32.mrb[0].mxu0
    %v1373 = vpop.f32.mrb[0].mxu0
    %1374 = vdwg.mxu0
    %v1375 = vsel %vm806, %v1370, -inf
    %1376 = vmax.xlane.f32.xlu0 %v1375
    %v1377 = vpop.xlane.xlu0 %1376
    %v1378 = vsub.f32 %v1370, %v1377
    %v1379 = vmul.f32 %v1378, 1.442695
    %v1380 = vpow.pop %v1379
    %v1381 = vsel %vm806, %v1380, 0.0
    %1382 = vadd.xlane.f32.xlu0 %v1381
    %v1383 = vpop.xlane.xlu0 %1382
    %v1384 = vrcp.pop %v1383
    %v1385 = vmul.f32 %v1380, %v1384
    %v1386 = vpack.c.bf16 %v1385, %v1385
    %1388 = vrot.lane.b32.xlu0 %v1218, 96
    %v1389 = vpop.permute.xlu0 %1388
    %v1391 = vsel %vm806, %v1386, 0
    %v1394 = vsel %vm822, %v1389, 0
    %1396 = vmatprep.subr.bf16.mxu0 0
    %1397 = vmatpush1.bf16.msra.mxu0 %v1394
    %1398 = vmatprep.subr.bf16.mxu0 0
    %1399 = vmatpush1.bf16.msra.mxu0 0
    %1400 = vmatprep.subr.bf16.mxu0 0
    %1401 = vmatpush1.bf16.msra.mxu0 0
    %1402 = vmatprep.subr.bf16.mxu0 0
    %1403 = vmatpush1.bf16.msra.mxu0 0
    %1404 = vmatprep.subr.bf16.mxu0 0
    %1405 = vmatpush1.bf16.msra.mxu0 0
    %1406 = vmatprep.subr.bf16.mxu0 0
    %1407 = vmatpush1.bf16.msra.mxu0 0
    %1408 = vmatprep.subr.bf16.mxu0 0
    %1409 = vmatpush1.bf16.msra.mxu0 0
    %1410 = vmatprep.subr.bf16.mxu0 0
    %1411 = vmatpush1.bf16.msra.mxu0 0
    %1412 = vmatprep.subr.bf16.mxu0 0
    %1413 = vmatpush1.bf16.msra.mxu0 0
    %1414 = vmatprep.subr.bf16.mxu0 0
    %1415 = vmatpush1.bf16.msra.mxu0 0
    %1416 = vmatprep.subr.bf16.mxu0 0
    %1417 = vmatpush1.bf16.msra.mxu0 0
    %1418 = vmatprep.subr.bf16.mxu0 0
    %1419 = vmatpush1.bf16.msra.mxu0 0
    %1420 = vmatprep.subr.bf16.mxu0 0
    %1421 = vmatpush1.bf16.msra.mxu0 0
    %1422 = vmatprep.subr.bf16.mxu0 0
    %1423 = vmatpush1.bf16.msra.mxu0 0
    %1424 = vmatprep.subr.bf16.mxu0 0
    %1425 = vmatpush1.bf16.msra.mxu0 0
    %1426 = vmatprep.subr.bf16.mxu0 0
    %1427 = vmatpush1.bf16.msra.mxu0 0
    %1428 = vmatprep.mubr.bf16.mxu0 0
    %1429 = vmatmul.mubr.bf16.gmra.mrb[0].mxu0 %v1391
    %v1430 = vpop.f32.mrb[0].mxu0
    %v1431 = vadd.f32 0.0, %v1430
    %v1432 = vpop.f32.mrb[0].mxu0
    %v1433 = vpop.f32.mrb[0].mxu0
    %v1434 = vpop.f32.mrb[0].mxu0
    %1435 = vdwg.mxu0
    %1436 = vrot.lane.b32.xlu0 %v1216, 64
    %v1437 = vpop.permute.xlu0 %1436
    %1438 = vrot.lane.b32.xlu0 %v1217, 64
    %v1439 = vpop.permute.xlu0 %1438
    %v1441 = vsel %vm759, %v1437, 0
    %v1444 = vsel %vm759, %v1439, 0
    %1446 = vmatprep.subr.bf16.mxu0 0
    %1447 = vmatpush1.bf16.xpose.msra.mxu0 %v1444
    %1448 = vmatprep.subr.bf16.mxu0 0
    %1449 = vmatpush1.bf16.xpose.msra.mxu0 0
    %1450 = vmatprep.subr.bf16.mxu0 0
    %1451 = vmatpush1.bf16.xpose.msra.mxu0 0
    %1452 = vmatprep.subr.bf16.mxu0 0
    %1453 = vmatpush1.bf16.xpose.msra.mxu0 0
    %1454 = vmatprep.subr.bf16.mxu0 0
    %1455 = vmatpush1.bf16.xpose.msra.mxu0 0
    %1456 = vmatprep.subr.bf16.mxu0 0
    %1457 = vmatpush1.bf16.xpose.msra.mxu0 0
    %1458 = vmatprep.subr.bf16.mxu0 0
    %1459 = vmatpush1.bf16.xpose.msra.mxu0 0
    %1460 = vmatprep.subr.bf16.mxu0 0
    %1461 = vmatpush1.bf16.xpose.msra.mxu0 0
    %1462 = vmatprep.subr.bf16.mxu0 0
    %1463 = vmatpush1.bf16.xpose.msra.mxu0 0
    %1464 = vmatprep.subr.bf16.mxu0 0
    %1465 = vmatpush1.bf16.xpose.msra.mxu0 0
    %1466 = vmatprep.subr.bf16.mxu0 0
    %1467 = vmatpush1.bf16.xpose.msra.mxu0 0
    %1468 = vmatprep.subr.bf16.mxu0 0
    %1469 = vmatpush1.bf16.xpose.msra.mxu0 0
    %1470 = vmatprep.subr.bf16.mxu0 0
    %1471 = vmatpush1.bf16.xpose.msra.mxu0 0
    %1472 = vmatprep.subr.bf16.mxu0 0
    %1473 = vmatpush1.bf16.xpose.msra.mxu0 0
    %1474 = vmatprep.subr.bf16.mxu0 0
    %1475 = vmatpush1.bf16.xpose.msra.mxu0 0
    %1476 = vmatprep.subr.bf16.mxu0 0
    %1477 = vmatpush1.bf16.xpose.msra.mxu0 0
    %1478 = vmatprep.mubr.bf16.mxu0 0
    %1479 = vmatmul.mubr.bf16.gmra.mrb[0].mxu0 %v1441
    %v1480 = vpop.f32.mrb[0].mxu0
    %v1481 = vadd.f32 0.0, %v1480
    %v1482 = vpop.f32.mrb[0].mxu0
    %v1483 = vpop.f32.mrb[0].mxu0
    %v1484 = vpop.f32.mrb[0].mxu0
    %1485 = vdwg.mxu0
    %v1486 = vsel %vm806, %v1481, -inf
    %1487 = vmax.xlane.f32.xlu0 %v1486
    %v1488 = vpop.xlane.xlu0 %1487
    %v1489 = vsub.f32 %v1481, %v1488
    %v1490 = vmul.f32 %v1489, 1.442695
    %v1491 = vpow.pop %v1490
    %v1492 = vsel %vm806, %v1491, 0.0
    %1493 = vadd.xlane.f32.xlu0 %v1492
    %v1494 = vpop.xlane.xlu0 %1493
    %v1495 = vrcp.pop %v1494
    %v1496 = vmul.f32 %v1491, %v1495
    %v1497 = vpack.c.bf16 %v1496, %v1496
    %1498 = vrot.lane.b32.xlu0 %v1218, 64
    %v1499 = vpop.permute.xlu0 %1498
    %v1501 = vsel %vm806, %v1497, 0
    %v1504 = vsel %vm822, %v1499, 0
    %1506 = vmatprep.subr.bf16.mxu0 0
    %1507 = vmatpush1.bf16.msra.mxu0 %v1504
    %1508 = vmatprep.subr.bf16.mxu0 0
    %1509 = vmatpush1.bf16.msra.mxu0 0
    %1510 = vmatprep.subr.bf16.mxu0 0
    %1511 = vmatpush1.bf16.msra.mxu0 0
    %1512 = vmatprep.subr.bf16.mxu0 0
    %1513 = vmatpush1.bf16.msra.mxu0 0
    %1514 = vmatprep.subr.bf16.mxu0 0
    %1515 = vmatpush1.bf16.msra.mxu0 0
    %1516 = vmatprep.subr.bf16.mxu0 0
    %1517 = vmatpush1.bf16.msra.mxu0 0
    %1518 = vmatprep.subr.bf16.mxu0 0
    %1519 = vmatpush1.bf16.msra.mxu0 0
    %1520 = vmatprep.subr.bf16.mxu0 0
    %1521 = vmatpush1.bf16.msra.mxu0 0
    %1522 = vmatprep.subr.bf16.mxu0 0
    %1523 = vmatpush1.bf16.msra.mxu0 0
    %1524 = vmatprep.subr.bf16.mxu0 0
    %1525 = vmatpush1.bf16.msra.mxu0 0
    %1526 = vmatprep.subr.bf16.mxu0 0
    %1527 = vmatpush1.bf16.msra.mxu0 0
    %1528 = vmatprep.subr.bf16.mxu0 0
    %1529 = vmatpush1.bf16.msra.mxu0 0
    %1530 = vmatprep.subr.bf16.mxu0 0
    %1531 = vmatpush1.bf16.msra.mxu0 0
    %1532 = vmatprep.subr.bf16.mxu0 0
    %1533 = vmatpush1.bf16.msra.mxu0 0
    %1534 = vmatprep.subr.bf16.mxu0 0
    %1535 = vmatpush1.bf16.msra.mxu0 0
    %1536 = vmatprep.subr.bf16.mxu0 0
    %1537 = vmatpush1.bf16.msra.mxu0 0
    %1538 = vmatprep.mubr.bf16.mxu0 0
    %1539 = vmatmul.mubr.bf16.gmra.mrb[0].mxu0 %v1501
    %v1540 = vpop.f32.mrb[0].mxu0
    %v1541 = vadd.f32 0.0, %v1540
    %v1542 = vpop.f32.mrb[0].mxu0
    %v1543 = vpop.f32.mrb[0].mxu0
    %v1544 = vpop.f32.mrb[0].mxu0
    %1545 = vdwg.mxu0
    %1546 = vrot.lane.b32.xlu0 %v1216, 32
    %v1547 = vpop.permute.xlu0 %1546
    %1548 = vrot.lane.b32.xlu0 %v1217, 32
    %v1549 = vpop.permute.xlu0 %1548
    %v1551 = vsel %vm759, %v1547, 0
    %v1554 = vsel %vm759, %v1549, 0
    %1556 = vmatprep.subr.bf16.mxu0 0
    %1557 = vmatpush1.bf16.xpose.msra.mxu0 %v1554
    %1558 = vmatprep.subr.bf16.mxu0 0
    %1559 = vmatpush1.bf16.xpose.msra.mxu0 0
    %1560 = vmatprep.subr.bf16.mxu0 0
    %1561 = vmatpush1.bf16.xpose.msra.mxu0 0
    %1562 = vmatprep.subr.bf16.mxu0 0
    %1563 = vmatpush1.bf16.xpose.msra.mxu0 0
    %1564 = vmatprep.subr.bf16.mxu0 0
    %1565 = vmatpush1.bf16.xpose.msra.mxu0 0
    %1566 = vmatprep.subr.bf16.mxu0 0
    %1567 = vmatpush1.bf16.xpose.msra.mxu0 0
    %1568 = vmatprep.subr.bf16.mxu0 0
    %1569 = vmatpush1.bf16.xpose.msra.mxu0 0
    %1570 = vmatprep.subr.bf16.mxu0 0
    %1571 = vmatpush1.bf16.xpose.msra.mxu0 0
    %1572 = vmatprep.subr.bf16.mxu0 0
    %1573 = vmatpush1.bf16.xpose.msra.mxu0 0
    %1574 = vmatprep.subr.bf16.mxu0 0
    %1575 = vmatpush1.bf16.xpose.msra.mxu0 0
    %1576 = vmatprep.subr.bf16.mxu0 0
    %1577 = vmatpush1.bf16.xpose.msra.mxu0 0
    %1578 = vmatprep.subr.bf16.mxu0 0
    %1579 = vmatpush1.bf16.xpose.msra.mxu0 0
    %1580 = vmatprep.subr.bf16.mxu0 0
    %1581 = vmatpush1.bf16.xpose.msra.mxu0 0
    %1582 = vmatprep.subr.bf16.mxu0 0
    %1583 = vmatpush1.bf16.xpose.msra.mxu0 0
    %1584 = vmatprep.subr.bf16.mxu0 0
    %1585 = vmatpush1.bf16.xpose.msra.mxu0 0
    %1586 = vmatprep.subr.bf16.mxu0 0
    %1587 = vmatpush1.bf16.xpose.msra.mxu0 0
    %1588 = vmatprep.mubr.bf16.mxu0 0
    %1589 = vmatmul.mubr.bf16.gmra.mrb[0].mxu0 %v1551
    %v1590 = vpop.f32.mrb[0].mxu0
    %v1591 = vadd.f32 0.0, %v1590
    %v1592 = vpop.f32.mrb[0].mxu0
    %v1593 = vpop.f32.mrb[0].mxu0
    %v1594 = vpop.f32.mrb[0].mxu0
    %1595 = vdwg.mxu0
    %v1596 = vsel %vm806, %v1591, -inf
    %1597 = vmax.xlane.f32.xlu0 %v1596
    %v1598 = vpop.xlane.xlu0 %1597
    %v1599 = vsub.f32 %v1591, %v1598
    %v1600 = vmul.f32 %v1599, 1.442695
    %v1601 = vpow.pop %v1600
    %v1602 = vsel %vm806, %v1601, 0.0
    %1603 = vadd.xlane.f32.xlu0 %v1602
    %v1604 = vpop.xlane.xlu0 %1603
    %v1605 = vrcp.pop %v1604
    %v1606 = vmul.f32 %v1601, %v1605
    %v1607 = vpack.c.bf16 %v1606, %v1606
    %1608 = vrot.lane.b32.xlu0 %v1218, 32
    %v1609 = vpop.permute.xlu0 %1608
    %v1611 = vsel %vm806, %v1607, 0
    %v1614 = vsel %vm822, %v1609, 0
    %1616 = vmatprep.subr.bf16.mxu0 0
    %1617 = vmatpush1.bf16.msra.mxu0 %v1614
    %1618 = vmatprep.subr.bf16.mxu0 0
    %1619 = vmatpush1.bf16.msra.mxu0 0
    %1620 = vmatprep.subr.bf16.mxu0 0
    %1621 = vmatpush1.bf16.msra.mxu0 0
    %1622 = vmatprep.subr.bf16.mxu0 0
    %1623 = vmatpush1.bf16.msra.mxu0 0
    %1624 = vmatprep.subr.bf16.mxu0 0
    %1625 = vmatpush1.bf16.msra.mxu0 0
    %1626 = vmatprep.subr.bf16.mxu0 0
    %1627 = vmatpush1.bf16.msra.mxu0 0
    %1628 = vmatprep.subr.bf16.mxu0 0
    %1629 = vmatpush1.bf16.msra.mxu0 0
    %1630 = vmatprep.subr.bf16.mxu0 0
    %1631 = vmatpush1.bf16.msra.mxu0 0
    %1632 = vmatprep.subr.bf16.mxu0 0
    %1633 = vmatpush1.bf16.msra.mxu0 0
    %1634 = vmatprep.subr.bf16.mxu0 0
    %1635 = vmatpush1.bf16.msra.mxu0 0
    %1636 = vmatprep.subr.bf16.mxu0 0
    %1637 = vmatpush1.bf16.msra.mxu0 0
    %1638 = vmatprep.subr.bf16.mxu0 0
    %1639 = vmatpush1.bf16.msra.mxu0 0
    %1640 = vmatprep.subr.bf16.mxu0 0
    %1641 = vmatpush1.bf16.msra.mxu0 0
    %1642 = vmatprep.subr.bf16.mxu0 0
    %1643 = vmatpush1.bf16.msra.mxu0 0
    %1644 = vmatprep.subr.bf16.mxu0 0
    %1645 = vmatpush1.bf16.msra.mxu0 0
    %1646 = vmatprep.subr.bf16.mxu0 0
    %1647 = vmatpush1.bf16.msra.mxu0 0
    %1648 = vmatprep.mubr.bf16.mxu0 0
    %1649 = vmatmul.mubr.bf16.gmra.mrb[0].mxu0 %v1611
    %v1650 = vpop.f32.mrb[0].mxu0
    %v1651 = vadd.f32 0.0, %v1650
    %v1652 = vpop.f32.mrb[0].mxu0
    %v1653 = vpop.f32.mrb[0].mxu0
    %v1654 = vpop.f32.mrb[0].mxu0
    %1655 = vdwg.mxu0
    %1657 = vrot.lane.b32.xlu0 %v1431, 32
    %v1658 = vpop.permute.xlu0 %1657
    %1661 = vrot.lane.b32.xlu0 %v1541, 64
    %v1662 = vpop.permute.xlu0 %1661
    %1665 = vrot.lane.b32.xlu0 %v1651, 96
    %v1666 = vpop.permute.xlu0 %1665
    %v1668 = vsel %vm759, %v1318, %v1658
    %v1669 = vsel %vm1212, %v1668, %v1662
    %v1670 = vsel %vm1214, %v1669, %v1666
    %v1671 = vld [vmem:[#allocation10] sm:$0xf]
    %v1672 = vld [vmem:[#allocation10 + $0x4] sm:$0xf]
    %v1673 = vld [vmem:[#allocation10 + $0x8] sm:$0xf]
    %v1674 = vld [vmem:[#allocation10 + $0xc] sm:$0xf]
    %v1675 = vld [vmem:[#allocation10 + $0x10] sm:$0xf]
    %v1676 = vld [vmem:[#allocation10 + $0x14] sm:$0xf]
    %v1677 = vld [vmem:[#allocation10 + $0x18] sm:$0xf]
    %v1678 = vld [vmem:[#allocation10 + $0x1c] sm:$0xf]
    %v1679 = vld [vmem:[#allocation10 + $0x20] sm:$0xf]
    %v1680 = vld [vmem:[#allocation10 + $0x24] sm:$0xf]
    %v1681 = vld [vmem:[#allocation10 + $0x28] sm:$0xf]
    %v1682 = vld [vmem:[#allocation10 + $0x2c] sm:$0xf]
    %v1683 = vld [vmem:[#allocation10 + $0x30] sm:$0xf]
    %v1684 = vld [vmem:[#allocation10 + $0x34] sm:$0xf]
    %v1685 = vld [vmem:[#allocation10 + $0x38] sm:$0xf]
    %v1686 = vld [vmem:[#allocation10 + $0x3c] sm:$0xf]
    %v1687 = vpack.c.bf16 %v1670, %v1215
    %v1688 = vld [vmem:[#allocation12] sm:$0x1]
    %v1690 = vlaneseq
    %v1691 = vshrl.u32 %v1690, 7
    %v1692 = vsub.s32 0, %v1691
    %v1693 = vrot.slane %v1688, %v1692
    %v1711 = vunpack.c.l.b16 %v1671
    %v1712 = vunpack.c.l.b16 %v1672
    %v1713 = vunpack.c.l.b16 %v1673
    %v1714 = vunpack.c.l.b16 %v1674
    %v1715 = vunpack.c.l.b16 %v1675
    %v1716 = vunpack.c.l.b16 %v1676
    %v1717 = vunpack.c.l.b16 %v1677
    %v1718 = vunpack.c.l.b16 %v1678
    %v1719 = vunpack.c.l.b16 %v1679
    %v1720 = vunpack.c.l.b16 %v1680
    %v1721 = vunpack.c.l.b16 %v1681
    %v1722 = vunpack.c.l.b16 %v1682
    %v1723 = vunpack.c.l.b16 %v1683
    %v1724 = vunpack.c.l.b16 %v1684
    %v1725 = vunpack.c.l.b16 %v1685
    %v1726 = vunpack.c.l.b16 %v1686
    %v1727 = vpack.c.b16 %v1712, %v1711
    %v1728 = vpack.c.b16 %v1714, %v1713
    %v1729 = vpack.c.b16 %v1716, %v1715
    %v1730 = vpack.c.b16 %v1718, %v1717
    %v1731 = vpack.c.b16 %v1720, %v1719
    %v1732 = vpack.c.b16 %v1722, %v1721
    %v1733 = vpack.c.b16 %v1724, %v1723
    %v1734 = vpack.c.b16 %v1726, %v1725
    %1743 = vmatprep.subr.bf16.mxu0 0
    %1744 = vmatpush1.bf16.msra.mxu0 %v1727
    %1745 = vmatprep.subr.bf16.mxu0 0
    %1746 = vmatpush1.bf16.msra.mxu0 %v1728
    %1747 = vmatprep.subr.bf16.mxu0 0
    %1748 = vmatpush1.bf16.msra.mxu0 %v1729
    %1749 = vmatprep.subr.bf16.mxu0 0
    %1750 = vmatpush1.bf16.msra.mxu0 %v1730
    %1751 = vmatprep.subr.bf16.mxu0 0
    %1752 = vmatpush1.bf16.msra.mxu0 %v1731
    %1753 = vmatprep.subr.bf16.mxu0 0
    %1754 = vmatpush1.bf16.msra.mxu0 %v1732
    %1755 = vmatprep.subr.bf16.mxu0 0
    %1756 = vmatpush1.bf16.msra.mxu0 %v1733
    %1757 = vmatprep.subr.bf16.mxu0 0
    %1758 = vmatpush1.bf16.msra.mxu0 %v1734
    %1759 = vmatprep.subr.bf16.mxu0 0
    %1760 = vmatpush1.bf16.msra.mxu0 0
    %1761 = vmatprep.subr.bf16.mxu0 0
    %1762 = vmatpush1.bf16.msra.mxu0 0
    %1763 = vmatprep.subr.bf16.mxu0 0
    %1764 = vmatpush1.bf16.msra.mxu0 0
    %1765 = vmatprep.subr.bf16.mxu0 0
    %1766 = vmatpush1.bf16.msra.mxu0 0
    %1767 = vmatprep.subr.bf16.mxu0 0
    %1768 = vmatpush1.bf16.msra.mxu0 0
    %1769 = vmatprep.subr.bf16.mxu0 0
    %1770 = vmatpush1.bf16.msra.mxu0 0
    %1771 = vmatprep.subr.bf16.mxu0 0
    %1772 = vmatpush1.bf16.msra.mxu0 0
    %1773 = vmatprep.subr.bf16.mxu0 0
    %1774 = vmatpush1.bf16.msra.mxu0 0
    %1775 = vmatprep.mubr.bf16.mxu0 0
    %1776 = vmatmul.mubr.bf16.gmra.mrb[0].mxu0 %v1687
    %v1777 = vpop.f32.mrb[0].mxu0
    %v1778 = vadd.f32 %v1693, %v1777
    %v1779 = vpop.f32.mrb[0].mxu0
    %v1780 = vpop.f32.mrb[0].mxu0
    %v1781 = vadd.f32 %v1693, %v1780
    %v1782 = vpop.f32.mrb[0].mxu0
    %1783 = vdwg.mxu0
    %v1784 = vadd.f32 %v492, %v1778
    %v1785 = vadd.f32 %v493, %v1781
    %v1786 = vld [vmem:[#allocation13] sm:$0x1]
    %v1787 = vld [vmem:[#allocation15] sm:$0x1]
    %1788 = vadd.xlane.f32.xlu0 %v1784
    %v1789 = vpop.xlane.xlu0 %1788
    %1790 = vadd.xlane.f32.xlu0 %v1785
    %v1791 = vpop.xlane.xlu0 %1790
    %v1792 = vrcp.pop 128.0
    %v1793 = vmul.f32 %v1789, %v1792
    %v1794 = vmul.f32 %v1791, %v1792
    %v1795 = vsub.f32 %v1784, %v1793
    %v1796 = vsub.f32 %v1785, %v1794
    %v1797 = vmul.f32 %v1795, %v1795
    %v1798 = vmul.f32 %v1796, %v1796
    %1799 = vadd.xlane.f32.xlu0 %v1797
    %v1800 = vpop.xlane.xlu0 %1799
    %1801 = vadd.xlane.f32.xlu0 %v1798
    %v1802 = vpop.xlane.xlu0 %1801
    %v1803 = vmul.f32 %v1800, %v1792
    %v1804 = vmul.f32 %v1802, %v1792
    %v1805 = vadd.f32 %v1803, 1e-05
    %v1806 = vadd.f32 %v1804, 1e-05
    %v1807 = vrsqrt.pop %v1805
    %v1808 = vrsqrt.pop %v1806
    %v1809 = vmul.f32 %v1795, %v1807
    %v1810 = vmul.f32 %v1796, %v1808
    %v1812 = vlaneseq
    %v1813 = vshrl.u32 %v1812, 7
    %v1814 = vsub.s32 0, %v1813
    %v1815 = vrot.slane %v1786, %v1814
    %v1817 = vmul.f32 %v1809, %v1815
    %v1818 = vmul.f32 %v1810, %v1815
    %v1820 = vlaneseq
    %v1821 = vshrl.u32 %v1820, 7
    %v1822 = vsub.s32 0, %v1821
    %v1823 = vrot.slane %v1787, %v1822
    %v1825 = vadd.f32 %v1817, %v1823
    %v1826 = vadd.f32 %v1818, %v1823
    %s1827 = smul.u32 4, 16
    %s1828 = smul.u32 %s1827, 16
    %s1829 = sshll.u32 %s1828, 4
    %1830 = dma.done [#allocation6], %s1829
    %s1831 = smul.u32 4, 256
    %s1832 = smul.u32 %s1831, 1
    %s1833 = sshll.u32 %s1832, 4
    %1834 = dma.done %s367, %s1833
    %v1835 = vpack.c.bf16 %v1826, %v1825
    %v1836 = vld [vmem:[#allocation2] sm:$0xff]
    %v1837 = vld [vmem:[#allocation2 + $0x8] sm:$0xff]
    %v1838 = vld [vmem:[#allocation2 + $0x10] sm:$0xff]
    %v1839 = vld [vmem:[#allocation2 + $0x18] sm:$0xff]
    %v1840 = vld [vmem:[#allocation2 + $0x80] sm:$0xff]
    %v1841 = vld [vmem:[#allocation2 + $0x88] sm:$0xff]
    %v1842 = vld [vmem:[#allocation2 + $0x90] sm:$0xff]
    %v1843 = vld [vmem:[#allocation2 + $0x98] sm:$0xff]
    %v1844 = vld [vmem:[#allocation2 + $0x100] sm:$0xff]
    %v1845 = vld [vmem:[#allocation2 + $0x108] sm:$0xff]
    %v1846 = vld [vmem:[#allocation2 + $0x110] sm:$0xff]
    %v1847 = vld [vmem:[#allocation2 + $0x118] sm:$0xff]
    %v1848 = vld [vmem:[#allocation2 + $0x180] sm:$0xff]
    %v1849 = vld [vmem:[#allocation2 + $0x188] sm:$0xff]
    %v1850 = vld [vmem:[#allocation2 + $0x190] sm:$0xff]
    %v1851 = vld [vmem:[#allocation2 + $0x198] sm:$0xff]
    %v1852 = vld [vmem:[#allocation2 + $0x200] sm:$0xff]
    %v1853 = vld [vmem:[#allocation2 + $0x208] sm:$0xff]
    %v1854 = vld [vmem:[#allocation2 + $0x210] sm:$0xff]
    %v1855 = vld [vmem:[#allocation2 + $0x218] sm:$0xff]
    %v1856 = vld [vmem:[#allocation2 + $0x280] sm:$0xff]
    %v1857 = vld [vmem:[#allocation2 + $0x288] sm:$0xff]
    %v1858 = vld [vmem:[#allocation2 + $0x290] sm:$0xff]
    %v1859 = vld [vmem:[#allocation2 + $0x298] sm:$0xff]
    %v1860 = vld [vmem:[#allocation2 + $0x300] sm:$0xff]
    %v1861 = vld [vmem:[#allocation2 + $0x308] sm:$0xff]
    %v1862 = vld [vmem:[#allocation2 + $0x310] sm:$0xff]
    %v1863 = vld [vmem:[#allocation2 + $0x318] sm:$0xff]
    %v1864 = vld [vmem:[#allocation2 + $0x380] sm:$0xff]
    %v1865 = vld [vmem:[#allocation2 + $0x388] sm:$0xff]
    %v1866 = vld [vmem:[#allocation2 + $0x390] sm:$0xff]
    %v1867 = vld [vmem:[#allocation2 + $0x398] sm:$0xff]
    %v1868 = vld [vmem:[%s21] sm:$0xf]
    %v1870 = vlaneseq
    %v1871 = vshrl.u32 %v1870, 7
    %v1872 = vsub.s32 0, %v1871
    %v1873 = vrot.slane %v1868, %v1872
    %v1874 = vlaneseq
    %v1875 = vshrl.u32 %v1874, 7
    %v1876 = vsub.s32 1, %v1875
    %v1877 = vrot.slane %v1868, %v1876
    %v1878 = vlaneseq
    %v1879 = vshrl.u32 %v1878, 7
    %v1880 = vsub.s32 2, %v1879
    %v1881 = vrot.slane %v1868, %v1880
    %v1882 = vlaneseq
    %v1883 = vshrl.u32 %v1882, 7
    %v1884 = vsub.s32 3, %v1883
    %v1885 = vrot.slane %v1868, %v1884
    %1890 = vmatprep.subr.bf16.mxu0 %v1837
    %1891 = vmatpush1.bf16.msra.mxu0 %v1836
    %1892 = vmatprep.subr.bf16.mxu0 %v1841
    %1893 = vmatpush1.bf16.msra.mxu0 %v1840
    %1894 = vmatprep.subr.bf16.mxu0 %v1845
    %1895 = vmatpush1.bf16.msra.mxu0 %v1844
    %1896 = vmatprep.subr.bf16.mxu0 %v1849
    %1897 = vmatpush1.bf16.msra.mxu0 %v1848
    %1898 = vmatprep.subr.bf16.mxu0 %v1853
    %1899 = vmatpush1.bf16.msra.mxu0 %v1852
    %1900 = vmatprep.subr.bf16.mxu0 %v1857
    %1901 = vmatpush1.bf16.msra.mxu0 %v1856
    %1902 = vmatprep.subr.bf16.mxu0 %v1861
    %1903 = vmatpush1.bf16.msra.mxu0 %v1860
    %1904 = vmatprep.subr.bf16.mxu0 %v1865
    %1905 = vmatpush1.bf16.msra.mxu0 %v1864
    %1906 = vmatprep.subr.bf16.mxu0 0
    %1907 = vmatpush1.bf16.msra.mxu0 0
    %1908 = vmatprep.subr.bf16.mxu0 0
    %1909 = vmatpush1.bf16.msra.mxu0 0
    %1910 = vmatprep.subr.bf16.mxu0 0
    %1911 = vmatpush1.bf16.msra.mxu0 0
    %1912 = vmatprep.subr.bf16.mxu0 0
    %1913 = vmatpush1.bf16.msra.mxu0 0
    %1914 = vmatprep.subr.bf16.mxu0 0
    %1915 = vmatpush1.bf16.msra.mxu0 0
    %1916 = vmatprep.subr.bf16.mxu0 0
    %1917 = vmatpush1.bf16.msra.mxu0 0
    %1918 = vmatprep.subr.bf16.mxu0 0
    %1919 = vmatpush1.bf16.msra.mxu0 0
    %1920 = vmatprep.subr.bf16.mxu0 0
    %1921 = vmatpush1.bf16.msra.mxu0 0
    %1922 = vmatprep.mubr.bf16.mxu0 0
    %1923 = vmatmul.mubr.bf16.gmra.mrb[0].mxu0 %v1835
    %v1924 = vpop.f32.mrb[0].mxu0
    %v1925 = vadd.f32 %v1873, %v1924
    %v1926 = vpop.f32.mrb[0].mxu0
    %v1927 = vadd.f32 %v1877, %v1926
    %v1928 = vpop.f32.mrb[0].mxu0
    %v1929 = vadd.f32 %v1873, %v1928
    %v1930 = vpop.f32.mrb[0].mxu0
    %v1931 = vadd.f32 %v1877, %v1930
    %1932 = vdwg.mxu0
    %1933 = vmatprep.subr.bf16.mxu0 %v1839
    %1934 = vmatpush1.bf16.msra.mxu0 %v1838
    %1935 = vmatprep.subr.bf16.mxu0 %v1843
    %1936 = vmatpush1.bf16.msra.mxu0 %v1842
    %1937 = vmatprep.subr.bf16.mxu0 %v1847
    %1938 = vmatpush1.bf16.msra.mxu0 %v1846
    %1939 = vmatprep.subr.bf16.mxu0 %v1851
    %1940 = vmatpush1.bf16.msra.mxu0 %v1850
    %1941 = vmatprep.subr.bf16.mxu0 %v1855
    %1942 = vmatpush1.bf16.msra.mxu0 %v1854
    %1943 = vmatprep.subr.bf16.mxu0 %v1859
    %1944 = vmatpush1.bf16.msra.mxu0 %v1858
    %1945 = vmatprep.subr.bf16.mxu0 %v1863
    %1946 = vmatpush1.bf16.msra.mxu0 %v1862
    %1947 = vmatprep.subr.bf16.mxu0 %v1867
    %1948 = vmatpush1.bf16.msra.mxu0 %v1866
    %1949 = vmatprep.subr.bf16.mxu0 0
    %1950 = vmatpush1.bf16.msra.mxu0 0
    %1951 = vmatprep.subr.bf16.mxu0 0
    %1952 = vmatpush1.bf16.msra.mxu0 0
    %1953 = vmatprep.subr.bf16.mxu0 0
    %1954 = vmatpush1.bf16.msra.mxu0 0
    %1955 = vmatprep.subr.bf16.mxu0 0
    %1956 = vmatpush1.bf16.msra.mxu0 0
    %1957 = vmatprep.subr.bf16.mxu0 0
    %1958 = vmatpush1.bf16.msra.mxu0 0
    %1959 = vmatprep.subr.bf16.mxu0 0
    %1960 = vmatpush1.bf16.msra.mxu0 0
    %1961 = vmatprep.subr.bf16.mxu0 0
    %1962 = vmatpush1.bf16.msra.mxu0 0
    %1963 = vmatprep.subr.bf16.mxu0 0
    %1964 = vmatpush1.bf16.msra.mxu0 0
    %1965 = vmatprep.mubr.bf16.mxu0 0
    %1966 = vmatmul.mubr.bf16.gmra.mrb[0].mxu0 %v1835
    %v1967 = vpop.f32.mrb[0].mxu0
    %v1968 = vadd.f32 %v1881, %v1967
    %v1969 = vpop.f32.mrb[0].mxu0
    %v1970 = vadd.f32 %v1885, %v1969
    %v1971 = vpop.f32.mrb[0].mxu0
    %v1972 = vadd.f32 %v1881, %v1971
    %v1973 = vpop.f32.mrb[0].mxu0
    %v1974 = vadd.f32 %v1885, %v1973
    %1975 = vdwg.mxu0
    %v1976 = vmax.f32 %v1925, 0.0
    %v1977 = vmax.f32 %v1927, 0.0
    %v1978 = vmax.f32 %v1968, 0.0
    %v1979 = vmax.f32 %v1970, 0.0
    %v1980 = vmax.f32 %v1929, 0.0
    %v1981 = vmax.f32 %v1931, 0.0
    %v1982 = vmax.f32 %v1972, 0.0
    %v1983 = vmax.f32 %v1974, 0.0
    %v1984 = vpack.c.bf16 %v1980, %v1976
    %v1985 = vpack.c.bf16 %v1981, %v1977
    %v1986 = vpack.c.bf16 %v1982, %v1978
    %v1987 = vpack.c.bf16 %v1983, %v1979
    %v1988 = vld [vmem:[#allocation3] sm:$0xff]
    %v1989 = vld [vmem:[#allocation3 + $0x8] sm:$0xff]
    %v1990 = vld [vmem:[#allocation3 + $0x10] sm:$0xff]
    %v1991 = vld [vmem:[#allocation3 + $0x18] sm:$0xff]
    %v1992 = vld [vmem:[#allocation3 + $0x20] sm:$0xff]
    %v1993 = vld [vmem:[#allocation3 + $0x28] sm:$0xff]
    %v1994 = vld [vmem:[#allocation3 + $0x30] sm:$0xff]
    %v1995 = vld [vmem:[#allocation3 + $0x38] sm:$0xff]
    %v1996 = vld [vmem:[#allocation3 + $0x40] sm:$0xff]
    %v1997 = vld [vmem:[#allocation3 + $0x48] sm:$0xff]
    %v1998 = vld [vmem:[#allocation3 + $0x50] sm:$0xff]
    %v1999 = vld [vmem:[#allocation3 + $0x58] sm:$0xff]
    %v2000 = vld [vmem:[#allocation3 + $0x60] sm:$0xff]
    %v2001 = vld [vmem:[#allocation3 + $0x68] sm:$0xff]
    %v2002 = vld [vmem:[#allocation3 + $0x70] sm:$0xff]
    %v2003 = vld [vmem:[#allocation3 + $0x78] sm:$0xff]
    %v2004 = vld [vmem:[#allocation3 + $0x80] sm:$0xff]
    %v2005 = vld [vmem:[#allocation3 + $0x88] sm:$0xff]
    %v2006 = vld [vmem:[#allocation3 + $0x90] sm:$0xff]
    %v2007 = vld [vmem:[#allocation3 + $0x98] sm:$0xff]
    %v2008 = vld [vmem:[#allocation3 + $0xa0] sm:$0xff]
    %v2009 = vld [vmem:[#allocation3 + $0xa8] sm:$0xff]
    %v2010 = vld [vmem:[#allocation3 + $0xb0] sm:$0xff]
    %v2011 = vld [vmem:[#allocation3 + $0xb8] sm:$0xff]
    %v2012 = vld [vmem:[#allocation3 + $0xc0] sm:$0xff]
    %v2013 = vld [vmem:[#allocation3 + $0xc8] sm:$0xff]
    %v2014 = vld [vmem:[#allocation3 + $0xd0] sm:$0xff]
    %v2015 = vld [vmem:[#allocation3 + $0xd8] sm:$0xff]
    %v2016 = vld [vmem:[#allocation3 + $0xe0] sm:$0xff]
    %v2017 = vld [vmem:[#allocation3 + $0xe8] sm:$0xff]
    %v2018 = vld [vmem:[#allocation3 + $0xf0] sm:$0xff]
    %v2019 = vld [vmem:[#allocation3 + $0xf8] sm:$0xff]
    %v2020 = vld [vmem:[#allocation2 + $0x20] sm:$0xff]
    %v2021 = vld [vmem:[#allocation2 + $0x28] sm:$0xff]
    %v2022 = vld [vmem:[#allocation2 + $0x30] sm:$0xff]
    %v2023 = vld [vmem:[#allocation2 + $0x38] sm:$0xff]
    %v2024 = vld [vmem:[#allocation2 + $0xa0] sm:$0xff]
    %v2025 = vld [vmem:[#allocation2 + $0xa8] sm:$0xff]
    %v2026 = vld [vmem:[#allocation2 + $0xb0] sm:$0xff]
    %v2027 = vld [vmem:[#allocation2 + $0xb8] sm:$0xff]
    %v2028 = vld [vmem:[#allocation2 + $0x120] sm:$0xff]
    %v2029 = vld [vmem:[#allocation2 + $0x128] sm:$0xff]
    %v2030 = vld [vmem:[#allocation2 + $0x130] sm:$0xff]
    %v2031 = vld [vmem:[#allocation2 + $0x138] sm:$0xff]
    %v2032 = vld [vmem:[#allocation2 + $0x1a0] sm:$0xff]
    %v2033 = vld [vmem:[#allocation2 + $0x1a8] sm:$0xff]
    %v2034 = vld [vmem:[#allocation2 + $0x1b0] sm:$0xff]
    %v2035 = vld [vmem:[#allocation2 + $0x1b8] sm:$0xff]
    %v2036 = vld [vmem:[#allocation2 + $0x220] sm:$0xff]
    %v2037 = vld [vmem:[#allocation2 + $0x228] sm:$0xff]
    %v2038 = vld [vmem:[#allocation2 + $0x230] sm:$0xff]
    %v2039 = vld [vmem:[#allocation2 + $0x238] sm:$0xff]
    %v2040 = vld [vmem:[#allocation2 + $0x2a0] sm:$0xff]
    %v2041 = vld [vmem:[#allocation2 + $0x2a8] sm:$0xff]
    %v2042 = vld [vmem:[#allocation2 + $0x2b0] sm:$0xff]
    %v2043 = vld [vmem:[#allocation2 + $0x2b8] sm:$0xff]
    %v2044 = vld [vmem:[#allocation2 + $0x320] sm:$0xff]
    %v2045 = vld [vmem:[#allocation2 + $0x328] sm:$0xff]
    %v2046 = vld [vmem:[#allocation2 + $0x330] sm:$0xff]
    %v2047 = vld [vmem:[#allocation2 + $0x338] sm:$0xff]
    %v2048 = vld [vmem:[#allocation2 + $0x3a0] sm:$0xff]
    %v2049 = vld [vmem:[#allocation2 + $0x3a8] sm:$0xff]
    %v2050 = vld [vmem:[#allocation2 + $0x3b0] sm:$0xff]
    %v2051 = vld [vmem:[#allocation2 + $0x3b8] sm:$0xff]
    %v2052 = vld [vmem:[%s21 + $0x4] sm:$0xf]
    %v2054 = vlaneseq
    %v2055 = vshrl.u32 %v2054, 7
    %v2056 = vsub.s32 0, %v2055
    %v2057 = vrot.slane %v2052, %v2056
    %v2058 = vlaneseq
    %v2059 = vshrl.u32 %v2058, 7
    %v2060 = vsub.s32 1, %v2059
    %v2061 = vrot.slane %v2052, %v2060
    %v2062 = vlaneseq
    %v2063 = vshrl.u32 %v2062, 7
    %v2064 = vsub.s32 2, %v2063
    %v2065 = vrot.slane %v2052, %v2064
    %v2066 = vlaneseq
    %v2067 = vshrl.u32 %v2066, 7
    %v2068 = vsub.s32 3, %v2067
    %v2069 = vrot.slane %v2052, %v2068
    %2074 = vmatprep.subr.bf16.mxu0 %v2021
    %2075 = vmatpush1.bf16.msra.mxu0 %v2020
    %2076 = vmatprep.subr.bf16.mxu0 %v2025
    %2077 = vmatpush1.bf16.msra.mxu0 %v2024
    %2078 = vmatprep.subr.bf16.mxu0 %v2029
    %2079 = vmatpush1.bf16.msra.mxu0 %v2028
    %2080 = vmatprep.subr.bf16.mxu0 %v2033
    %2081 = vmatpush1.bf16.msra.mxu0 %v2032
    %2082 = vmatprep.subr.bf16.mxu0 %v2037
    %2083 = vmatpush1.bf16.msra.mxu0 %v2036
    %2084 = vmatprep.subr.bf16.mxu0 %v2041
    %2085 = vmatpush1.bf16.msra.mxu0 %v2040
    %2086 = vmatprep.subr.bf16.mxu0 %v2045
    %2087 = vmatpush1.bf16.msra.mxu0 %v2044
    %2088 = vmatprep.subr.bf16.mxu0 %v2049
    %2089 = vmatpush1.bf16.msra.mxu0 %v2048
    %2090 = vmatprep.subr.bf16.mxu0 0
    %2091 = vmatpush1.bf16.msra.mxu0 0
    %2092 = vmatprep.subr.bf16.mxu0 0
    %2093 = vmatpush1.bf16.msra.mxu0 0
    %2094 = vmatprep.subr.bf16.mxu0 0
    %2095 = vmatpush1.bf16.msra.mxu0 0
    %2096 = vmatprep.subr.bf16.mxu0 0
    %2097 = vmatpush1.bf16.msra.mxu0 0
    %2098 = vmatprep.subr.bf16.mxu0 0
    %2099 = vmatpush1.bf16.msra.mxu0 0
    %2100 = vmatprep.subr.bf16.mxu0 0
    %2101 = vmatpush1.bf16.msra.mxu0 0
    %2102 = vmatprep.subr.bf16.mxu0 0
    %2103 = vmatpush1.bf16.msra.mxu0 0
    %2104 = vmatprep.subr.bf16.mxu0 0
    %2105 = vmatpush1.bf16.msra.mxu0 0
    %2106 = vmatprep.mubr.bf16.mxu0 0
    %2107 = vmatmul.mubr.bf16.gmra.mrb[0].mxu0 %v1835
    %v2108 = vpop.f32.mrb[0].mxu0
    %v2109 = vadd.f32 %v2057, %v2108
    %v2110 = vpop.f32.mrb[0].mxu0
    %v2111 = vadd.f32 %v2061, %v2110
    %v2112 = vpop.f32.mrb[0].mxu0
    %v2113 = vadd.f32 %v2057, %v2112
    %v2114 = vpop.f32.mrb[0].mxu0
    %v2115 = vadd.f32 %v2061, %v2114
    %2116 = vdwg.mxu0
    %2117 = vmatprep.subr.bf16.mxu0 %v2023
    %2118 = vmatpush1.bf16.msra.mxu0 %v2022
    %2119 = vmatprep.subr.bf16.mxu0 %v2027
    %2120 = vmatpush1.bf16.msra.mxu0 %v2026
    %2121 = vmatprep.subr.bf16.mxu0 %v2031
    %2122 = vmatpush1.bf16.msra.mxu0 %v2030
    %2123 = vmatprep.subr.bf16.mxu0 %v2035
    %2124 = vmatpush1.bf16.msra.mxu0 %v2034
    %2125 = vmatprep.subr.bf16.mxu0 %v2039
    %2126 = vmatpush1.bf16.msra.mxu0 %v2038
    %2127 = vmatprep.subr.bf16.mxu0 %v2043
    %2128 = vmatpush1.bf16.msra.mxu0 %v2042
    %2129 = vmatprep.subr.bf16.mxu0 %v2047
    %2130 = vmatpush1.bf16.msra.mxu0 %v2046
    %2131 = vmatprep.subr.bf16.mxu0 %v2051
    %2132 = vmatpush1.bf16.msra.mxu0 %v2050
    %2133 = vmatprep.subr.bf16.mxu0 0
    %2134 = vmatpush1.bf16.msra.mxu0 0
    %2135 = vmatprep.subr.bf16.mxu0 0
    %2136 = vmatpush1.bf16.msra.mxu0 0
    %2137 = vmatprep.subr.bf16.mxu0 0
    %2138 = vmatpush1.bf16.msra.mxu0 0
    %2139 = vmatprep.subr.bf16.mxu0 0
    %2140 = vmatpush1.bf16.msra.mxu0 0
    %2141 = vmatprep.subr.bf16.mxu0 0
    %2142 = vmatpush1.bf16.msra.mxu0 0
    %2143 = vmatprep.subr.bf16.mxu0 0
    %2144 = vmatpush1.bf16.msra.mxu0 0
    %2145 = vmatprep.subr.bf16.mxu0 0
    %2146 = vmatpush1.bf16.msra.mxu0 0
    %2147 = vmatprep.subr.bf16.mxu0 0
    %2148 = vmatpush1.bf16.msra.mxu0 0
    %2149 = vmatprep.mubr.bf16.mxu0 0
    %2150 = vmatmul.mubr.bf16.gmra.mrb[0].mxu0 %v1835
    %v2151 = vpop.f32.mrb[0].mxu0
    %v2152 = vadd.f32 %v2065, %v2151
    %v2153 = vpop.f32.mrb[0].mxu0
    %v2154 = vadd.f32 %v2069, %v2153
    %v2155 = vpop.f32.mrb[0].mxu0
    %v2156 = vadd.f32 %v2065, %v2155
    %v2157 = vpop.f32.mrb[0].mxu0
    %v2158 = vadd.f32 %v2069, %v2157
    %2159 = vdwg.mxu0
    %v2160 = vmax.f32 %v2109, 0.0
    %v2161 = vmax.f32 %v2111, 0.0
    %v2162 = vmax.f32 %v2152, 0.0
    %v2163 = vmax.f32 %v2154, 0.0
    %v2164 = vmax.f32 %v2113, 0.0
    %v2165 = vmax.f32 %v2115, 0.0
    %v2166 = vmax.f32 %v2156, 0.0
    %v2167 = vmax.f32 %v2158, 0.0
    %v2168 = vpack.c.bf16 %v2164, %v2160
    %v2169 = vpack.c.bf16 %v2165, %v2161
    %v2170 = vpack.c.bf16 %v2166, %v2162
    %v2171 = vpack.c.bf16 %v2167, %v2163
    %v2172 = vld [vmem:[#allocation3 + $0x100] sm:$0xff]
    %v2173 = vld [vmem:[#allocation3 + $0x108] sm:$0xff]
    %v2174 = vld [vmem:[#allocation3 + $0x110] sm:$0xff]
    %v2175 = vld [vmem:[#allocation3 + $0x118] sm:$0xff]
    %v2176 = vld [vmem:[#allocation3 + $0x120] sm:$0xff]
    %v2177 = vld [vmem:[#allocation3 + $0x128] sm:$0xff]
    %v2178 = vld [vmem:[#allocation3 + $0x130] sm:$0xff]
    %v2179 = vld [vmem:[#allocation3 + $0x138] sm:$0xff]
    %v2180 = vld [vmem:[#allocation3 + $0x140] sm:$0xff]
    %v2181 = vld [vmem:[#allocation3 + $0x148] sm:$0xff]
    %v2182 = vld [vmem:[#allocation3 + $0x150] sm:$0xff]
    %v2183 = vld [vmem:[#allocation3 + $0x158] sm:$0xff]
    %v2184 = vld [vmem:[#allocation3 + $0x160] sm:$0xff]
    %v2185 = vld [vmem:[#allocation3 + $0x168] sm:$0xff]
    %v2186 = vld [vmem:[#allocation3 + $0x170] sm:$0xff]
    %v2187 = vld [vmem:[#allocation3 + $0x178] sm:$0xff]
    %v2188 = vld [vmem:[#allocation3 + $0x180] sm:$0xff]
    %v2189 = vld [vmem:[#allocation3 + $0x188] sm:$0xff]
    %v2190 = vld [vmem:[#allocation3 + $0x190] sm:$0xff]
    %v2191 = vld [vmem:[#allocation3 + $0x198] sm:$0xff]
    %v2192 = vld [vmem:[#allocation3 + $0x1a0] sm:$0xff]
    %v2193 = vld [vmem:[#allocation3 + $0x1a8] sm:$0xff]
    %v2194 = vld [vmem:[#allocation3 + $0x1b0] sm:$0xff]
    %v2195 = vld [vmem:[#allocation3 + $0x1b8] sm:$0xff]
    %v2196 = vld [vmem:[#allocation3 + $0x1c0] sm:$0xff]
    %v2197 = vld [vmem:[#allocation3 + $0x1c8] sm:$0xff]
    %v2198 = vld [vmem:[#allocation3 + $0x1d0] sm:$0xff]
    %v2199 = vld [vmem:[#allocation3 + $0x1d8] sm:$0xff]
    %v2200 = vld [vmem:[#allocation3 + $0x1e0] sm:$0xff]
    %v2201 = vld [vmem:[#allocation3 + $0x1e8] sm:$0xff]
    %v2202 = vld [vmem:[#allocation3 + $0x1f0] sm:$0xff]
    %v2203 = vld [vmem:[#allocation3 + $0x1f8] sm:$0xff]
    %2204 = vmatprep.subr.bf16.mxu0 0
    %2205 = vmatpush1.bf16.msra.mxu0 %v2172
    %2206 = vmatprep.subr.bf16.mxu0 0
    %2207 = vmatpush1.bf16.msra.mxu0 %v2173
    %2208 = vmatprep.subr.bf16.mxu0 0
    %2209 = vmatpush1.bf16.msra.mxu0 %v2174
    %2210 = vmatprep.subr.bf16.mxu0 0
    %2211 = vmatpush1.bf16.msra.mxu0 %v2175
    %2212 = vmatprep.subr.bf16.mxu0 0
    %2213 = vmatpush1.bf16.msra.mxu0 %v2176
    %2214 = vmatprep.subr.bf16.mxu0 0
    %2215 = vmatpush1.bf16.msra.mxu0 %v2177
    %2216 = vmatprep.subr.bf16.mxu0 0
    %2217 = vmatpush1.bf16.msra.mxu0 %v2178
    %2218 = vmatprep.subr.bf16.mxu0 0
    %2219 = vmatpush1.bf16.msra.mxu0 %v2179
    %2220 = vmatprep.subr.bf16.mxu0 0
    %2221 = vmatpush1.bf16.msra.mxu0 %v2180
    %2222 = vmatprep.subr.bf16.mxu0 0
    %2223 = vmatpush1.bf16.msra.mxu0 %v2181
    %2224 = vmatprep.subr.bf16.mxu0 0
    %2225 = vmatpush1.bf16.msra.mxu0 %v2182
    %2226 = vmatprep.subr.bf16.mxu0 0
    %2227 = vmatpush1.bf16.msra.mxu0 %v2183
    %2228 = vmatprep.subr.bf16.mxu0 0
    %2229 = vmatpush1.bf16.msra.mxu0 %v2184
    %2230 = vmatprep.subr.bf16.mxu0 0
    %2231 = vmatpush1.bf16.msra.mxu0 %v2185
    %2232 = vmatprep.subr.bf16.mxu0 0
    %2233 = vmatpush1.bf16.msra.mxu0 %v2186
    %2234 = vmatprep.subr.bf16.mxu0 0
    %2235 = vmatpush1.bf16.msra.mxu0 %v2187
    %2236 = vmatprep.mubr.bf16.mxu0 %v2169
    %2237 = vmatmul.mubr.bf16.gmra.mrb[0].mxu0 %v2168
    %v2238 = vpop.f32.mrb[0].mxu0
    %v2239 = vadd.f32 0.0, %v2238
    %v2240 = vpop.f32.mrb[0].mxu0
    %v2241 = vpop.f32.mrb[0].mxu0
    %v2242 = vadd.f32 0.0, %v2241
    %v2243 = vpop.f32.mrb[0].mxu0
    %2244 = vdwg.mxu0
    %2245 = vmatprep.subr.bf16.mxu0 0
    %2246 = vmatpush1.bf16.msra.mxu0 %v2188
    %2247 = vmatprep.subr.bf16.mxu0 0
    %2248 = vmatpush1.bf16.msra.mxu0 %v2189
    %2249 = vmatprep.subr.bf16.mxu0 0
    %2250 = vmatpush1.bf16.msra.mxu0 %v2190
    %2251 = vmatprep.subr.bf16.mxu0 0
    %2252 = vmatpush1.bf16.msra.mxu0 %v2191
    %2253 = vmatprep.subr.bf16.mxu0 0
    %2254 = vmatpush1.bf16.msra.mxu0 %v2192
    %2255 = vmatprep.subr.bf16.mxu0 0
    %2256 = vmatpush1.bf16.msra.mxu0 %v2193
    %2257 = vmatprep.subr.bf16.mxu0 0
    %2258 = vmatpush1.bf16.msra.mxu0 %v2194
    %2259 = vmatprep.subr.bf16.mxu0 0
    %2260 = vmatpush1.bf16.msra.mxu0 %v2195
    %2261 = vmatprep.subr.bf16.mxu0 0
    %2262 = vmatpush1.bf16.msra.mxu0 %v2196
    %2263 = vmatprep.subr.bf16.mxu0 0
    %2264 = vmatpush1.bf16.msra.mxu0 %v2197
    %2265 = vmatprep.subr.bf16.mxu0 0
    %2266 = vmatpush1.bf16.msra.mxu0 %v2198
    %2267 = vmatprep.subr.bf16.mxu0 0
    %2268 = vmatpush1.bf16.msra.mxu0 %v2199
    %2269 = vmatprep.subr.bf16.mxu0 0
    %2270 = vmatpush1.bf16.msra.mxu0 %v2200
    %2271 = vmatprep.subr.bf16.mxu0 0
    %2272 = vmatpush1.bf16.msra.mxu0 %v2201
    %2273 = vmatprep.subr.bf16.mxu0 0
    %2274 = vmatpush1.bf16.msra.mxu0 %v2202
    %2275 = vmatprep.subr.bf16.mxu0 0
    %2276 = vmatpush1.bf16.msra.mxu0 %v2203
    %2277 = vmatprep.mubr.bf16.mxu0 %v2171
    %2278 = vmatmul.mubr.bf16.gmra.mrb[0].mxu0 %v2170
    %v2279 = vpop.f32.mrb[0].mxu0
    %v2280 = vadd.f32 %v2239, %v2279
    %v2281 = vpop.f32.mrb[0].mxu0
    %v2282 = vpop.f32.mrb[0].mxu0
    %v2283 = vadd.f32 %v2242, %v2282
    %v2284 = vpop.f32.mrb[0].mxu0
    %2285 = vdwg.mxu0
    %2286 = vmatprep.subr.bf16.mxu0 0
    %2287 = vmatpush1.bf16.msra.mxu0 %v1988
    %2288 = vmatprep.subr.bf16.mxu0 0
    %2289 = vmatpush1.bf16.msra.mxu0 %v1989
    %2290 = vmatprep.subr.bf16.mxu0 0
    %2291 = vmatpush1.bf16.msra.mxu0 %v1990
    %2292 = vmatprep.subr.bf16.mxu0 0
    %2293 = vmatpush1.bf16.msra.mxu0 %v1991
    %2294 = vmatprep.subr.bf16.mxu0 0
    %2295 = vmatpush1.bf16.msra.mxu0 %v1992
    %2296 = vmatprep.subr.bf16.mxu0 0
    %2297 = vmatpush1.bf16.msra.mxu0 %v1993
    %2298 = vmatprep.subr.bf16.mxu0 0
    %2299 = vmatpush1.bf16.msra.mxu0 %v1994
    %2300 = vmatprep.subr.bf16.mxu0 0
    %2301 = vmatpush1.bf16.msra.mxu0 %v1995
    %2302 = vmatprep.subr.bf16.mxu0 0
    %2303 = vmatpush1.bf16.msra.mxu0 %v1996
    %2304 = vmatprep.subr.bf16.mxu0 0
    %2305 = vmatpush1.bf16.msra.mxu0 %v1997
    %2306 = vmatprep.subr.bf16.mxu0 0
    %2307 = vmatpush1.bf16.msra.mxu0 %v1998
    %2308 = vmatprep.subr.bf16.mxu0 0
    %2309 = vmatpush1.bf16.msra.mxu0 %v1999
    %2310 = vmatprep.subr.bf16.mxu0 0
    %2311 = vmatpush1.bf16.msra.mxu0 %v2000
    %2312 = vmatprep.subr.bf16.mxu0 0
    %2313 = vmatpush1.bf16.msra.mxu0 %v2001
    %2314 = vmatprep.subr.bf16.mxu0 0
    %2315 = vmatpush1.bf16.msra.mxu0 %v2002
    %2316 = vmatprep.subr.bf16.mxu0 0
    %2317 = vmatpush1.bf16.msra.mxu0 %v2003
    %2318 = vmatprep.mubr.bf16.mxu0 %v1985
    %2319 = vmatmul.mubr.bf16.gmra.mrb[0].mxu0 %v1984
    %v2320 = vpop.f32.mrb[0].mxu0
    %v2321 = vadd.f32 %v2280, %v2320
    %v2322 = vpop.f32.mrb[0].mxu0
    %v2323 = vpop.f32.mrb[0].mxu0
    %v2324 = vadd.f32 %v2283, %v2323
    %v2325 = vpop.f32.mrb[0].mxu0
    %2326 = vdwg.mxu0
    %2327 = vmatprep.subr.bf16.mxu0 0
    %2328 = vmatpush1.bf16.msra.mxu0 %v2004
    %2329 = vmatprep.subr.bf16.mxu0 0
    %2330 = vmatpush1.bf16.msra.mxu0 %v2005
    %2331 = vmatprep.subr.bf16.mxu0 0
    %2332 = vmatpush1.bf16.msra.mxu0 %v2006
    %2333 = vmatprep.subr.bf16.mxu0 0
    %2334 = vmatpush1.bf16.msra.mxu0 %v2007
    %2335 = vmatprep.subr.bf16.mxu0 0
    %2336 = vmatpush1.bf16.msra.mxu0 %v2008
    %2337 = vmatprep.subr.bf16.mxu0 0
    %2338 = vmatpush1.bf16.msra.mxu0 %v2009
    %2339 = vmatprep.subr.bf16.mxu0 0
    %2340 = vmatpush1.bf16.msra.mxu0 %v2010
    %2341 = vmatprep.subr.bf16.mxu0 0
    %2342 = vmatpush1.bf16.msra.mxu0 %v2011
    %2343 = vmatprep.subr.bf16.mxu0 0
    %2344 = vmatpush1.bf16.msra.mxu0 %v2012
    %2345 = vmatprep.subr.bf16.mxu0 0
    %2346 = vmatpush1.bf16.msra.mxu0 %v2013
    %2347 = vmatprep.subr.bf16.mxu0 0
    %2348 = vmatpush1.bf16.msra.mxu0 %v2014
    %2349 = vmatprep.subr.bf16.mxu0 0
    %2350 = vmatpush1.bf16.msra.mxu0 %v2015
    %2351 = vmatprep.subr.bf16.mxu0 0
    %2352 = vmatpush1.bf16.msra.mxu0 %v2016
    %2353 = vmatprep.subr.bf16.mxu0 0
    %2354 = vmatpush1.bf16.msra.mxu0 %v2017
    %2355 = vmatprep.subr.bf16.mxu0 0
    %2356 = vmatpush1.bf16.msra.mxu0 %v2018
    %2357 = vmatprep.subr.bf16.mxu0 0
    %2358 = vmatpush1.bf16.msra.mxu0 %v2019
    %2359 = vmatprep.mubr.bf16.mxu0 %v1987
    %2360 = vmatmul.mubr.bf16.gmra.mrb[0].mxu0 %v1986
    %v2361 = vpop.f32.mrb[0].mxu0
    %v2362 = vadd.f32 %v2321, %v2361
    %v2363 = vpop.f32.mrb[0].mxu0
    %v2364 = vpop.f32.mrb[0].mxu0
    %v2365 = vadd.f32 %v2324, %v2364
    %v2366 = vpop.f32.mrb[0].mxu0
    %2367 = vdwg.mxu0
    %v2368 = vld [vmem:[#allocation2 + $0x40] sm:$0xff]
    %v2369 = vld [vmem:[#allocation2 + $0x48] sm:$0xff]
    %v2370 = vld [vmem:[#allocation2 + $0x50] sm:$0xff]
    %v2371 = vld [vmem:[#allocation2 + $0x58] sm:$0xff]
    %v2372 = vld [vmem:[#allocation2 + $0xc0] sm:$0xff]
    %v2373 = vld [vmem:[#allocation2 + $0xc8] sm:$0xff]
    %v2374 = vld [vmem:[#allocation2 + $0xd0] sm:$0xff]
    %v2375 = vld [vmem:[#allocation2 + $0xd8] sm:$0xff]
    %v2376 = vld [vmem:[#allocation2 + $0x140] sm:$0xff]
    %v2377 = vld [vmem:[#allocation2 + $0x148] sm:$0xff]
    %v2378 = vld [vmem:[#allocation2 + $0x150] sm:$0xff]
    %v2379 = vld [vmem:[#allocation2 + $0x158] sm:$0xff]
    %v2380 = vld [vmem:[#allocation2 + $0x1c0] sm:$0xff]
    %v2381 = vld [vmem:[#allocation2 + $0x1c8] sm:$0xff]
    %v2382 = vld [vmem:[#allocation2 + $0x1d0] sm:$0xff]
    %v2383 = vld [vmem:[#allocation2 + $0x1d8] sm:$0xff]
    %v2384 = vld [vmem:[#allocation2 + $0x240] sm:$0xff]
    %v2385 = vld [vmem:[#allocation2 + $0x248] sm:$0xff]
    %v2386 = vld [vmem:[#allocation2 + $0x250] sm:$0xff]
    %v2387 = vld [vmem:[#allocation2 + $0x258] sm:$0xff]
    %v2388 = vld [vmem:[#allocation2 + $0x2c0] sm:$0xff]
    %v2389 = vld [vmem:[#allocation2 + $0x2c8] sm:$0xff]
    %v2390 = vld [vmem:[#allocation2 + $0x2d0] sm:$0xff]
    %v2391 = vld [vmem:[#allocation2 + $0x2d8] sm:$0xff]
    %v2392 = vld [vmem:[#allocation2 + $0x340] sm:$0xff]
    %v2393 = vld [vmem:[#allocation2 + $0x348] sm:$0xff]
    %v2394 = vld [vmem:[#allocation2 + $0x350] sm:$0xff]
    %v2395 = vld [vmem:[#allocation2 + $0x358] sm:$0xff]
    %v2396 = vld [vmem:[#allocation2 + $0x3c0] sm:$0xff]
    %v2397 = vld [vmem:[#allocation2 + $0x3c8] sm:$0xff]
    %v2398 = vld [vmem:[#allocation2 + $0x3d0] sm:$0xff]
    %v2399 = vld [vmem:[#allocation2 + $0x3d8] sm:$0xff]
    %v2400 = vld [vmem:[%s21 + $0x8] sm:$0xf]
    %v2402 = vlaneseq
    %v2403 = vshrl.u32 %v2402, 7
    %v2404 = vsub.s32 0, %v2403
    %v2405 = vrot.slane %v2400, %v2404
    %v2406 = vlaneseq
    %v2407 = vshrl.u32 %v2406, 7
    %v2408 = vsub.s32 1, %v2407
    %v2409 = vrot.slane %v2400, %v2408
    %v2410 = vlaneseq
    %v2411 = vshrl.u32 %v2410, 7
    %v2412 = vsub.s32 2, %v2411
    %v2413 = vrot.slane %v2400, %v2412
    %v2414 = vlaneseq
    %v2415 = vshrl.u32 %v2414, 7
    %v2416 = vsub.s32 3, %v2415
    %v2417 = vrot.slane %v2400, %v2416
    %2422 = vmatprep.subr.bf16.mxu0 %v2369
    %2423 = vmatpush1.bf16.msra.mxu0 %v2368
    %2424 = vmatprep.subr.bf16.mxu0 %v2373
    %2425 = vmatpush1.bf16.msra.mxu0 %v2372
    %2426 = vmatprep.subr.bf16.mxu0 %v2377
    %2427 = vmatpush1.bf16.msra.mxu0 %v2376
    %2428 = vmatprep.subr.bf16.mxu0 %v2381
    %2429 = vmatpush1.bf16.msra.mxu0 %v2380
    %2430 = vmatprep.subr.bf16.mxu0 %v2385
    %2431 = vmatpush1.bf16.msra.mxu0 %v2384
    %2432 = vmatprep.subr.bf16.mxu0 %v2389
    %2433 = vmatpush1.bf16.msra.mxu0 %v2388
    %2434 = vmatprep.subr.bf16.mxu0 %v2393
    %2435 = vmatpush1.bf16.msra.mxu0 %v2392
    %2436 = vmatprep.subr.bf16.mxu0 %v2397
    %2437 = vmatpush1.bf16.msra.mxu0 %v2396
    %2438 = vmatprep.subr.bf16.mxu0 0
    %2439 = vmatpush1.bf16.msra.mxu0 0
    %2440 = vmatprep.subr.bf16.mxu0 0
    %2441 = vmatpush1.bf16.msra.mxu0 0
    %2442 = vmatprep.subr.bf16.mxu0 0
    %2443 = vmatpush1.bf16.msra.mxu0 0
    %2444 = vmatprep.subr.bf16.mxu0 0
    %2445 = vmatpush1.bf16.msra.mxu0 0
    %2446 = vmatprep.subr.bf16.mxu0 0
    %2447 = vmatpush1.bf16.msra.mxu0 0
    %2448 = vmatprep.subr.bf16.mxu0 0
    %2449 = vmatpush1.bf16.msra.mxu0 0
    %2450 = vmatprep.subr.bf16.mxu0 0
    %2451 = vmatpush1.bf16.msra.mxu0 0
    %2452 = vmatprep.subr.bf16.mxu0 0
    %2453 = vmatpush1.bf16.msra.mxu0 0
    %2454 = vmatprep.mubr.bf16.mxu0 0
    %2455 = vmatmul.mubr.bf16.gmra.mrb[0].mxu0 %v1835
    %v2456 = vpop.f32.mrb[0].mxu0
    %v2457 = vadd.f32 %v2405, %v2456
    %v2458 = vpop.f32.mrb[0].mxu0
    %v2459 = vadd.f32 %v2409, %v2458
    %v2460 = vpop.f32.mrb[0].mxu0
    %v2461 = vadd.f32 %v2405, %v2460
    %v2462 = vpop.f32.mrb[0].mxu0
    %v2463 = vadd.f32 %v2409, %v2462
    %2464 = vdwg.mxu0
    %2465 = vmatprep.subr.bf16.mxu0 %v2371
    %2466 = vmatpush1.bf16.msra.mxu0 %v2370
    %2467 = vmatprep.subr.bf16.mxu0 %v2375
    %2468 = vmatpush1.bf16.msra.mxu0 %v2374
    %2469 = vmatprep.subr.bf16.mxu0 %v2379
    %2470 = vmatpush1.bf16.msra.mxu0 %v2378
    %2471 = vmatprep.subr.bf16.mxu0 %v2383
    %2472 = vmatpush1.bf16.msra.mxu0 %v2382
    %2473 = vmatprep.subr.bf16.mxu0 %v2387
    %2474 = vmatpush1.bf16.msra.mxu0 %v2386
    %2475 = vmatprep.subr.bf16.mxu0 %v2391
    %2476 = vmatpush1.bf16.msra.mxu0 %v2390
    %2477 = vmatprep.subr.bf16.mxu0 %v2395
    %2478 = vmatpush1.bf16.msra.mxu0 %v2394
    %2479 = vmatprep.subr.bf16.mxu0 %v2399
    %2480 = vmatpush1.bf16.msra.mxu0 %v2398
    %2481 = vmatprep.subr.bf16.mxu0 0
    %2482 = vmatpush1.bf16.msra.mxu0 0
    %2483 = vmatprep.subr.bf16.mxu0 0
    %2484 = vmatpush1.bf16.msra.mxu0 0
    %2485 = vmatprep.subr.bf16.mxu0 0
    %2486 = vmatpush1.bf16.msra.mxu0 0
    %2487 = vmatprep.subr.bf16.mxu0 0
    %2488 = vmatpush1.bf16.msra.mxu0 0
    %2489 = vmatprep.subr.bf16.mxu0 0
    %2490 = vmatpush1.bf16.msra.mxu0 0
    %2491 = vmatprep.subr.bf16.mxu0 0
    %2492 = vmatpush1.bf16.msra.mxu0 0
    %2493 = vmatprep.subr.bf16.mxu0 0
    %2494 = vmatpush1.bf16.msra.mxu0 0
    %2495 = vmatprep.subr.bf16.mxu0 0
    %2496 = vmatpush1.bf16.msra.mxu0 0
    %2497 = vmatprep.mubr.bf16.mxu0 0
    %2498 = vmatmul.mubr.bf16.gmra.mrb[0].mxu0 %v1835
    %v2499 = vpop.f32.mrb[0].mxu0
    %v2500 = vadd.f32 %v2413, %v2499
    %v2501 = vpop.f32.mrb[0].mxu0
    %v2502 = vadd.f32 %v2417, %v2501
    %v2503 = vpop.f32.mrb[0].mxu0
    %v2504 = vadd.f32 %v2413, %v2503
    %v2505 = vpop.f32.mrb[0].mxu0
    %v2506 = vadd.f32 %v2417, %v2505
    %2507 = vdwg.mxu0
    %v2508 = vmax.f32 %v2457, 0.0
    %v2509 = vmax.f32 %v2459, 0.0
    %v2510 = vmax.f32 %v2500, 0.0
    %v2511 = vmax.f32 %v2502, 0.0
    %v2512 = vmax.f32 %v2461, 0.0
    %v2513 = vmax.f32 %v2463, 0.0
    %v2514 = vmax.f32 %v2504, 0.0
    %v2515 = vmax.f32 %v2506, 0.0
    %v2516 = vpack.c.bf16 %v2512, %v2508
    %v2517 = vpack.c.bf16 %v2513, %v2509
    %v2518 = vpack.c.bf16 %v2514, %v2510
    %v2519 = vpack.c.bf16 %v2515, %v2511
    %v2520 = vld [vmem:[#allocation3 + $0x200] sm:$0xff]
    %v2521 = vld [vmem:[#allocation3 + $0x208] sm:$0xff]
    %v2522 = vld [vmem:[#allocation3 + $0x210] sm:$0xff]
    %v2523 = vld [vmem:[#allocation3 + $0x218] sm:$0xff]
    %v2524 = vld [vmem:[#allocation3 + $0x220] sm:$0xff]
    %v2525 = vld [vmem:[#allocation3 + $0x228] sm:$0xff]
    %v2526 = vld [vmem:[#allocation3 + $0x230] sm:$0xff]
    %v2527 = vld [vmem:[#allocation3 + $0x238] sm:$0xff]
    %v2528 = vld [vmem:[#allocation3 + $0x240] sm:$0xff]
    %v2529 = vld [vmem:[#allocation3 + $0x248] sm:$0xff]
    %v2530 = vld [vmem:[#allocation3 + $0x250] sm:$0xff]
    %v2531 = vld [vmem:[#allocation3 + $0x258] sm:$0xff]
    %v2532 = vld [vmem:[#allocation3 + $0x260] sm:$0xff]
    %v2533 = vld [vmem:[#allocation3 + $0x268] sm:$0xff]
    %v2534 = vld [vmem:[#allocation3 + $0x270] sm:$0xff]
    %v2535 = vld [vmem:[#allocation3 + $0x278] sm:$0xff]
    %v2536 = vld [vmem:[#allocation3 + $0x280] sm:$0xff]
    %v2537 = vld [vmem:[#allocation3 + $0x288] sm:$0xff]
    %v2538 = vld [vmem:[#allocation3 + $0x290] sm:$0xff]
    %v2539 = vld [vmem:[#allocation3 + $0x298] sm:$0xff]
    %v2540 = vld [vmem:[#allocation3 + $0x2a0] sm:$0xff]
    %v2541 = vld [vmem:[#allocation3 + $0x2a8] sm:$0xff]
    %v2542 = vld [vmem:[#allocation3 + $0x2b0] sm:$0xff]
    %v2543 = vld [vmem:[#allocation3 + $0x2b8] sm:$0xff]
    %v2544 = vld [vmem:[#allocation3 + $0x2c0] sm:$0xff]
    %v2545 = vld [vmem:[#allocation3 + $0x2c8] sm:$0xff]
    %v2546 = vld [vmem:[#allocation3 + $0x2d0] sm:$0xff]
    %v2547 = vld [vmem:[#allocation3 + $0x2d8] sm:$0xff]
    %v2548 = vld [vmem:[#allocation3 + $0x2e0] sm:$0xff]
    %v2549 = vld [vmem:[#allocation3 + $0x2e8] sm:$0xff]
    %v2550 = vld [vmem:[#allocation3 + $0x2f0] sm:$0xff]
    %v2551 = vld [vmem:[#allocation3 + $0x2f8] sm:$0xff]
    %2552 = vmatprep.subr.bf16.mxu0 0
    %2553 = vmatpush1.bf16.msra.mxu0 %v2520
    %2554 = vmatprep.subr.bf16.mxu0 0
    %2555 = vmatpush1.bf16.msra.mxu0 %v2521
    %2556 = vmatprep.subr.bf16.mxu0 0
    %2557 = vmatpush1.bf16.msra.mxu0 %v2522
    %2558 = vmatprep.subr.bf16.mxu0 0
    %2559 = vmatpush1.bf16.msra.mxu0 %v2523
    %2560 = vmatprep.subr.bf16.mxu0 0
    %2561 = vmatpush1.bf16.msra.mxu0 %v2524
    %2562 = vmatprep.subr.bf16.mxu0 0
    %2563 = vmatpush1.bf16.msra.mxu0 %v2525
    %2564 = vmatprep.subr.bf16.mxu0 0
    %2565 = vmatpush1.bf16.msra.mxu0 %v2526
    %2566 = vmatprep.subr.bf16.mxu0 0
    %2567 = vmatpush1.bf16.msra.mxu0 %v2527
    %2568 = vmatprep.subr.bf16.mxu0 0
    %2569 = vmatpush1.bf16.msra.mxu0 %v2528
    %2570 = vmatprep.subr.bf16.mxu0 0
    %2571 = vmatpush1.bf16.msra.mxu0 %v2529
    %2572 = vmatprep.subr.bf16.mxu0 0
    %2573 = vmatpush1.bf16.msra.mxu0 %v2530
    %2574 = vmatprep.subr.bf16.mxu0 0
    %2575 = vmatpush1.bf16.msra.mxu0 %v2531
    %2576 = vmatprep.subr.bf16.mxu0 0
    %2577 = vmatpush1.bf16.msra.mxu0 %v2532
    %2578 = vmatprep.subr.bf16.mxu0 0
    %2579 = vmatpush1.bf16.msra.mxu0 %v2533
    %2580 = vmatprep.subr.bf16.mxu0 0
    %2581 = vmatpush1.bf16.msra.mxu0 %v2534
    %2582 = vmatprep.subr.bf16.mxu0 0
    %2583 = vmatpush1.bf16.msra.mxu0 %v2535
    %2584 = vmatprep.mubr.bf16.mxu0 %v2517
    %2585 = vmatmul.mubr.bf16.gmra.mrb[0].mxu0 %v2516
    %v2586 = vpop.f32.mrb[0].mxu0
    %v2587 = vadd.f32 0.0, %v2586
    %v2588 = vpop.f32.mrb[0].mxu0
    %v2589 = vpop.f32.mrb[0].mxu0
    %v2590 = vadd.f32 0.0, %v2589
    %v2591 = vpop.f32.mrb[0].mxu0
    %2592 = vdwg.mxu0
    %2593 = vmatprep.subr.bf16.mxu0 0
    %2594 = vmatpush1.bf16.msra.mxu0 %v2536
    %2595 = vmatprep.subr.bf16.mxu0 0
    %2596 = vmatpush1.bf16.msra.mxu0 %v2537
    %2597 = vmatprep.subr.bf16.mxu0 0
    %2598 = vmatpush1.bf16.msra.mxu0 %v2538
    %2599 = vmatprep.subr.bf16.mxu0 0
    %2600 = vmatpush1.bf16.msra.mxu0 %v2539
    %2601 = vmatprep.subr.bf16.mxu0 0
    %2602 = vmatpush1.bf16.msra.mxu0 %v2540
    %2603 = vmatprep.subr.bf16.mxu0 0
    %2604 = vmatpush1.bf16.msra.mxu0 %v2541
    %2605 = vmatprep.subr.bf16.mxu0 0
    %2606 = vmatpush1.bf16.msra.mxu0 %v2542
    %2607 = vmatprep.subr.bf16.mxu0 0
    %2608 = vmatpush1.bf16.msra.mxu0 %v2543
    %2609 = vmatprep.subr.bf16.mxu0 0
    %2610 = vmatpush1.bf16.msra.mxu0 %v2544
    %2611 = vmatprep.subr.bf16.mxu0 0
    %2612 = vmatpush1.bf16.msra.mxu0 %v2545
    %2613 = vmatprep.subr.bf16.mxu0 0
    %2614 = vmatpush1.bf16.msra.mxu0 %v2546
    %2615 = vmatprep.subr.bf16.mxu0 0
    %2616 = vmatpush1.bf16.msra.mxu0 %v2547
    %2617 = vmatprep.subr.bf16.mxu0 0
    %2618 = vmatpush1.bf16.msra.mxu0 %v2548
    %2619 = vmatprep.subr.bf16.mxu0 0
    %2620 = vmatpush1.bf16.msra.mxu0 %v2549
    %2621 = vmatprep.subr.bf16.mxu0 0
    %2622 = vmatpush1.bf16.msra.mxu0 %v2550
    %2623 = vmatprep.subr.bf16.mxu0 0
    %2624 = vmatpush1.bf16.msra.mxu0 %v2551
    %2625 = vmatprep.mubr.bf16.mxu0 %v2519
    %2626 = vmatmul.mubr.bf16.gmra.mrb[0].mxu0 %v2518
    %v2627 = vpop.f32.mrb[0].mxu0
    %v2628 = vadd.f32 %v2587, %v2627
    %v2629 = vpop.f32.mrb[0].mxu0
    %v2630 = vpop.f32.mrb[0].mxu0
    %v2631 = vadd.f32 %v2590, %v2630
    %v2632 = vpop.f32.mrb[0].mxu0
    %2633 = vdwg.mxu0
    %v2634 = vadd.f32 %v2362, %v2628
    %v2635 = vadd.f32 %v2365, %v2631
    %v2636 = vld [vmem:[#allocation2 + $0x60] sm:$0xff]
    %v2637 = vld [vmem:[#allocation2 + $0x68] sm:$0xff]
    %v2638 = vld [vmem:[#allocation2 + $0x70] sm:$0xff]
    %v2639 = vld [vmem:[#allocation2 + $0x78] sm:$0xff]
    %v2640 = vld [vmem:[#allocation2 + $0xe0] sm:$0xff]
    %v2641 = vld [vmem:[#allocation2 + $0xe8] sm:$0xff]
    %v2642 = vld [vmem:[#allocation2 + $0xf0] sm:$0xff]
    %v2643 = vld [vmem:[#allocation2 + $0xf8] sm:$0xff]
    %v2644 = vld [vmem:[#allocation2 + $0x160] sm:$0xff]
    %v2645 = vld [vmem:[#allocation2 + $0x168] sm:$0xff]
    %v2646 = vld [vmem:[#allocation2 + $0x170] sm:$0xff]
    %v2647 = vld [vmem:[#allocation2 + $0x178] sm:$0xff]
    %v2648 = vld [vmem:[#allocation2 + $0x1e0] sm:$0xff]
    %v2649 = vld [vmem:[#allocation2 + $0x1e8] sm:$0xff]
    %v2650 = vld [vmem:[#allocation2 + $0x1f0] sm:$0xff]
    %v2651 = vld [vmem:[#allocation2 + $0x1f8] sm:$0xff]
    %v2652 = vld [vmem:[#allocation2 + $0x260] sm:$0xff]
    %v2653 = vld [vmem:[#allocation2 + $0x268] sm:$0xff]
    %v2654 = vld [vmem:[#allocation2 + $0x270] sm:$0xff]
    %v2655 = vld [vmem:[#allocation2 + $0x278] sm:$0xff]
    %v2656 = vld [vmem:[#allocation2 + $0x2e0] sm:$0xff]
    %v2657 = vld [vmem:[#allocation2 + $0x2e8] sm:$0xff]
    %v2658 = vld [vmem:[#allocation2 + $0x2f0] sm:$0xff]
    %v2659 = vld [vmem:[#allocation2 + $0x2f8] sm:$0xff]
    %v2660 = vld [vmem:[#allocation2 + $0x360] sm:$0xff]
    %v2661 = vld [vmem:[#allocation2 + $0x368] sm:$0xff]
    %v2662 = vld [vmem:[#allocation2 + $0x370] sm:$0xff]
    %v2663 = vld [vmem:[#allocation2 + $0x378] sm:$0xff]
    %v2664 = vld [vmem:[#allocation2 + $0x3e0] sm:$0xff]
    %v2665 = vld [vmem:[#allocation2 + $0x3e8] sm:$0xff]
    %v2666 = vld [vmem:[#allocation2 + $0x3f0] sm:$0xff]
    %v2667 = vld [vmem:[#allocation2 + $0x3f8] sm:$0xff]
    %v2668 = vld [vmem:[%s21 + $0xc] sm:$0xf]
    %v2670 = vlaneseq
    %v2671 = vshrl.u32 %v2670, 7
    %v2672 = vsub.s32 0, %v2671
    %v2673 = vrot.slane %v2668, %v2672
    %v2674 = vlaneseq
    %v2675 = vshrl.u32 %v2674, 7
    %v2676 = vsub.s32 1, %v2675
    %v2677 = vrot.slane %v2668, %v2676
    %v2678 = vlaneseq
    %v2679 = vshrl.u32 %v2678, 7
    %v2680 = vsub.s32 2, %v2679
    %v2681 = vrot.slane %v2668, %v2680
    %v2682 = vlaneseq
    %v2683 = vshrl.u32 %v2682, 7
    %v2684 = vsub.s32 3, %v2683
    %v2685 = vrot.slane %v2668, %v2684
    %2690 = vmatprep.subr.bf16.mxu0 %v2637
    %2691 = vmatpush1.bf16.msra.mxu0 %v2636
    %2692 = vmatprep.subr.bf16.mxu0 %v2641
    %2693 = vmatpush1.bf16.msra.mxu0 %v2640
    %2694 = vmatprep.subr.bf16.mxu0 %v2645
    %2695 = vmatpush1.bf16.msra.mxu0 %v2644
    %2696 = vmatprep.subr.bf16.mxu0 %v2649
    %2697 = vmatpush1.bf16.msra.mxu0 %v2648
    %2698 = vmatprep.subr.bf16.mxu0 %v2653
    %2699 = vmatpush1.bf16.msra.mxu0 %v2652
    %2700 = vmatprep.subr.bf16.mxu0 %v2657
    %2701 = vmatpush1.bf16.msra.mxu0 %v2656
    %2702 = vmatprep.subr.bf16.mxu0 %v2661
    %2703 = vmatpush1.bf16.msra.mxu0 %v2660
    %2704 = vmatprep.subr.bf16.mxu0 %v2665
    %2705 = vmatpush1.bf16.msra.mxu0 %v2664
    %2706 = vmatprep.subr.bf16.mxu0 0
    %2707 = vmatpush1.bf16.msra.mxu0 0
    %2708 = vmatprep.subr.bf16.mxu0 0
    %2709 = vmatpush1.bf16.msra.mxu0 0
    %2710 = vmatprep.subr.bf16.mxu0 0
    %2711 = vmatpush1.bf16.msra.mxu0 0
    %2712 = vmatprep.subr.bf16.mxu0 0
    %2713 = vmatpush1.bf16.msra.mxu0 0
    %2714 = vmatprep.subr.bf16.mxu0 0
    %2715 = vmatpush1.bf16.msra.mxu0 0
    %2716 = vmatprep.subr.bf16.mxu0 0
    %2717 = vmatpush1.bf16.msra.mxu0 0
    %2718 = vmatprep.subr.bf16.mxu0 0
    %2719 = vmatpush1.bf16.msra.mxu0 0
    %2720 = vmatprep.subr.bf16.mxu0 0
    %2721 = vmatpush1.bf16.msra.mxu0 0
    %2722 = vmatprep.mubr.bf16.mxu0 0
    %2723 = vmatmul.mubr.bf16.gmra.mrb[0].mxu0 %v1835
    %v2724 = vpop.f32.mrb[0].mxu0
    %v2725 = vadd.f32 %v2673, %v2724
    %v2726 = vpop.f32.mrb[0].mxu0
    %v2727 = vadd.f32 %v2677, %v2726
    %v2728 = vpop.f32.mrb[0].mxu0
    %v2729 = vadd.f32 %v2673, %v2728
    %v2730 = vpop.f32.mrb[0].mxu0
    %v2731 = vadd.f32 %v2677, %v2730
    %2732 = vdwg.mxu0
    %2733 = vmatprep.subr.bf16.mxu0 %v2639
    %2734 = vmatpush1.bf16.msra.mxu0 %v2638
    %2735 = vmatprep.subr.bf16.mxu0 %v2643
    %2736 = vmatpush1.bf16.msra.mxu0 %v2642
    %2737 = vmatprep.subr.bf16.mxu0 %v2647
    %2738 = vmatpush1.bf16.msra.mxu0 %v2646
    %2739 = vmatprep.subr.bf16.mxu0 %v2651
    %2740 = vmatpush1.bf16.msra.mxu0 %v2650
    %2741 = vmatprep.subr.bf16.mxu0 %v2655
    %2742 = vmatpush1.bf16.msra.mxu0 %v2654
    %2743 = vmatprep.subr.bf16.mxu0 %v2659
    %2744 = vmatpush1.bf16.msra.mxu0 %v2658
    %2745 = vmatprep.subr.bf16.mxu0 %v2663
    %2746 = vmatpush1.bf16.msra.mxu0 %v2662
    %2747 = vmatprep.subr.bf16.mxu0 %v2667
    %2748 = vmatpush1.bf16.msra.mxu0 %v2666
    %2749 = vmatprep.subr.bf16.mxu0 0
    %2750 = vmatpush1.bf16.msra.mxu0 0
    %2751 = vmatprep.subr.bf16.mxu0 0
    %2752 = vmatpush1.bf16.msra.mxu0 0
    %2753 = vmatprep.subr.bf16.mxu0 0
    %2754 = vmatpush1.bf16.msra.mxu0 0
    %2755 = vmatprep.subr.bf16.mxu0 0
    %2756 = vmatpush1.bf16.msra.mxu0 0
    %2757 = vmatprep.subr.bf16.mxu0 0
    %2758 = vmatpush1.bf16.msra.mxu0 0
    %2759 = vmatprep.subr.bf16.mxu0 0
    %2760 = vmatpush1.bf16.msra.mxu0 0
    %2761 = vmatprep.subr.bf16.mxu0 0
    %2762 = vmatpush1.bf16.msra.mxu0 0
    %2763 = vmatprep.subr.bf16.mxu0 0
    %2764 = vmatpush1.bf16.msra.mxu0 0
    %2765 = vmatprep.mubr.bf16.mxu0 0
    %2766 = vmatmul.mubr.bf16.gmra.mrb[0].mxu0 %v1835
    %v2767 = vpop.f32.mrb[0].mxu0
    %v2768 = vadd.f32 %v2681, %v2767
    %v2769 = vpop.f32.mrb[0].mxu0
    %v2770 = vadd.f32 %v2685, %v2769
    %v2771 = vpop.f32.mrb[0].mxu0
    %v2772 = vadd.f32 %v2681, %v2771
    %v2773 = vpop.f32.mrb[0].mxu0
    %v2774 = vadd.f32 %v2685, %v2773
    %2775 = vdwg.mxu0
    %v2776 = vmax.f32 %v2725, 0.0
    %v2777 = vmax.f32 %v2727, 0.0
    %v2778 = vmax.f32 %v2768, 0.0
    %v2779 = vmax.f32 %v2770, 0.0
    %v2780 = vmax.f32 %v2729, 0.0
    %v2781 = vmax.f32 %v2731, 0.0
    %v2782 = vmax.f32 %v2772, 0.0
    %v2783 = vmax.f32 %v2774, 0.0
    %v2784 = vpack.c.bf16 %v2780, %v2776
    %v2785 = vpack.c.bf16 %v2781, %v2777
    %v2786 = vpack.c.bf16 %v2782, %v2778
    %v2787 = vpack.c.bf16 %v2783, %v2779
    %v2788 = vld [vmem:[#allocation3 + $0x300] sm:$0xff]
    %v2789 = vld [vmem:[#allocation3 + $0x308] sm:$0xff]
    %v2790 = vld [vmem:[#allocation3 + $0x310] sm:$0xff]
    %v2791 = vld [vmem:[#allocation3 + $0x318] sm:$0xff]
    %v2792 = vld [vmem:[#allocation3 + $0x320] sm:$0xff]
    %v2793 = vld [vmem:[#allocation3 + $0x328] sm:$0xff]
    %v2794 = vld [vmem:[#allocation3 + $0x330] sm:$0xff]
    %v2795 = vld [vmem:[#allocation3 + $0x338] sm:$0xff]
    %v2796 = vld [vmem:[#allocation3 + $0x340] sm:$0xff]
    %v2797 = vld [vmem:[#allocation3 + $0x348] sm:$0xff]
    %v2798 = vld [vmem:[#allocation3 + $0x350] sm:$0xff]
    %v2799 = vld [vmem:[#allocation3 + $0x358] sm:$0xff]
    %v2800 = vld [vmem:[#allocation3 + $0x360] sm:$0xff]
    %v2801 = vld [vmem:[#allocation3 + $0x368] sm:$0xff]
    %v2802 = vld [vmem:[#allocation3 + $0x370] sm:$0xff]
    %v2803 = vld [vmem:[#allocation3 + $0x378] sm:$0xff]
    %v2804 = vld [vmem:[#allocation3 + $0x380] sm:$0xff]
    %v2805 = vld [vmem:[#allocation3 + $0x388] sm:$0xff]
    %v2806 = vld [vmem:[#allocation3 + $0x390] sm:$0xff]
    %v2807 = vld [vmem:[#allocation3 + $0x398] sm:$0xff]
    %v2808 = vld [vmem:[#allocation3 + $0x3a0] sm:$0xff]
    %v2809 = vld [vmem:[#allocation3 + $0x3a8] sm:$0xff]
    %v2810 = vld [vmem:[#allocation3 + $0x3b0] sm:$0xff]
    %v2811 = vld [vmem:[#allocation3 + $0x3b8] sm:$0xff]
    %v2812 = vld [vmem:[#allocation3 + $0x3c0] sm:$0xff]
    %v2813 = vld [vmem:[#allocation3 + $0x3c8] sm:$0xff]
    %v2814 = vld [vmem:[#allocation3 + $0x3d0] sm:$0xff]
    %v2815 = vld [vmem:[#allocation3 + $0x3d8] sm:$0xff]
    %v2816 = vld [vmem:[#allocation3 + $0x3e0] sm:$0xff]
    %v2817 = vld [vmem:[#allocation3 + $0x3e8] sm:$0xff]
    %v2818 = vld [vmem:[#allocation3 + $0x3f0] sm:$0xff]
    %v2819 = vld [vmem:[#allocation3 + $0x3f8] sm:$0xff]
    %2820 = vmatprep.subr.bf16.mxu0 0
    %2821 = vmatpush1.bf16.msra.mxu0 %v2788
    %2822 = vmatprep.subr.bf16.mxu0 0
    %2823 = vmatpush1.bf16.msra.mxu0 %v2789
    %2824 = vmatprep.subr.bf16.mxu0 0
    %2825 = vmatpush1.bf16.msra.mxu0 %v2790
    %2826 = vmatprep.subr.bf16.mxu0 0
    %2827 = vmatpush1.bf16.msra.mxu0 %v2791
    %2828 = vmatprep.subr.bf16.mxu0 0
    %2829 = vmatpush1.bf16.msra.mxu0 %v2792
    %2830 = vmatprep.subr.bf16.mxu0 0
    %2831 = vmatpush1.bf16.msra.mxu0 %v2793
    %2832 = vmatprep.subr.bf16.mxu0 0
    %2833 = vmatpush1.bf16.msra.mxu0 %v2794
    %2834 = vmatprep.subr.bf16.mxu0 0
    %2835 = vmatpush1.bf16.msra.mxu0 %v2795
    %2836 = vmatprep.subr.bf16.mxu0 0
    %2837 = vmatpush1.bf16.msra.mxu0 %v2796
    %2838 = vmatprep.subr.bf16.mxu0 0
    %2839 = vmatpush1.bf16.msra.mxu0 %v2797
    %2840 = vmatprep.subr.bf16.mxu0 0
    %2841 = vmatpush1.bf16.msra.mxu0 %v2798
    %2842 = vmatprep.subr.bf16.mxu0 0
    %2843 = vmatpush1.bf16.msra.mxu0 %v2799
    %2844 = vmatprep.subr.bf16.mxu0 0
    %2845 = vmatpush1.bf16.msra.mxu0 %v2800
    %2846 = vmatprep.subr.bf16.mxu0 0
    %2847 = vmatpush1.bf16.msra.mxu0 %v2801
    %2848 = vmatprep.subr.bf16.mxu0 0
    %2849 = vmatpush1.bf16.msra.mxu0 %v2802
    %2850 = vmatprep.subr.bf16.mxu0 0
    %2851 = vmatpush1.bf16.msra.mxu0 %v2803
    %2852 = vmatprep.mubr.bf16.mxu0 %v2785
    %2853 = vmatmul.mubr.bf16.gmra.mrb[0].mxu0 %v2784
    %v2854 = vpop.f32.mrb[0].mxu0
    %v2855 = vadd.f32 0.0, %v2854
    %v2856 = vpop.f32.mrb[0].mxu0
    %v2857 = vpop.f32.mrb[0].mxu0
    %v2858 = vadd.f32 0.0, %v2857
    %v2859 = vpop.f32.mrb[0].mxu0
    %2860 = vdwg.mxu0
    %2861 = vmatprep.subr.bf16.mxu0 0
    %2862 = vmatpush1.bf16.msra.mxu0 %v2804
    %2863 = vmatprep.subr.bf16.mxu0 0
    %2864 = vmatpush1.bf16.msra.mxu0 %v2805
    %2865 = vmatprep.subr.bf16.mxu0 0
    %2866 = vmatpush1.bf16.msra.mxu0 %v2806
    %2867 = vmatprep.subr.bf16.mxu0 0
    %2868 = vmatpush1.bf16.msra.mxu0 %v2807
    %2869 = vmatprep.subr.bf16.mxu0 0
    %2870 = vmatpush1.bf16.msra.mxu0 %v2808
    %2871 = vmatprep.subr.bf16.mxu0 0
    %2872 = vmatpush1.bf16.msra.mxu0 %v2809
    %2873 = vmatprep.subr.bf16.mxu0 0
    %2874 = vmatpush1.bf16.msra.mxu0 %v2810
    %2875 = vmatprep.subr.bf16.mxu0 0
    %2876 = vmatpush1.bf16.msra.mxu0 %v2811
    %2877 = vmatprep.subr.bf16.mxu0 0
    %2878 = vmatpush1.bf16.msra.mxu0 %v2812
    %2879 = vmatprep.subr.bf16.mxu0 0
    %2880 = vmatpush1.bf16.msra.mxu0 %v2813
    %2881 = vmatprep.subr.bf16.mxu0 0
    %2882 = vmatpush1.bf16.msra.mxu0 %v2814
    %2883 = vmatprep.subr.bf16.mxu0 0
    %2884 = vmatpush1.bf16.msra.mxu0 %v2815
    %2885 = vmatprep.subr.bf16.mxu0 0
    %2886 = vmatpush1.bf16.msra.mxu0 %v2816
    %2887 = vmatprep.subr.bf16.mxu0 0
    %2888 = vmatpush1.bf16.msra.mxu0 %v2817
    %2889 = vmatprep.subr.bf16.mxu0 0
    %2890 = vmatpush1.bf16.msra.mxu0 %v2818
    %2891 = vmatprep.subr.bf16.mxu0 0
    %2892 = vmatpush1.bf16.msra.mxu0 %v2819
    %2893 = vmatprep.mubr.bf16.mxu0 %v2787
    %2894 = vmatmul.mubr.bf16.gmra.mrb[0].mxu0 %v2786
    %v2895 = vpop.f32.mrb[0].mxu0
    %v2896 = vadd.f32 %v2855, %v2895
    %v2897 = vpop.f32.mrb[0].mxu0
    %v2898 = vpop.f32.mrb[0].mxu0
    %v2899 = vadd.f32 %v2858, %v2898
    %v2900 = vpop.f32.mrb[0].mxu0
    %2901 = vdwg.mxu0
    %v2902 = vadd.f32 %v2634, %v2896
    %v2903 = vadd.f32 %v2635, %v2899
    %v2904 = vadd.f32 %v1825, %v2902
    %v2905 = vadd.f32 %v1826, %v2903
    %v2906 = vld [vmem:[#allocation16] sm:$0x1]
    %v2908 = vlaneseq
    %v2909 = vshrl.u32 %v2908, 7
    %v2910 = vsub.s32 0, %v2909
    %v2911 = vrot.slane %v2906, %v2910
    %v2913 = vadd.f32 %v2904, %v2911
    %v2914 = vadd.f32 %v2905, %v2911
    %v2915 = vld [vmem:[#allocation18] sm:$0x1]
    %v2916 = vld [vmem:[#allocation19] sm:$0x1]
    %2917 = vadd.xlane.f32.xlu0 %v2913
    %v2918 = vpop.xlane.xlu0 %2917
    %2919 = vadd.xlane.f32.xlu0 %v2914
    %v2920 = vpop.xlane.xlu0 %2919
    %v2921 = vmul.f32 %v2918, %v1792
    %v2922 = vmul.f32 %v2920, %v1792
    %v2923 = vsub.f32 %v2913, %v2921
    %v2924 = vsub.f32 %v2914, %v2922
    %v2925 = vmul.f32 %v2923, %v2923
    %v2926 = vmul.f32 %v2924, %v2924
    %2927 = vadd.xlane.f32.xlu0 %v2925
    %v2928 = vpop.xlane.xlu0 %2927
    %2929 = vadd.xlane.f32.xlu0 %v2926
    %v2930 = vpop.xlane.xlu0 %2929
    %v2931 = vmul.f32 %v2928, %v1792
    %v2932 = vmul.f32 %v2930, %v1792
    %v2933 = vadd.f32 %v2931, 1e-05
    %v2934 = vadd.f32 %v2932, 1e-05
    %v2935 = vrsqrt.pop %v2933
    %v2936 = vrsqrt.pop %v2934
    %v2937 = vmul.f32 %v2923, %v2935
    %v2938 = vmul.f32 %v2924, %v2936
    %v2940 = vlaneseq
    %v2941 = vshrl.u32 %v2940, 7
    %v2942 = vsub.s32 0, %v2941
    %v2943 = vrot.slane %v2915, %v2942
    %v2945 = vmul.f32 %v2937, %v2943
    %v2946 = vmul.f32 %v2938, %v2943
    %v2948 = vlaneseq
    %v2949 = vshrl.u32 %v2948, 7
    %v2950 = vsub.s32 0, %v2949
    %v2951 = vrot.slane %v2916, %v2950
    %v2953 = vadd.f32 %v2945, %v2951
    %v2954 = vadd.f32 %v2946, %v2951
    %v2956 = vrot.slane %v2953, 7
    %v2959 = vrot.slane %v2954, 6
    %vm2961 = vcmask 1040384
    %v2962 = vsel %vm2961, %v2956, %v2959
    %v2963 = vld [vmem:[#allocation21] sm:$0xf]
    %v2964 = vld [vmem:[#allocation21 + $0x4] sm:$0xf]
    %v2965 = vld [vmem:[#allocation21 + $0x8] sm:$0xf]
    %v2966 = vld [vmem:[#allocation21 + $0xc] sm:$0xf]
    %v2967 = vld [vmem:[#allocation21 + $0x10] sm:$0xf]
    %v2968 = vld [vmem:[#allocation21 + $0x14] sm:$0xf]
    %v2969 = vld [vmem:[#allocation21 + $0x18] sm:$0xf]
    %v2970 = vld [vmem:[#allocation21 + $0x1c] sm:$0xf]
    %v2971 = vld [vmem:[#allocation21 + $0x20] sm:$0xf]
    %v2972 = vld [vmem:[#allocation21 + $0x24] sm:$0xf]
    %v2973 = vld [vmem:[#allocation21 + $0x28] sm:$0xf]
    %v2974 = vld [vmem:[#allocation21 + $0x2c] sm:$0xf]
    %v2975 = vld [vmem:[#allocation21 + $0x30] sm:$0xf]
    %v2976 = vld [vmem:[#allocation21 + $0x34] sm:$0xf]
    %v2977 = vld [vmem:[#allocation21 + $0x38] sm:$0xf]
    %v2978 = vld [vmem:[#allocation21 + $0x3c] sm:$0xf]
    %v2979 = vpack.c.bf16 %v2962, %v2962
    %v2980 = vld [vmem:[#allocation22] sm:$0x1]
    %v2982 = vlaneseq
    %v2983 = vshrl.u32 %v2982, 7
    %v2984 = vsub.s32 0, %v2983
    %v2985 = vrot.slane %v2980, %v2984
    %v3003 = vunpack.c.l.b16 %v2963
    %v3004 = vunpack.c.l.b16 %v2964
    %v3005 = vunpack.c.l.b16 %v2965
    %v3006 = vunpack.c.l.b16 %v2966
    %v3007 = vunpack.c.l.b16 %v2967
    %v3008 = vunpack.c.l.b16 %v2968
    %v3009 = vunpack.c.l.b16 %v2969
    %v3010 = vunpack.c.l.b16 %v2970
    %v3011 = vunpack.c.l.b16 %v2971
    %v3012 = vunpack.c.l.b16 %v2972
    %v3013 = vunpack.c.l.b16 %v2973
    %v3014 = vunpack.c.l.b16 %v2974
    %v3015 = vunpack.c.l.b16 %v2975
    %v3016 = vunpack.c.l.b16 %v2976
    %v3017 = vunpack.c.l.b16 %v2977
    %v3018 = vunpack.c.l.b16 %v2978
    %v3019 = vpack.c.b16 %v3004, %v3003
    %v3020 = vpack.c.b16 %v3006, %v3005
    %v3021 = vpack.c.b16 %v3008, %v3007
    %v3022 = vpack.c.b16 %v3010, %v3009
    %v3023 = vpack.c.b16 %v3012, %v3011
    %v3024 = vpack.c.b16 %v3014, %v3013
    %v3025 = vpack.c.b16 %v3016, %v3015
    %v3026 = vpack.c.b16 %v3018, %v3017
    %3035 = vmatprep.subr.bf16.mxu0 0
    %3036 = vmatpush1.bf16.msra.mxu0 %v3019
    %3037 = vmatprep.subr.bf16.mxu0 0
    %3038 = vmatpush1.bf16.msra.mxu0 %v3020
    %3039 = vmatprep.subr.bf16.mxu0 0
    %3040 = vmatpush1.bf16.msra.mxu0 %v3021
    %3041 = vmatprep.subr.bf16.mxu0 0
    %3042 = vmatpush1.bf16.msra.mxu0 %v3022
    %3043 = vmatprep.subr.bf16.mxu0 0
    %3044 = vmatpush1.bf16.msra.mxu0 %v3023
    %3045 = vmatprep.subr.bf16.mxu0 0
    %3046 = vmatpush1.bf16.msra.mxu0 %v3024
    %3047 = vmatprep.subr.bf16.mxu0 0
    %3048 = vmatpush1.bf16.msra.mxu0 %v3025
    %3049 = vmatprep.subr.bf16.mxu0 0
    %3050 = vmatpush1.bf16.msra.mxu0 %v3026
    %3051 = vmatprep.subr.bf16.mxu0 0
    %3052 = vmatpush1.bf16.msra.mxu0 0
    %3053 = vmatprep.subr.bf16.mxu0 0
    %3054 = vmatpush1.bf16.msra.mxu0 0
    %3055 = vmatprep.subr.bf16.mxu0 0
    %3056 = vmatpush1.bf16.msra.mxu0 0
    %3057 = vmatprep.subr.bf16.mxu0 0
    %3058 = vmatpush1.bf16.msra.mxu0 0
    %3059 = vmatprep.subr.bf16.mxu0 0
    %3060 = vmatpush1.bf16.msra.mxu0 0
    %3061 = vmatprep.subr.bf16.mxu0 0
    %3062 = vmatpush1.bf16.msra.mxu0 0
    %3063 = vmatprep.subr.bf16.mxu0 0
    %3064 = vmatpush1.bf16.msra.mxu0 0
    %3065 = vmatprep.subr.bf16.mxu0 0
    %3066 = vmatpush1.bf16.msra.mxu0 0
    %3067 = vmatprep.mubr.bf16.mxu0 0
    %3068 = vmatmul.mubr.bf16.gmra.mrb[0].mxu0 %v2979
    %v3069 = vpop.f32.mrb[0].mxu0
    %v3070 = vadd.f32 %v2985, %v3069
    %v3071 = vpop.f32.mrb[0].mxu0
    %v3072 = vpop.f32.mrb[0].mxu0
    %v3073 = vpop.f32.mrb[0].mxu0
    %3074 = vdwg.mxu0
    %v3075 = vld [vmem:[#allocation24] sm:$0xff]
    %v3076 = vld [vmem:[#allocation24 + $0x8] sm:$0xff]
    %v3077 = vld [vmem:[#allocation24 + $0x10] sm:$0xff]
    %v3078 = vld [vmem:[#allocation24 + $0x18] sm:$0xff]
    %v3079 = vld [vmem:[#allocation24 + $0x20] sm:$0xff]
    %v3080 = vld [vmem:[#allocation24 + $0x28] sm:$0xff]
    %v3081 = vld [vmem:[#allocation24 + $0x30] sm:$0xff]
    %v3082 = vld [vmem:[#allocation24 + $0x38] sm:$0xff]
    %v3083 = vld [vmem:[#allocation24 + $0x40] sm:$0xff]
    %v3084 = vld [vmem:[#allocation24 + $0x48] sm:$0xff]
    %v3085 = vld [vmem:[#allocation24 + $0x50] sm:$0xff]
    %v3086 = vld [vmem:[#allocation24 + $0x58] sm:$0xff]
    %v3087 = vld [vmem:[#allocation24 + $0x60] sm:$0xff]
    %v3088 = vld [vmem:[#allocation24 + $0x68] sm:$0xff]
    %v3089 = vld [vmem:[#allocation24 + $0x70] sm:$0xff]
    %v3090 = vld [vmem:[#allocation24 + $0x78] sm:$0xff]
    %v3091 = vpack.c.bf16 %v2954, %v2953
    %v3092 = vld [vmem:[%s37] sm:$0x3]
    %v3094 = vlaneseq
    %v3095 = vshrl.u32 %v3094, 7
    %v3096 = vsub.s32 0, %v3095
    %v3097 = vrot.slane %v3092, %v3096
    %v3098 = vlaneseq
    %v3099 = vshrl.u32 %v3098, 7
    %v3100 = vsub.s32 1, %v3099
    %v3101 = vrot.slane %v3092, %v3100
    %v3120 = vunpack.c.l.b16 %v3075
    %v3121 = vunpack.c.h.b16 %v3075
    %v3122 = vunpack.c.l.b16 %v3076
    %v3123 = vunpack.c.h.b16 %v3076
    %v3124 = vunpack.c.l.b16 %v3077
    %v3125 = vunpack.c.h.b16 %v3077
    %v3126 = vunpack.c.l.b16 %v3078
    %v3127 = vunpack.c.h.b16 %v3078
    %v3128 = vunpack.c.l.b16 %v3079
    %v3129 = vunpack.c.h.b16 %v3079
    %v3130 = vunpack.c.l.b16 %v3080
    %v3131 = vunpack.c.h.b16 %v3080
    %v3132 = vunpack.c.l.b16 %v3081
    %v3133 = vunpack.c.h.b16 %v3081
    %v3134 = vunpack.c.l.b16 %v3082
    %v3135 = vunpack.c.h.b16 %v3082
    %v3136 = vunpack.c.l.b16 %v3083
    %v3137 = vunpack.c.h.b16 %v3083
    %v3138 = vunpack.c.l.b16 %v3084
    %v3139 = vunpack.c.h.b16 %v3084
    %v3140 = vunpack.c.l.b16 %v3085
    %v3141 = vunpack.c.h.b16 %v3085
    %v3142 = vunpack.c.l.b16 %v3086
    %v3143 = vunpack.c.h.b16 %v3086
    %v3144 = vunpack.c.l.b16 %v3087
    %v3145 = vunpack.c.h.b16 %v3087
    %v3146 = vunpack.c.l.b16 %v3088
    %v3147 = vunpack.c.h.b16 %v3088
    %v3148 = vunpack.c.l.b16 %v3089
    %v3149 = vunpack.c.h.b16 %v3089
    %v3150 = vunpack.c.l.b16 %v3090
    %v3151 = vunpack.c.h.b16 %v3090
    %v3152 = vpack.c.b16 %v3122, %v3120
    %v3153 = vpack.c.b16 %v3123, %v3121
    %v3154 = vpack.c.b16 %v3126, %v3124
    %v3155 = vpack.c.b16 %v3127, %v3125
    %v3156 = vpack.c.b16 %v3130, %v3128
    %v3157 = vpack.c.b16 %v3131, %v3129
    %v3158 = vpack.c.b16 %v3134, %v3132
    %v3159 = vpack.c.b16 %v3135, %v3133
    %v3160 = vpack.c.b16 %v3138, %v3136
    %v3161 = vpack.c.b16 %v3139, %v3137
    %v3162 = vpack.c.b16 %v3142, %v3140
    %v3163 = vpack.c.b16 %v3143, %v3141
    %v3164 = vpack.c.b16 %v3146, %v3144
    %v3165 = vpack.c.b16 %v3147, %v3145
    %v3166 = vpack.c.b16 %v3150, %v3148
    %v3167 = vpack.c.b16 %v3151, %v3149
    %3184 = vmatprep.subr.bf16.mxu0 %v3153
    %3185 = vmatpush1.bf16.msra.mxu0 %v3152
    %3186 = vmatprep.subr.bf16.mxu0 %v3155
    %3187 = vmatpush1.bf16.msra.mxu0 %v3154
    %3188 = vmatprep.subr.bf16.mxu0 %v3157
    %3189 = vmatpush1.bf16.msra.mxu0 %v3156
    %3190 = vmatprep.subr.bf16.mxu0 %v3159
    %3191 = vmatpush1.bf16.msra.mxu0 %v3158
    %3192 = vmatprep.subr.bf16.mxu0 %v3161
    %3193 = vmatpush1.bf16.msra.mxu0 %v3160
    %3194 = vmatprep.subr.bf16.mxu0 %v3163
    %3195 = vmatpush1.bf16.msra.mxu0 %v3162
    %3196 = vmatprep.subr.bf16.mxu0 %v3165
    %3197 = vmatpush1.bf16.msra.mxu0 %v3164
    %3198 = vmatprep.subr.bf16.mxu0 %v3167
    %3199 = vmatpush1.bf16.msra.mxu0 %v3166
    %3200 = vmatprep.subr.bf16.mxu0 0
    %3201 = vmatpush1.bf16.msra.mxu0 0
    %3202 = vmatprep.subr.bf16.mxu0 0
    %3203 = vmatpush1.bf16.msra.mxu0 0
    %3204 = vmatprep.subr.bf16.mxu0 0
    %3205 = vmatpush1.bf16.msra.mxu0 0
    %3206 = vmatprep.subr.bf16.mxu0 0
    %3207 = vmatpush1.bf16.msra.mxu0 0
    %3208 = vmatprep.subr.bf16.mxu0 0
    %3209 = vmatpush1.bf16.msra.mxu0 0
    %3210 = vmatprep.subr.bf16.mxu0 0
    %3211 = vmatpush1.bf16.msra.mxu0 0
    %3212 = vmatprep.subr.bf16.mxu0 0
    %3213 = vmatpush1.bf16.msra.mxu0 0
    %3214 = vmatprep.subr.bf16.mxu0 0
    %3215 = vmatpush1.bf16.msra.mxu0 0
    %3216 = vmatprep.mubr.bf16.mxu0 0
    %3217 = vmatmul.mubr.bf16.gmra.mrb[0].mxu0 %v3091
    %v3218 = vpop.f32.mrb[0].mxu0
    %v3219 = vadd.f32 %v3097, %v3218
    %v3220 = vpop.f32.mrb[0].mxu0
    %v3221 = vadd.f32 %v3101, %v3220
    %v3222 = vpop.f32.mrb[0].mxu0
    %v3223 = vadd.f32 %v3097, %v3222
    %v3224 = vpop.f32.mrb[0].mxu0
    %v3225 = vadd.f32 %v3101, %v3224
    %3226 = vdwg.mxu0
    %v3227 = vpack.c.bf16 %v3070, %v3070
    %v3228 = vpack.c.bf16 %v3219, %v3219
    %v3229 = vpack.c.bf16 %v3221, %v3221
    %v3231 = vsel %vm759, %v3227, 0
    %v3234 = vsel %vm759, %v3228, 0
    %3236 = vmatprep.subr.bf16.mxu0 0
    %3237 = vmatpush1.bf16.xpose.msra.mxu0 %v3234
    %3238 = vmatprep.subr.bf16.mxu0 0
    %3239 = vmatpush1.bf16.xpose.msra.mxu0 0
    %3240 = vmatprep.subr.bf16.mxu0 0
    %3241 = vmatpush1.bf16.xpose.msra.mxu0 0
    %3242 = vmatprep.subr.bf16.mxu0 0
    %3243 = vmatpush1.bf16.xpose.msra.mxu0 0
    %3244 = vmatprep.subr.bf16.mxu0 0
    %3245 = vmatpush1.bf16.xpose.msra.mxu0 0
    %3246 = vmatprep.subr.bf16.mxu0 0
    %3247 = vmatpush1.bf16.xpose.msra.mxu0 0
    %3248 = vmatprep.subr.bf16.mxu0 0
    %3249 = vmatpush1.bf16.xpose.msra.mxu0 0
    %3250 = vmatprep.subr.bf16.mxu0 0
    %3251 = vmatpush1.bf16.xpose.msra.mxu0 0
    %3252 = vmatprep.subr.bf16.mxu0 0
    %3253 = vmatpush1.bf16.xpose.msra.mxu0 0
    %3254 = vmatprep.subr.bf16.mxu0 0
    %3255 = vmatpush1.bf16.xpose.msra.mxu0 0
    %3256 = vmatprep.subr.bf16.mxu0 0
    %3257 = vmatpush1.bf16.xpose.msra.mxu0 0
    %3258 = vmatprep.subr.bf16.mxu0 0
    %3259 = vmatpush1.bf16.xpose.msra.mxu0 0
    %3260 = vmatprep.subr.bf16.mxu0 0
    %3261 = vmatpush1.bf16.xpose.msra.mxu0 0
    %3262 = vmatprep.subr.bf16.mxu0 0
    %3263 = vmatpush1.bf16.xpose.msra.mxu0 0
    %3264 = vmatprep.subr.bf16.mxu0 0
    %3265 = vmatpush1.bf16.xpose.msra.mxu0 0
    %3266 = vmatprep.subr.bf16.mxu0 0
    %3267 = vmatpush1.bf16.xpose.msra.mxu0 0
    %3268 = vmatprep.mubr.bf16.mxu0 0
    %3269 = vmatmul.mubr.bf16.gmra.mrb[0].mxu0 %v3231
    %v3270 = vpop.f32.mrb[0].mxu0
    %v3271 = vadd.f32 0.0, %v3270
    %v3272 = vpop.f32.mrb[0].mxu0
    %v3273 = vpop.f32.mrb[0].mxu0
    %v3274 = vpop.f32.mrb[0].mxu0
    %3275 = vdwg.mxu0
    %vm3276 = vcmask 57344
    %v3277 = vsel %vm3276, %v3271, -inf
    %3278 = vmax.xlane.f32.xlu0 %v3277
    %v3279 = vpop.xlane.xlu0 %3278
    %v3280 = vsub.f32 %v3271, %v3279
    %v3281 = vmul.f32 %v3280, 1.442695
    %v3282 = vpow.pop %v3281
    %v3283 = vsel %vm3276, %v3282, 0.0
    %3284 = vadd.xlane.f32.xlu0 %v3283
    %v3285 = vpop.xlane.xlu0 %3284
    %v3286 = vrcp.pop %v3285
    %v3287 = vmul.f32 %v3282, %v3286
    %v3288 = vpack.c.bf16 %v3287, %v3287
    %v3290 = vsel %vm806, %v3288, 0
    %v3293 = vsel %vm822, %v3229, 0
    %3295 = vmatprep.subr.bf16.mxu0 0
    %3296 = vmatpush1.bf16.msra.mxu0 %v3293
    %3297 = vmatprep.subr.bf16.mxu0 0
    %3298 = vmatpush1.bf16.msra.mxu0 0
    %3299 = vmatprep.subr.bf16.mxu0 0
    %3300 = vmatpush1.bf16.msra.mxu0 0
    %3301 = vmatprep.subr.bf16.mxu0 0
    %3302 = vmatpush1.bf16.msra.mxu0 0
    %3303 = vmatprep.subr.bf16.mxu0 0
    %3304 = vmatpush1.bf16.msra.mxu0 0
    %3305 = vmatprep.subr.bf16.mxu0 0
    %3306 = vmatpush1.bf16.msra.mxu0 0
    %3307 = vmatprep.subr.bf16.mxu0 0
    %3308 = vmatpush1.bf16.msra.mxu0 0
    %3309 = vmatprep.subr.bf16.mxu0 0
    %3310 = vmatpush1.bf16.msra.mxu0 0
    %3311 = vmatprep.subr.bf16.mxu0 0
    %3312 = vmatpush1.bf16.msra.mxu0 0
    %3313 = vmatprep.subr.bf16.mxu0 0
    %3314 = vmatpush1.bf16.msra.mxu0 0
    %3315 = vmatprep.subr.bf16.mxu0 0
    %3316 = vmatpush1.bf16.msra.mxu0 0
    %3317 = vmatprep.subr.bf16.mxu0 0
    %3318 = vmatpush1.bf16.msra.mxu0 0
    %3319 = vmatprep.subr.bf16.mxu0 0
    %3320 = vmatpush1.bf16.msra.mxu0 0
    %3321 = vmatprep.subr.bf16.mxu0 0
    %3322 = vmatpush1.bf16.msra.mxu0 0
    %3323 = vmatprep.subr.bf16.mxu0 0
    %3324 = vmatpush1.bf16.msra.mxu0 0
    %3325 = vmatprep.subr.bf16.mxu0 0
    %3326 = vmatpush1.bf16.msra.mxu0 0
    %3327 = vmatprep.mubr.bf16.mxu0 0
    %3328 = vmatmul.mubr.bf16.gmra.mrb[0].mxu0 %v3290
    %v3329 = vpop.f32.mrb[0].mxu0
    %v3330 = vadd.f32 0.0, %v3329
    %v3331 = vpop.f32.mrb[0].mxu0
    %v3332 = vpop.f32.mrb[0].mxu0
    %v3333 = vpop.f32.mrb[0].mxu0
    %3334 = vdwg.mxu0
    %3336 = vrot.lane.b32.xlu0 %v3227, 96
    %v3337 = vpop.permute.xlu0 %3336
    %3339 = vrot.lane.b32.xlu0 %v3228, 96
    %v3340 = vpop.permute.xlu0 %3339
    %v3342 = vsel %vm759, %v3337, 0
    %v3345 = vsel %vm759, %v3340, 0
    %3347 = vmatprep.subr.bf16.mxu0 0
    %3348 = vmatpush1.bf16.xpose.msra.mxu0 %v3345
    %3349 = vmatprep.subr.bf16.mxu0 0
    %3350 = vmatpush1.bf16.xpose.msra.mxu0 0
    %3351 = vmatprep.subr.bf16.mxu0 0
    %3352 = vmatpush1.bf16.xpose.msra.mxu0 0
    %3353 = vmatprep.subr.bf16.mxu0 0
    %3354 = vmatpush1.bf16.xpose.msra.mxu0 0
    %3355 = vmatprep.subr.bf16.mxu0 0
    %3356 = vmatpush1.bf16.xpose.msra.mxu0 0
    %3357 = vmatprep.subr.bf16.mxu0 0
    %3358 = vmatpush1.bf16.xpose.msra.mxu0 0
    %3359 = vmatprep.subr.bf16.mxu0 0
    %3360 = vmatpush1.bf16.xpose.msra.mxu0 0
    %3361 = vmatprep.subr.bf16.mxu0 0
    %3362 = vmatpush1.bf16.xpose.msra.mxu0 0
    %3363 = vmatprep.subr.bf16.mxu0 0
    %3364 = vmatpush1.bf16.xpose.msra.mxu0 0
    %3365 = vmatprep.subr.bf16.mxu0 0
    %3366 = vmatpush1.bf16.xpose.msra.mxu0 0
    %3367 = vmatprep.subr.bf16.mxu0 0
    %3368 = vmatpush1.bf16.xpose.msra.mxu0 0
    %3369 = vmatprep.subr.bf16.mxu0 0
    %3370 = vmatpush1.bf16.xpose.msra.mxu0 0
    %3371 = vmatprep.subr.bf16.mxu0 0
    %3372 = vmatpush1.bf16.xpose.msra.mxu0 0
    %3373 = vmatprep.subr.bf16.mxu0 0
    %3374 = vmatpush1.bf16.xpose.msra.mxu0 0
    %3375 = vmatprep.subr.bf16.mxu0 0
    %3376 = vmatpush1.bf16.xpose.msra.mxu0 0
    %3377 = vmatprep.subr.bf16.mxu0 0
    %3378 = vmatpush1.bf16.xpose.msra.mxu0 0
    %3379 = vmatprep.mubr.bf16.mxu0 0
    %3380 = vmatmul.mubr.bf16.gmra.mrb[0].mxu0 %v3342
    %v3381 = vpop.f32.mrb[0].mxu0
    %v3382 = vadd.f32 0.0, %v3381
    %v3383 = vpop.f32.mrb[0].mxu0
    %v3384 = vpop.f32.mrb[0].mxu0
    %v3385 = vpop.f32.mrb[0].mxu0
    %3386 = vdwg.mxu0
    %v3387 = vsel %vm3276, %v3382, -inf
    %3388 = vmax.xlane.f32.xlu0 %v3387
    %v3389 = vpop.xlane.xlu0 %3388
    %v3390 = vsub.f32 %v3382, %v3389
    %v3391 = vmul.f32 %v3390, 1.442695
    %v3392 = vpow.pop %v3391
    %v3393 = vsel %vm3276, %v3392, 0.0
    %3394 = vadd.xlane.f32.xlu0 %v3393
    %v3395 = vpop.xlane.xlu0 %3394
    %v3396 = vrcp.pop %v3395
    %v3397 = vmul.f32 %v3392, %v3396
    %v3398 = vpack.c.bf16 %v3397, %v3397
    %3400 = vrot.lane.b32.xlu0 %v3229, 96
    %v3401 = vpop.permute.xlu0 %3400
    %v3403 = vsel %vm806, %v3398, 0
    %v3406 = vsel %vm822, %v3401, 0
    %3408 = vmatprep.subr.bf16.mxu0 0
    %3409 = vmatpush1.bf16.msra.mxu0 %v3406
    %3410 = vmatprep.subr.bf16.mxu0 0
    %3411 = vmatpush1.bf16.msra.mxu0 0
    %3412 = vmatprep.subr.bf16.mxu0 0
    %3413 = vmatpush1.bf16.msra.mxu0 0
    %3414 = vmatprep.subr.bf16.mxu0 0
    %3415 = vmatpush1.bf16.msra.mxu0 0
    %3416 = vmatprep.subr.bf16.mxu0 0
    %3417 = vmatpush1.bf16.msra.mxu0 0
    %3418 = vmatprep.subr.bf16.mxu0 0
    %3419 = vmatpush1.bf16.msra.mxu0 0
    %3420 = vmatprep.subr.bf16.mxu0 0
    %3421 = vmatpush1.bf16.msra.mxu0 0
    %3422 = vmatprep.subr.bf16.mxu0 0
    %3423 = vmatpush1.bf16.msra.mxu0 0
    %3424 = vmatprep.subr.bf16.mxu0 0
    %3425 = vmatpush1.bf16.msra.mxu0 0
    %3426 = vmatprep.subr.bf16.mxu0 0
    %3427 = vmatpush1.bf16.msra.mxu0 0
    %3428 = vmatprep.subr.bf16.mxu0 0
    %3429 = vmatpush1.bf16.msra.mxu0 0
    %3430 = vmatprep.subr.bf16.mxu0 0
    %3431 = vmatpush1.bf16.msra.mxu0 0
    %3432 = vmatprep.subr.bf16.mxu0 0
    %3433 = vmatpush1.bf16.msra.mxu0 0
    %3434 = vmatprep.subr.bf16.mxu0 0
    %3435 = vmatpush1.bf16.msra.mxu0 0
    %3436 = vmatprep.subr.bf16.mxu0 0
    %3437 = vmatpush1.bf16.msra.mxu0 0
    %3438 = vmatprep.subr.bf16.mxu0 0
    %3439 = vmatpush1.bf16.msra.mxu0 0
    %3440 = vmatprep.mubr.bf16.mxu0 0
    %3441 = vmatmul.mubr.bf16.gmra.mrb[0].mxu0 %v3403
    %v3442 = vpop.f32.mrb[0].mxu0
    %v3443 = vadd.f32 0.0, %v3442
    %v3444 = vpop.f32.mrb[0].mxu0
    %v3445 = vpop.f32.mrb[0].mxu0
    %v3446 = vpop.f32.mrb[0].mxu0
    %3447 = vdwg.mxu0
    %3448 = vrot.lane.b32.xlu0 %v3227, 64
    %v3449 = vpop.permute.xlu0 %3448
    %3450 = vrot.lane.b32.xlu0 %v3228, 64
    %v3451 = vpop.permute.xlu0 %3450
    %v3453 = vsel %vm759, %v3449, 0
    %v3456 = vsel %vm759, %v3451, 0
    %3458 = vmatprep.subr.bf16.mxu0 0
    %3459 = vmatpush1.bf16.xpose.msra.mxu0 %v3456
    %3460 = vmatprep.subr.bf16.mxu0 0
    %3461 = vmatpush1.bf16.xpose.msra.mxu0 0
    %3462 = vmatprep.subr.bf16.mxu0 0
    %3463 = vmatpush1.bf16.xpose.msra.mxu0 0
    %3464 = vmatprep.subr.bf16.mxu0 0
    %3465 = vmatpush1.bf16.xpose.msra.mxu0 0
    %3466 = vmatprep.subr.bf16.mxu0 0
    %3467 = vmatpush1.bf16.xpose.msra.mxu0 0
    %3468 = vmatprep.subr.bf16.mxu0 0
    %3469 = vmatpush1.bf16.xpose.msra.mxu0 0
    %3470 = vmatprep.subr.bf16.mxu0 0
    %3471 = vmatpush1.bf16.xpose.msra.mxu0 0
    %3472 = vmatprep.subr.bf16.mxu0 0
    %3473 = vmatpush1.bf16.xpose.msra.mxu0 0
    %3474 = vmatprep.subr.bf16.mxu0 0
    %3475 = vmatpush1.bf16.xpose.msra.mxu0 0
    %3476 = vmatprep.subr.bf16.mxu0 0
    %3477 = vmatpush1.bf16.xpose.msra.mxu0 0
    %3478 = vmatprep.subr.bf16.mxu0 0
    %3479 = vmatpush1.bf16.xpose.msra.mxu0 0
    %3480 = vmatprep.subr.bf16.mxu0 0
    %3481 = vmatpush1.bf16.xpose.msra.mxu0 0
    %3482 = vmatprep.subr.bf16.mxu0 0
    %3483 = vmatpush1.bf16.xpose.msra.mxu0 0
    %3484 = vmatprep.subr.bf16.mxu0 0
    %3485 = vmatpush1.bf16.xpose.msra.mxu0 0
    %3486 = vmatprep.subr.bf16.mxu0 0
    %3487 = vmatpush1.bf16.xpose.msra.mxu0 0
    %3488 = vmatprep.subr.bf16.mxu0 0
    %3489 = vmatpush1.bf16.xpose.msra.mxu0 0
    %3490 = vmatprep.mubr.bf16.mxu0 0
    %3491 = vmatmul.mubr.bf16.gmra.mrb[0].mxu0 %v3453
    %v3492 = vpop.f32.mrb[0].mxu0
    %v3493 = vadd.f32 0.0, %v3492
    %v3494 = vpop.f32.mrb[0].mxu0
    %v3495 = vpop.f32.mrb[0].mxu0
    %v3496 = vpop.f32.mrb[0].mxu0
    %3497 = vdwg.mxu0
    %v3498 = vsel %vm3276, %v3493, -inf
    %3499 = vmax.xlane.f32.xlu0 %v3498
    %v3500 = vpop.xlane.xlu0 %3499
    %v3501 = vsub.f32 %v3493, %v3500
    %v3502 = vmul.f32 %v3501, 1.442695
    %v3503 = vpow.pop %v3502
    %v3504 = vsel %vm3276, %v3503, 0.0
    %3505 = vadd.xlane.f32.xlu0 %v3504
    %v3506 = vpop.xlane.xlu0 %3505
    %v3507 = vrcp.pop %v3506
    %v3508 = vmul.f32 %v3503, %v3507
    %v3509 = vpack.c.bf16 %v3508, %v3508
    %3510 = vrot.lane.b32.xlu0 %v3229, 64
    %v3511 = vpop.permute.xlu0 %3510
    %v3513 = vsel %vm806, %v3509, 0
    %v3516 = vsel %vm822, %v3511, 0
    %3518 = vmatprep.subr.bf16.mxu0 0
    %3519 = vmatpush1.bf16.msra.mxu0 %v3516
    %3520 = vmatprep.subr.bf16.mxu0 0
    %3521 = vmatpush1.bf16.msra.mxu0 0
    %3522 = vmatprep.subr.bf16.mxu0 0
    %3523 = vmatpush1.bf16.msra.mxu0 0
    %3524 = vmatprep.subr.bf16.mxu0 0
    %3525 = vmatpush1.bf16.msra.mxu0 0
    %3526 = vmatprep.subr.bf16.mxu0 0
    %3527 = vmatpush1.bf16.msra.mxu0 0
    %3528 = vmatprep.subr.bf16.mxu0 0
    %3529 = vmatpush1.bf16.msra.mxu0 0
    %3530 = vmatprep.subr.bf16.mxu0 0
    %3531 = vmatpush1.bf16.msra.mxu0 0
    %3532 = vmatprep.subr.bf16.mxu0 0
    %3533 = vmatpush1.bf16.msra.mxu0 0
    %3534 = vmatprep.subr.bf16.mxu0 0
    %3535 = vmatpush1.bf16.msra.mxu0 0
    %3536 = vmatprep.subr.bf16.mxu0 0
    %3537 = vmatpush1.bf16.msra.mxu0 0
    %3538 = vmatprep.subr.bf16.mxu0 0
    %3539 = vmatpush1.bf16.msra.mxu0 0
    %3540 = vmatprep.subr.bf16.mxu0 0
    %3541 = vmatpush1.bf16.msra.mxu0 0
    %3542 = vmatprep.subr.bf16.mxu0 0
    %3543 = vmatpush1.bf16.msra.mxu0 0
    %3544 = vmatprep.subr.bf16.mxu0 0
    %3545 = vmatpush1.bf16.msra.mxu0 0
    %3546 = vmatprep.subr.bf16.mxu0 0
    %3547 = vmatpush1.bf16.msra.mxu0 0
    %3548 = vmatprep.subr.bf16.mxu0 0
    %3549 = vmatpush1.bf16.msra.mxu0 0
    %3550 = vmatprep.mubr.bf16.mxu0 0
    %3551 = vmatmul.mubr.bf16.gmra.mrb[0].mxu0 %v3513
    %v3552 = vpop.f32.mrb[0].mxu0
    %v3553 = vadd.f32 0.0, %v3552
    %v3554 = vpop.f32.mrb[0].mxu0
    %v3555 = vpop.f32.mrb[0].mxu0
    %v3556 = vpop.f32.mrb[0].mxu0
    %3557 = vdwg.mxu0
    %3558 = vrot.lane.b32.xlu0 %v3227, 32
    %v3559 = vpop.permute.xlu0 %3558
    %3560 = vrot.lane.b32.xlu0 %v3228, 32
    %v3561 = vpop.permute.xlu0 %3560
    %v3563 = vsel %vm759, %v3559, 0
    %v3566 = vsel %vm759, %v3561, 0
    %3568 = vmatprep.subr.bf16.mxu0 0
    %3569 = vmatpush1.bf16.xpose.msra.mxu0 %v3566
    %3570 = vmatprep.subr.bf16.mxu0 0
    %3571 = vmatpush1.bf16.xpose.msra.mxu0 0
    %3572 = vmatprep.subr.bf16.mxu0 0
    %3573 = vmatpush1.bf16.xpose.msra.mxu0 0
    %3574 = vmatprep.subr.bf16.mxu0 0
    %3575 = vmatpush1.bf16.xpose.msra.mxu0 0
    %3576 = vmatprep.subr.bf16.mxu0 0
    %3577 = vmatpush1.bf16.xpose.msra.mxu0 0
    %3578 = vmatprep.subr.bf16.mxu0 0
    %3579 = vmatpush1.bf16.xpose.msra.mxu0 0
    %3580 = vmatprep.subr.bf16.mxu0 0
    %3581 = vmatpush1.bf16.xpose.msra.mxu0 0
    %3582 = vmatprep.subr.bf16.mxu0 0
    %3583 = vmatpush1.bf16.xpose.msra.mxu0 0
    %3584 = vmatprep.subr.bf16.mxu0 0
    %3585 = vmatpush1.bf16.xpose.msra.mxu0 0
    %3586 = vmatprep.subr.bf16.mxu0 0
    %3587 = vmatpush1.bf16.xpose.msra.mxu0 0
    %3588 = vmatprep.subr.bf16.mxu0 0
    %3589 = vmatpush1.bf16.xpose.msra.mxu0 0
    %3590 = vmatprep.subr.bf16.mxu0 0
    %3591 = vmatpush1.bf16.xpose.msra.mxu0 0
    %3592 = vmatprep.subr.bf16.mxu0 0
    %3593 = vmatpush1.bf16.xpose.msra.mxu0 0
    %3594 = vmatprep.subr.bf16.mxu0 0
    %3595 = vmatpush1.bf16.xpose.msra.mxu0 0
    %3596 = vmatprep.subr.bf16.mxu0 0
    %3597 = vmatpush1.bf16.xpose.msra.mxu0 0
    %3598 = vmatprep.subr.bf16.mxu0 0
    %3599 = vmatpush1.bf16.xpose.msra.mxu0 0
    %3600 = vmatprep.mubr.bf16.mxu0 0
    %3601 = vmatmul.mubr.bf16.gmra.mrb[0].mxu0 %v3563
    %v3602 = vpop.f32.mrb[0].mxu0
    %v3603 = vadd.f32 0.0, %v3602
    %v3604 = vpop.f32.mrb[0].mxu0
    %v3605 = vpop.f32.mrb[0].mxu0
    %v3606 = vpop.f32.mrb[0].mxu0
    %3607 = vdwg.mxu0
    %v3608 = vsel %vm3276, %v3603, -inf
    %3609 = vmax.xlane.f32.xlu0 %v3608
    %v3610 = vpop.xlane.xlu0 %3609
    %v3611 = vsub.f32 %v3603, %v3610
    %v3612 = vmul.f32 %v3611, 1.442695
    %v3613 = vpow.pop %v3612
    %v3614 = vsel %vm3276, %v3613, 0.0
    %3615 = vadd.xlane.f32.xlu0 %v3614
    %v3616 = vpop.xlane.xlu0 %3615
    %v3617 = vrcp.pop %v3616
    %v3618 = vmul.f32 %v3613, %v3617
    %v3619 = vpack.c.bf16 %v3618, %v3618
    %3620 = vrot.lane.b32.xlu0 %v3229, 32
    %v3621 = vpop.permute.xlu0 %3620
    %v3623 = vsel %vm806, %v3619, 0
    %v3626 = vsel %vm822, %v3621, 0
    %3628 = vmatprep.subr.bf16.mxu0 0
    %3629 = vmatpush1.bf16.msra.mxu0 %v3626
    %3630 = vmatprep.subr.bf16.mxu0 0
    %3631 = vmatpush1.bf16.msra.mxu0 0
    %3632 = vmatprep.subr.bf16.mxu0 0
    %3633 = vmatpush1.bf16.msra.mxu0 0
    %3634 = vmatprep.subr.bf16.mxu0 0
    %3635 = vmatpush1.bf16.msra.mxu0 0
    %3636 = vmatprep.subr.bf16.mxu0 0
    %3637 = vmatpush1.bf16.msra.mxu0 0
    %3638 = vmatprep.subr.bf16.mxu0 0
    %3639 = vmatpush1.bf16.msra.mxu0 0
    %3640 = vmatprep.subr.bf16.mxu0 0
    %3641 = vmatpush1.bf16.msra.mxu0 0
    %3642 = vmatprep.subr.bf16.mxu0 0
    %3643 = vmatpush1.bf16.msra.mxu0 0
    %3644 = vmatprep.subr.bf16.mxu0 0
    %3645 = vmatpush1.bf16.msra.mxu0 0
    %3646 = vmatprep.subr.bf16.mxu0 0
    %3647 = vmatpush1.bf16.msra.mxu0 0
    %3648 = vmatprep.subr.bf16.mxu0 0
    %3649 = vmatpush1.bf16.msra.mxu0 0
    %3650 = vmatprep.subr.bf16.mxu0 0
    %3651 = vmatpush1.bf16.msra.mxu0 0
    %3652 = vmatprep.subr.bf16.mxu0 0
    %3653 = vmatpush1.bf16.msra.mxu0 0
    %3654 = vmatprep.subr.bf16.mxu0 0
    %3655 = vmatpush1.bf16.msra.mxu0 0
    %3656 = vmatprep.subr.bf16.mxu0 0
    %3657 = vmatpush1.bf16.msra.mxu0 0
    %3658 = vmatprep.subr.bf16.mxu0 0
    %3659 = vmatpush1.bf16.msra.mxu0 0
    %3660 = vmatprep.mubr.bf16.mxu0 0
    %3661 = vmatmul.mubr.bf16.gmra.mrb[0].mxu0 %v3623
    %v3662 = vpop.f32.mrb[0].mxu0
    %v3663 = vadd.f32 0.0, %v3662
    %v3664 = vpop.f32.mrb[0].mxu0
    %v3665 = vpop.f32.mrb[0].mxu0
    %v3666 = vpop.f32.mrb[0].mxu0
    %3667 = vdwg.mxu0
    %3669 = vrot.lane.b32.xlu0 %v3443, 32
    %v3670 = vpop.permute.xlu0 %3669
    %3673 = vrot.lane.b32.xlu0 %v3553, 64
    %v3674 = vpop.permute.xlu0 %3673
    %3677 = vrot.lane.b32.xlu0 %v3663, 96
    %v3678 = vpop.permute.xlu0 %3677
    %v3680 = vsel %vm759, %v3330, %v3670
    %v3681 = vsel %vm1212, %v3680, %v3674
    %v3682 = vsel %vm1214, %v3681, %v3678
    %v3683 = vpack.c.bf16 %v3223, %v3223
    %v3684 = vpack.c.bf16 %v3225, %v3225
    %v3685 = vshrl.u32 %v3227, 16
    %v3688 = vsel %vm759, %v3685, 0
    %v3691 = vsel %vm759, %v3683, 0
    %3693 = vmatprep.subr.bf16.mxu0 0
    %3694 = vmatpush1.bf16.xpose.msra.mxu0 %v3691
    %3695 = vmatprep.subr.bf16.mxu0 0
    %3696 = vmatpush1.bf16.xpose.msra.mxu0 0
    %3697 = vmatprep.subr.bf16.mxu0 0
    %3698 = vmatpush1.bf16.xpose.msra.mxu0 0
    %3699 = vmatprep.subr.bf16.mxu0 0
    %3700 = vmatpush1.bf16.xpose.msra.mxu0 0
    %3701 = vmatprep.subr.bf16.mxu0 0
    %3702 = vmatpush1.bf16.xpose.msra.mxu0 0
    %3703 = vmatprep.subr.bf16.mxu0 0
    %3704 = vmatpush1.bf16.xpose.msra.mxu0 0
    %3705 = vmatprep.subr.bf16.mxu0 0
    %3706 = vmatpush1.bf16.xpose.msra.mxu0 0
    %3707 = vmatprep.subr.bf16.mxu0 0
    %3708 = vmatpush1.bf16.xpose.msra.mxu0 0
    %3709 = vmatprep.subr.bf16.mxu0 0
    %3710 = vmatpush1.bf16.xpose.msra.mxu0 0
    %3711 = vmatprep.subr.bf16.mxu0 0
    %3712 = vmatpush1.bf16.xpose.msra.mxu0 0
    %3713 = vmatprep.subr.bf16.mxu0 0
    %3714 = vmatpush1.bf16.xpose.msra.mxu0 0
    %3715 = vmatprep.subr.bf16.mxu0 0
    %3716 = vmatpush1.bf16.xpose.msra.mxu0 0
    %3717 = vmatprep.subr.bf16.mxu0 0
    %3718 = vmatpush1.bf16.xpose.msra.mxu0 0
    %3719 = vmatprep.subr.bf16.mxu0 0
    %3720 = vmatpush1.bf16.xpose.msra.mxu0 0
    %3721 = vmatprep.subr.bf16.mxu0 0
    %3722 = vmatpush1.bf16.xpose.msra.mxu0 0
    %3723 = vmatprep.subr.bf16.mxu0 0
    %3724 = vmatpush1.bf16.xpose.msra.mxu0 0
    %3725 = vmatprep.mubr.bf16.mxu0 0
    %3726 = vmatmul.mubr.bf16.gmra.mrb[0].mxu0 %v3688
    %v3727 = vpop.f32.mrb[0].mxu0
    %v3728 = vadd.f32 0.0, %v3727
    %v3729 = vpop.f32.mrb[0].mxu0
    %v3730 = vpop.f32.mrb[0].mxu0
    %v3731 = vpop.f32.mrb[0].mxu0
    %3732 = vdwg.mxu0
    %v3733 = vsel %vm3276, %v3728, -inf
    %3734 = vmax.xlane.f32.xlu0 %v3733
    %v3735 = vpop.xlane.xlu0 %3734
    %v3736 = vsub.f32 %v3728, %v3735
    %v3737 = vmul.f32 %v3736, 1.442695
    %v3738 = vpow.pop %v3737
    %v3739 = vsel %vm3276, %v3738, 0.0
    %3740 = vadd.xlane.f32.xlu0 %v3739
    %v3741 = vpop.xlane.xlu0 %3740
    %v3742 = vrcp.pop %v3741
    %v3743 = vmul.f32 %v3738, %v3742
    %v3744 = vpack.c.bf16 %v3743, %v3743
    %v3746 = vsel %vm806, %v3744, 0
    %v3749 = vsel %vm822, %v3684, 0
    %3751 = vmatprep.subr.bf16.mxu0 0
    %3752 = vmatpush1.bf16.msra.mxu0 %v3749
    %3753 = vmatprep.subr.bf16.mxu0 0
    %3754 = vmatpush1.bf16.msra.mxu0 0
    %3755 = vmatprep.subr.bf16.mxu0 0
    %3756 = vmatpush1.bf16.msra.mxu0 0
    %3757 = vmatprep.subr.bf16.mxu0 0
    %3758 = vmatpush1.bf16.msra.mxu0 0
    %3759 = vmatprep.subr.bf16.mxu0 0
    %3760 = vmatpush1.bf16.msra.mxu0 0
    %3761 = vmatprep.subr.bf16.mxu0 0
    %3762 = vmatpush1.bf16.msra.mxu0 0
    %3763 = vmatprep.subr.bf16.mxu0 0
    %3764 = vmatpush1.bf16.msra.mxu0 0
    %3765 = vmatprep.subr.bf16.mxu0 0
    %3766 = vmatpush1.bf16.msra.mxu0 0
    %3767 = vmatprep.subr.bf16.mxu0 0
    %3768 = vmatpush1.bf16.msra.mxu0 0
    %3769 = vmatprep.subr.bf16.mxu0 0
    %3770 = vmatpush1.bf16.msra.mxu0 0
    %3771 = vmatprep.subr.bf16.mxu0 0
    %3772 = vmatpush1.bf16.msra.mxu0 0
    %3773 = vmatprep.subr.bf16.mxu0 0
    %3774 = vmatpush1.bf16.msra.mxu0 0
    %3775 = vmatprep.subr.bf16.mxu0 0
    %3776 = vmatpush1.bf16.msra.mxu0 0
    %3777 = vmatprep.subr.bf16.mxu0 0
    %3778 = vmatpush1.bf16.msra.mxu0 0
    %3779 = vmatprep.subr.bf16.mxu0 0
    %3780 = vmatpush1.bf16.msra.mxu0 0
    %3781 = vmatprep.subr.bf16.mxu0 0
    %3782 = vmatpush1.bf16.msra.mxu0 0
    %3783 = vmatprep.mubr.bf16.mxu0 0
    %3784 = vmatmul.mubr.bf16.gmra.mrb[0].mxu0 %v3746
    %v3785 = vpop.f32.mrb[0].mxu0
    %v3786 = vadd.f32 0.0, %v3785
    %v3787 = vpop.f32.mrb[0].mxu0
    %v3788 = vpop.f32.mrb[0].mxu0
    %v3789 = vpop.f32.mrb[0].mxu0
    %3790 = vdwg.mxu0
    %3791 = vrot.lane.b32.xlu0 %v3685, 96
    %v3792 = vpop.permute.xlu0 %3791
    %3794 = vrot.lane.b32.xlu0 %v3683, 96
    %v3795 = vpop.permute.xlu0 %3794
    %v3797 = vsel %vm759, %v3792, 0
    %v3800 = vsel %vm759, %v3795, 0
    %3802 = vmatprep.subr.bf16.mxu0 0
    %3803 = vmatpush1.bf16.xpose.msra.mxu0 %v3800
    %3804 = vmatprep.subr.bf16.mxu0 0
    %3805 = vmatpush1.bf16.xpose.msra.mxu0 0
    %3806 = vmatprep.subr.bf16.mxu0 0
    %3807 = vmatpush1.bf16.xpose.msra.mxu0 0
    %3808 = vmatprep.subr.bf16.mxu0 0
    %3809 = vmatpush1.bf16.xpose.msra.mxu0 0
    %3810 = vmatprep.subr.bf16.mxu0 0
    %3811 = vmatpush1.bf16.xpose.msra.mxu0 0
    %3812 = vmatprep.subr.bf16.mxu0 0
    %3813 = vmatpush1.bf16.xpose.msra.mxu0 0
    %3814 = vmatprep.subr.bf16.mxu0 0
    %3815 = vmatpush1.bf16.xpose.msra.mxu0 0
    %3816 = vmatprep.subr.bf16.mxu0 0
    %3817 = vmatpush1.bf16.xpose.msra.mxu0 0
    %3818 = vmatprep.subr.bf16.mxu0 0
    %3819 = vmatpush1.bf16.xpose.msra.mxu0 0
    %3820 = vmatprep.subr.bf16.mxu0 0
    %3821 = vmatpush1.bf16.xpose.msra.mxu0 0
    %3822 = vmatprep.subr.bf16.mxu0 0
    %3823 = vmatpush1.bf16.xpose.msra.mxu0 0
    %3824 = vmatprep.subr.bf16.mxu0 0
    %3825 = vmatpush1.bf16.xpose.msra.mxu0 0
    %3826 = vmatprep.subr.bf16.mxu0 0
    %3827 = vmatpush1.bf16.xpose.msra.mxu0 0
    %3828 = vmatprep.subr.bf16.mxu0 0
    %3829 = vmatpush1.bf16.xpose.msra.mxu0 0
    %3830 = vmatprep.subr.bf16.mxu0 0
    %3831 = vmatpush1.bf16.xpose.msra.mxu0 0
    %3832 = vmatprep.subr.bf16.mxu0 0
    %3833 = vmatpush1.bf16.xpose.msra.mxu0 0
    %3834 = vmatprep.mubr.bf16.mxu0 0
    %3835 = vmatmul.mubr.bf16.gmra.mrb[0].mxu0 %v3797
    %v3836 = vpop.f32.mrb[0].mxu0
    %v3837 = vadd.f32 0.0, %v3836
    %v3838 = vpop.f32.mrb[0].mxu0
    %v3839 = vpop.f32.mrb[0].mxu0
    %v3840 = vpop.f32.mrb[0].mxu0
    %3841 = vdwg.mxu0
    %v3842 = vsel %vm3276, %v3837, -inf
    %3843 = vmax.xlane.f32.xlu0 %v3842
    %v3844 = vpop.xlane.xlu0 %3843
    %v3845 = vsub.f32 %v3837, %v3844
    %v3846 = vmul.f32 %v3845, 1.442695
    %v3847 = vpow.pop %v3846
    %v3848 = vsel %vm3276, %v3847, 0.0
    %3849 = vadd.xlane.f32.xlu0 %v3848
    %v3850 = vpop.xlane.xlu0 %3849
    %v3851 = vrcp.pop %v3850
    %v3852 = vmul.f32 %v3847, %v3851
    %v3853 = vpack.c.bf16 %v3852, %v3852
    %3855 = vrot.lane.b32.xlu0 %v3684, 96
    %v3856 = vpop.permute.xlu0 %3855
    %v3858 = vsel %vm806, %v3853, 0
    %v3861 = vsel %vm822, %v3856, 0
    %3863 = vmatprep.subr.bf16.mxu0 0
    %3864 = vmatpush1.bf16.msra.mxu0 %v3861
    %3865 = vmatprep.subr.bf16.mxu0 0
    %3866 = vmatpush1.bf16.msra.mxu0 0
    %3867 = vmatprep.subr.bf16.mxu0 0
    %3868 = vmatpush1.bf16.msra.mxu0 0
    %3869 = vmatprep.subr.bf16.mxu0 0
    %3870 = vmatpush1.bf16.msra.mxu0 0
    %3871 = vmatprep.subr.bf16.mxu0 0
    %3872 = vmatpush1.bf16.msra.mxu0 0
    %3873 = vmatprep.subr.bf16.mxu0 0
    %3874 = vmatpush1.bf16.msra.mxu0 0
    %3875 = vmatprep.subr.bf16.mxu0 0
    %3876 = vmatpush1.bf16.msra.mxu0 0
    %3877 = vmatprep.subr.bf16.mxu0 0
    %3878 = vmatpush1.bf16.msra.mxu0 0
    %3879 = vmatprep.subr.bf16.mxu0 0
    %3880 = vmatpush1.bf16.msra.mxu0 0
    %3881 = vmatprep.subr.bf16.mxu0 0
    %3882 = vmatpush1.bf16.msra.mxu0 0
    %3883 = vmatprep.subr.bf16.mxu0 0
    %3884 = vmatpush1.bf16.msra.mxu0 0
    %3885 = vmatprep.subr.bf16.mxu0 0
    %3886 = vmatpush1.bf16.msra.mxu0 0
    %3887 = vmatprep.subr.bf16.mxu0 0
    %3888 = vmatpush1.bf16.msra.mxu0 0
    %3889 = vmatprep.subr.bf16.mxu0 0
    %3890 = vmatpush1.bf16.msra.mxu0 0
    %3891 = vmatprep.subr.bf16.mxu0 0
    %3892 = vmatpush1.bf16.msra.mxu0 0
    %3893 = vmatprep.subr.bf16.mxu0 0
    %3894 = vmatpush1.bf16.msra.mxu0 0
    %3895 = vmatprep.mubr.bf16.mxu0 0
    %3896 = vmatmul.mubr.bf16.gmra.mrb[0].mxu0 %v3858
    %v3897 = vpop.f32.mrb[0].mxu0
    %v3898 = vadd.f32 0.0, %v3897
    %v3899 = vpop.f32.mrb[0].mxu0
    %v3900 = vpop.f32.mrb[0].mxu0
    %v3901 = vpop.f32.mrb[0].mxu0
    %3902 = vdwg.mxu0
    %3903 = vrot.lane.b32.xlu0 %v3685, 64
    %v3904 = vpop.permute.xlu0 %3903
    %3905 = vrot.lane.b32.xlu0 %v3683, 64
    %v3906 = vpop.permute.xlu0 %3905
    %v3908 = vsel %vm759, %v3904, 0
    %v3911 = vsel %vm759, %v3906, 0
    %3913 = vmatprep.subr.bf16.mxu0 0
    %3914 = vmatpush1.bf16.xpose.msra.mxu0 %v3911
    %3915 = vmatprep.subr.bf16.mxu0 0
    %3916 = vmatpush1.bf16.xpose.msra.mxu0 0
    %3917 = vmatprep.subr.bf16.mxu0 0
    %3918 = vmatpush1.bf16.xpose.msra.mxu0 0
    %3919 = vmatprep.subr.bf16.mxu0 0
    %3920 = vmatpush1.bf16.xpose.msra.mxu0 0
    %3921 = vmatprep.subr.bf16.mxu0 0
    %3922 = vmatpush1.bf16.xpose.msra.mxu0 0
    %3923 = vmatprep.subr.bf16.mxu0 0
    %3924 = vmatpush1.bf16.xpose.msra.mxu0 0
    %3925 = vmatprep.subr.bf16.mxu0 0
    %3926 = vmatpush1.bf16.xpose.msra.mxu0 0
    %3927 = vmatprep.subr.bf16.mxu0 0
    %3928 = vmatpush1.bf16.xpose.msra.mxu0 0
    %3929 = vmatprep.subr.bf16.mxu0 0
    %3930 = vmatpush1.bf16.xpose.msra.mxu0 0
    %3931 = vmatprep.subr.bf16.mxu0 0
    %3932 = vmatpush1.bf16.xpose.msra.mxu0 0
    %3933 = vmatprep.subr.bf16.mxu0 0
    %3934 = vmatpush1.bf16.xpose.msra.mxu0 0
    %3935 = vmatprep.subr.bf16.mxu0 0
    %3936 = vmatpush1.bf16.xpose.msra.mxu0 0
    %3937 = vmatprep.subr.bf16.mxu0 0
    %3938 = vmatpush1.bf16.xpose.msra.mxu0 0
    %3939 = vmatprep.subr.bf16.mxu0 0
    %3940 = vmatpush1.bf16.xpose.msra.mxu0 0
    %3941 = vmatprep.subr.bf16.mxu0 0
    %3942 = vmatpush1.bf16.xpose.msra.mxu0 0
    %3943 = vmatprep.subr.bf16.mxu0 0
    %3944 = vmatpush1.bf16.xpose.msra.mxu0 0
    %3945 = vmatprep.mubr.bf16.mxu0 0
    %3946 = vmatmul.mubr.bf16.gmra.mrb[0].mxu0 %v3908
    %v3947 = vpop.f32.mrb[0].mxu0
    %v3948 = vadd.f32 0.0, %v3947
    %v3949 = vpop.f32.mrb[0].mxu0
    %v3950 = vpop.f32.mrb[0].mxu0
    %v3951 = vpop.f32.mrb[0].mxu0
    %3952 = vdwg.mxu0
    %v3953 = vsel %vm3276, %v3948, -inf
    %3954 = vmax.xlane.f32.xlu0 %v3953
    %v3955 = vpop.xlane.xlu0 %3954
    %v3956 = vsub.f32 %v3948, %v3955
    %v3957 = vmul.f32 %v3956, 1.442695
    %v3958 = vpow.pop %v3957
    %v3959 = vsel %vm3276, %v3958, 0.0
    %3960 = vadd.xlane.f32.xlu0 %v3959
    %v3961 = vpop.xlane.xlu0 %3960
    %v3962 = vrcp.pop %v3961
    %v3963 = vmul.f32 %v3958, %v3962
    %v3964 = vpack.c.bf16 %v3963, %v3963
    %3965 = vrot.lane.b32.xlu0 %v3684, 64
    %v3966 = vpop.permute.xlu0 %3965
    %v3968 = vsel %vm806, %v3964, 0
    %v3971 = vsel %vm822, %v3966, 0
    %3973 = vmatprep.subr.bf16.mxu0 0
    %3974 = vmatpush1.bf16.msra.mxu0 %v3971
    %3975 = vmatprep.subr.bf16.mxu0 0
    %3976 = vmatpush1.bf16.msra.mxu0 0
    %3977 = vmatprep.subr.bf16.mxu0 0
    %3978 = vmatpush1.bf16.msra.mxu0 0
    %3979 = vmatprep.subr.bf16.mxu0 0
    %3980 = vmatpush1.bf16.msra.mxu0 0
    %3981 = vmatprep.subr.bf16.mxu0 0
    %3982 = vmatpush1.bf16.msra.mxu0 0
    %3983 = vmatprep.subr.bf16.mxu0 0
    %3984 = vmatpush1.bf16.msra.mxu0 0
    %3985 = vmatprep.subr.bf16.mxu0 0
    %3986 = vmatpush1.bf16.msra.mxu0 0
    %3987 = vmatprep.subr.bf16.mxu0 0
    %3988 = vmatpush1.bf16.msra.mxu0 0
    %3989 = vmatprep.subr.bf16.mxu0 0
    %3990 = vmatpush1.bf16.msra.mxu0 0
    %3991 = vmatprep.subr.bf16.mxu0 0
    %3992 = vmatpush1.bf16.msra.mxu0 0
    %3993 = vmatprep.subr.bf16.mxu0 0
    %3994 = vmatpush1.bf16.msra.mxu0 0
    %3995 = vmatprep.subr.bf16.mxu0 0
    %3996 = vmatpush1.bf16.msra.mxu0 0
    %3997 = vmatprep.subr.bf16.mxu0 0
    %3998 = vmatpush1.bf16.msra.mxu0 0
    %3999 = vmatprep.subr.bf16.mxu0 0
    %4000 = vmatpush1.bf16.msra.mxu0 0
    %4001 = vmatprep.subr.bf16.mxu0 0
    %4002 = vmatpush1.bf16.msra.mxu0 0
    %4003 = vmatprep.subr.bf16.mxu0 0
    %4004 = vmatpush1.bf16.msra.mxu0 0
    %4005 = vmatprep.mubr.bf16.mxu0 0
    %4006 = vmatmul.mubr.bf16.gmra.mrb[0].mxu0 %v3968
    %v4007 = vpop.f32.mrb[0].mxu0
    %v4008 = vadd.f32 0.0, %v4007
    %v4009 = vpop.f32.mrb[0].mxu0
    %v4010 = vpop.f32.mrb[0].mxu0
    %v4011 = vpop.f32.mrb[0].mxu0
    %4012 = vdwg.mxu0
    %4013 = vrot.lane.b32.xlu0 %v3685, 32
    %v4014 = vpop.permute.xlu0 %4013
    %4015 = vrot.lane.b32.xlu0 %v3683, 32
    %v4016 = vpop.permute.xlu0 %4015
    %v4018 = vsel %vm759, %v4014, 0
    %v4021 = vsel %vm759, %v4016, 0
    %4023 = vmatprep.subr.bf16.mxu0 0
    %4024 = vmatpush1.bf16.xpose.msra.mxu0 %v4021
    %4025 = vmatprep.subr.bf16.mxu0 0
    %4026 = vmatpush1.bf16.xpose.msra.mxu0 0
    %4027 = vmatprep.subr.bf16.mxu0 0
    %4028 = vmatpush1.bf16.xpose.msra.mxu0 0
    %4029 = vmatprep.subr.bf16.mxu0 0
    %4030 = vmatpush1.bf16.xpose.msra.mxu0 0
    %4031 = vmatprep.subr.bf16.mxu0 0
    %4032 = vmatpush1.bf16.xpose.msra.mxu0 0
    %4033 = vmatprep.subr.bf16.mxu0 0
    %4034 = vmatpush1.bf16.xpose.msra.mxu0 0
    %4035 = vmatprep.subr.bf16.mxu0 0
    %4036 = vmatpush1.bf16.xpose.msra.mxu0 0
    %4037 = vmatprep.subr.bf16.mxu0 0
    %4038 = vmatpush1.bf16.xpose.msra.mxu0 0
    %4039 = vmatprep.subr.bf16.mxu0 0
    %4040 = vmatpush1.bf16.xpose.msra.mxu0 0
    %4041 = vmatprep.subr.bf16.mxu0 0
    %4042 = vmatpush1.bf16.xpose.msra.mxu0 0
    %4043 = vmatprep.subr.bf16.mxu0 0
    %4044 = vmatpush1.bf16.xpose.msra.mxu0 0
    %4045 = vmatprep.subr.bf16.mxu0 0
    %4046 = vmatpush1.bf16.xpose.msra.mxu0 0
    %4047 = vmatprep.subr.bf16.mxu0 0
    %4048 = vmatpush1.bf16.xpose.msra.mxu0 0
    %4049 = vmatprep.subr.bf16.mxu0 0
    %4050 = vmatpush1.bf16.xpose.msra.mxu0 0
    %4051 = vmatprep.subr.bf16.mxu0 0
    %4052 = vmatpush1.bf16.xpose.msra.mxu0 0
    %4053 = vmatprep.subr.bf16.mxu0 0
    %4054 = vmatpush1.bf16.xpose.msra.mxu0 0
    %4055 = vmatprep.mubr.bf16.mxu0 0
    %4056 = vmatmul.mubr.bf16.gmra.mrb[0].mxu0 %v4018
    %v4057 = vpop.f32.mrb[0].mxu0
    %v4058 = vadd.f32 0.0, %v4057
    %v4059 = vpop.f32.mrb[0].mxu0
    %v4060 = vpop.f32.mrb[0].mxu0
    %v4061 = vpop.f32.mrb[0].mxu0
    %4062 = vdwg.mxu0
    %v4063 = vsel %vm3276, %v4058, -inf
    %4064 = vmax.xlane.f32.xlu0 %v4063
    %v4065 = vpop.xlane.xlu0 %4064
    %v4066 = vsub.f32 %v4058, %v4065
    %v4067 = vmul.f32 %v4066, 1.442695
    %v4068 = vpow.pop %v4067
    %v4069 = vsel %vm3276, %v4068, 0.0
    %4070 = vadd.xlane.f32.xlu0 %v4069
    %v4071 = vpop.xlane.xlu0 %4070
    %v4072 = vrcp.pop %v4071
    %v4073 = vmul.f32 %v4068, %v4072
    %v4074 = vpack.c.bf16 %v4073, %v4073
    %4075 = vrot.lane.b32.xlu0 %v3684, 32
    %v4076 = vpop.permute.xlu0 %4075
    %v4078 = vsel %vm806, %v4074, 0
    %v4081 = vsel %vm822, %v4076, 0
    %4083 = vmatprep.subr.bf16.mxu0 0
    %4084 = vmatpush1.bf16.msra.mxu0 %v4081
    %4085 = vmatprep.subr.bf16.mxu0 0
    %4086 = vmatpush1.bf16.msra.mxu0 0
    %4087 = vmatprep.subr.bf16.mxu0 0
    %4088 = vmatpush1.bf16.msra.mxu0 0
    %4089 = vmatprep.subr.bf16.mxu0 0
    %4090 = vmatpush1.bf16.msra.mxu0 0
    %4091 = vmatprep.subr.bf16.mxu0 0
    %4092 = vmatpush1.bf16.msra.mxu0 0
    %4093 = vmatprep.subr.bf16.mxu0 0
    %4094 = vmatpush1.bf16.msra.mxu0 0
    %4095 = vmatprep.subr.bf16.mxu0 0
    %4096 = vmatpush1.bf16.msra.mxu0 0
    %4097 = vmatprep.subr.bf16.mxu0 0
    %4098 = vmatpush1.bf16.msra.mxu0 0
    %4099 = vmatprep.subr.bf16.mxu0 0
    %4100 = vmatpush1.bf16.msra.mxu0 0
    %4101 = vmatprep.subr.bf16.mxu0 0
    %4102 = vmatpush1.bf16.msra.mxu0 0
    %4103 = vmatprep.subr.bf16.mxu0 0
    %4104 = vmatpush1.bf16.msra.mxu0 0
    %4105 = vmatprep.subr.bf16.mxu0 0
    %4106 = vmatpush1.bf16.msra.mxu0 0
    %4107 = vmatprep.subr.bf16.mxu0 0
    %4108 = vmatpush1.bf16.msra.mxu0 0
    %4109 = vmatprep.subr.bf16.mxu0 0
    %4110 = vmatpush1.bf16.msra.mxu0 0
    %4111 = vmatprep.subr.bf16.mxu0 0
    %4112 = vmatpush1.bf16.msra.mxu0 0
    %4113 = vmatprep.subr.bf16.mxu0 0
    %4114 = vmatpush1.bf16.msra.mxu0 0
    %4115 = vmatprep.mubr.bf16.mxu0 0
    %4116 = vmatmul.mubr.bf16.gmra.mrb[0].mxu0 %v4078
    %v4117 = vpop.f32.mrb[0].mxu0
    %v4118 = vadd.f32 0.0, %v4117
    %v4119 = vpop.f32.mrb[0].mxu0
    %v4120 = vpop.f32.mrb[0].mxu0
    %v4121 = vpop.f32.mrb[0].mxu0
    %4122 = vdwg.mxu0
    %4124 = vrot.lane.b32.xlu0 %v3898, 32
    %v4125 = vpop.permute.xlu0 %4124
    %4128 = vrot.lane.b32.xlu0 %v4008, 64
    %v4129 = vpop.permute.xlu0 %4128
    %4132 = vrot.lane.b32.xlu0 %v4118, 96
    %v4133 = vpop.permute.xlu0 %4132
    %v4135 = vsel %vm759, %v3786, %v4125
    %v4136 = vsel %vm1212, %v4135, %v4129
    %v4137 = vsel %vm1214, %v4136, %v4133
    %v4139 = vrot.slane %v4137, 7
    %v4141 = vsel %vm2961, %v3682, %v4139
    %v4142 = vld [vmem:[#allocation25] sm:$0xf]
    %v4143 = vld [vmem:[#allocation25 + $0x4] sm:$0xf]
    %v4144 = vld [vmem:[#allocation25 + $0x8] sm:$0xf]
    %v4145 = vld [vmem:[#allocation25 + $0xc] sm:$0xf]
    %v4146 = vld [vmem:[#allocation25 + $0x10] sm:$0xf]
    %v4147 = vld [vmem:[#allocation25 + $0x14] sm:$0xf]
    %v4148 = vld [vmem:[#allocation25 + $0x18] sm:$0xf]
    %v4149 = vld [vmem:[#allocation25 + $0x1c] sm:$0xf]
    %v4150 = vld [vmem:[#allocation25 + $0x20] sm:$0xf]
    %v4151 = vld [vmem:[#allocation25 + $0x24] sm:$0xf]
    %v4152 = vld [vmem:[#allocation25 + $0x28] sm:$0xf]
    %v4153 = vld [vmem:[#allocation25 + $0x2c] sm:$0xf]
    %v4154 = vld [vmem:[#allocation25 + $0x30] sm:$0xf]
    %v4155 = vld [vmem:[#allocation25 + $0x34] sm:$0xf]
    %v4156 = vld [vmem:[#allocation25 + $0x38] sm:$0xf]
    %v4157 = vld [vmem:[#allocation25 + $0x3c] sm:$0xf]
    %v4158 = vpack.c.bf16 %v4141, %v4141
    %v4159 = vld [vmem:[#allocation27] sm:$0x1]
    %v4161 = vlaneseq
    %v4162 = vshrl.u32 %v4161, 7
    %v4163 = vsub.s32 0, %v4162
    %v4164 = vrot.slane %v4159, %v4163
    %v4182 = vunpack.c.l.b16 %v4142
    %v4183 = vunpack.c.l.b16 %v4143
    %v4184 = vunpack.c.l.b16 %v4144
    %v4185 = vunpack.c.l.b16 %v4145
    %v4186 = vunpack.c.l.b16 %v4146
    %v4187 = vunpack.c.l.b16 %v4147
    %v4188 = vunpack.c.l.b16 %v4148
    %v4189 = vunpack.c.l.b16 %v4149
    %v4190 = vunpack.c.l.b16 %v4150
    %v4191 = vunpack.c.l.b16 %v4151
    %v4192 = vunpack.c.l.b16 %v4152
    %v4193 = vunpack.c.l.b16 %v4153
    %v4194 = vunpack.c.l.b16 %v4154
    %v4195 = vunpack.c.l.b16 %v4155
    %v4196 = vunpack.c.l.b16 %v4156
    %v4197 = vunpack.c.l.b16 %v4157
    %v4198 = vpack.c.b16 %v4183, %v4182
    %v4199 = vpack.c.b16 %v4185, %v4184
    %v4200 = vpack.c.b16 %v4187, %v4186
    %v4201 = vpack.c.b16 %v4189, %v4188
    %v4202 = vpack.c.b16 %v4191, %v4190
    %v4203 = vpack.c.b16 %v4193, %v4192
    %v4204 = vpack.c.b16 %v4195, %v4194
    %v4205 = vpack.c.b16 %v4197, %v4196
    %4214 = vmatprep.subr.bf16.mxu0 0
    %4215 = vmatpush1.bf16.msra.mxu0 %v4198
    %4216 = vmatprep.subr.bf16.mxu0 0
    %4217 = vmatpush1.bf16.msra.mxu0 %v4199
    %4218 = vmatprep.subr.bf16.mxu0 0
    %4219 = vmatpush1.bf16.msra.mxu0 %v4200
    %4220 = vmatprep.subr.bf16.mxu0 0
    %4221 = vmatpush1.bf16.msra.mxu0 %v4201
    %4222 = vmatprep.subr.bf16.mxu0 0
    %4223 = vmatpush1.bf16.msra.mxu0 %v4202
    %4224 = vmatprep.subr.bf16.mxu0 0
    %4225 = vmatpush1.bf16.msra.mxu0 %v4203
    %4226 = vmatprep.subr.bf16.mxu0 0
    %4227 = vmatpush1.bf16.msra.mxu0 %v4204
    %4228 = vmatprep.subr.bf16.mxu0 0
    %4229 = vmatpush1.bf16.msra.mxu0 %v4205
    %4230 = vmatprep.subr.bf16.mxu0 0
    %4231 = vmatpush1.bf16.msra.mxu0 0
    %4232 = vmatprep.subr.bf16.mxu0 0
    %4233 = vmatpush1.bf16.msra.mxu0 0
    %4234 = vmatprep.subr.bf16.mxu0 0
    %4235 = vmatpush1.bf16.msra.mxu0 0
    %4236 = vmatprep.subr.bf16.mxu0 0
    %4237 = vmatpush1.bf16.msra.mxu0 0
    %4238 = vmatprep.subr.bf16.mxu0 0
    %4239 = vmatpush1.bf16.msra.mxu0 0
    %4240 = vmatprep.subr.bf16.mxu0 0
    %4241 = vmatpush1.bf16.msra.mxu0 0
    %4242 = vmatprep.subr.bf16.mxu0 0
    %4243 = vmatpush1.bf16.msra.mxu0 0
    %4244 = vmatprep.subr.bf16.mxu0 0
    %4245 = vmatpush1.bf16.msra.mxu0 0
    %4246 = vmatprep.mubr.bf16.mxu0 0
    %4247 = vmatmul.mubr.bf16.gmra.mrb[0].mxu0 %v4158
    %v4248 = vpop.f32.mrb[0].mxu0
    %v4249 = vadd.f32 %v4164, %v4248
    %v4250 = vpop.f32.mrb[0].mxu0
    %v4251 = vpop.f32.mrb[0].mxu0
    %v4252 = vpop.f32.mrb[0].mxu0
    %4253 = vdwg.mxu0
    %v4254 = vadd.f32 %v2962, %v4249
    %v4255 = vld [vmem:[#allocation28] sm:$0x1]
    %v4256 = vld [vmem:[#allocation30] sm:$0x1]
    %vm4257 = vcmask 1041408
    %v4258 = vsel %vm4257, %v4254, 0.0
    %4259 = vadd.xlane.f32.xlu0 %v4258
    %v4260 = vpop.xlane.xlu0 %4259
    %v4261 = vmul.f32 %v4260, %v1792
    %v4262 = vsub.f32 %v4254, %v4261
    %v4263 = vmul.f32 %v4262, %v4262
    %v4264 = vsel %vm4257, %v4263, 0.0
    %4265 = vadd.xlane.f32.xlu0 %v4264
    %v4266 = vpop.xlane.xlu0 %4265
    %v4267 = vmul.f32 %v4266, %v1792
    %v4268 = vadd.f32 %v4267, 1e-05
    %v4269 = vrsqrt.pop %v4268
    %v4270 = vmul.f32 %v4262, %v4269
    %v4272 = vlaneseq
    %v4273 = vshrl.u32 %v4272, 7
    %v4274 = vsub.s32 0, %v4273
    %v4275 = vrot.slane %v4255, %v4274
    %v4277 = vmul.f32 %v4270, %v4275
    %v4279 = vlaneseq
    %v4280 = vshrl.u32 %v4279, 7
    %v4281 = vsub.s32 0, %v4280
    %v4282 = vrot.slane %v4256, %v4281
    %v4284 = vadd.f32 %v4277, %v4282
    %s4285 = sshll.u32 %s1828, 4
    %4286 = dma.done %s379, %s4285
    %s4287 = sshll.u32 %s1832, 4
    %4288 = dma.done %s414, %s4287
    %v4289 = vpack.c.bf16 %v4284, %v4284
    %v4290 = vld [vmem:[#allocation4] sm:$0xff]
    %v4291 = vld [vmem:[#allocation4 + $0x8] sm:$0xff]
    %v4292 = vld [vmem:[#allocation4 + $0x10] sm:$0xff]
    %v4293 = vld [vmem:[#allocation4 + $0x18] sm:$0xff]
    %v4294 = vld [vmem:[#allocation4 + $0x80] sm:$0xff]
    %v4295 = vld [vmem:[#allocation4 + $0x88] sm:$0xff]
    %v4296 = vld [vmem:[#allocation4 + $0x90] sm:$0xff]
    %v4297 = vld [vmem:[#allocation4 + $0x98] sm:$0xff]
    %v4298 = vld [vmem:[#allocation4 + $0x100] sm:$0xff]
    %v4299 = vld [vmem:[#allocation4 + $0x108] sm:$0xff]
    %v4300 = vld [vmem:[#allocation4 + $0x110] sm:$0xff]
    %v4301 = vld [vmem:[#allocation4 + $0x118] sm:$0xff]
    %v4302 = vld [vmem:[#allocation4 + $0x180] sm:$0xff]
    %v4303 = vld [vmem:[#allocation4 + $0x188] sm:$0xff]
    %v4304 = vld [vmem:[#allocation4 + $0x190] sm:$0xff]
    %v4305 = vld [vmem:[#allocation4 + $0x198] sm:$0xff]
    %v4306 = vld [vmem:[#allocation4 + $0x200] sm:$0xff]
    %v4307 = vld [vmem:[#allocation4 + $0x208] sm:$0xff]
    %v4308 = vld [vmem:[#allocation4 + $0x210] sm:$0xff]
    %v4309 = vld [vmem:[#allocation4 + $0x218] sm:$0xff]
    %v4310 = vld [vmem:[#allocation4 + $0x280] sm:$0xff]
    %v4311 = vld [vmem:[#allocation4 + $0x288] sm:$0xff]
    %v4312 = vld [vmem:[#allocation4 + $0x290] sm:$0xff]
    %v4313 = vld [vmem:[#allocation4 + $0x298] sm:$0xff]
    %v4314 = vld [vmem:[#allocation4 + $0x300] sm:$0xff]
    %v4315 = vld [vmem:[#allocation4 + $0x308] sm:$0xff]
    %v4316 = vld [vmem:[#allocation4 + $0x310] sm:$0xff]
    %v4317 = vld [vmem:[#allocation4 + $0x318] sm:$0xff]
    %v4318 = vld [vmem:[#allocation4 + $0x380] sm:$0xff]
    %v4319 = vld [vmem:[#allocation4 + $0x388] sm:$0xff]
    %v4320 = vld [vmem:[#allocation4 + $0x390] sm:$0xff]
    %v4321 = vld [vmem:[#allocation4 + $0x398] sm:$0xff]
    %v4322 = vld [vmem:[%s49] sm:$0xf]
    %v4324 = vlaneseq
    %v4325 = vshrl.u32 %v4324, 7
    %v4326 = vsub.s32 0, %v4325
    %v4327 = vrot.slane %v4322, %v4326
    %v4328 = vlaneseq
    %v4329 = vshrl.u32 %v4328, 7
    %v4330 = vsub.s32 1, %v4329
    %v4331 = vrot.slane %v4322, %v4330
    %v4332 = vlaneseq
    %v4333 = vshrl.u32 %v4332, 7
    %v4334 = vsub.s32 2, %v4333
    %v4335 = vrot.slane %v4322, %v4334
    %v4336 = vlaneseq
    %v4337 = vshrl.u32 %v4336, 7
    %v4338 = vsub.s32 3, %v4337
    %v4339 = vrot.slane %v4322, %v4338
    %4344 = vmatprep.subr.bf16.mxu0 %v4291
    %4345 = vmatpush1.bf16.msra.mxu0 %v4290
    %4346 = vmatprep.subr.bf16.mxu0 %v4295
    %4347 = vmatpush1.bf16.msra.mxu0 %v4294
    %4348 = vmatprep.subr.bf16.mxu0 %v4299
    %4349 = vmatpush1.bf16.msra.mxu0 %v4298
    %4350 = vmatprep.subr.bf16.mxu0 %v4303
    %4351 = vmatpush1.bf16.msra.mxu0 %v4302
    %4352 = vmatprep.subr.bf16.mxu0 %v4307
    %4353 = vmatpush1.bf16.msra.mxu0 %v4306
    %4354 = vmatprep.subr.bf16.mxu0 %v4311
    %4355 = vmatpush1.bf16.msra.mxu0 %v4310
    %4356 = vmatprep.subr.bf16.mxu0 %v4315
    %4357 = vmatpush1.bf16.msra.mxu0 %v4314
    %4358 = vmatprep.subr.bf16.mxu0 %v4319
    %4359 = vmatpush1.bf16.msra.mxu0 %v4318
    %4360 = vmatprep.subr.bf16.mxu0 0
    %4361 = vmatpush1.bf16.msra.mxu0 0
    %4362 = vmatprep.subr.bf16.mxu0 0
    %4363 = vmatpush1.bf16.msra.mxu0 0
    %4364 = vmatprep.subr.bf16.mxu0 0
    %4365 = vmatpush1.bf16.msra.mxu0 0
    %4366 = vmatprep.subr.bf16.mxu0 0
    %4367 = vmatpush1.bf16.msra.mxu0 0
    %4368 = vmatprep.subr.bf16.mxu0 0
    %4369 = vmatpush1.bf16.msra.mxu0 0
    %4370 = vmatprep.subr.bf16.mxu0 0
    %4371 = vmatpush1.bf16.msra.mxu0 0
    %4372 = vmatprep.subr.bf16.mxu0 0
    %4373 = vmatpush1.bf16.msra.mxu0 0
    %4374 = vmatprep.subr.bf16.mxu0 0
    %4375 = vmatpush1.bf16.msra.mxu0 0
    %4376 = vmatprep.mubr.bf16.mxu0 0
    %4377 = vmatmul.mubr.bf16.gmra.mrb[0].mxu0 %v4289
    %v4378 = vpop.f32.mrb[0].mxu0
    %v4379 = vadd.f32 %v4327, %v4378
    %v4380 = vpop.f32.mrb[0].mxu0
    %v4381 = vadd.f32 %v4331, %v4380
    %v4382 = vpop.f32.mrb[0].mxu0
    %v4383 = vpop.f32.mrb[0].mxu0
    %4384 = vdwg.mxu0
    %4385 = vmatprep.subr.bf16.mxu0 %v4293
    %4386 = vmatpush1.bf16.msra.mxu0 %v4292
    %4387 = vmatprep.subr.bf16.mxu0 %v4297
    %4388 = vmatpush1.bf16.msra.mxu0 %v4296
    %4389 = vmatprep.subr.bf16.mxu0 %v4301
    %4390 = vmatpush1.bf16.msra.mxu0 %v4300
    %4391 = vmatprep.subr.bf16.mxu0 %v4305
    %4392 = vmatpush1.bf16.msra.mxu0 %v4304
    %4393 = vmatprep.subr.bf16.mxu0 %v4309
    %4394 = vmatpush1.bf16.msra.mxu0 %v4308
    %4395 = vmatprep.subr.bf16.mxu0 %v4313
    %4396 = vmatpush1.bf16.msra.mxu0 %v4312
    %4397 = vmatprep.subr.bf16.mxu0 %v4317
    %4398 = vmatpush1.bf16.msra.mxu0 %v4316
    %4399 = vmatprep.subr.bf16.mxu0 %v4321
    %4400 = vmatpush1.bf16.msra.mxu0 %v4320
    %4401 = vmatprep.subr.bf16.mxu0 0
    %4402 = vmatpush1.bf16.msra.mxu0 0
    %4403 = vmatprep.subr.bf16.mxu0 0
    %4404 = vmatpush1.bf16.msra.mxu0 0
    %4405 = vmatprep.subr.bf16.mxu0 0
    %4406 = vmatpush1.bf16.msra.mxu0 0
    %4407 = vmatprep.subr.bf16.mxu0 0
    %4408 = vmatpush1.bf16.msra.mxu0 0
    %4409 = vmatprep.subr.bf16.mxu0 0
    %4410 = vmatpush1.bf16.msra.mxu0 0
    %4411 = vmatprep.subr.bf16.mxu0 0
    %4412 = vmatpush1.bf16.msra.mxu0 0
    %4413 = vmatprep.subr.bf16.mxu0 0
    %4414 = vmatpush1.bf16.msra.mxu0 0
    %4415 = vmatprep.subr.bf16.mxu0 0
    %4416 = vmatpush1.bf16.msra.mxu0 0
    %4417 = vmatprep.mubr.bf16.mxu0 0
    %4418 = vmatmul.mubr.bf16.gmra.mrb[0].mxu0 %v4289
    %v4419 = vpop.f32.mrb[0].mxu0
    %v4420 = vadd.f32 %v4335, %v4419
    %v4421 = vpop.f32.mrb[0].mxu0
    %v4422 = vadd.f32 %v4339, %v4421
    %v4423 = vpop.f32.mrb[0].mxu0
    %v4424 = vpop.f32.mrb[0].mxu0
    %4425 = vdwg.mxu0
    %v4426 = vmax.f32 %v4379, 0.0
    %v4427 = vmax.f32 %v4381, 0.0
    %v4428 = vmax.f32 %v4420, 0.0
    %v4429 = vmax.f32 %v4422, 0.0
    %v4430 = vpack.c.bf16 %v4426, %v4426
    %v4431 = vpack.c.bf16 %v4427, %v4427
    %v4432 = vpack.c.bf16 %v4428, %v4428
    %v4433 = vpack.c.bf16 %v4429, %v4429
    %v4434 = vld [vmem:[#allocation5] sm:$0xff]
    %v4435 = vld [vmem:[#allocation5 + $0x8] sm:$0xff]
    %v4436 = vld [vmem:[#allocation5 + $0x10] sm:$0xff]
    %v4437 = vld [vmem:[#allocation5 + $0x18] sm:$0xff]
    %v4438 = vld [vmem:[#allocation5 + $0x20] sm:$0xff]
    %v4439 = vld [vmem:[#allocation5 + $0x28] sm:$0xff]
    %v4440 = vld [vmem:[#allocation5 + $0x30] sm:$0xff]
    %v4441 = vld [vmem:[#allocation5 + $0x38] sm:$0xff]
    %v4442 = vld [vmem:[#allocation5 + $0x40] sm:$0xff]
    %v4443 = vld [vmem:[#allocation5 + $0x48] sm:$0xff]
    %v4444 = vld [vmem:[#allocation5 + $0x50] sm:$0xff]
    %v4445 = vld [vmem:[#allocation5 + $0x58] sm:$0xff]
    %v4446 = vld [vmem:[#allocation5 + $0x60] sm:$0xff]
    %v4447 = vld [vmem:[#allocation5 + $0x68] sm:$0xff]
    %v4448 = vld [vmem:[#allocation5 + $0x70] sm:$0xff]
    %v4449 = vld [vmem:[#allocation5 + $0x78] sm:$0xff]
    %v4450 = vld [vmem:[#allocation5 + $0x80] sm:$0xff]
    %v4451 = vld [vmem:[#allocation5 + $0x88] sm:$0xff]
    %v4452 = vld [vmem:[#allocation5 + $0x90] sm:$0xff]
    %v4453 = vld [vmem:[#allocation5 + $0x98] sm:$0xff]
    %v4454 = vld [vmem:[#allocation5 + $0xa0] sm:$0xff]
    %v4455 = vld [vmem:[#allocation5 + $0xa8] sm:$0xff]
    %v4456 = vld [vmem:[#allocation5 + $0xb0] sm:$0xff]
    %v4457 = vld [vmem:[#allocation5 + $0xb8] sm:$0xff]
    %v4458 = vld [vmem:[#allocation5 + $0xc0] sm:$0xff]
    %v4459 = vld [vmem:[#allocation5 + $0xc8] sm:$0xff]
    %v4460 = vld [vmem:[#allocation5 + $0xd0] sm:$0xff]
    %v4461 = vld [vmem:[#allocation5 + $0xd8] sm:$0xff]
    %v4462 = vld [vmem:[#allocation5 + $0xe0] sm:$0xff]
    %v4463 = vld [vmem:[#allocation5 + $0xe8] sm:$0xff]
    %v4464 = vld [vmem:[#allocation5 + $0xf0] sm:$0xff]
    %v4465 = vld [vmem:[#allocation5 + $0xf8] sm:$0xff]
    %v4466 = vld [vmem:[#allocation4 + $0x20] sm:$0xff]
    %v4467 = vld [vmem:[#allocation4 + $0x28] sm:$0xff]
    %v4468 = vld [vmem:[#allocation4 + $0x30] sm:$0xff]
    %v4469 = vld [vmem:[#allocation4 + $0x38] sm:$0xff]
    %v4470 = vld [vmem:[#allocation4 + $0xa0] sm:$0xff]
    %v4471 = vld [vmem:[#allocation4 + $0xa8] sm:$0xff]
    %v4472 = vld [vmem:[#allocation4 + $0xb0] sm:$0xff]
    %v4473 = vld [vmem:[#allocation4 + $0xb8] sm:$0xff]
    %v4474 = vld [vmem:[#allocation4 + $0x120] sm:$0xff]
    %v4475 = vld [vmem:[#allocation4 + $0x128] sm:$0xff]
    %v4476 = vld [vmem:[#allocation4 + $0x130] sm:$0xff]
    %v4477 = vld [vmem:[#allocation4 + $0x138] sm:$0xff]
    %v4478 = vld [vmem:[#allocation4 + $0x1a0] sm:$0xff]
    %v4479 = vld [vmem:[#allocation4 + $0x1a8] sm:$0xff]
    %v4480 = vld [vmem:[#allocation4 + $0x1b0] sm:$0xff]
    %v4481 = vld [vmem:[#allocation4 + $0x1b8] sm:$0xff]
    %v4482 = vld [vmem:[#allocation4 + $0x220] sm:$0xff]
    %v4483 = vld [vmem:[#allocation4 + $0x228] sm:$0xff]
    %v4484 = vld [vmem:[#allocation4 + $0x230] sm:$0xff]
    %v4485 = vld [vmem:[#allocation4 + $0x238] sm:$0xff]
    %v4486 = vld [vmem:[#allocation4 + $0x2a0] sm:$0xff]
    %v4487 = vld [vmem:[#allocation4 + $0x2a8] sm:$0xff]
    %v4488 = vld [vmem:[#allocation4 + $0x2b0] sm:$0xff]
    %v4489 = vld [vmem:[#allocation4 + $0x2b8] sm:$0xff]
    %v4490 = vld [vmem:[#allocation4 + $0x320] sm:$0xff]
    %v4491 = vld [vmem:[#allocation4 + $0x328] sm:$0xff]
    %v4492 = vld [vmem:[#allocation4 + $0x330] sm:$0xff]
    %v4493 = vld [vmem:[#allocation4 + $0x338] sm:$0xff]
    %v4494 = vld [vmem:[#allocation4 + $0x3a0] sm:$0xff]
    %v4495 = vld [vmem:[#allocation4 + $0x3a8] sm:$0xff]
    %v4496 = vld [vmem:[#allocation4 + $0x3b0] sm:$0xff]
    %v4497 = vld [vmem:[#allocation4 + $0x3b8] sm:$0xff]
    %v4498 = vld [vmem:[%s49 + $0x4] sm:$0xf]
    %v4500 = vlaneseq
    %v4501 = vshrl.u32 %v4500, 7
    %v4502 = vsub.s32 0, %v4501
    %v4503 = vrot.slane %v4498, %v4502
    %v4504 = vlaneseq
    %v4505 = vshrl.u32 %v4504, 7
    %v4506 = vsub.s32 1, %v4505
    %v4507 = vrot.slane %v4498, %v4506
    %v4508 = vlaneseq
    %v4509 = vshrl.u32 %v4508, 7
    %v4510 = vsub.s32 2, %v4509
    %v4511 = vrot.slane %v4498, %v4510
    %v4512 = vlaneseq
    %v4513 = vshrl.u32 %v4512, 7
    %v4514 = vsub.s32 3, %v4513
    %v4515 = vrot.slane %v4498, %v4514
    %4520 = vmatprep.subr.bf16.mxu0 %v4467
    %4521 = vmatpush1.bf16.msra.mxu0 %v4466
    %4522 = vmatprep.subr.bf16.mxu0 %v4471
    %4523 = vmatpush1.bf16.msra.mxu0 %v4470
    %4524 = vmatprep.subr.bf16.mxu0 %v4475
    %4525 = vmatpush1.bf16.msra.mxu0 %v4474
    %4526 = vmatprep.subr.bf16.mxu0 %v4479
    %4527 = vmatpush1.bf16.msra.mxu0 %v4478
    %4528 = vmatprep.subr.bf16.mxu0 %v4483
    %4529 = vmatpush1.bf16.msra.mxu0 %v4482
    %4530 = vmatprep.subr.bf16.mxu0 %v4487
    %4531 = vmatpush1.bf16.msra.mxu0 %v4486
    %4532 = vmatprep.subr.bf16.mxu0 %v4491
    %4533 = vmatpush1.bf16.msra.mxu0 %v4490
    %4534 = vmatprep.subr.bf16.mxu0 %v4495
    %4535 = vmatpush1.bf16.msra.mxu0 %v4494
    %4536 = vmatprep.subr.bf16.mxu0 0
    %4537 = vmatpush1.bf16.msra.mxu0 0
    %4538 = vmatprep.subr.bf16.mxu0 0
    %4539 = vmatpush1.bf16.msra.mxu0 0
    %4540 = vmatprep.subr.bf16.mxu0 0
    %4541 = vmatpush1.bf16.msra.mxu0 0
    %4542 = vmatprep.subr.bf16.mxu0 0
    %4543 = vmatpush1.bf16.msra.mxu0 0
    %4544 = vmatprep.subr.bf16.mxu0 0
    %4545 = vmatpush1.bf16.msra.mxu0 0
    %4546 = vmatprep.subr.bf16.mxu0 0
    %4547 = vmatpush1.bf16.msra.mxu0 0
    %4548 = vmatprep.subr.bf16.mxu0 0
    %4549 = vmatpush1.bf16.msra.mxu0 0
    %4550 = vmatprep.subr.bf16.mxu0 0
    %4551 = vmatpush1.bf16.msra.mxu0 0
    %4552 = vmatprep.mubr.bf16.mxu0 0
    %4553 = vmatmul.mubr.bf16.gmra.mrb[0].mxu0 %v4289
    %v4554 = vpop.f32.mrb[0].mxu0
    %v4555 = vadd.f32 %v4503, %v4554
    %v4556 = vpop.f32.mrb[0].mxu0
    %v4557 = vadd.f32 %v4507, %v4556
    %v4558 = vpop.f32.mrb[0].mxu0
    %v4559 = vpop.f32.mrb[0].mxu0
    %4560 = vdwg.mxu0
    %4561 = vmatprep.subr.bf16.mxu0 %v4469
    %4562 = vmatpush1.bf16.msra.mxu0 %v4468
    %4563 = vmatprep.subr.bf16.mxu0 %v4473
    %4564 = vmatpush1.bf16.msra.mxu0 %v4472
    %4565 = vmatprep.subr.bf16.mxu0 %v4477
    %4566 = vmatpush1.bf16.msra.mxu0 %v4476
    %4567 = vmatprep.subr.bf16.mxu0 %v4481
    %4568 = vmatpush1.bf16.msra.mxu0 %v4480
    %4569 = vmatprep.subr.bf16.mxu0 %v4485
    %4570 = vmatpush1.bf16.msra.mxu0 %v4484
    %4571 = vmatprep.subr.bf16.mxu0 %v4489
    %4572 = vmatpush1.bf16.msra.mxu0 %v4488
    %4573 = vmatprep.subr.bf16.mxu0 %v4493
    %4574 = vmatpush1.bf16.msra.mxu0 %v4492
    %4575 = vmatprep.subr.bf16.mxu0 %v4497
    %4576 = vmatpush1.bf16.msra.mxu0 %v4496
    %4577 = vmatprep.subr.bf16.mxu0 0
    %4578 = vmatpush1.bf16.msra.mxu0 0
    %4579 = vmatprep.subr.bf16.mxu0 0
    %4580 = vmatpush1.bf16.msra.mxu0 0
    %4581 = vmatprep.subr.bf16.mxu0 0
    %4582 = vmatpush1.bf16.msra.mxu0 0
    %4583 = vmatprep.subr.bf16.mxu0 0
    %4584 = vmatpush1.bf16.msra.mxu0 0
    %4585 = vmatprep.subr.bf16.mxu0 0
    %4586 = vmatpush1.bf16.msra.mxu0 0
    %4587 = vmatprep.subr.bf16.mxu0 0
    %4588 = vmatpush1.bf16.msra.mxu0 0
    %4589 = vmatprep.subr.bf16.mxu0 0
    %4590 = vmatpush1.bf16.msra.mxu0 0
    %4591 = vmatprep.subr.bf16.mxu0 0
    %4592 = vmatpush1.bf16.msra.mxu0 0
    %4593 = vmatprep.mubr.bf16.mxu0 0
    %4594 = vmatmul.mubr.bf16.gmra.mrb[0].mxu0 %v4289
    %v4595 = vpop.f32.mrb[0].mxu0
    %v4596 = vadd.f32 %v4511, %v4595
    %v4597 = vpop.f32.mrb[0].mxu0
    %v4598 = vadd.f32 %v4515, %v4597
    %v4599 = vpop.f32.mrb[0].mxu0
    %v4600 = vpop.f32.mrb[0].mxu0
    %4601 = vdwg.mxu0
    %v4602 = vmax.f32 %v4555, 0.0
    %v4603 = vmax.f32 %v4557, 0.0
    %v4604 = vmax.f32 %v4596, 0.0
    %v4605 = vmax.f32 %v4598, 0.0
    %v4606 = vpack.c.bf16 %v4602, %v4602
    %v4607 = vpack.c.bf16 %v4603, %v4603
    %v4608 = vpack.c.bf16 %v4604, %v4604
    %v4609 = vpack.c.bf16 %v4605, %v4605
    %v4610 = vld [vmem:[#allocation5 + $0x100] sm:$0xff]
    %v4611 = vld [vmem:[#allocation5 + $0x108] sm:$0xff]
    %v4612 = vld [vmem:[#allocation5 + $0x110] sm:$0xff]
    %v4613 = vld [vmem:[#allocation5 + $0x118] sm:$0xff]
    %v4614 = vld [vmem:[#allocation5 + $0x120] sm:$0xff]
    %v4615 = vld [vmem:[#allocation5 + $0x128] sm:$0xff]
    %v4616 = vld [vmem:[#allocation5 + $0x130] sm:$0xff]
    %v4617 = vld [vmem:[#allocation5 + $0x138] sm:$0xff]
    %v4618 = vld [vmem:[#allocation5 + $0x140] sm:$0xff]
    %v4619 = vld [vmem:[#allocation5 + $0x148] sm:$0xff]
    %v4620 = vld [vmem:[#allocation5 + $0x150] sm:$0xff]
    %v4621 = vld [vmem:[#allocation5 + $0x158] sm:$0xff]
    %v4622 = vld [vmem:[#allocation5 + $0x160] sm:$0xff]
    %v4623 = vld [vmem:[#allocation5 + $0x168] sm:$0xff]
    %v4624 = vld [vmem:[#allocation5 + $0x170] sm:$0xff]
    %v4625 = vld [vmem:[#allocation5 + $0x178] sm:$0xff]
    %v4626 = vld [vmem:[#allocation5 + $0x180] sm:$0xff]
    %v4627 = vld [vmem:[#allocation5 + $0x188] sm:$0xff]
    %v4628 = vld [vmem:[#allocation5 + $0x190] sm:$0xff]
    %v4629 = vld [vmem:[#allocation5 + $0x198] sm:$0xff]
    %v4630 = vld [vmem:[#allocation5 + $0x1a0] sm:$0xff]
    %v4631 = vld [vmem:[#allocation5 + $0x1a8] sm:$0xff]
    %v4632 = vld [vmem:[#allocation5 + $0x1b0] sm:$0xff]
    %v4633 = vld [vmem:[#allocation5 + $0x1b8] sm:$0xff]
    %v4634 = vld [vmem:[#allocation5 + $0x1c0] sm:$0xff]
    %v4635 = vld [vmem:[#allocation5 + $0x1c8] sm:$0xff]
    %v4636 = vld [vmem:[#allocation5 + $0x1d0] sm:$0xff]
    %v4637 = vld [vmem:[#allocation5 + $0x1d8] sm:$0xff]
    %v4638 = vld [vmem:[#allocation5 + $0x1e0] sm:$0xff]
    %v4639 = vld [vmem:[#allocation5 + $0x1e8] sm:$0xff]
    %v4640 = vld [vmem:[#allocation5 + $0x1f0] sm:$0xff]
    %v4641 = vld [vmem:[#allocation5 + $0x1f8] sm:$0xff]
    %4642 = vmatprep.subr.bf16.mxu0 0
    %4643 = vmatpush1.bf16.msra.mxu0 %v4610
    %4644 = vmatprep.subr.bf16.mxu0 0
    %4645 = vmatpush1.bf16.msra.mxu0 %v4611
    %4646 = vmatprep.subr.bf16.mxu0 0
    %4647 = vmatpush1.bf16.msra.mxu0 %v4612
    %4648 = vmatprep.subr.bf16.mxu0 0
    %4649 = vmatpush1.bf16.msra.mxu0 %v4613
    %4650 = vmatprep.subr.bf16.mxu0 0
    %4651 = vmatpush1.bf16.msra.mxu0 %v4614
    %4652 = vmatprep.subr.bf16.mxu0 0
    %4653 = vmatpush1.bf16.msra.mxu0 %v4615
    %4654 = vmatprep.subr.bf16.mxu0 0
    %4655 = vmatpush1.bf16.msra.mxu0 %v4616
    %4656 = vmatprep.subr.bf16.mxu0 0
    %4657 = vmatpush1.bf16.msra.mxu0 %v4617
    %4658 = vmatprep.subr.bf16.mxu0 0
    %4659 = vmatpush1.bf16.msra.mxu0 %v4618
    %4660 = vmatprep.subr.bf16.mxu0 0
    %4661 = vmatpush1.bf16.msra.mxu0 %v4619
    %4662 = vmatprep.subr.bf16.mxu0 0
    %4663 = vmatpush1.bf16.msra.mxu0 %v4620
    %4664 = vmatprep.subr.bf16.mxu0 0
    %4665 = vmatpush1.bf16.msra.mxu0 %v4621
    %4666 = vmatprep.subr.bf16.mxu0 0
    %4667 = vmatpush1.bf16.msra.mxu0 %v4622
    %4668 = vmatprep.subr.bf16.mxu0 0
    %4669 = vmatpush1.bf16.msra.mxu0 %v4623
    %4670 = vmatprep.subr.bf16.mxu0 0
    %4671 = vmatpush1.bf16.msra.mxu0 %v4624
    %4672 = vmatprep.subr.bf16.mxu0 0
    %4673 = vmatpush1.bf16.msra.mxu0 %v4625
    %4674 = vmatprep.mubr.bf16.mxu0 %v4607
    %4675 = vmatmul.mubr.bf16.gmra.mrb[0].mxu0 %v4606
    %v4676 = vpop.f32.mrb[0].mxu0
    %v4677 = vadd.f32 0.0, %v4676
    %v4678 = vpop.f32.mrb[0].mxu0
    %v4679 = vpop.f32.mrb[0].mxu0
    %v4680 = vpop.f32.mrb[0].mxu0
    %4681 = vdwg.mxu0
    %4682 = vmatprep.subr.bf16.mxu0 0
    %4683 = vmatpush1.bf16.msra.mxu0 %v4626
    %4684 = vmatprep.subr.bf16.mxu0 0
    %4685 = vmatpush1.bf16.msra.mxu0 %v4627
    %4686 = vmatprep.subr.bf16.mxu0 0
    %4687 = vmatpush1.bf16.msra.mxu0 %v4628
    %4688 = vmatprep.subr.bf16.mxu0 0
    %4689 = vmatpush1.bf16.msra.mxu0 %v4629
    %4690 = vmatprep.subr.bf16.mxu0 0
    %4691 = vmatpush1.bf16.msra.mxu0 %v4630
    %4692 = vmatprep.subr.bf16.mxu0 0
    %4693 = vmatpush1.bf16.msra.mxu0 %v4631
    %4694 = vmatprep.subr.bf16.mxu0 0
    %4695 = vmatpush1.bf16.msra.mxu0 %v4632
    %4696 = vmatprep.subr.bf16.mxu0 0
    %4697 = vmatpush1.bf16.msra.mxu0 %v4633
    %4698 = vmatprep.subr.bf16.mxu0 0
    %4699 = vmatpush1.bf16.msra.mxu0 %v4634
    %4700 = vmatprep.subr.bf16.mxu0 0
    %4701 = vmatpush1.bf16.msra.mxu0 %v4635
    %4702 = vmatprep.subr.bf16.mxu0 0
    %4703 = vmatpush1.bf16.msra.mxu0 %v4636
    %4704 = vmatprep.subr.bf16.mxu0 0
    %4705 = vmatpush1.bf16.msra.mxu0 %v4637
    %4706 = vmatprep.subr.bf16.mxu0 0
    %4707 = vmatpush1.bf16.msra.mxu0 %v4638
    %4708 = vmatprep.subr.bf16.mxu0 0
    %4709 = vmatpush1.bf16.msra.mxu0 %v4639
    %4710 = vmatprep.subr.bf16.mxu0 0
    %4711 = vmatpush1.bf16.msra.mxu0 %v4640
    %4712 = vmatprep.subr.bf16.mxu0 0
    %4713 = vmatpush1.bf16.msra.mxu0 %v4641
    %4714 = vmatprep.mubr.bf16.mxu0 %v4609
    %4715 = vmatmul.mubr.bf16.gmra.mrb[0].mxu0 %v4608
    %v4716 = vpop.f32.mrb[0].mxu0
    %v4717 = vadd.f32 %v4677, %v4716
    %v4718 = vpop.f32.mrb[0].mxu0
    %v4719 = vpop.f32.mrb[0].mxu0
    %v4720 = vpop.f32.mrb[0].mxu0
    %4721 = vdwg.mxu0
    %4722 = vmatprep.subr.bf16.mxu0 0
    %4723 = vmatpush1.bf16.msra.mxu0 %v4434
    %4724 = vmatprep.subr.bf16.mxu0 0
    %4725 = vmatpush1.bf16.msra.mxu0 %v4435
    %4726 = vmatprep.subr.bf16.mxu0 0
    %4727 = vmatpush1.bf16.msra.mxu0 %v4436
    %4728 = vmatprep.subr.bf16.mxu0 0
    %4729 = vmatpush1.bf16.msra.mxu0 %v4437
    %4730 = vmatprep.subr.bf16.mxu0 0
    %4731 = vmatpush1.bf16.msra.mxu0 %v4438
    %4732 = vmatprep.subr.bf16.mxu0 0
    %4733 = vmatpush1.bf16.msra.mxu0 %v4439
    %4734 = vmatprep.subr.bf16.mxu0 0
    %4735 = vmatpush1.bf16.msra.mxu0 %v4440
    %4736 = vmatprep.subr.bf16.mxu0 0
    %4737 = vmatpush1.bf16.msra.mxu0 %v4441
    %4738 = vmatprep.subr.bf16.mxu0 0
    %4739 = vmatpush1.bf16.msra.mxu0 %v4442
    %4740 = vmatprep.subr.bf16.mxu0 0
    %4741 = vmatpush1.bf16.msra.mxu0 %v4443
    %4742 = vmatprep.subr.bf16.mxu0 0
    %4743 = vmatpush1.bf16.msra.mxu0 %v4444
    %4744 = vmatprep.subr.bf16.mxu0 0
    %4745 = vmatpush1.bf16.msra.mxu0 %v4445
    %4746 = vmatprep.subr.bf16.mxu0 0
    %4747 = vmatpush1.bf16.msra.mxu0 %v4446
    %4748 = vmatprep.subr.bf16.mxu0 0
    %4749 = vmatpush1.bf16.msra.mxu0 %v4447
    %4750 = vmatprep.subr.bf16.mxu0 0
    %4751 = vmatpush1.bf16.msra.mxu0 %v4448
    %4752 = vmatprep.subr.bf16.mxu0 0
    %4753 = vmatpush1.bf16.msra.mxu0 %v4449
    %4754 = vmatprep.mubr.bf16.mxu0 %v4431
    %4755 = vmatmul.mubr.bf16.gmra.mrb[0].mxu0 %v4430
    %v4756 = vpop.f32.mrb[0].mxu0
    %v4757 = vadd.f32 %v4717, %v4756
    %v4758 = vpop.f32.mrb[0].mxu0
    %v4759 = vpop.f32.mrb[0].mxu0
    %v4760 = vpop.f32.mrb[0].mxu0
    %4761 = vdwg.mxu0
    %4762 = vmatprep.subr.bf16.mxu0 0
    %4763 = vmatpush1.bf16.msra.mxu0 %v4450
    %4764 = vmatprep.subr.bf16.mxu0 0
    %4765 = vmatpush1.bf16.msra.mxu0 %v4451
    %4766 = vmatprep.subr.bf16.mxu0 0
    %4767 = vmatpush1.bf16.msra.mxu0 %v4452
    %4768 = vmatprep.subr.bf16.mxu0 0
    %4769 = vmatpush1.bf16.msra.mxu0 %v4453
    %4770 = vmatprep.subr.bf16.mxu0 0
    %4771 = vmatpush1.bf16.msra.mxu0 %v4454
    %4772 = vmatprep.subr.bf16.mxu0 0
    %4773 = vmatpush1.bf16.msra.mxu0 %v4455
    %4774 = vmatprep.subr.bf16.mxu0 0
    %4775 = vmatpush1.bf16.msra.mxu0 %v4456
    %4776 = vmatprep.subr.bf16.mxu0 0
    %4777 = vmatpush1.bf16.msra.mxu0 %v4457
    %4778 = vmatprep.subr.bf16.mxu0 0
    %4779 = vmatpush1.bf16.msra.mxu0 %v4458
    %4780 = vmatprep.subr.bf16.mxu0 0
    %4781 = vmatpush1.bf16.msra.mxu0 %v4459
    %4782 = vmatprep.subr.bf16.mxu0 0
    %4783 = vmatpush1.bf16.msra.mxu0 %v4460
    %4784 = vmatprep.subr.bf16.mxu0 0
    %4785 = vmatpush1.bf16.msra.mxu0 %v4461
    %4786 = vmatprep.subr.bf16.mxu0 0
    %4787 = vmatpush1.bf16.msra.mxu0 %v4462
    %4788 = vmatprep.subr.bf16.mxu0 0
    %4789 = vmatpush1.bf16.msra.mxu0 %v4463
    %4790 = vmatprep.subr.bf16.mxu0 0
    %4791 = vmatpush1.bf16.msra.mxu0 %v4464
    %4792 = vmatprep.subr.bf16.mxu0 0
    %4793 = vmatpush1.bf16.msra.mxu0 %v4465
    %4794 = vmatprep.mubr.bf16.mxu0 %v4433
    %4795 = vmatmul.mubr.bf16.gmra.mrb[0].mxu0 %v4432
    %v4796 = vpop.f32.mrb[0].mxu0
    %v4797 = vadd.f32 %v4757, %v4796
    %v4798 = vpop.f32.mrb[0].mxu0
    %v4799 = vpop.f32.mrb[0].mxu0
    %v4800 = vpop.f32.mrb[0].mxu0
    %4801 = vdwg.mxu0
    %v4802 = vld [vmem:[#allocation4 + $0x40] sm:$0xff]
    %v4803 = vld [vmem:[#allocation4 + $0x48] sm:$0xff]
    %v4804 = vld [vmem:[#allocation4 + $0x50] sm:$0xff]
    %v4805 = vld [vmem:[#allocation4 + $0x58] sm:$0xff]
    %v4806 = vld [vmem:[#allocation4 + $0xc0] sm:$0xff]
    %v4807 = vld [vmem:[#allocation4 + $0xc8] sm:$0xff]
    %v4808 = vld [vmem:[#allocation4 + $0xd0] sm:$0xff]
    %v4809 = vld [vmem:[#allocation4 + $0xd8] sm:$0xff]
    %v4810 = vld [vmem:[#allocation4 + $0x140] sm:$0xff]
    %v4811 = vld [vmem:[#allocation4 + $0x148] sm:$0xff]
    %v4812 = vld [vmem:[#allocation4 + $0x150] sm:$0xff]
    %v4813 = vld [vmem:[#allocation4 + $0x158] sm:$0xff]
    %v4814 = vld [vmem:[#allocation4 + $0x1c0] sm:$0xff]
    %v4815 = vld [vmem:[#allocation4 + $0x1c8] sm:$0xff]
    %v4816 = vld [vmem:[#allocation4 + $0x1d0] sm:$0xff]
    %v4817 = vld [vmem:[#allocation4 + $0x1d8] sm:$0xff]
    %v4818 = vld [vmem:[#allocation4 + $0x240] sm:$0xff]
    %v4819 = vld [vmem:[#allocation4 + $0x248] sm:$0xff]
    %v4820 = vld [vmem:[#allocation4 + $0x250] sm:$0xff]
    %v4821 = vld [vmem:[#allocation4 + $0x258] sm:$0xff]
    %v4822 = vld [vmem:[#allocation4 + $0x2c0] sm:$0xff]
    %v4823 = vld [vmem:[#allocation4 + $0x2c8] sm:$0xff]
    %v4824 = vld [vmem:[#allocation4 + $0x2d0] sm:$0xff]
    %v4825 = vld [vmem:[#allocation4 + $0x2d8] sm:$0xff]
    %v4826 = vld [vmem:[#allocation4 + $0x340] sm:$0xff]
    %v4827 = vld [vmem:[#allocation4 + $0x348] sm:$0xff]
    %v4828 = vld [vmem:[#allocation4 + $0x350] sm:$0xff]
    %v4829 = vld [vmem:[#allocation4 + $0x358] sm:$0xff]
    %v4830 = vld [vmem:[#allocation4 + $0x3c0] sm:$0xff]
    %v4831 = vld [vmem:[#allocation4 + $0x3c8] sm:$0xff]
    %v4832 = vld [vmem:[#allocation4 + $0x3d0] sm:$0xff]
    %v4833 = vld [vmem:[#allocation4 + $0x3d8] sm:$0xff]
    %v4834 = vld [vmem:[%s49 + $0x8] sm:$0xf]
    %v4836 = vlaneseq
    %v4837 = vshrl.u32 %v4836, 7
    %v4838 = vsub.s32 0, %v4837
    %v4839 = vrot.slane %v4834, %v4838
    %v4840 = vlaneseq
    %v4841 = vshrl.u32 %v4840, 7
    %v4842 = vsub.s32 1, %v4841
    %v4843 = vrot.slane %v4834, %v4842
    %v4844 = vlaneseq
    %v4845 = vshrl.u32 %v4844, 7
    %v4846 = vsub.s32 2, %v4845
    %v4847 = vrot.slane %v4834, %v4846
    %v4848 = vlaneseq
    %v4849 = vshrl.u32 %v4848, 7
    %v4850 = vsub.s32 3, %v4849
    %v4851 = vrot.slane %v4834, %v4850
    %4856 = vmatprep.subr.bf16.mxu0 %v4803
    %4857 = vmatpush1.bf16.msra.mxu0 %v4802
    %4858 = vmatprep.subr.bf16.mxu0 %v4807
    %4859 = vmatpush1.bf16.msra.mxu0 %v4806
    %4860 = vmatprep.subr.bf16.mxu0 %v4811
    %4861 = vmatpush1.bf16.msra.mxu0 %v4810
    %4862 = vmatprep.subr.bf16.mxu0 %v4815
    %4863 = vmatpush1.bf16.msra.mxu0 %v4814
    %4864 = vmatprep.subr.bf16.mxu0 %v4819
    %4865 = vmatpush1.bf16.msra.mxu0 %v4818
    %4866 = vmatprep.subr.bf16.mxu0 %v4823
    %4867 = vmatpush1.bf16.msra.mxu0 %v4822
    %4868 = vmatprep.subr.bf16.mxu0 %v4827
    %4869 = vmatpush1.bf16.msra.mxu0 %v4826
    %4870 = vmatprep.subr.bf16.mxu0 %v4831
    %4871 = vmatpush1.bf16.msra.mxu0 %v4830
    %4872 = vmatprep.subr.bf16.mxu0 0
    %4873 = vmatpush1.bf16.msra.mxu0 0
    %4874 = vmatprep.subr.bf16.mxu0 0
    %4875 = vmatpush1.bf16.msra.mxu0 0
    %4876 = vmatprep.subr.bf16.mxu0 0
    %4877 = vmatpush1.bf16.msra.mxu0 0
    %4878 = vmatprep.subr.bf16.mxu0 0
    %4879 = vmatpush1.bf16.msra.mxu0 0
    %4880 = vmatprep.subr.bf16.mxu0 0
    %4881 = vmatpush1.bf16.msra.mxu0 0
    %4882 = vmatprep.subr.bf16.mxu0 0
    %4883 = vmatpush1.bf16.msra.mxu0 0
    %4884 = vmatprep.subr.bf16.mxu0 0
    %4885 = vmatpush1.bf16.msra.mxu0 0
    %4886 = vmatprep.subr.bf16.mxu0 0
    %4887 = vmatpush1.bf16.msra.mxu0 0
    %4888 = vmatprep.mubr.bf16.mxu0 0
    %4889 = vmatmul.mubr.bf16.gmra.mrb[0].mxu0 %v4289
    %v4890 = vpop.f32.mrb[0].mxu0
    %v4891 = vadd.f32 %v4839, %v4890
    %v4892 = vpop.f32.mrb[0].mxu0
    %v4893 = vadd.f32 %v4843, %v4892
    %v4894 = vpop.f32.mrb[0].mxu0
    %v4895 = vpop.f32.mrb[0].mxu0
    %4896 = vdwg.mxu0
    %4897 = vmatprep.subr.bf16.mxu0 %v4805
    %4898 = vmatpush1.bf16.msra.mxu0 %v4804
    %4899 = vmatprep.subr.bf16.mxu0 %v4809
    %4900 = vmatpush1.bf16.msra.mxu0 %v4808
    %4901 = vmatprep.subr.bf16.mxu0 %v4813
    %4902 = vmatpush1.bf16.msra.mxu0 %v4812
    %4903 = vmatprep.subr.bf16.mxu0 %v4817
    %4904 = vmatpush1.bf16.msra.mxu0 %v4816
    %4905 = vmatprep.subr.bf16.mxu0 %v4821
    %4906 = vmatpush1.bf16.msra.mxu0 %v4820
    %4907 = vmatprep.subr.bf16.mxu0 %v4825
    %4908 = vmatpush1.bf16.msra.mxu0 %v4824
    %4909 = vmatprep.subr.bf16.mxu0 %v4829
    %4910 = vmatpush1.bf16.msra.mxu0 %v4828
    %4911 = vmatprep.subr.bf16.mxu0 %v4833
    %4912 = vmatpush1.bf16.msra.mxu0 %v4832
    %4913 = vmatprep.subr.bf16.mxu0 0
    %4914 = vmatpush1.bf16.msra.mxu0 0
    %4915 = vmatprep.subr.bf16.mxu0 0
    %4916 = vmatpush1.bf16.msra.mxu0 0
    %4917 = vmatprep.subr.bf16.mxu0 0
    %4918 = vmatpush1.bf16.msra.mxu0 0
    %4919 = vmatprep.subr.bf16.mxu0 0
    %4920 = vmatpush1.bf16.msra.mxu0 0
    %4921 = vmatprep.subr.bf16.mxu0 0
    %4922 = vmatpush1.bf16.msra.mxu0 0
    %4923 = vmatprep.subr.bf16.mxu0 0
    %4924 = vmatpush1.bf16.msra.mxu0 0
    %4925 = vmatprep.subr.bf16.mxu0 0
    %4926 = vmatpush1.bf16.msra.mxu0 0
    %4927 = vmatprep.subr.bf16.mxu0 0
    %4928 = vmatpush1.bf16.msra.mxu0 0
    %4929 = vmatprep.mubr.bf16.mxu0 0
    %4930 = vmatmul.mubr.bf16.gmra.mrb[0].mxu0 %v4289
    %v4931 = vpop.f32.mrb[0].mxu0
    %v4932 = vadd.f32 %v4847, %v4931
    %v4933 = vpop.f32.mrb[0].mxu0
    %v4934 = vadd.f32 %v4851, %v4933
    %v4935 = vpop.f32.mrb[0].mxu0
    %v4936 = vpop.f32.mrb[0].mxu0
    %4937 = vdwg.mxu0
    %v4938 = vmax.f32 %v4891, 0.0
    %v4939 = vmax.f32 %v4893, 0.0
    %v4940 = vmax.f32 %v4932, 0.0
    %v4941 = vmax.f32 %v4934, 0.0
    %v4942 = vpack.c.bf16 %v4938, %v4938
    %v4943 = vpack.c.bf16 %v4939, %v4939
    %v4944 = vpack.c.bf16 %v4940, %v4940
    %v4945 = vpack.c.bf16 %v4941, %v4941
    %v4946 = vld [vmem:[#allocation5 + $0x200] sm:$0xff]
    %v4947 = vld [vmem:[#allocation5 + $0x208] sm:$0xff]
    %v4948 = vld [vmem:[#allocation5 + $0x210] sm:$0xff]
    %v4949 = vld [vmem:[#allocation5 + $0x218] sm:$0xff]
    %v4950 = vld [vmem:[#allocation5 + $0x220] sm:$0xff]
    %v4951 = vld [vmem:[#allocation5 + $0x228] sm:$0xff]
    %v4952 = vld [vmem:[#allocation5 + $0x230] sm:$0xff]
    %v4953 = vld [vmem:[#allocation5 + $0x238] sm:$0xff]
    %v4954 = vld [vmem:[#allocation5 + $0x240] sm:$0xff]
    %v4955 = vld [vmem:[#allocation5 + $0x248] sm:$0xff]
    %v4956 = vld [vmem:[#allocation5 + $0x250] sm:$0xff]
    %v4957 = vld [vmem:[#allocation5 + $0x258] sm:$0xff]
    %v4958 = vld [vmem:[#allocation5 + $0x260] sm:$0xff]
    %v4959 = vld [vmem:[#allocation5 + $0x268] sm:$0xff]
    %v4960 = vld [vmem:[#allocation5 + $0x270] sm:$0xff]
    %v4961 = vld [vmem:[#allocation5 + $0x278] sm:$0xff]
    %v4962 = vld [vmem:[#allocation5 + $0x280] sm:$0xff]
    %v4963 = vld [vmem:[#allocation5 + $0x288] sm:$0xff]
    %v4964 = vld [vmem:[#allocation5 + $0x290] sm:$0xff]
    %v4965 = vld [vmem:[#allocation5 + $0x298] sm:$0xff]
    %v4966 = vld [vmem:[#allocation5 + $0x2a0] sm:$0xff]
    %v4967 = vld [vmem:[#allocation5 + $0x2a8] sm:$0xff]
    %v4968 = vld [vmem:[#allocation5 + $0x2b0] sm:$0xff]
    %v4969 = vld [vmem:[#allocation5 + $0x2b8] sm:$0xff]
    %v4970 = vld [vmem:[#allocation5 + $0x2c0] sm:$0xff]
    %v4971 = vld [vmem:[#allocation5 + $0x2c8] sm:$0xff]
    %v4972 = vld [vmem:[#allocation5 + $0x2d0] sm:$0xff]
    %v4973 = vld [vmem:[#allocation5 + $0x2d8] sm:$0xff]
    %v4974 = vld [vmem:[#allocation5 + $0x2e0] sm:$0xff]
    %v4975 = vld [vmem:[#allocation5 + $0x2e8] sm:$0xff]
    %v4976 = vld [vmem:[#allocation5 + $0x2f0] sm:$0xff]
    %v4977 = vld [vmem:[#allocation5 + $0x2f8] sm:$0xff]
    %4978 = vmatprep.subr.bf16.mxu0 0
    %4979 = vmatpush1.bf16.msra.mxu0 %v4946
    %4980 = vmatprep.subr.bf16.mxu0 0
    %4981 = vmatpush1.bf16.msra.mxu0 %v4947
    %4982 = vmatprep.subr.bf16.mxu0 0
    %4983 = vmatpush1.bf16.msra.mxu0 %v4948
    %4984 = vmatprep.subr.bf16.mxu0 0
    %4985 = vmatpush1.bf16.msra.mxu0 %v4949
    %4986 = vmatprep.subr.bf16.mxu0 0
    %4987 = vmatpush1.bf16.msra.mxu0 %v4950
    %4988 = vmatprep.subr.bf16.mxu0 0
    %4989 = vmatpush1.bf16.msra.mxu0 %v4951
    %4990 = vmatprep.subr.bf16.mxu0 0
    %4991 = vmatpush1.bf16.msra.mxu0 %v4952
    %4992 = vmatprep.subr.bf16.mxu0 0
    %4993 = vmatpush1.bf16.msra.mxu0 %v4953
    %4994 = vmatprep.subr.bf16.mxu0 0
    %4995 = vmatpush1.bf16.msra.mxu0 %v4954
    %4996 = vmatprep.subr.bf16.mxu0 0
    %4997 = vmatpush1.bf16.msra.mxu0 %v4955
    %4998 = vmatprep.subr.bf16.mxu0 0
    %4999 = vmatpush1.bf16.msra.mxu0 %v4956
    %5000 = vmatprep.subr.bf16.mxu0 0
    %5001 = vmatpush1.bf16.msra.mxu0 %v4957
    %5002 = vmatprep.subr.bf16.mxu0 0
    %5003 = vmatpush1.bf16.msra.mxu0 %v4958
    %5004 = vmatprep.subr.bf16.mxu0 0
    %5005 = vmatpush1.bf16.msra.mxu0 %v4959
    %5006 = vmatprep.subr.bf16.mxu0 0
    %5007 = vmatpush1.bf16.msra.mxu0 %v4960
    %5008 = vmatprep.subr.bf16.mxu0 0
    %5009 = vmatpush1.bf16.msra.mxu0 %v4961
    %5010 = vmatprep.mubr.bf16.mxu0 %v4943
    %5011 = vmatmul.mubr.bf16.gmra.mrb[0].mxu0 %v4942
    %v5012 = vpop.f32.mrb[0].mxu0
    %v5013 = vadd.f32 0.0, %v5012
    %v5014 = vpop.f32.mrb[0].mxu0
    %v5015 = vpop.f32.mrb[0].mxu0
    %v5016 = vpop.f32.mrb[0].mxu0
    %5017 = vdwg.mxu0
    %5018 = vmatprep.subr.bf16.mxu0 0
    %5019 = vmatpush1.bf16.msra.mxu0 %v4962
    %5020 = vmatprep.subr.bf16.mxu0 0
    %5021 = vmatpush1.bf16.msra.mxu0 %v4963
    %5022 = vmatprep.subr.bf16.mxu0 0
    %5023 = vmatpush1.bf16.msra.mxu0 %v4964
    %5024 = vmatprep.subr.bf16.mxu0 0
    %5025 = vmatpush1.bf16.msra.mxu0 %v4965
    %5026 = vmatprep.subr.bf16.mxu0 0
    %5027 = vmatpush1.bf16.msra.mxu0 %v4966
    %5028 = vmatprep.subr.bf16.mxu0 0
    %5029 = vmatpush1.bf16.msra.mxu0 %v4967
    %5030 = vmatprep.subr.bf16.mxu0 0
    %5031 = vmatpush1.bf16.msra.mxu0 %v4968
    %5032 = vmatprep.subr.bf16.mxu0 0
    %5033 = vmatpush1.bf16.msra.mxu0 %v4969
    %5034 = vmatprep.subr.bf16.mxu0 0
    %5035 = vmatpush1.bf16.msra.mxu0 %v4970
    %5036 = vmatprep.subr.bf16.mxu0 0
    %5037 = vmatpush1.bf16.msra.mxu0 %v4971
    %5038 = vmatprep.subr.bf16.mxu0 0
    %5039 = vmatpush1.bf16.msra.mxu0 %v4972
    %5040 = vmatprep.subr.bf16.mxu0 0
    %5041 = vmatpush1.bf16.msra.mxu0 %v4973
    %5042 = vmatprep.subr.bf16.mxu0 0
    %5043 = vmatpush1.bf16.msra.mxu0 %v4974
    %5044 = vmatprep.subr.bf16.mxu0 0
    %5045 = vmatpush1.bf16.msra.mxu0 %v4975
    %5046 = vmatprep.subr.bf16.mxu0 0
    %5047 = vmatpush1.bf16.msra.mxu0 %v4976
    %5048 = vmatprep.subr.bf16.mxu0 0
    %5049 = vmatpush1.bf16.msra.mxu0 %v4977
    %5050 = vmatprep.mubr.bf16.mxu0 %v4945
    %5051 = vmatmul.mubr.bf16.gmra.mrb[0].mxu0 %v4944
    %v5052 = vpop.f32.mrb[0].mxu0
    %v5053 = vadd.f32 %v5013, %v5052
    %v5054 = vpop.f32.mrb[0].mxu0
    %v5055 = vpop.f32.mrb[0].mxu0
    %v5056 = vpop.f32.mrb[0].mxu0
    %5057 = vdwg.mxu0
    %v5058 = vadd.f32 %v4797, %v5053
    %v5059 = vld [vmem:[#allocation4 + $0x60] sm:$0xff]
    %v5060 = vld [vmem:[#allocation4 + $0x68] sm:$0xff]
    %v5061 = vld [vmem:[#allocation4 + $0x70] sm:$0xff]
    %v5062 = vld [vmem:[#allocation4 + $0x78] sm:$0xff]
    %v5063 = vld [vmem:[#allocation4 + $0xe0] sm:$0xff]
    %v5064 = vld [vmem:[#allocation4 + $0xe8] sm:$0xff]
    %v5065 = vld [vmem:[#allocation4 + $0xf0] sm:$0xff]
    %v5066 = vld [vmem:[#allocation4 + $0xf8] sm:$0xff]
    %v5067 = vld [vmem:[#allocation4 + $0x160] sm:$0xff]
    %v5068 = vld [vmem:[#allocation4 + $0x168] sm:$0xff]
    %v5069 = vld [vmem:[#allocation4 + $0x170] sm:$0xff]
    %v5070 = vld [vmem:[#allocation4 + $0x178] sm:$0xff]
    %v5071 = vld [vmem:[#allocation4 + $0x1e0] sm:$0xff]
    %v5072 = vld [vmem:[#allocation4 + $0x1e8] sm:$0xff]
    %v5073 = vld [vmem:[#allocation4 + $0x1f0] sm:$0xff]
    %v5074 = vld [vmem:[#allocation4 + $0x1f8] sm:$0xff]
    %v5075 = vld [vmem:[#allocation4 + $0x260] sm:$0xff]
    %v5076 = vld [vmem:[#allocation4 + $0x268] sm:$0xff]
    %v5077 = vld [vmem:[#allocation4 + $0x270] sm:$0xff]
    %v5078 = vld [vmem:[#allocation4 + $0x278] sm:$0xff]
    %v5079 = vld [vmem:[#allocation4 + $0x2e0] sm:$0xff]
    %v5080 = vld [vmem:[#allocation4 + $0x2e8] sm:$0xff]
    %v5081 = vld [vmem:[#allocation4 + $0x2f0] sm:$0xff]
    %v5082 = vld [vmem:[#allocation4 + $0x2f8] sm:$0xff]
    %v5083 = vld [vmem:[#allocation4 + $0x360] sm:$0xff]
    %v5084 = vld [vmem:[#allocation4 + $0x368] sm:$0xff]
    %v5085 = vld [vmem:[#allocation4 + $0x370] sm:$0xff]
    %v5086 = vld [vmem:[#allocation4 + $0x378] sm:$0xff]
    %v5087 = vld [vmem:[#allocation4 + $0x3e0] sm:$0xff]
    %v5088 = vld [vmem:[#allocation4 + $0x3e8] sm:$0xff]
    %v5089 = vld [vmem:[#allocation4 + $0x3f0] sm:$0xff]
    %v5090 = vld [vmem:[#allocation4 + $0x3f8] sm:$0xff]
    %v5091 = vld [vmem:[%s49 + $0xc] sm:$0xf]
    %v5093 = vlaneseq
    %v5094 = vshrl.u32 %v5093, 7
    %v5095 = vsub.s32 0, %v5094
    %v5096 = vrot.slane %v5091, %v5095
    %v5097 = vlaneseq
    %v5098 = vshrl.u32 %v5097, 7
    %v5099 = vsub.s32 1, %v5098
    %v5100 = vrot.slane %v5091, %v5099
    %v5101 = vlaneseq
    %v5102 = vshrl.u32 %v5101, 7
    %v5103 = vsub.s32 2, %v5102
    %v5104 = vrot.slane %v5091, %v5103
    %v5105 = vlaneseq
    %v5106 = vshrl.u32 %v5105, 7
    %v5107 = vsub.s32 3, %v5106
    %v5108 = vrot.slane %v5091, %v5107
    %5113 = vmatprep.subr.bf16.mxu0 %v5060
    %5114 = vmatpush1.bf16.msra.mxu0 %v5059
    %5115 = vmatprep.subr.bf16.mxu0 %v5064
    %5116 = vmatpush1.bf16.msra.mxu0 %v5063
    %5117 = vmatprep.subr.bf16.mxu0 %v5068
    %5118 = vmatpush1.bf16.msra.mxu0 %v5067
    %5119 = vmatprep.subr.bf16.mxu0 %v5072
    %5120 = vmatpush1.bf16.msra.mxu0 %v5071
    %5121 = vmatprep.subr.bf16.mxu0 %v5076
    %5122 = vmatpush1.bf16.msra.mxu0 %v5075
    %5123 = vmatprep.subr.bf16.mxu0 %v5080
    %5124 = vmatpush1.bf16.msra.mxu0 %v5079
    %5125 = vmatprep.subr.bf16.mxu0 %v5084
    %5126 = vmatpush1.bf16.msra.mxu0 %v5083
    %5127 = vmatprep.subr.bf16.mxu0 %v5088
    %5128 = vmatpush1.bf16.msra.mxu0 %v5087
    %5129 = vmatprep.subr.bf16.mxu0 0
    %5130 = vmatpush1.bf16.msra.mxu0 0
    %5131 = vmatprep.subr.bf16.mxu0 0
    %5132 = vmatpush1.bf16.msra.mxu0 0
    %5133 = vmatprep.subr.bf16.mxu0 0
    %5134 = vmatpush1.bf16.msra.mxu0 0
    %5135 = vmatprep.subr.bf16.mxu0 0
    %5136 = vmatpush1.bf16.msra.mxu0 0
    %5137 = vmatprep.subr.bf16.mxu0 0
    %5138 = vmatpush1.bf16.msra.mxu0 0
    %5139 = vmatprep.subr.bf16.mxu0 0
    %5140 = vmatpush1.bf16.msra.mxu0 0
    %5141 = vmatprep.subr.bf16.mxu0 0
    %5142 = vmatpush1.bf16.msra.mxu0 0
    %5143 = vmatprep.subr.bf16.mxu0 0
    %5144 = vmatpush1.bf16.msra.mxu0 0
    %5145 = vmatprep.mubr.bf16.mxu0 0
    %5146 = vmatmul.mubr.bf16.gmra.mrb[0].mxu0 %v4289
    %v5147 = vpop.f32.mrb[0].mxu0
    %v5148 = vadd.f32 %v5096, %v5147
    %v5149 = vpop.f32.mrb[0].mxu0
    %v5150 = vadd.f32 %v5100, %v5149
    %v5151 = vpop.f32.mrb[0].mxu0
    %v5152 = vpop.f32.mrb[0].mxu0
    %5153 = vdwg.mxu0
    %5154 = vmatprep.subr.bf16.mxu0 %v5062
    %5155 = vmatpush1.bf16.msra.mxu0 %v5061
    %5156 = vmatprep.subr.bf16.mxu0 %v5066
    %5157 = vmatpush1.bf16.msra.mxu0 %v5065
    %5158 = vmatprep.subr.bf16.mxu0 %v5070
    %5159 = vmatpush1.bf16.msra.mxu0 %v5069
    %5160 = vmatprep.subr.bf16.mxu0 %v5074
    %5161 = vmatpush1.bf16.msra.mxu0 %v5073
    %5162 = vmatprep.subr.bf16.mxu0 %v5078
    %5163 = vmatpush1.bf16.msra.mxu0 %v5077
    %5164 = vmatprep.subr.bf16.mxu0 %v5082
    %5165 = vmatpush1.bf16.msra.mxu0 %v5081
    %5166 = vmatprep.subr.bf16.mxu0 %v5086
    %5167 = vmatpush1.bf16.msra.mxu0 %v5085
    %5168 = vmatprep.subr.bf16.mxu0 %v5090
    %5169 = vmatpush1.bf16.msra.mxu0 %v5089
    %5170 = vmatprep.subr.bf16.mxu0 0
    %5171 = vmatpush1.bf16.msra.mxu0 0
    %5172 = vmatprep.subr.bf16.mxu0 0
    %5173 = vmatpush1.bf16.msra.mxu0 0
    %5174 = vmatprep.subr.bf16.mxu0 0
    %5175 = vmatpush1.bf16.msra.mxu0 0
    %5176 = vmatprep.subr.bf16.mxu0 0
    %5177 = vmatpush1.bf16.msra.mxu0 0
    %5178 = vmatprep.subr.bf16.mxu0 0
    %5179 = vmatpush1.bf16.msra.mxu0 0
    %5180 = vmatprep.subr.bf16.mxu0 0
    %5181 = vmatpush1.bf16.msra.mxu0 0
    %5182 = vmatprep.subr.bf16.mxu0 0
    %5183 = vmatpush1.bf16.msra.mxu0 0
    %5184 = vmatprep.subr.bf16.mxu0 0
    %5185 = vmatpush1.bf16.msra.mxu0 0
    %5186 = vmatprep.mubr.bf16.mxu0 0
    %5187 = vmatmul.mubr.bf16.gmra.mrb[0].mxu0 %v4289
    %v5188 = vpop.f32.mrb[0].mxu0
    %v5189 = vadd.f32 %v5104, %v5188
    %v5190 = vpop.f32.mrb[0].mxu0
    %v5191 = vadd.f32 %v5108, %v5190
    %v5192 = vpop.f32.mrb[0].mxu0
    %v5193 = vpop.f32.mrb[0].mxu0
    %5194 = vdwg.mxu0
    %v5195 = vmax.f32 %v5148, 0.0
    %v5196 = vmax.f32 %v5150, 0.0
    %v5197 = vmax.f32 %v5189, 0.0
    %v5198 = vmax.f32 %v5191, 0.0
    %v5199 = vpack.c.bf16 %v5195, %v5195
    %v5200 = vpack.c.bf16 %v5196, %v5196
    %v5201 = vpack.c.bf16 %v5197, %v5197
    %v5202 = vpack.c.bf16 %v5198, %v5198
    %v5203 = vld [vmem:[#allocation5 + $0x300] sm:$0xff]
    %v5204 = vld [vmem:[#allocation5 + $0x308] sm:$0xff]
    %v5205 = vld [vmem:[#allocation5 + $0x310] sm:$0xff]
    %v5206 = vld [vmem:[#allocation5 + $0x318] sm:$0xff]
    %v5207 = vld [vmem:[#allocation5 + $0x320] sm:$0xff]
    %v5208 = vld [vmem:[#allocation5 + $0x328] sm:$0xff]
    %v5209 = vld [vmem:[#allocation5 + $0x330] sm:$0xff]
    %v5210 = vld [vmem:[#allocation5 + $0x338] sm:$0xff]
    %v5211 = vld [vmem:[#allocation5 + $0x340] sm:$0xff]
    %v5212 = vld [vmem:[#allocation5 + $0x348] sm:$0xff]
    %v5213 = vld [vmem:[#allocation5 + $0x350] sm:$0xff]
    %v5214 = vld [vmem:[#allocation5 + $0x358] sm:$0xff]
    %v5215 = vld [vmem:[#allocation5 + $0x360] sm:$0xff]
    %v5216 = vld [vmem:[#allocation5 + $0x368] sm:$0xff]
    %v5217 = vld [vmem:[#allocation5 + $0x370] sm:$0xff]
    %v5218 = vld [vmem:[#allocation5 + $0x378] sm:$0xff]
    %v5219 = vld [vmem:[#allocation5 + $0x380] sm:$0xff]
    %v5220 = vld [vmem:[#allocation5 + $0x388] sm:$0xff]
    %v5221 = vld [vmem:[#allocation5 + $0x390] sm:$0xff]
    %v5222 = vld [vmem:[#allocation5 + $0x398] sm:$0xff]
    %v5223 = vld [vmem:[#allocation5 + $0x3a0] sm:$0xff]
    %v5224 = vld [vmem:[#allocation5 + $0x3a8] sm:$0xff]
    %v5225 = vld [vmem:[#allocation5 + $0x3b0] sm:$0xff]
    %v5226 = vld [vmem:[#allocation5 + $0x3b8] sm:$0xff]
    %v5227 = vld [vmem:[#allocation5 + $0x3c0] sm:$0xff]
    %v5228 = vld [vmem:[#allocation5 + $0x3c8] sm:$0xff]
    %v5229 = vld [vmem:[#allocation5 + $0x3d0] sm:$0xff]
    %v5230 = vld [vmem:[#allocation5 + $0x3d8] sm:$0xff]
    %v5231 = vld [vmem:[#allocation5 + $0x3e0] sm:$0xff]
    %v5232 = vld [vmem:[#allocation5 + $0x3e8] sm:$0xff]
    %v5233 = vld [vmem:[#allocation5 + $0x3f0] sm:$0xff]
    %v5234 = vld [vmem:[#allocation5 + $0x3f8] sm:$0xff]
    %5235 = vmatprep.subr.bf16.mxu0 0
    %5236 = vmatpush1.bf16.msra.mxu0 %v5203
    %5237 = vmatprep.subr.bf16.mxu0 0
    %5238 = vmatpush1.bf16.msra.mxu0 %v5204
    %5239 = vmatprep.subr.bf16.mxu0 0
    %5240 = vmatpush1.bf16.msra.mxu0 %v5205
    %5241 = vmatprep.subr.bf16.mxu0 0
    %5242 = vmatpush1.bf16.msra.mxu0 %v5206
    %5243 = vmatprep.subr.bf16.mxu0 0
    %5244 = vmatpush1.bf16.msra.mxu0 %v5207
    %5245 = vmatprep.subr.bf16.mxu0 0
    %5246 = vmatpush1.bf16.msra.mxu0 %v5208
    %5247 = vmatprep.subr.bf16.mxu0 0
    %5248 = vmatpush1.bf16.msra.mxu0 %v5209
    %5249 = vmatprep.subr.bf16.mxu0 0
    %5250 = vmatpush1.bf16.msra.mxu0 %v5210
    %5251 = vmatprep.subr.bf16.mxu0 0
    %5252 = vmatpush1.bf16.msra.mxu0 %v5211
    %5253 = vmatprep.subr.bf16.mxu0 0
    %5254 = vmatpush1.bf16.msra.mxu0 %v5212
    %5255 = vmatprep.subr.bf16.mxu0 0
    %5256 = vmatpush1.bf16.msra.mxu0 %v5213
    %5257 = vmatprep.subr.bf16.mxu0 0
    %5258 = vmatpush1.bf16.msra.mxu0 %v5214
    %5259 = vmatprep.subr.bf16.mxu0 0
    %5260 = vmatpush1.bf16.msra.mxu0 %v5215
    %5261 = vmatprep.subr.bf16.mxu0 0
    %5262 = vmatpush1.bf16.msra.mxu0 %v5216
    %5263 = vmatprep.subr.bf16.mxu0 0
    %5264 = vmatpush1.bf16.msra.mxu0 %v5217
    %5265 = vmatprep.subr.bf16.mxu0 0
    %5266 = vmatpush1.bf16.msra.mxu0 %v5218
    %5267 = vmatprep.mubr.bf16.mxu0 %v5200
    %5268 = vmatmul.mubr.bf16.gmra.mrb[0].mxu0 %v5199
    %v5269 = vpop.f32.mrb[0].mxu0
    %v5270 = vadd.f32 0.0, %v5269
    %v5271 = vpop.f32.mrb[0].mxu0
    %v5272 = vpop.f32.mrb[0].mxu0
    %v5273 = vpop.f32.mrb[0].mxu0
    %5274 = vdwg.mxu0
    %5275 = vmatprep.subr.bf16.mxu0 0
    %5276 = vmatpush1.bf16.msra.mxu0 %v5219
    %5277 = vmatprep.subr.bf16.mxu0 0
    %5278 = vmatpush1.bf16.msra.mxu0 %v5220
    %5279 = vmatprep.subr.bf16.mxu0 0
    %5280 = vmatpush1.bf16.msra.mxu0 %v5221
    %5281 = vmatprep.subr.bf16.mxu0 0
    %5282 = vmatpush1.bf16.msra.mxu0 %v5222
    %5283 = vmatprep.subr.bf16.mxu0 0
    %5284 = vmatpush1.bf16.msra.mxu0 %v5223
    %5285 = vmatprep.subr.bf16.mxu0 0
    %5286 = vmatpush1.bf16.msra.mxu0 %v5224
    %5287 = vmatprep.subr.bf16.mxu0 0
    %5288 = vmatpush1.bf16.msra.mxu0 %v5225
    %5289 = vmatprep.subr.bf16.mxu0 0
    %5290 = vmatpush1.bf16.msra.mxu0 %v5226
    %5291 = vmatprep.subr.bf16.mxu0 0
    %5292 = vmatpush1.bf16.msra.mxu0 %v5227
    %5293 = vmatprep.subr.bf16.mxu0 0
    %5294 = vmatpush1.bf16.msra.mxu0 %v5228
    %5295 = vmatprep.subr.bf16.mxu0 0
    %5296 = vmatpush1.bf16.msra.mxu0 %v5229
    %5297 = vmatprep.subr.bf16.mxu0 0
    %5298 = vmatpush1.bf16.msra.mxu0 %v5230
    %5299 = vmatprep.subr.bf16.mxu0 0
    %5300 = vmatpush1.bf16.msra.mxu0 %v5231
    %5301 = vmatprep.subr.bf16.mxu0 0
    %5302 = vmatpush1.bf16.msra.mxu0 %v5232
    %5303 = vmatprep.subr.bf16.mxu0 0
    %5304 = vmatpush1.bf16.msra.mxu0 %v5233
    %5305 = vmatprep.subr.bf16.mxu0 0
    %5306 = vmatpush1.bf16.msra.mxu0 %v5234
    %5307 = vmatprep.mubr.bf16.mxu0 %v5202
    %5308 = vmatmul.mubr.bf16.gmra.mrb[0].mxu0 %v5201
    %v5309 = vpop.f32.mrb[0].mxu0
    %v5310 = vadd.f32 %v5270, %v5309
    %v5311 = vpop.f32.mrb[0].mxu0
    %v5312 = vpop.f32.mrb[0].mxu0
    %v5313 = vpop.f32.mrb[0].mxu0
    %5314 = vdwg.mxu0
    %v5315 = vadd.f32 %v5058, %v5310
    %v5316 = vadd.f32 %v4284, %v5315
    %v5317 = vld [vmem:[#allocation31] sm:$0x1]
    %v5319 = vlaneseq
    %v5320 = vshrl.u32 %v5319, 7
    %v5321 = vsub.s32 0, %v5320
    %v5322 = vrot.slane %v5317, %v5321
    %v5324 = vadd.f32 %v5316, %v5322
    %v5325 = vld [vmem:[#allocation33] sm:$0x1]
    %v5326 = vld [vmem:[#allocation34] sm:$0x1]
    %v5327 = vsel %vm4257, %v5324, 0.0
    %5328 = vadd.xlane.f32.xlu0 %v5327
    %v5329 = vpop.xlane.xlu0 %5328
    %v5330 = vmul.f32 %v5329, %v1792
    %v5331 = vsub.f32 %v5324, %v5330
    %v5332 = vmul.f32 %v5331, %v5331
    %v5333 = vsel %vm4257, %v5332, 0.0
    %5334 = vadd.xlane.f32.xlu0 %v5333
    %v5335 = vpop.xlane.xlu0 %5334
    %v5336 = vmul.f32 %v5335, %v1792
    %v5337 = vadd.f32 %v5336, 1e-05
    %v5338 = vrsqrt.pop %v5337
    %v5339 = vmul.f32 %v5331, %v5338
    %v5341 = vlaneseq
    %v5342 = vshrl.u32 %v5341, 7
    %v5343 = vsub.s32 0, %v5342
    %v5344 = vrot.slane %v5325, %v5343
    %v5346 = vmul.f32 %v5339, %v5344
    %v5348 = vlaneseq
    %v5349 = vshrl.u32 %v5348, 7
    %v5350 = vsub.s32 0, %v5349
    %v5351 = vrot.slane %v5326, %v5350
    %v5353 = vadd.f32 %v5346, %v5351
    %5354 = vst [vmem:[#allocation36] sm:$0x3] %v5353
    // Predicated region
    $region182: #{temporal_layer_forward.1} parent=1 // pred_check
      _
    $region183: #{temporal_layer_forward.1} parent=1 // pred_check_branch
      %5356 = sbr.rel (0) target = $region185
    $region184: #{temporal_layer_forward.1} parent=1 // pred_region
      %s5358 = ssub.s32 32, 32
      %5359 = vsyncadd [#allocation9], %s5358
      %s5361 = sshll.u32 [#allocation36], 4
      %s5362 = int_to_ptr.vmem [resolvable:$true] %s5361
      %5364 = dma.vmem_to_hbm [thread:$0]  %s5362, 32, %s59, [#allocation9]
    $region185: #{temporal_layer_forward.1} parent=1 // pred_fallthru
      _
    // Predicated region
    $region186: #{temporal_layer_forward.1} parent=1 // pred_check
      _
    $region187: #{temporal_layer_forward.1} parent=1 // pred_check_branch
      %5366 = sbr.rel (0) target = $region189
    $region188: #{temporal_layer_forward.1} parent=1 // pred_region
      %5367 = dma.done [#allocation9], 32
    $region189: #{temporal_layer_forward.1} parent=1 // pred_fallthru
      _
    %5368 = vsyncpa [#allocation8], 1
    %5369 = vsyncpa [#allocation11], 1
    %5370 = vsyncpa [#allocation14], 1
    %5371 = vsyncpa [#allocation17], 1
    %5372 = vsyncpa [#allocation20], 1
    %5373 = vsyncpa [#allocation23], 1
    %5374 = vsyncpa [#allocation26], 1
    %5375 = vsyncpa [#allocation29], 1
    %5376 = vsyncpa [#allocation32], 1
    %5377 = vsyncpa [#allocation35], 1
    %5378 = vsyncpa [#allocation9], 1
  %5379 = vsyncmov [#allocation6]
  %s5380 = vpop.sfrf %5379
  %p5381 = scmp.eq.s32.totalorder %s5380, 0
  %p5382 = pneg %p5381
  %5384 = shalt.err (%p5382)
  %s5385 = scalar_lea.sflag [#allocation6], 1
  %5386 = vsyncmov %s5385
  %s5387 = vpop.sfrf %5386
  %p5388 = scmp.eq.s32.totalorder %s5387, 0
  %p5389 = pneg %p5388
  %5391 = shalt.err (%p5389)
  %s5392 = scalar_lea.sflag [#allocation6], 2
  %5393 = vsyncmov %s5392
  %s5394 = vpop.sfrf %5393
  %p5395 = scmp.eq.s32.totalorder %s5394, 0
  %p5396 = pneg %p5395
  %5398 = shalt.err (%p5396)
  %s5399 = scalar_lea.sflag [#allocation6], 3
  %5400 = vsyncmov %s5399
  %s5401 = vpop.sfrf %5400
  %p5402 = scmp.eq.s32.totalorder %s5401, 0
  %p5403 = pneg %p5402
  %5405 = shalt.err (%p5403)

</llo_original>
